<compile_context>
chip_gen: v6e
topology: v6e:2x2x1
jax: 0.10.0
libtpu: 0.0.40
codegen_flags: <defaults>
</compile_context>

<pallas_src>
import jax
import jax.numpy as jnp
import numpy as np
from jax.experimental import pallas as pl
from jax.experimental.pallas import tpu as pltpu

KSIZE = 5
PAD = 2
LANE = 128


def _encoder_kernel(x_ref, w1_ref, b1_ref, w2_ref, b2_ref, o_ref,
                    xp1_ref, xp2_ref):
    # x_ref : (1, H, W, C0)        one batch element (NHWC), f32
    # w1_ref: (25*C0, C1)          conv1 weights in im2col (kh,kw,cin) order
    # b1_ref: (1, C1)
    # w2_ref: (25*C1, C2p)         conv2 weights, Cout zero-padded to C2p
    # b2_ref: (1, C2p)
    # o_ref : (1, H*W, C2p)        full-lane output tile
    # xp1_ref: (H+4, W+4, C0) VMEM zero-padded conv1 input
    # xp2_ref: (H+4, W+4, C1) VMEM zero-padded conv1 output (conv2 input)
    Hp, Wp, C0 = xp1_ref.shape
    H = Hp - 2 * PAD
    W = Wp - 2 * PAD
    C1 = xp2_ref.shape[2]
    C2p = b2_ref.shape[1]

    def im2col(xp_ref, cin):
        # (H*W, 25*cin): minor-dim-preserving slices + one lane concatenation.
        patches = [
            xp_ref[kh:kh + H, kw:kw + W, :].reshape(H * W, cin)
            for kh in range(KSIZE) for kw in range(KSIZE)
        ]
        return jnp.concatenate(patches, axis=1)

    def conv_bias_relu(col_f32, w_ref, b_ref):
        # bf16 MXU operands (single-pass, native on all TPU gens), f32 accumulate.
        acc = jnp.dot(col_f32.astype(jnp.bfloat16),
                      w_ref[...].astype(jnp.bfloat16),
                      preferred_element_type=jnp.float32)
        return jnp.maximum(acc + b_ref[...], 0.0)          # (H*W, Cout), f32

    # ---- conv1 + ReLU: SAME padding done in VMEM (zero halo, copy interior) ----
    xp1_ref[...] = jnp.zeros_like(xp1_ref)
    xp1_ref[PAD:PAD + H, PAD:PAD + W, :] = x_ref[0]
    y1 = conv_bias_relu(im2col(xp1_ref, C0), w1_ref, b1_ref)   # (H*W, C1)

    # ---- conv2 + ReLU: intermediate stays in VMEM, never written to HBM ----
    xp2_ref[...] = jnp.zeros_like(xp2_ref)
    xp2_ref[PAD:PAD + H, PAD:PAD + W, :] = y1.reshape(H, W, C1)
    y2 = conv_bias_relu(im2col(xp2_ref, C1), w2_ref, b2_ref)   # (H*W, C2p)

    # Full-lane (C2p = 128) contiguous store.
    o_ref[...] = y2.reshape(1, H * W, C2p)


@jax.jit
def base_encoder_pallas(x_nchw, w1_hwio, b1, w2_hwio, b2):
    """Fused conv1(5x5)+ReLU -> conv2(5x5)+ReLU, SAME padding, one pallas_call."""
    N, C0, H, W = x_nchw.shape
    C1 = w1_hwio.shape[3]
    C2 = w2_hwio.shape[3]
    C2p = ((C2 + LANE - 1) // LANE) * LANE      # pad Cout -> full 128-lane stores

    x_nhwc = jnp.transpose(x_nchw, (0, 2, 3, 1)).astype(jnp.float32)

    # HWIO -> im2col matrix layout (row index = (kh*5 + kw)*Cin + cin).
    w1m = w1_hwio.reshape(KSIZE * KSIZE * C0, C1)
    w2m = w2_hwio.reshape(KSIZE * KSIZE * C1, C2)
    w2m = jnp.pad(w2m, ((0, 0), (0, C2p - C2)))
    b1m = b1.reshape(1, C1)
    b2m = jnp.pad(b2.reshape(1, C2), ((0, 0), (0, C2p - C2)))

    out = pl.pallas_call(
        _encoder_kernel,
        out_shape=jax.ShapeDtypeStruct((N, H * W, C2p), jnp.float32),
        grid=(N,),
        in_specs=[
            pl.BlockSpec((1, H, W, C0), lambda n: (n, 0, 0, 0)),
            pl.BlockSpec((KSIZE * KSIZE * C0, C1), lambda n: (0, 0)),
            pl.BlockSpec((1, C1), lambda n: (0, 0)),
            pl.BlockSpec((KSIZE * KSIZE * C1, C2p), lambda n: (0, 0)),
            pl.BlockSpec((1, C2p), lambda n: (0, 0)),
        ],
        out_specs=pl.BlockSpec((1, H * W, C2p), lambda n: (n, 0, 0)),
        scratch_shapes=[
            pltpu.VMEM((H + 2 * PAD, W + 2 * PAD, C0), jnp.float32),
            pltpu.VMEM((H + 2 * PAD, W + 2 * PAD, C1), jnp.float32),
        ],
        compiler_params=pltpu.CompilerParams(
            dimension_semantics=("parallel",)),   # N>=2 -> both v7x TensorCores
    )(x_nhwc, w1m, b1m, w2m, b2m)

    # (N, H*W, C2p) -> drop channel padding -> (N, H, W, C2) -> NCHW
    out = out[:, :, :C2].reshape(N, H, W, C2)
    return jnp.transpose(out, (0, 3, 1, 2))


class BaseEncoderPallas:
    """JAX/Pallas equivalent of Base_Encoder: conv1(5x5,20)+ReLU, conv2(5x5,64)+ReLU."""

    def __init__(self, cfg_enc, key):
        self.input_size = cfg_enc['input_size']
        in_channels = cfg_enc['in_channels']
        k1, k2, k3, k4 = jax.random.split(key, 4)

        # PyTorch-like uniform(-1/sqrt(fan_in), 1/sqrt(fan_in)) init.
        def init_conv(kw_key, kb_key, cin, cout):
            fan_in = cin * KSIZE * KSIZE
            bound = 1.0 / np.sqrt(fan_in)
            w_oihw = jax.random.uniform(
                kw_key, (cout, cin, KSIZE, KSIZE), jnp.float32, -bound, bound)
            b = jax.random.uniform(kb_key, (cout,), jnp.float32, -bound, bound)
            return jnp.transpose(w_oihw, (2, 3, 1, 0)), b   # OIHW -> HWIO

        self.w1, self.b1 = init_conv(k1, k2, in_channels, 20)
        self.w2, self.b2 = init_conv(k3, k4, 20, 64)

    def __call__(self, x_nchw):
        return base_encoder_pallas(x_nchw, self.w1, self.b1, self.w2, self.b2)


def _ref_conv_relu(x_nhwc, w_hwio, b):
    y = jax.lax.conv_general_dilated(
        x_nhwc, w_hwio, window_strides=(1, 1),
        padding=((PAD, PAD), (PAD, PAD)),
        dimension_numbers=('NHWC', 'HWIO', 'NHWC'),
        precision=jax.lax.Precision.HIGHEST)
    return jnp.maximum(y + b, 0.0)


if __name__ == "__main__":
    key = jax.random.PRNGKey(0)
    kx, kparams = jax.random.split(key)

    N, C, H, W = 2, 4, 16, 16
    cfg_enc = {'input_size': (H, W), 'in_channels': C}
    x_nchw = jax.random.normal(kx, (N, C, H, W), jnp.float32)

    enc = BaseEncoderPallas(cfg_enc, kparams)
    out = jax.block_until_ready(enc(x_nchw))
    assert out.shape == (N, 64, H, W), out.shape

    # Cross-check against XLA's high-precision reference convolution (NHWC).
    # Kernel uses bf16 MXU operands with f32 accumulation -> relaxed tolerance.
    x_nhwc = jnp.transpose(x_nchw, (0, 2, 3, 1))
    ref = _ref_conv_relu(_ref_conv_relu(x_nhwc, enc.w1, enc.b1), enc.w2, enc.b2)
    ref = jnp.transpose(ref, (0, 3, 1, 2))
    np.testing.assert_allclose(np.asarray(out), np.asarray(ref),
                               rtol=2e-2, atol=2e-2)

    print("KERNEL_OK")
</pallas_src>

<mosaic_0001>
module attributes {stable_mosaic.version = 11 : i64} {
  func.func @_encoder_kernel(%arg0: i32, %arg1: memref<1x16x16x4xf32, #tpu.memory_space<vmem>>, %arg2: memref<100x20xf32, #tpu.memory_space<vmem>>, %arg3: memref<1x20xf32, #tpu.memory_space<vmem>>, %arg4: memref<500x128xf32, #tpu.memory_space<vmem>>, %arg5: memref<1x128xf32, #tpu.memory_space<vmem>>, %arg6: memref<1x256x128xf32, #tpu.memory_space<vmem>>, %arg7: memref<20x20x4xf32, #tpu.memory_space<vmem>>, %arg8: memref<20x20x20xf32, #tpu.memory_space<vmem>>) attributes {dimension_semantics = [#tpu.dimension_semantics<parallel>], iteration_bounds = array<i64: 2>, scalar_prefetch = 0 : i64, scratch_operands = 2 : i64, tpu.core_type = #tpu.core_type<tc>, window_params = [{transform_indices = @transform_0, window_bounds = array<i64: 1, 16, 16, 4>}, {pipeline_mode = #tpu.pipeline_mode<synchronous>, transform_indices = @transform_1, window_bounds = array<i64: 100, 20>}, {pipeline_mode = #tpu.pipeline_mode<synchronous>, transform_indices = @transform_2, window_bounds = array<i64: 1, 20>}, {pipeline_mode = #tpu.pipeline_mode<synchronous>, transform_indices = @transform_3, window_bounds = array<i64: 500, 128>}, {pipeline_mode = #tpu.pipeline_mode<synchronous>, transform_indices = @transform_4, window_bounds = array<i64: 1, 128>}, {transform_indices = @transform_5, window_bounds = array<i64: 1, 256, 128>}]} {
    %cst = arith.constant 0.000000e+00 : f32
    %0 = vector.broadcast %cst : f32 to vector<20x20x4xf32>
    %c0 = arith.constant 0 : index
    %c0_0 = arith.constant 0 : index
    %c0_1 = arith.constant 0 : index
    %1 = vector.load %arg7[%c0, %c0_0, %c0_1] : memref<20x20x4xf32, #tpu.memory_space<vmem>>, vector<20x20x4xf32>
    tpu.vector_store %arg7[%c0, %c0_0, %c0_1], %0 {strides = array<i32>} : memref<20x20x4xf32, #tpu.memory_space<vmem>>, vector<20x20x4xf32>,
    %c0_2 = arith.constant 0 : index
    %c0_3 = arith.constant 0 : index
    %c0_4 = arith.constant 0 : index
    %c0_5 = arith.constant 0 : index
    %2 = vector.load %arg1[%c0_2, %c0_3, %c0_4, %c0_5] : memref<1x16x16x4xf32, #tpu.memory_space<vmem>>, vector<1x16x16x4xf32>
    %3 = vector.shape_cast %2 : vector<1x16x16x4xf32> to vector<16x16x4xf32>
    %c2 = arith.constant 2 : index
    %c2_6 = arith.constant 2 : index
    %c0_7 = arith.constant 0 : index
    %4 = vector.load %arg7[%c2, %c2_6, %c0_7] : memref<20x20x4xf32, #tpu.memory_space<vmem>>, vector<16x16x4xf32>
    tpu.vector_store %arg7[%c2, %c2_6, %c0_7], %3 {strides = array<i32>} : memref<20x20x4xf32, #tpu.memory_space<vmem>>, vector<16x16x4xf32>,
    %c0_8 = arith.constant 0 : index
    %c0_9 = arith.constant 0 : index
    %c0_10 = arith.constant 0 : index
    %5 = vector.load %arg7[%c0_8, %c0_9, %c0_10] : memref<20x20x4xf32, #tpu.memory_space<vmem>>, vector<16x16x4xf32>
    %6 = vector.shape_cast %5 : vector<16x16x4xf32> to vector<256x4xf32>
    %c0_11 = arith.constant 0 : index
    %c1 = arith.constant 1 : index
    %c0_12 = arith.constant 0 : index
    %7 = vector.load %arg7[%c0_11, %c1, %c0_12] : memref<20x20x4xf32, #tpu.memory_space<vmem>>, vector<16x16x4xf32>
    %8 = vector.shape_cast %7 : vector<16x16x4xf32> to vector<256x4xf32>
    %c0_13 = arith.constant 0 : index
    %c2_14 = arith.constant 2 : index
    %c0_15 = arith.constant 0 : index
    %9 = vector.load %arg7[%c0_13, %c2_14, %c0_15] : memref<20x20x4xf32, #tpu.memory_space<vmem>>, vector<16x16x4xf32>
    %10 = vector.shape_cast %9 : vector<16x16x4xf32> to vector<256x4xf32>
    %c0_16 = arith.constant 0 : index
    %c3 = arith.constant 3 : index
    %c0_17 = arith.constant 0 : index
    %11 = vector.load %arg7[%c0_16, %c3, %c0_17] : memref<20x20x4xf32, #tpu.memory_space<vmem>>, vector<16x16x4xf32>
    %12 = vector.shape_cast %11 : vector<16x16x4xf32> to vector<256x4xf32>
    %c0_18 = arith.constant 0 : index
    %c4 = arith.constant 4 : index
    %c0_19 = arith.constant 0 : index
    %13 = vector.load %arg7[%c0_18, %c4, %c0_19] : memref<20x20x4xf32, #tpu.memory_space<vmem>>, vector<16x16x4xf32>
    %14 = vector.shape_cast %13 : vector<16x16x4xf32> to vector<256x4xf32>
    %c1_20 = arith.constant 1 : index
    %c0_21 = arith.constant 0 : index
    %c0_22 = arith.constant 0 : index
    %15 = vector.load %arg7[%c1_20, %c0_21, %c0_22] : memref<20x20x4xf32, #tpu.memory_space<vmem>>, vector<16x16x4xf32>
    %16 = vector.shape_cast %15 : vector<16x16x4xf32> to vector<256x4xf32>
    %c1_23 = arith.constant 1 : index
    %c1_24 = arith.constant 1 : index
    %c0_25 = arith.constant 0 : index
    %17 = vector.load %arg7[%c1_23, %c1_24, %c0_25] : memref<20x20x4xf32, #tpu.memory_space<vmem>>, vector<16x16x4xf32>
    %18 = vector.shape_cast %17 : vector<16x16x4xf32> to vector<256x4xf32>
    %c1_26 = arith.constant 1 : index
    %c2_27 = arith.constant 2 : index
    %c0_28 = arith.constant 0 : index
    %19 = vector.load %arg7[%c1_26, %c2_27, %c0_28] : memref<20x20x4xf32, #tpu.memory_space<vmem>>, vector<16x16x4xf32>
    %20 = vector.shape_cast %19 : vector<16x16x4xf32> to vector<256x4xf32>
    %c1_29 = arith.constant 1 : index
    %c3_30 = arith.constant 3 : index
    %c0_31 = arith.constant 0 : index
    %21 = vector.load %arg7[%c1_29, %c3_30, %c0_31] : memref<20x20x4xf32, #tpu.memory_space<vmem>>, vector<16x16x4xf32>
    %22 = vector.shape_cast %21 : vector<16x16x4xf32> to vector<256x4xf32>
    %c1_32 = arith.constant 1 : index
    %c4_33 = arith.constant 4 : index
    %c0_34 = arith.constant 0 : index
    %23 = vector.load %arg7[%c1_32, %c4_33, %c0_34] : memref<20x20x4xf32, #tpu.memory_space<vmem>>, vector<16x16x4xf32>
    %24 = vector.shape_cast %23 : vector<16x16x4xf32> to vector<256x4xf32>
    %c2_35 = arith.constant 2 : index
    %c0_36 = arith.constant 0 : index
    %c0_37 = arith.constant 0 : index
    %25 = vector.load %arg7[%c2_35, %c0_36, %c0_37] : memref<20x20x4xf32, #tpu.memory_space<vmem>>, vector<16x16x4xf32>
    %26 = vector.shape_cast %25 : vector<16x16x4xf32> to vector<256x4xf32>
    %c2_38 = arith.constant 2 : index
    %c1_39 = arith.constant 1 : index
    %c0_40 = arith.constant 0 : index
    %27 = vector.load %arg7[%c2_38, %c1_39, %c0_40] : memref<20x20x4xf32, #tpu.memory_space<vmem>>, vector<16x16x4xf32>
    %28 = vector.shape_cast %27 : vector<16x16x4xf32> to vector<256x4xf32>
    %c2_41 = arith.constant 2 : index
    %c2_42 = arith.constant 2 : index
    %c0_43 = arith.constant 0 : index
    %29 = vector.load %arg7[%c2_41, %c2_42, %c0_43] : memref<20x20x4xf32, #tpu.memory_space<vmem>>, vector<16x16x4xf32>
    %30 = vector.shape_cast %29 : vector<16x16x4xf32> to vector<256x4xf32>
    %c2_44 = arith.constant 2 : index
    %c3_45 = arith.constant 3 : index
    %c0_46 = arith.constant 0 : index
    %31 = vector.load %arg7[%c2_44, %c3_45, %c0_46] : memref<20x20x4xf32, #tpu.memory_space<vmem>>, vector<16x16x4xf32>
    %32 = vector.shape_cast %31 : vector<16x16x4xf32> to vector<256x4xf32>
    %c2_47 = arith.constant 2 : index
    %c4_48 = arith.constant 4 : index
    %c0_49 = arith.constant 0 : index
    %33 = vector.load %arg7[%c2_47, %c4_48, %c0_49] : memref<20x20x4xf32, #tpu.memory_space<vmem>>, vector<16x16x4xf32>
    %34 = vector.shape_cast %33 : vector<16x16x4xf32> to vector<256x4xf32>
    %c3_50 = arith.constant 3 : index
    %c0_51 = arith.constant 0 : index
    %c0_52 = arith.constant 0 : index
    %35 = vector.load %arg7[%c3_50, %c0_51, %c0_52] : memref<20x20x4xf32, #tpu.memory_space<vmem>>, vector<16x16x4xf32>
    %36 = vector.shape_cast %35 : vector<16x16x4xf32> to vector<256x4xf32>
    %c3_53 = arith.constant 3 : index
    %c1_54 = arith.constant 1 : index
    %c0_55 = arith.constant 0 : index
    %37 = vector.load %arg7[%c3_53, %c1_54, %c0_55] : memref<20x20x4xf32, #tpu.memory_space<vmem>>, vector<16x16x4xf32>
    %38 = vector.shape_cast %37 : vector<16x16x4xf32> to vector<256x4xf32>
    %c3_56 = arith.constant 3 : index
    %c2_57 = arith.constant 2 : index
    %c0_58 = arith.constant 0 : index
    %39 = vector.load %arg7[%c3_56, %c2_57, %c0_58] : memref<20x20x4xf32, #tpu.memory_space<vmem>>, vector<16x16x4xf32>
    %40 = vector.shape_cast %39 : vector<16x16x4xf32> to vector<256x4xf32>
    %c3_59 = arith.constant 3 : index
    %c3_60 = arith.constant 3 : index
    %c0_61 = arith.constant 0 : index
    %41 = vector.load %arg7[%c3_59, %c3_60, %c0_61] : memref<20x20x4xf32, #tpu.memory_space<vmem>>, vector<16x16x4xf32>
    %42 = vector.shape_cast %41 : vector<16x16x4xf32> to vector<256x4xf32>
    %c3_62 = arith.constant 3 : index
    %c4_63 = arith.constant 4 : index
    %c0_64 = arith.constant 0 : index
    %43 = vector.load %arg7[%c3_62, %c4_63, %c0_64] : memref<20x20x4xf32, #tpu.memory_space<vmem>>, vector<16x16x4xf32>
    %44 = vector.shape_cast %43 : vector<16x16x4xf32> to vector<256x4xf32>
    %c4_65 = arith.constant 4 : index
    %c0_66 = arith.constant 0 : index
    %c0_67 = arith.constant 0 : index
    %45 = vector.load %arg7[%c4_65, %c0_66, %c0_67] : memref<20x20x4xf32, #tpu.memory_space<vmem>>, vector<16x16x4xf32>
    %46 = vector.shape_cast %45 : vector<16x16x4xf32> to vector<256x4xf32>
    %c4_68 = arith.constant 4 : index
    %c1_69 = arith.constant 1 : index
    %c0_70 = arith.constant 0 : index
    %47 = vector.load %arg7[%c4_68, %c1_69, %c0_70] : memref<20x20x4xf32, #tpu.memory_space<vmem>>, vector<16x16x4xf32>
    %48 = vector.shape_cast %47 : vector<16x16x4xf32> to vector<256x4xf32>
    %c4_71 = arith.constant 4 : index
    %c2_72 = arith.constant 2 : index
    %c0_73 = arith.constant 0 : index
    %49 = vector.load %arg7[%c4_71, %c2_72, %c0_73] : memref<20x20x4xf32, #tpu.memory_space<vmem>>, vector<16x16x4xf32>
    %50 = vector.shape_cast %49 : vector<16x16x4xf32> to vector<256x4xf32>
    %c4_74 = arith.constant 4 : index
    %c3_75 = arith.constant 3 : index
    %c0_76 = arith.constant 0 : index
    %51 = vector.load %arg7[%c4_74, %c3_75, %c0_76] : memref<20x20x4xf32, #tpu.memory_space<vmem>>, vector<16x16x4xf32>
    %52 = vector.shape_cast %51 : vector<16x16x4xf32> to vector<256x4xf32>
    %c4_77 = arith.constant 4 : index
    %c4_78 = arith.constant 4 : index
    %c0_79 = arith.constant 0 : index
    %53 = vector.load %arg7[%c4_77, %c4_78, %c0_79] : memref<20x20x4xf32, #tpu.memory_space<vmem>>, vector<16x16x4xf32>
    %54 = vector.shape_cast %53 : vector<16x16x4xf32> to vector<256x4xf32>
    %55 = tpu.concatenate %6, %8, %10, %12, %14, %16, %18, %20, %22, %24, %26, %28, %30, %32, %34, %36 in 1 : vector<256x4xf32>, vector<256x4xf32>, vector<256x4xf32>, vector<256x4xf32>, vector<256x4xf32>, vector<256x4xf32>, vector<256x4xf32>, vector<256x4xf32>, vector<256x4xf32>, vector<256x4xf32>, vector<256x4xf32>, vector<256x4xf32>, vector<256x4xf32>, vector<256x4xf32>, vector<256x4xf32>, vector<256x4xf32> -> vector<256x64xf32>
    %56 = tpu.concatenate %38, %40, %42, %44, %46, %48, %50, %52, %54 in 1 : vector<256x4xf32>, vector<256x4xf32>, vector<256x4xf32>, vector<256x4xf32>, vector<256x4xf32>, vector<256x4xf32>, vector<256x4xf32>, vector<256x4xf32>, vector<256x4xf32> -> vector<256x36xf32>
    %57 = tpu.concatenate %55, %56 in 1 : vector<256x64xf32>, vector<256x36xf32> -> vector<256x100xf32>
    %58 = arith.truncf %57 : vector<256x100xf32> to vector<256x100xbf16>
    %c0_80 = arith.constant 0 : index
    %c0_81 = arith.constant 0 : index
    %59 = vector.load %arg2[%c0_80, %c0_81] : memref<100x20xf32, #tpu.memory_space<vmem>>, vector<100x20xf32>
    %60 = arith.truncf %59 : vector<100x20xf32> to vector<100x20xbf16>
    %cst_82 = arith.constant dense<0.000000e+00> : vector<256x20xf32>
    %61 = tpu.matmul %58, %60, %cst_82 {dimension_numbers = #tpu.dot_dimension_numbers<[1], [0], [0], [1], [0, 0, 1, 1], [], []>} : vector<256x100xbf16>, vector<100x20xbf16>, vector<256x20xf32> -> vector<256x20xf32>
    %c0_83 = arith.constant 0 : index
    %c0_84 = arith.constant 0 : index
    %62 = vector.load %arg3[%c0_83, %c0_84] : memref<1x20xf32, #tpu.memory_space<vmem>>, vector<1x20xf32>
    %63 = vector.broadcast %62 : vector<1x20xf32> to vector<256x20xf32>
    %64 = arith.addf %61, %63 : vector<256x20xf32>
    %cst_85 = arith.constant 0.000000e+00 : f32
    %65 = vector.broadcast %cst_85 : f32 to vector<256x20xf32>
    %66 = arith.maximumf %64, %65 : vector<256x20xf32>
    %cst_86 = arith.constant 0.000000e+00 : f32
    %67 = vector.broadcast %cst_86 : f32 to vector<20x20x20xf32>
    %c0_87 = arith.constant 0 : index
    %c0_88 = arith.constant 0 : index
    %c0_89 = arith.constant 0 : index
    %68 = vector.load %arg8[%c0_87, %c0_88, %c0_89] : memref<20x20x20xf32, #tpu.memory_space<vmem>>, vector<20x20x20xf32>
    tpu.vector_store %arg8[%c0_87, %c0_88, %c0_89], %67 {strides = array<i32>} : memref<20x20x20xf32, #tpu.memory_space<vmem>>, vector<20x20x20xf32>,
    %69 = vector.shape_cast %66 : vector<256x20xf32> to vector<16x16x20xf32>
    %c2_90 = arith.constant 2 : index
    %c2_91 = arith.constant 2 : index
    %c0_92 = arith.constant 0 : index
    %70 = vector.load %arg8[%c2_90, %c2_91, %c0_92] : memref<20x20x20xf32, #tpu.memory_space<vmem>>, vector<16x16x20xf32>
    tpu.vector_store %arg8[%c2_90, %c2_91, %c0_92], %69 {strides = array<i32>} : memref<20x20x20xf32, #tpu.memory_space<vmem>>, vector<16x16x20xf32>,
    %c0_93 = arith.constant 0 : index
    %c0_94 = arith.constant 0 : index
    %c0_95 = arith.constant 0 : index
    %71 = vector.load %arg8[%c0_93, %c0_94, %c0_95] : memref<20x20x20xf32, #tpu.memory_space<vmem>>, vector<16x16x20xf32>
    %72 = vector.shape_cast %71 : vector<16x16x20xf32> to vector<256x20xf32>
    %c0_96 = arith.constant 0 : index
    %c1_97 = arith.constant 1 : index
    %c0_98 = arith.constant 0 : index
    %73 = vector.load %arg8[%c0_96, %c1_97, %c0_98] : memref<20x20x20xf32, #tpu.memory_space<vmem>>, vector<16x16x20xf32>
    %74 = vector.shape_cast %73 : vector<16x16x20xf32> to vector<256x20xf32>
    %c0_99 = arith.constant 0 : index
    %c2_100 = arith.constant 2 : index
    %c0_101 = arith.constant 0 : index
    %75 = vector.load %arg8[%c0_99, %c2_100, %c0_101] : memref<20x20x20xf32, #tpu.memory_space<vmem>>, vector<16x16x20xf32>
    %76 = vector.shape_cast %75 : vector<16x16x20xf32> to vector<256x20xf32>
    %c0_102 = arith.constant 0 : index
    %c3_103 = arith.constant 3 : index
    %c0_104 = arith.constant 0 : index
    %77 = vector.load %arg8[%c0_102, %c3_103, %c0_104] : memref<20x20x20xf32, #tpu.memory_space<vmem>>, vector<16x16x20xf32>
    %78 = vector.shape_cast %77 : vector<16x16x20xf32> to vector<256x20xf32>
    %c0_105 = arith.constant 0 : index
    %c4_106 = arith.constant 4 : index
    %c0_107 = arith.constant 0 : index
    %79 = vector.load %arg8[%c0_105, %c4_106, %c0_107] : memref<20x20x20xf32, #tpu.memory_space<vmem>>, vector<16x16x20xf32>
    %80 = vector.shape_cast %79 : vector<16x16x20xf32> to vector<256x20xf32>
    %c1_108 = arith.constant 1 : index
    %c0_109 = arith.constant 0 : index
    %c0_110 = arith.constant 0 : index
    %81 = vector.load %arg8[%c1_108, %c0_109, %c0_110] : memref<20x20x20xf32, #tpu.memory_space<vmem>>, vector<16x16x20xf32>
    %82 = vector.shape_cast %81 : vector<16x16x20xf32> to vector<256x20xf32>
    %c1_111 = arith.constant 1 : index
    %c1_112 = arith.constant 1 : index
    %c0_113 = arith.constant 0 : index
    %83 = vector.load %arg8[%c1_111, %c1_112, %c0_113] : memref<20x20x20xf32, #tpu.memory_space<vmem>>, vector<16x16x20xf32>
    %84 = vector.shape_cast %83 : vector<16x16x20xf32> to vector<256x20xf32>
    %c1_114 = arith.constant 1 : index
    %c2_115 = arith.constant 2 : index
    %c0_116 = arith.constant 0 : index
    %85 = vector.load %arg8[%c1_114, %c2_115, %c0_116] : memref<20x20x20xf32, #tpu.memory_space<vmem>>, vector<16x16x20xf32>
    %86 = vector.shape_cast %85 : vector<16x16x20xf32> to vector<256x20xf32>
    %c1_117 = arith.constant 1 : index
    %c3_118 = arith.constant 3 : index
    %c0_119 = arith.constant 0 : index
    %87 = vector.load %arg8[%c1_117, %c3_118, %c0_119] : memref<20x20x20xf32, #tpu.memory_space<vmem>>, vector<16x16x20xf32>
    %88 = vector.shape_cast %87 : vector<16x16x20xf32> to vector<256x20xf32>
    %c1_120 = arith.constant 1 : index
    %c4_121 = arith.constant 4 : index
    %c0_122 = arith.constant 0 : index
    %89 = vector.load %arg8[%c1_120, %c4_121, %c0_122] : memref<20x20x20xf32, #tpu.memory_space<vmem>>, vector<16x16x20xf32>
    %90 = vector.shape_cast %89 : vector<16x16x20xf32> to vector<256x20xf32>
    %c2_123 = arith.constant 2 : index
    %c0_124 = arith.constant 0 : index
    %c0_125 = arith.constant 0 : index
    %91 = vector.load %arg8[%c2_123, %c0_124, %c0_125] : memref<20x20x20xf32, #tpu.memory_space<vmem>>, vector<16x16x20xf32>
    %92 = vector.shape_cast %91 : vector<16x16x20xf32> to vector<256x20xf32>
    %c2_126 = arith.constant 2 : index
    %c1_127 = arith.constant 1 : index
    %c0_128 = arith.constant 0 : index
    %93 = vector.load %arg8[%c2_126, %c1_127, %c0_128] : memref<20x20x20xf32, #tpu.memory_space<vmem>>, vector<16x16x20xf32>
    %94 = vector.shape_cast %93 : vector<16x16x20xf32> to vector<256x20xf32>
    %c2_129 = arith.constant 2 : index
    %c2_130 = arith.constant 2 : index
    %c0_131 = arith.constant 0 : index
    %95 = vector.load %arg8[%c2_129, %c2_130, %c0_131] : memref<20x20x20xf32, #tpu.memory_space<vmem>>, vector<16x16x20xf32>
    %96 = vector.shape_cast %95 : vector<16x16x20xf32> to vector<256x20xf32>
    %c2_132 = arith.constant 2 : index
    %c3_133 = arith.constant 3 : index
    %c0_134 = arith.constant 0 : index
    %97 = vector.load %arg8[%c2_132, %c3_133, %c0_134] : memref<20x20x20xf32, #tpu.memory_space<vmem>>, vector<16x16x20xf32>
    %98 = vector.shape_cast %97 : vector<16x16x20xf32> to vector<256x20xf32>
    %c2_135 = arith.constant 2 : index
    %c4_136 = arith.constant 4 : index
    %c0_137 = arith.constant 0 : index
    %99 = vector.load %arg8[%c2_135, %c4_136, %c0_137] : memref<20x20x20xf32, #tpu.memory_space<vmem>>, vector<16x16x20xf32>
    %100 = vector.shape_cast %99 : vector<16x16x20xf32> to vector<256x20xf32>
    %c3_138 = arith.constant 3 : index
    %c0_139 = arith.constant 0 : index
    %c0_140 = arith.constant 0 : index
    %101 = vector.load %arg8[%c3_138, %c0_139, %c0_140] : memref<20x20x20xf32, #tpu.memory_space<vmem>>, vector<16x16x20xf32>
    %102 = vector.shape_cast %101 : vector<16x16x20xf32> to vector<256x20xf32>
    %c3_141 = arith.constant 3 : index
    %c1_142 = arith.constant 1 : index
    %c0_143 = arith.constant 0 : index
    %103 = vector.load %arg8[%c3_141, %c1_142, %c0_143] : memref<20x20x20xf32, #tpu.memory_space<vmem>>, vector<16x16x20xf32>
    %104 = vector.shape_cast %103 : vector<16x16x20xf32> to vector<256x20xf32>
    %c3_144 = arith.constant 3 : index
    %c2_145 = arith.constant 2 : index
    %c0_146 = arith.constant 0 : index
    %105 = vector.load %arg8[%c3_144, %c2_145, %c0_146] : memref<20x20x20xf32, #tpu.memory_space<vmem>>, vector<16x16x20xf32>
    %106 = vector.shape_cast %105 : vector<16x16x20xf32> to vector<256x20xf32>
    %c3_147 = arith.constant 3 : index
    %c3_148 = arith.constant 3 : index
    %c0_149 = arith.constant 0 : index
    %107 = vector.load %arg8[%c3_147, %c3_148, %c0_149] : memref<20x20x20xf32, #tpu.memory_space<vmem>>, vector<16x16x20xf32>
    %108 = vector.shape_cast %107 : vector<16x16x20xf32> to vector<256x20xf32>
    %c3_150 = arith.constant 3 : index
    %c4_151 = arith.constant 4 : index
    %c0_152 = arith.constant 0 : index
    %109 = vector.load %arg8[%c3_150, %c4_151, %c0_152] : memref<20x20x20xf32, #tpu.memory_space<vmem>>, vector<16x16x20xf32>
    %110 = vector.shape_cast %109 : vector<16x16x20xf32> to vector<256x20xf32>
    %c4_153 = arith.constant 4 : index
    %c0_154 = arith.constant 0 : index
    %c0_155 = arith.constant 0 : index
    %111 = vector.load %arg8[%c4_153, %c0_154, %c0_155] : memref<20x20x20xf32, #tpu.memory_space<vmem>>, vector<16x16x20xf32>
    %112 = vector.shape_cast %111 : vector<16x16x20xf32> to vector<256x20xf32>
    %c4_156 = arith.constant 4 : index
    %c1_157 = arith.constant 1 : index
    %c0_158 = arith.constant 0 : index
    %113 = vector.load %arg8[%c4_156, %c1_157, %c0_158] : memref<20x20x20xf32, #tpu.memory_space<vmem>>, vector<16x16x20xf32>
    %114 = vector.shape_cast %113 : vector<16x16x20xf32> to vector<256x20xf32>
    %c4_159 = arith.constant 4 : index
    %c2_160 = arith.constant 2 : index
    %c0_161 = arith.constant 0 : index
    %115 = vector.load %arg8[%c4_159, %c2_160, %c0_161] : memref<20x20x20xf32, #tpu.memory_space<vmem>>, vector<16x16x20xf32>
    %116 = vector.shape_cast %115 : vector<16x16x20xf32> to vector<256x20xf32>
    %c4_162 = arith.constant 4 : index
    %c3_163 = arith.constant 3 : index
    %c0_164 = arith.constant 0 : index
    %117 = vector.load %arg8[%c4_162, %c3_163, %c0_164] : memref<20x20x20xf32, #tpu.memory_space<vmem>>, vector<16x16x20xf32>
    %118 = vector.shape_cast %117 : vector<16x16x20xf32> to vector<256x20xf32>
    %c4_165 = arith.constant 4 : index
    %c4_166 = arith.constant 4 : index
    %c0_167 = arith.constant 0 : index
    %119 = vector.load %arg8[%c4_165, %c4_166, %c0_167] : memref<20x20x20xf32, #tpu.memory_space<vmem>>, vector<16x16x20xf32>
    %120 = vector.shape_cast %119 : vector<16x16x20xf32> to vector<256x20xf32>
    %121 = tpu.concatenate %72, %74, %76, %78, %80, %82, %84, %86, %88, %90, %92, %94, %96, %98, %100, %102 in 1 : vector<256x20xf32>, vector<256x20xf32>, vector<256x20xf32>, vector<256x20xf32>, vector<256x20xf32>, vector<256x20xf32>, vector<256x20xf32>, vector<256x20xf32>, vector<256x20xf32>, vector<256x20xf32>, vector<256x20xf32>, vector<256x20xf32>, vector<256x20xf32>, vector<256x20xf32>, vector<256x20xf32>, vector<256x20xf32> -> vector<256x320xf32>
    %122 = tpu.concatenate %104, %106, %108, %110, %112, %114, %116, %118, %120 in 1 : vector<256x20xf32>, vector<256x20xf32>, vector<256x20xf32>, vector<256x20xf32>, vector<256x20xf32>, vector<256x20xf32>, vector<256x20xf32>, vector<256x20xf32>, vector<256x20xf32> -> vector<256x180xf32>
    %123 = tpu.concatenate %121, %122 in 1 : vector<256x320xf32>, vector<256x180xf32> -> vector<256x500xf32>
    %124 = arith.truncf %123 : vector<256x500xf32> to vector<256x500xbf16>
    %c0_168 = arith.constant 0 : index
    %c0_169 = arith.constant 0 : index
    %125 = vector.load %arg4[%c0_168, %c0_169] : memref<500x128xf32, #tpu.memory_space<vmem>>, vector<500x128xf32>
    %126 = arith.truncf %125 : vector<500x128xf32> to vector<500x128xbf16>
    %cst_170 = arith.constant dense<0.000000e+00> : vector<256x128xf32>
    %127 = tpu.matmul %124, %126, %cst_170 {dimension_numbers = #tpu.dot_dimension_numbers<[1], [0], [0], [1], [0, 0, 1, 1], [], []>} : vector<256x500xbf16>, vector<500x128xbf16>, vector<256x128xf32> -> vector<256x128xf32>
    %c0_171 = arith.constant 0 : index
    %c0_172 = arith.constant 0 : index
    %128 = vector.load %arg5[%c0_171, %c0_172] : memref<1x128xf32, #tpu.memory_space<vmem>>, vector<1x128xf32>
    %129 = vector.broadcast %128 : vector<1x128xf32> to vector<256x128xf32>
    %130 = arith.addf %127, %129 : vector<256x128xf32>
    %cst_173 = arith.constant 0.000000e+00 : f32
    %131 = vector.broadcast %cst_173 : f32 to vector<256x128xf32>
    %132 = arith.maximumf %130, %131 : vector<256x128xf32>
    %133 = vector.shape_cast %132 : vector<256x128xf32> to vector<1x256x128xf32>
    %c0_174 = arith.constant 0 : index
    %c0_175 = arith.constant 0 : index
    %c0_176 = arith.constant 0 : index
    %134 = vector.load %arg6[%c0_174, %c0_175, %c0_176] : memref<1x256x128xf32, #tpu.memory_space<vmem>>, vector<1x256x128xf32>
    tpu.vector_store %arg6[%c0_174, %c0_175, %c0_176], %133 {strides = array<i32>} : memref<1x256x128xf32, #tpu.memory_space<vmem>>, vector<1x256x128xf32>,
    return
  }
  func.func @transform_0(%arg0: i32) -> (i32, i32, i32, i32) {
    %c0_i32 = arith.constant 0 : i32
    %c0_i32_0 = arith.constant 0 : i32
    %c0_i32_1 = arith.constant 0 : i32
    %c0_i32_2 = arith.constant 0 : i32
    return %arg0, %c0_i32, %c0_i32_0, %c0_i32_1 : i32, i32, i32, i32
  }
  func.func @transform_1(%arg0: i32) -> (i32, i32) {
    %c0_i32 = arith.constant 0 : i32
    %c0_i32_0 = arith.constant 0 : i32
    %c0_i32_1 = arith.constant 0 : i32
    return %c0_i32, %c0_i32_0 : i32, i32
  }
  func.func @transform_2(%arg0: i32) -> (i32, i32) {
    %c0_i32 = arith.constant 0 : i32
    %c0_i32_0 = arith.constant 0 : i32
    %c0_i32_1 = arith.constant 0 : i32
    return %c0_i32, %c0_i32_0 : i32, i32
  }
  func.func @transform_3(%arg0: i32) -> (i32, i32) {
    %c0_i32 = arith.constant 0 : i32
    %c0_i32_0 = arith.constant 0 : i32
    %c0_i32_1 = arith.constant 0 : i32
    return %c0_i32, %c0_i32_0 : i32, i32
  }
  func.func @transform_4(%arg0: i32) -> (i32, i32) {
    %c0_i32 = arith.constant 0 : i32
    %c0_i32_0 = arith.constant 0 : i32
    %c0_i32_1 = arith.constant 0 : i32
    return %c0_i32, %c0_i32_0 : i32, i32
  }
  func.func @transform_5(%arg0: i32) -> (i32, i32, i32) {
    %c0_i32 = arith.constant 0 : i32
    %c0_i32_0 = arith.constant 0 : i32
    %c0_i32_1 = arith.constant 0 : i32
    return %arg0, %c0_i32, %c0_i32_0 : i32, i32, i32
  }
}

</mosaic_0001>

<llo_original>
// kernel: base_encoder_pallas.1
$region0: #{base_encoder_pallas.1}
  #allocation0 [shape = 'u32[]', space=smem, size = 0x4, offset = 0x4, fixed_abs, tag = 'smem constant byte address 0x4 - core index']
  #allocation1 [shape = 'u32[144,128]{1,0:T(1,128)}', space=vmem, size = 0x12000, scoped, tag = 'internal scratch']
  #allocation2 [shape = 'f32[20,20,4]{2,1,0:T(8,128)}', space=vmem, size = 0x3c000, scoped, tag = 'scratch operand']
  #allocation3 [shape = 'f32[20,20,20]{2,1,0:T(8,128)}', space=vmem, size = 0x3c000, scoped, tag = 'scratch operand']
  %s0 = inlined_call_operand.vmem [shape: f32[2,16,16,4], index: 0, kind: input, shape index: {}]
  %s1 = inlined_call_operand.vmem [shape: f32[100,20], index: 1, kind: input, shape index: {}]
  %s2 = inlined_call_operand.vmem [shape: f32[1,20], index: 2, kind: input, shape index: {}]
  %s3 = inlined_call_operand.vmem [shape: f32[500,128], index: 3, kind: input, shape index: {}]
  %s4 = inlined_call_operand.vmem [shape: f32[1,128], index: 4, kind: input, shape index: {}]
  %s5 = inlined_call_operand.hbm [shape: f32[2,256,128], index: 5, kind: output, shape index: {}]
  %s6 = sld [smem:[#allocation0]]
  $region53: #{base_encoder_pallas.1} parent=0
    _
  %s8 = ssub.s32 1, %s6
  %s9 = scalar_select 0, %s8, %s6
  $region1: #{base_encoder_pallas.1} parent=0
    #allocation4 [shape = 'u8[262144]{0}', space=vmem, size = 0x40000, scoped, tag = 'output window, operand 0']
    #allocation5 [shape = 's32[2]{0}', space=sflag, size = 0x8, scoped, tag = 'scoped memory for base_encoder_pallas.1']
    %10 = vsyncpa [#allocation5], 0
    %s11 = scalar_lea.sflag [#allocation5], 1
    %12 = vsyncpa %s11, 0
    loop: start=0, step=1, limit=4
    $region2: #{base_encoder_pallas.1} parent=1 // loop_pre_header
      _
    $region3: #{base_encoder_pallas.1} parent=1 // loop_header
      %s14 = sphi 0, %s18
      %p15 = scmp.ge.s32.totalorder %s14, 4
      %s24 = sphi 0, %s26
      %s27 = sphi 0, %s24
      %s28 = sphi 0, %s27
      %s44 = sphi 0, %s28
      %s48 = sphi 0, %s48
      %s50 = sphi 0, %s48
      %s51 = sphi 0, %s50
      %s65 = sphi 0, %s51
      %s69 = sphi 0, %s69
      %s71 = sphi 0, %s69
      %s72 = sphi 0, %s71
      %s86 = sphi 0, %s72
      %s90 = sphi 0, %s90
      %s92 = sphi 0, %s90
      %s93 = sphi 0, %s92
      %s107 = sphi 0, %s93
      %s111 = sphi 0, %s111
      %s113 = sphi 0, %s111
      %s114 = sphi 0, %s113
      %s128 = sphi 0, %s114
      %s134 = sphi 0, %s136
      %s137 = sphi 0, %s134
      %s138 = sphi 0, %s137
      %s154 = sphi 0, %s138
    $region4: #{base_encoder_pallas.1} parent=1 // loop_header_branch
      %17 = sbr.rel (%p15) target = $region8
    $region5: #{base_encoder_pallas.1} parent=1 // loop_body
      %s19 = ssub.s32 %s14, 1
      %s20 = ssub.s32 %s14, 2
      %s21 = sadd.s32 %s14, 1
      %s22 = ssub.s32 %s14, %s21
      %p23 = scmp.eq.s32.totalorder %s22, 0
      %s25 = sadd.s32 %s24, 1
      %s26 = scalar_select %p23, %s24, %s25
      %p29 = pneg %p23
      %p30 = scmp.eq.s32.totalorder %s14, 1
      %p31 = por %p29, %p30
      %p32 = scmp.ne.s32.totalorder %s24, %s27
      %p33 = scmp.eq.s32.totalorder %s14, 0
      %p34 = por %p32, %p33
      %p35 = scmp.ne.s32.totalorder %s24, %s27
      %p36 = scmp.eq.s32.totalorder %s19, 1
      %p37 = por %p35, %p36
      %p38 = scmp.ne.s32.totalorder %s27, %s28
      %p39 = scmp.eq.s32.totalorder %s19, 0
      %p40 = por %p38, %p39
      %p41 = scmp.ne.s32.totalorder %s27, %s28
      %p42 = scmp.eq.s32.totalorder %s20, 1
      %p43 = por %p41, %p42
      %p45 = scmp.ne.s32.totalorder %s28, %s44
      %p46 = scmp.eq.s32.totalorder %s20, 0
      %p47 = por %p45, %p46
      %s49 = sadd.s32 %s48, 1
      %p52 = scmp.eq.s32.totalorder %s14, 1
      %p53 = scmp.ne.s32.totalorder %s48, %s50
      %p54 = scmp.eq.s32.totalorder %s14, 0
      %p55 = por %p53, %p54
      %p56 = scmp.ne.s32.totalorder %s48, %s50
      %p57 = scmp.eq.s32.totalorder %s19, 1
      %p58 = por %p56, %p57
      %p59 = scmp.ne.s32.totalorder %s50, %s51
      %p60 = scmp.eq.s32.totalorder %s19, 0
      %p61 = por %p59, %p60
      %p62 = scmp.ne.s32.totalorder %s50, %s51
      %p63 = scmp.eq.s32.totalorder %s20, 1
      %p64 = por %p62, %p63
      %p66 = scmp.ne.s32.totalorder %s51, %s65
      %p67 = scmp.eq.s32.totalorder %s20, 0
      %p68 = por %p66, %p67
      %s70 = sadd.s32 %s69, 1
      %p73 = scmp.eq.s32.totalorder %s14, 1
      %p74 = scmp.ne.s32.totalorder %s69, %s71
      %p75 = scmp.eq.s32.totalorder %s14, 0
      %p76 = por %p74, %p75
      %p77 = scmp.ne.s32.totalorder %s69, %s71
      %p78 = scmp.eq.s32.totalorder %s19, 1
      %p79 = por %p77, %p78
      %p80 = scmp.ne.s32.totalorder %s71, %s72
      %p81 = scmp.eq.s32.totalorder %s19, 0
      %p82 = por %p80, %p81
      %p83 = scmp.ne.s32.totalorder %s71, %s72
      %p84 = scmp.eq.s32.totalorder %s20, 1
      %p85 = por %p83, %p84
      %p87 = scmp.ne.s32.totalorder %s72, %s86
      %p88 = scmp.eq.s32.totalorder %s20, 0
      %p89 = por %p87, %p88
      %s91 = sadd.s32 %s90, 1
      %p94 = scmp.eq.s32.totalorder %s14, 1
      %p95 = scmp.ne.s32.totalorder %s90, %s92
      %p96 = scmp.eq.s32.totalorder %s14, 0
      %p97 = por %p95, %p96
      %p98 = scmp.ne.s32.totalorder %s90, %s92
      %p99 = scmp.eq.s32.totalorder %s19, 1
      %p100 = por %p98, %p99
      %p101 = scmp.ne.s32.totalorder %s92, %s93
      %p102 = scmp.eq.s32.totalorder %s19, 0
      %p103 = por %p101, %p102
      %p104 = scmp.ne.s32.totalorder %s92, %s93
      %p105 = scmp.eq.s32.totalorder %s20, 1
      %p106 = por %p104, %p105
      %p108 = scmp.ne.s32.totalorder %s93, %s107
      %p109 = scmp.eq.s32.totalorder %s20, 0
      %p110 = por %p108, %p109
      %s112 = sadd.s32 %s111, 1
      %p115 = scmp.eq.s32.totalorder %s14, 1
      %p116 = scmp.ne.s32.totalorder %s111, %s113
      %p117 = scmp.eq.s32.totalorder %s14, 0
      %p118 = por %p116, %p117
      %p119 = scmp.ne.s32.totalorder %s111, %s113
      %p120 = scmp.eq.s32.totalorder %s19, 1
      %p121 = por %p119, %p120
      %p122 = scmp.ne.s32.totalorder %s113, %s114
      %p123 = scmp.eq.s32.totalorder %s19, 0
      %p124 = por %p122, %p123
      %p125 = scmp.ne.s32.totalorder %s113, %s114
      %p126 = scmp.eq.s32.totalorder %s20, 1
      %p127 = por %p125, %p126
      %p129 = scmp.ne.s32.totalorder %s114, %s128
      %p130 = scmp.eq.s32.totalorder %s20, 0
      %p131 = por %p129, %p130
      %s132 = ssub.s32 %s14, %s21
      %p133 = scmp.eq.s32.totalorder %s132, 0
      %s135 = sadd.s32 %s134, 1
      %s136 = scalar_select %p133, %s134, %s135
      %p139 = pneg %p133
      %p140 = scmp.eq.s32.totalorder %s14, 1
      %p141 = por %p139, %p140
      %p142 = scmp.ne.s32.totalorder %s134, %s137
      %p143 = scmp.eq.s32.totalorder %s14, 0
      %p144 = por %p142, %p143
      %p145 = scmp.ne.s32.totalorder %s134, %s137
      %p146 = scmp.eq.s32.totalorder %s19, 1
      %p147 = por %p145, %p146
      %p148 = scmp.ne.s32.totalorder %s137, %s138
      %p149 = scmp.eq.s32.totalorder %s19, 0
      %p150 = por %p148, %p149
      %p151 = scmp.ne.s32.totalorder %s137, %s138
      %p152 = scmp.eq.s32.totalorder %s20, 1
      %p153 = por %p151, %p152
      %p155 = scmp.ne.s32.totalorder %s138, %s154
      %p156 = scmp.eq.s32.totalorder %s20, 0
      %p157 = por %p155, %p156
      %p158 = scmp.le.s32.totalorder 1, %s14
      %p159 = scmp.lt.s32.totalorder %s14, 3
      %p160 = pnand %p158, %p159
      %p161 = pneg %p160
      // Predicated region
      $region9: #{base_encoder_pallas.1} parent=5 // pred_check
        _
      $region10: #{base_encoder_pallas.1} parent=5 // pred_check_branch
        %163 = sbr.rel (%p160) target = $region12
      $region11: #{base_encoder_pallas.1} parent=5 // pred_region
        %s164 = ssub.s32 %s14, 1
        // Predicated region
        $region13: #{base_encoder_pallas.1} parent=11 // pred_check
          %p165 = pneg %p61
        $region14: #{base_encoder_pallas.1} parent=11 // pred_check_branch
          %167 = sbr.rel (%p165) target = $region16
        $region15: #{base_encoder_pallas.1} parent=11 // pred_region
          _
        $region16: #{base_encoder_pallas.1} parent=11 // pred_fallthru
          _
        // Predicated region
        $region17: #{base_encoder_pallas.1} parent=11 // pred_check
          %p168 = pneg %p82
        $region18: #{base_encoder_pallas.1} parent=11 // pred_check_branch
          %170 = sbr.rel (%p168) target = $region20
        $region19: #{base_encoder_pallas.1} parent=11 // pred_region
          _
        $region20: #{base_encoder_pallas.1} parent=11 // pred_fallthru
          _
        // Predicated region
        $region21: #{base_encoder_pallas.1} parent=11 // pred_check
          %p171 = pneg %p103
        $region22: #{base_encoder_pallas.1} parent=11 // pred_check_branch
          %173 = sbr.rel (%p171) target = $region24
        $region23: #{base_encoder_pallas.1} parent=11 // pred_region
          _
        $region24: #{base_encoder_pallas.1} parent=11 // pred_fallthru
          _
        // Predicated region
        $region25: #{base_encoder_pallas.1} parent=11 // pred_check
          %p174 = pneg %p124
        $region26: #{base_encoder_pallas.1} parent=11 // pred_check_branch
          %176 = sbr.rel (%p174) target = $region28
        $region27: #{base_encoder_pallas.1} parent=11 // pred_region
          _
        $region28: #{base_encoder_pallas.1} parent=11 // pred_fallthru
          _
      $region12: #{base_encoder_pallas.1} parent=5 // pred_fallthru
        _
      %p177 = scmp.lt.s32.totalorder %s14, 2
      // Predicated region
      $region29: #{base_encoder_pallas.1} parent=5 // pred_check
        %p178 = pneg %p177
      $region30: #{base_encoder_pallas.1} parent=5 // pred_check_branch
        %180 = sbr.rel (%p178) target = $region32
      $region31: #{base_encoder_pallas.1} parent=5 // pred_region
        // Predicated region
        $region33: #{base_encoder_pallas.1} parent=31 // pred_check
          %p181 = pneg %p34
        $region34: #{base_encoder_pallas.1} parent=31 // pred_check_branch
          %183 = sbr.rel (%p181) target = $region36
        $region35: #{base_encoder_pallas.1} parent=31 // pred_region
          %p184 = scmp.lt.s32.totalorder %s14, 1
          %s185 = scalar_select %p184, %s14, 1
          %s186 = smul.addr %s185, 32
          %s187 = smul.addr %s186, 8
          %s188 = scalar_lea.vmem %s0, %s187
        $region36: #{base_encoder_pallas.1} parent=31 // pred_fallthru
          _
      $region32: #{base_encoder_pallas.1} parent=5 // pred_fallthru
        _
      %p189 = scmp.le.s32.totalorder 1, %s14
      %p190 = scmp.lt.s32.totalorder %s14, 3
      %p191 = pnand %p189, %p190
      %p192 = pneg %p191
      // Predicated region
      $region37: #{base_encoder_pallas.1} parent=5 // pred_check
        _
      $region38: #{base_encoder_pallas.1} parent=5 // pred_check_branch
        %194 = sbr.rel (%p191) target = $region40
      $region39: #{base_encoder_pallas.1} parent=5 // pred_region
        %s195 = ssub.s32 %s14, 1
        %p196 = scmp.lt.s32.totalorder %s19, 1
        %s197 = scalar_select %p196, %s19, 1
        %s198 = smul.addr %s197, 32
        %s199 = smul.addr %s198, 8
        %s200 = scalar_lea.vmem %s0, %s199
        %p201 = pneg %p40
        %p202 = pneg %p37
        %p203 = pneg %p61
        %p204 = pneg %p58
        %p205 = pneg %p82
        %p206 = pneg %p79
        %p207 = pneg %p103
        %p208 = pneg %p100
        %p209 = pneg %p124
        %p210 = pneg %p121
        %p211 = pneg %p150
        %p212 = pneg %p147
        %s213 = sand.u32 %s137, 1
        %s214 = scalar_lea.sflag [#allocation5], %s213
        %s215 = sand.u32 %s137, 1
        %s216 = smul.addr %s215, 256
        %s217 = scalar_lea.vmem [#allocation4], %s216
        %p218 = scmp.lt.s32.totalorder %s19, 1
        %s219 = scalar_select %p218, %s19, 1
        %s220 = smul.addr %s219, 32
        %s221 = smul.addr %s220, 8
        %s222 = scalar_lea.vmem %s0, %s221
        %vm224 = vcmask 31744
        %225 = vst.msk [vmem:[#allocation2] sm:$0xff] %vm224, 0.0
        %226 = vst.msk [vmem:[#allocation2 + $0x8] sm:$0xff] %vm224, 0.0
        %vm227 = vcmask 27648
        %228 = vst.msk [vmem:[#allocation2 + $0x10] sm:$0xf] %vm227, 0.0
        %229 = vst.msk [vmem:[#allocation2 + $0x18] sm:$0xff] %vm224, 0.0
        %230 = vst.msk [vmem:[#allocation2 + $0x20] sm:$0xff] %vm224, 0.0
        %231 = vst.msk [vmem:[#allocation2 + $0x28] sm:$0xf] %vm227, 0.0
        %232 = vst.msk [vmem:[#allocation2 + $0x30] sm:$0xff] %vm224, 0.0
        %233 = vst.msk [vmem:[#allocation2 + $0x38] sm:$0xff] %vm224, 0.0
        %234 = vst.msk [vmem:[#allocation2 + $0x40] sm:$0xf] %vm227, 0.0
        %235 = vst.msk [vmem:[#allocation2 + $0x48] sm:$0xff] %vm224, 0.0
        %236 = vst.msk [vmem:[#allocation2 + $0x50] sm:$0xff] %vm224, 0.0
        %237 = vst.msk [vmem:[#allocation2 + $0x58] sm:$0xf] %vm227, 0.0
        %238 = vst.msk [vmem:[#allocation2 + $0x60] sm:$0xff] %vm224, 0.0
        %239 = vst.msk [vmem:[#allocation2 + $0x68] sm:$0xff] %vm224, 0.0
        %240 = vst.msk [vmem:[#allocation2 + $0x70] sm:$0xf] %vm227, 0.0
        %241 = vst.msk [vmem:[#allocation2 + $0x78] sm:$0xff] %vm224, 0.0
        %242 = vst.msk [vmem:[#allocation2 + $0x80] sm:$0xff] %vm224, 0.0
        %243 = vst.msk [vmem:[#allocation2 + $0x88] sm:$0xf] %vm227, 0.0
        %244 = vst.msk [vmem:[#allocation2 + $0x90] sm:$0xff] %vm224, 0.0
        %245 = vst.msk [vmem:[#allocation2 + $0x98] sm:$0xff] %vm224, 0.0
        %246 = vst.msk [vmem:[#allocation2 + $0xa0] sm:$0xf] %vm227, 0.0
        %247 = vst.msk [vmem:[#allocation2 + $0xa8] sm:$0xff] %vm224, 0.0
        %248 = vst.msk [vmem:[#allocation2 + $0xb0] sm:$0xff] %vm224, 0.0
        %249 = vst.msk [vmem:[#allocation2 + $0xb8] sm:$0xf] %vm227, 0.0
        %250 = vst.msk [vmem:[#allocation2 + $0xc0] sm:$0xff] %vm224, 0.0
        %251 = vst.msk [vmem:[#allocation2 + $0xc8] sm:$0xff] %vm224, 0.0
        %252 = vst.msk [vmem:[#allocation2 + $0xd0] sm:$0xf] %vm227, 0.0
        %253 = vst.msk [vmem:[#allocation2 + $0xd8] sm:$0xff] %vm224, 0.0
        %254 = vst.msk [vmem:[#allocation2 + $0xe0] sm:$0xff] %vm224, 0.0
        %255 = vst.msk [vmem:[#allocation2 + $0xe8] sm:$0xf] %vm227, 0.0
        %256 = vst.msk [vmem:[#allocation2 + $0xf0] sm:$0xff] %vm224, 0.0
        %257 = vst.msk [vmem:[#allocation2 + $0xf8] sm:$0xff] %vm224, 0.0
        %258 = vst.msk [vmem:[#allocation2 + $0x100] sm:$0xf] %vm227, 0.0
        %259 = vst.msk [vmem:[#allocation2 + $0x108] sm:$0xff] %vm224, 0.0
        %260 = vst.msk [vmem:[#allocation2 + $0x110] sm:$0xff] %vm224, 0.0
        %261 = vst.msk [vmem:[#allocation2 + $0x118] sm:$0xf] %vm227, 0.0
        %262 = vst.msk [vmem:[#allocation2 + $0x120] sm:$0xff] %vm224, 0.0
        %263 = vst.msk [vmem:[#allocation2 + $0x128] sm:$0xff] %vm224, 0.0
        %264 = vst.msk [vmem:[#allocation2 + $0x130] sm:$0xf] %vm227, 0.0
        %265 = vst.msk [vmem:[#allocation2 + $0x138] sm:$0xff] %vm224, 0.0
        %266 = vst.msk [vmem:[#allocation2 + $0x140] sm:$0xff] %vm224, 0.0
        %267 = vst.msk [vmem:[#allocation2 + $0x148] sm:$0xf] %vm227, 0.0
        %268 = vst.msk [vmem:[#allocation2 + $0x150] sm:$0xff] %vm224, 0.0
        %269 = vst.msk [vmem:[#allocation2 + $0x158] sm:$0xff] %vm224, 0.0
        %270 = vst.msk [vmem:[#allocation2 + $0x160] sm:$0xf] %vm227, 0.0
        %271 = vst.msk [vmem:[#allocation2 + $0x168] sm:$0xff] %vm224, 0.0
        %272 = vst.msk [vmem:[#allocation2 + $0x170] sm:$0xff] %vm224, 0.0
        %273 = vst.msk [vmem:[#allocation2 + $0x178] sm:$0xf] %vm227, 0.0
        %274 = vst.msk [vmem:[#allocation2 + $0x180] sm:$0xff] %vm224, 0.0
        %275 = vst.msk [vmem:[#allocation2 + $0x188] sm:$0xff] %vm224, 0.0
        %276 = vst.msk [vmem:[#allocation2 + $0x190] sm:$0xf] %vm227, 0.0
        %277 = vst.msk [vmem:[#allocation2 + $0x198] sm:$0xff] %vm224, 0.0
        %278 = vst.msk [vmem:[#allocation2 + $0x1a0] sm:$0xff] %vm224, 0.0
        %279 = vst.msk [vmem:[#allocation2 + $0x1a8] sm:$0xf] %vm227, 0.0
        %280 = vst.msk [vmem:[#allocation2 + $0x1b0] sm:$0xff] %vm224, 0.0
        %281 = vst.msk [vmem:[#allocation2 + $0x1b8] sm:$0xff] %vm224, 0.0
        %282 = vst.msk [vmem:[#allocation2 + $0x1c0] sm:$0xf] %vm227, 0.0
        %283 = vst.msk [vmem:[#allocation2 + $0x1c8] sm:$0xff] %vm224, 0.0
        %284 = vst.msk [vmem:[#allocation2 + $0x1d0] sm:$0xff] %vm224, 0.0
        %285 = vst.msk [vmem:[#allocation2 + $0x1d8] sm:$0xf] %vm227, 0.0
        %v286 = vld [vmem:[%s222] sm:$0xff]
        %v287 = vld [vmem:[%s222 + $0x8] sm:$0xff]
        %v288 = vld [vmem:[%s222 + $0x10] sm:$0xff]
        %v289 = vld [vmem:[%s222 + $0x18] sm:$0xff]
        %v290 = vld [vmem:[%s222 + $0x20] sm:$0xff]
        %v291 = vld [vmem:[%s222 + $0x28] sm:$0xff]
        %v292 = vld [vmem:[%s222 + $0x30] sm:$0xff]
        %v293 = vld [vmem:[%s222 + $0x38] sm:$0xff]
        %v294 = vld [vmem:[%s222 + $0x40] sm:$0xff]
        %v295 = vld [vmem:[%s222 + $0x48] sm:$0xff]
        %v296 = vld [vmem:[%s222 + $0x50] sm:$0xff]
        %v297 = vld [vmem:[%s222 + $0x58] sm:$0xff]
        %v298 = vld [vmem:[%s222 + $0x60] sm:$0xff]
        %v299 = vld [vmem:[%s222 + $0x68] sm:$0xff]
        %v300 = vld [vmem:[%s222 + $0x70] sm:$0xff]
        %v301 = vld [vmem:[%s222 + $0x78] sm:$0xff]
        %v302 = vld [vmem:[%s222 + $0x80] sm:$0xff]
        %v303 = vld [vmem:[%s222 + $0x88] sm:$0xff]
        %v304 = vld [vmem:[%s222 + $0x90] sm:$0xff]
        %v305 = vld [vmem:[%s222 + $0x98] sm:$0xff]
        %v306 = vld [vmem:[%s222 + $0xa0] sm:$0xff]
        %v307 = vld [vmem:[%s222 + $0xa8] sm:$0xff]
        %v308 = vld [vmem:[%s222 + $0xb0] sm:$0xff]
        %v309 = vld [vmem:[%s222 + $0xb8] sm:$0xff]
        %v310 = vld [vmem:[%s222 + $0xc0] sm:$0xff]
        %v311 = vld [vmem:[%s222 + $0xc8] sm:$0xff]
        %v312 = vld [vmem:[%s222 + $0xd0] sm:$0xff]
        %v313 = vld [vmem:[%s222 + $0xd8] sm:$0xff]
        %v314 = vld [vmem:[%s222 + $0xe0] sm:$0xff]
        %v315 = vld [vmem:[%s222 + $0xe8] sm:$0xff]
        %v316 = vld [vmem:[%s222 + $0xf0] sm:$0xff]
        %v317 = vld [vmem:[%s222 + $0xf8] sm:$0xff]
        %s318 = scalar_lea.vmem [#allocation2], 48
        %319 = vst.msk [vmem:[%s318 + $0x2] sm:$0xff] %vm224, %v286
        %320 = vst.msk [vmem:[%s318 + $0xa] sm:$0xff] %vm224, %v287
        %321 = vst.msk [vmem:[%s318 + $0x1a] sm:$0xff] %vm224, %v288
        %322 = vst.msk [vmem:[%s318 + $0x22] sm:$0xff] %vm224, %v289
        %323 = vst.msk [vmem:[%s318 + $0x32] sm:$0xff] %vm224, %v290
        %324 = vst.msk [vmem:[%s318 + $0x3a] sm:$0xff] %vm224, %v291
        %325 = vst.msk [vmem:[%s318 + $0x4a] sm:$0xff] %vm224, %v292
        %326 = vst.msk [vmem:[%s318 + $0x52] sm:$0xff] %vm224, %v293
        %327 = vst.msk [vmem:[%s318 + $0x62] sm:$0xff] %vm224, %v294
        %328 = vst.msk [vmem:[%s318 + $0x6a] sm:$0xff] %vm224, %v295
        %329 = vst.msk [vmem:[%s318 + $0x7a] sm:$0xff] %vm224, %v296
        %330 = vst.msk [vmem:[%s318 + $0x82] sm:$0xff] %vm224, %v297
        %331 = vst.msk [vmem:[%s318 + $0x92] sm:$0xff] %vm224, %v298
        %332 = vst.msk [vmem:[%s318 + $0x9a] sm:$0xff] %vm224, %v299
        %333 = vst.msk [vmem:[%s318 + $0xaa] sm:$0xff] %vm224, %v300
        %334 = vst.msk [vmem:[%s318 + $0xb2] sm:$0xff] %vm224, %v301
        %335 = vst.msk [vmem:[%s318 + $0xc2] sm:$0xff] %vm224, %v302
        %336 = vst.msk [vmem:[%s318 + $0xca] sm:$0xff] %vm224, %v303
        %337 = vst.msk [vmem:[%s318 + $0xda] sm:$0xff] %vm224, %v304
        %338 = vst.msk [vmem:[%s318 + $0xe2] sm:$0xff] %vm224, %v305
        %339 = vst.msk [vmem:[%s318 + $0xf2] sm:$0xff] %vm224, %v306
        %340 = vst.msk [vmem:[%s318 + $0xfa] sm:$0xff] %vm224, %v307
        %341 = vst.msk [vmem:[%s318 + $0x10a] sm:$0xff] %vm224, %v308
        %342 = vst.msk [vmem:[%s318 + $0x112] sm:$0xff] %vm224, %v309
        %343 = vst.msk [vmem:[%s318 + $0x122] sm:$0xff] %vm224, %v310
        %344 = vst.msk [vmem:[%s318 + $0x12a] sm:$0xff] %vm224, %v311
        %345 = vst.msk [vmem:[%s318 + $0x13a] sm:$0xff] %vm224, %v312
        %346 = vst.msk [vmem:[%s318 + $0x142] sm:$0xff] %vm224, %v313
        %347 = vst.msk [vmem:[%s318 + $0x152] sm:$0xff] %vm224, %v314
        %348 = vst.msk [vmem:[%s318 + $0x15a] sm:$0xff] %vm224, %v315
        %349 = vst.msk [vmem:[%s318 + $0x16a] sm:$0xff] %vm224, %v316
        %350 = vst.msk [vmem:[%s318 + $0x172] sm:$0xff] %vm224, %v317
        %v351 = vld [vmem:[#allocation2] sm:$0xff]
        %v352 = vld [vmem:[#allocation2 + $0x8] sm:$0xff]
        %v353 = vld [vmem:[#allocation2 + $0x18] sm:$0xff]
        %v354 = vld [vmem:[#allocation2 + $0x20] sm:$0xff]
        %v355 = vld [vmem:[#allocation2 + $0x30] sm:$0xff]
        %v356 = vld [vmem:[#allocation2 + $0x38] sm:$0xff]
        %v357 = vld [vmem:[#allocation2 + $0x48] sm:$0xff]
        %v358 = vld [vmem:[#allocation2 + $0x50] sm:$0xff]
        %v359 = vld [vmem:[#allocation2 + $0x60] sm:$0xff]
        %v360 = vld [vmem:[#allocation2 + $0x68] sm:$0xff]
        %v361 = vld [vmem:[#allocation2 + $0x78] sm:$0xff]
        %v362 = vld [vmem:[#allocation2 + $0x80] sm:$0xff]
        %v363 = vld [vmem:[#allocation2 + $0x90] sm:$0xff]
        %v364 = vld [vmem:[#allocation2 + $0x98] sm:$0xff]
        %v365 = vld [vmem:[#allocation2 + $0xa8] sm:$0xff]
        %v366 = vld [vmem:[#allocation2 + $0xb0] sm:$0xff]
        %v367 = vld [vmem:[#allocation2 + $0xc0] sm:$0xff]
        %v368 = vld [vmem:[#allocation2 + $0xc8] sm:$0xff]
        %v369 = vld [vmem:[#allocation2 + $0xd8] sm:$0xff]
        %v370 = vld [vmem:[#allocation2 + $0xe0] sm:$0xff]
        %v371 = vld [vmem:[#allocation2 + $0xf0] sm:$0xff]
        %v372 = vld [vmem:[#allocation2 + $0xf8] sm:$0xff]
        %v373 = vld [vmem:[#allocation2 + $0x108] sm:$0xff]
        %v374 = vld [vmem:[#allocation2 + $0x110] sm:$0xff]
        %v375 = vld [vmem:[#allocation2 + $0x120] sm:$0xff]
        %v376 = vld [vmem:[#allocation2 + $0x128] sm:$0xff]
        %v377 = vld [vmem:[#allocation2 + $0x138] sm:$0xff]
        %v378 = vld [vmem:[#allocation2 + $0x140] sm:$0xff]
        %v379 = vld [vmem:[#allocation2 + $0x150] sm:$0xff]
        %v380 = vld [vmem:[#allocation2 + $0x158] sm:$0xff]
        %v381 = vld [vmem:[#allocation2 + $0x168] sm:$0xff]
        %v382 = vld [vmem:[#allocation2 + $0x170] sm:$0xff]
        %v383 = vld [vmem:[#allocation2 + $0x1] sm:$0xff]
        %v384 = vld [vmem:[#allocation2 + $0x9] sm:$0xff]
        %v385 = vld [vmem:[#allocation2 + $0x19] sm:$0xff]
        %v386 = vld [vmem:[#allocation2 + $0x21] sm:$0xff]
        %v387 = vld [vmem:[#allocation2 + $0x31] sm:$0xff]
        %v388 = vld [vmem:[#allocation2 + $0x39] sm:$0xff]
        %v389 = vld [vmem:[#allocation2 + $0x49] sm:$0xff]
        %v390 = vld [vmem:[#allocation2 + $0x51] sm:$0xff]
        %v391 = vld [vmem:[#allocation2 + $0x61] sm:$0xff]
        %v392 = vld [vmem:[#allocation2 + $0x69] sm:$0xff]
        %v393 = vld [vmem:[#allocation2 + $0x79] sm:$0xff]
        %v394 = vld [vmem:[#allocation2 + $0x81] sm:$0xff]
        %v395 = vld [vmem:[#allocation2 + $0x91] sm:$0xff]
        %v396 = vld [vmem:[#allocation2 + $0x99] sm:$0xff]
        %v397 = vld [vmem:[#allocation2 + $0xa9] sm:$0xff]
        %v398 = vld [vmem:[#allocation2 + $0xb1] sm:$0xff]
        %v399 = vld [vmem:[#allocation2 + $0xc1] sm:$0xff]
        %v400 = vld [vmem:[#allocation2 + $0xc9] sm:$0xff]
        %v401 = vld [vmem:[#allocation2 + $0xd9] sm:$0xff]
        %v402 = vld [vmem:[#allocation2 + $0xe1] sm:$0xff]
        %v403 = vld [vmem:[#allocation2 + $0xf1] sm:$0xff]
        %v404 = vld [vmem:[#allocation2 + $0xf9] sm:$0xff]
        %v405 = vld [vmem:[#allocation2 + $0x109] sm:$0xff]
        %v406 = vld [vmem:[#allocation2 + $0x111] sm:$0xff]
        %v407 = vld [vmem:[#allocation2 + $0x121] sm:$0xff]
        %v408 = vld [vmem:[#allocation2 + $0x129] sm:$0xff]
        %v409 = vld [vmem:[#allocation2 + $0x139] sm:$0xff]
        %v410 = vld [vmem:[#allocation2 + $0x141] sm:$0xff]
        %v411 = vld [vmem:[#allocation2 + $0x151] sm:$0xff]
        %v412 = vld [vmem:[#allocation2 + $0x159] sm:$0xff]
        %v413 = vld [vmem:[#allocation2 + $0x169] sm:$0xff]
        %v414 = vld [vmem:[#allocation2 + $0x171] sm:$0xff]
        %v415 = vld [vmem:[#allocation2 + $0x2] sm:$0xff]
        %v416 = vld [vmem:[#allocation2 + $0xa] sm:$0xff]
        %v417 = vld [vmem:[#allocation2 + $0x1a] sm:$0xff]
        %v418 = vld [vmem:[#allocation2 + $0x22] sm:$0xff]
        %v419 = vld [vmem:[#allocation2 + $0x32] sm:$0xff]
        %v420 = vld [vmem:[#allocation2 + $0x3a] sm:$0xff]
        %v421 = vld [vmem:[#allocation2 + $0x4a] sm:$0xff]
        %v422 = vld [vmem:[#allocation2 + $0x52] sm:$0xff]
        %v423 = vld [vmem:[#allocation2 + $0x62] sm:$0xff]
        %v424 = vld [vmem:[#allocation2 + $0x6a] sm:$0xff]
        %v425 = vld [vmem:[#allocation2 + $0x7a] sm:$0xff]
        %v426 = vld [vmem:[#allocation2 + $0x82] sm:$0xff]
        %v427 = vld [vmem:[#allocation2 + $0x92] sm:$0xff]
        %v428 = vld [vmem:[#allocation2 + $0x9a] sm:$0xff]
        %v429 = vld [vmem:[#allocation2 + $0xaa] sm:$0xff]
        %v430 = vld [vmem:[#allocation2 + $0xb2] sm:$0xff]
        %v431 = vld [vmem:[#allocation2 + $0xc2] sm:$0xff]
        %v432 = vld [vmem:[#allocation2 + $0xca] sm:$0xff]
        %v433 = vld [vmem:[#allocation2 + $0xda] sm:$0xff]
        %v434 = vld [vmem:[#allocation2 + $0xe2] sm:$0xff]
        %v435 = vld [vmem:[#allocation2 + $0xf2] sm:$0xff]
        %v436 = vld [vmem:[#allocation2 + $0xfa] sm:$0xff]
        %v437 = vld [vmem:[#allocation2 + $0x10a] sm:$0xff]
        %v438 = vld [vmem:[#allocation2 + $0x112] sm:$0xff]
        %v439 = vld [vmem:[#allocation2 + $0x122] sm:$0xff]
        %v440 = vld [vmem:[#allocation2 + $0x12a] sm:$0xff]
        %v441 = vld [vmem:[#allocation2 + $0x13a] sm:$0xff]
        %v442 = vld [vmem:[#allocation2 + $0x142] sm:$0xff]
        %v443 = vld [vmem:[#allocation2 + $0x152] sm:$0xff]
        %v444 = vld [vmem:[#allocation2 + $0x15a] sm:$0xff]
        %v445 = vld [vmem:[#allocation2 + $0x16a] sm:$0xff]
        %v446 = vld [vmem:[#allocation2 + $0x172] sm:$0xff]
        %v447 = vld [vmem:[#allocation2 + $0x3] sm:$0xff]
        %v448 = vld [vmem:[#allocation2 + $0xb] sm:$0xff]
        %v449 = vld [vmem:[#allocation2 + $0x1b] sm:$0xff]
        %v450 = vld [vmem:[#allocation2 + $0x23] sm:$0xff]
        %v451 = vld [vmem:[#allocation2 + $0x33] sm:$0xff]
        %v452 = vld [vmem:[#allocation2 + $0x3b] sm:$0xff]
        %v453 = vld [vmem:[#allocation2 + $0x4b] sm:$0xff]
        %v454 = vld [vmem:[#allocation2 + $0x53] sm:$0xff]
        %v455 = vld [vmem:[#allocation2 + $0x63] sm:$0xff]
        %v456 = vld [vmem:[#allocation2 + $0x6b] sm:$0xff]
        %v457 = vld [vmem:[#allocation2 + $0x7b] sm:$0xff]
        %v458 = vld [vmem:[#allocation2 + $0x83] sm:$0xff]
        %v459 = vld [vmem:[#allocation2 + $0x93] sm:$0xff]
        %v460 = vld [vmem:[#allocation2 + $0x9b] sm:$0xff]
        %v461 = vld [vmem:[#allocation2 + $0xab] sm:$0xff]
        %v462 = vld [vmem:[#allocation2 + $0xb3] sm:$0xff]
        %v463 = vld [vmem:[#allocation2 + $0xc3] sm:$0xff]
        %v464 = vld [vmem:[#allocation2 + $0xcb] sm:$0xff]
        %v465 = vld [vmem:[#allocation2 + $0xdb] sm:$0xff]
        %v466 = vld [vmem:[#allocation2 + $0xe3] sm:$0xff]
        %v467 = vld [vmem:[#allocation2 + $0xf3] sm:$0xff]
        %v468 = vld [vmem:[#allocation2 + $0xfb] sm:$0xff]
        %v469 = vld [vmem:[#allocation2 + $0x10b] sm:$0xff]
        %v470 = vld [vmem:[#allocation2 + $0x113] sm:$0xff]
        %v471 = vld [vmem:[#allocation2 + $0x123] sm:$0xff]
        %v472 = vld [vmem:[#allocation2 + $0x12b] sm:$0xff]
        %v473 = vld [vmem:[#allocation2 + $0x13b] sm:$0xff]
        %v474 = vld [vmem:[#allocation2 + $0x143] sm:$0xff]
        %v475 = vld [vmem:[#allocation2 + $0x153] sm:$0xff]
        %v476 = vld [vmem:[#allocation2 + $0x15b] sm:$0xff]
        %v477 = vld [vmem:[#allocation2 + $0x16b] sm:$0xff]
        %v478 = vld [vmem:[#allocation2 + $0x173] sm:$0xff]
        %v479 = vld [vmem:[#allocation2 + $0x4] sm:$0xff]
        %v480 = vld [vmem:[#allocation2 + $0xc] sm:$0xff]
        %v481 = vld [vmem:[#allocation2 + $0x1c] sm:$0xff]
        %v482 = vld [vmem:[#allocation2 + $0x24] sm:$0xff]
        %v483 = vld [vmem:[#allocation2 + $0x34] sm:$0xff]
        %v484 = vld [vmem:[#allocation2 + $0x3c] sm:$0xff]
        %v485 = vld [vmem:[#allocation2 + $0x4c] sm:$0xff]
        %v486 = vld [vmem:[#allocation2 + $0x54] sm:$0xff]
        %v487 = vld [vmem:[#allocation2 + $0x64] sm:$0xff]
        %v488 = vld [vmem:[#allocation2 + $0x6c] sm:$0xff]
        %v489 = vld [vmem:[#allocation2 + $0x7c] sm:$0xff]
        %v490 = vld [vmem:[#allocation2 + $0x84] sm:$0xff]
        %v491 = vld [vmem:[#allocation2 + $0x94] sm:$0xff]
        %v492 = vld [vmem:[#allocation2 + $0x9c] sm:$0xff]
        %v493 = vld [vmem:[#allocation2 + $0xac] sm:$0xff]
        %v494 = vld [vmem:[#allocation2 + $0xb4] sm:$0xff]
        %v495 = vld [vmem:[#allocation2 + $0xc4] sm:$0xff]
        %v496 = vld [vmem:[#allocation2 + $0xcc] sm:$0xff]
        %v497 = vld [vmem:[#allocation2 + $0xdc] sm:$0xff]
        %v498 = vld [vmem:[#allocation2 + $0xe4] sm:$0xff]
        %v499 = vld [vmem:[#allocation2 + $0xf4] sm:$0xff]
        %v500 = vld [vmem:[#allocation2 + $0xfc] sm:$0xff]
        %v501 = vld [vmem:[#allocation2 + $0x10c] sm:$0xff]
        %v502 = vld [vmem:[#allocation2 + $0x114] sm:$0xff]
        %v503 = vld [vmem:[#allocation2 + $0x124] sm:$0xff]
        %v504 = vld [vmem:[#allocation2 + $0x12c] sm:$0xff]
        %v505 = vld [vmem:[#allocation2 + $0x13c] sm:$0xff]
        %v506 = vld [vmem:[#allocation2 + $0x144] sm:$0xff]
        %v507 = vld [vmem:[#allocation2 + $0x154] sm:$0xff]
        %v508 = vld [vmem:[#allocation2 + $0x15c] sm:$0xff]
        %v509 = vld [vmem:[#allocation2 + $0x16c] sm:$0xff]
        %v510 = vld [vmem:[#allocation2 + $0x174] sm:$0xff]
        %s511 = scalar_lea.vmem [#allocation2], 24
        %v512 = vld [vmem:[%s511] sm:$0xff]
        %v513 = vld [vmem:[%s511 + $0x8] sm:$0xff]
        %v514 = vld [vmem:[%s511 + $0x18] sm:$0xff]
        %v515 = vld [vmem:[%s511 + $0x20] sm:$0xff]
        %v516 = vld [vmem:[%s511 + $0x30] sm:$0xff]
        %v517 = vld [vmem:[%s511 + $0x38] sm:$0xff]
        %v518 = vld [vmem:[%s511 + $0x48] sm:$0xff]
        %v519 = vld [vmem:[%s511 + $0x50] sm:$0xff]
        %v520 = vld [vmem:[%s511 + $0x60] sm:$0xff]
        %v521 = vld [vmem:[%s511 + $0x68] sm:$0xff]
        %v522 = vld [vmem:[%s511 + $0x78] sm:$0xff]
        %v523 = vld [vmem:[%s511 + $0x80] sm:$0xff]
        %v524 = vld [vmem:[%s511 + $0x90] sm:$0xff]
        %v525 = vld [vmem:[%s511 + $0x98] sm:$0xff]
        %v526 = vld [vmem:[%s511 + $0xa8] sm:$0xff]
        %v527 = vld [vmem:[%s511 + $0xb0] sm:$0xff]
        %v528 = vld [vmem:[%s511 + $0xc0] sm:$0xff]
        %v529 = vld [vmem:[%s511 + $0xc8] sm:$0xff]
        %v530 = vld [vmem:[%s511 + $0xd8] sm:$0xff]
        %v531 = vld [vmem:[%s511 + $0xe0] sm:$0xff]
        %v532 = vld [vmem:[%s511 + $0xf0] sm:$0xff]
        %v533 = vld [vmem:[%s511 + $0xf8] sm:$0xff]
        %v534 = vld [vmem:[%s511 + $0x108] sm:$0xff]
        %v535 = vld [vmem:[%s511 + $0x110] sm:$0xff]
        %v536 = vld [vmem:[%s511 + $0x120] sm:$0xff]
        %v537 = vld [vmem:[%s511 + $0x128] sm:$0xff]
        %v538 = vld [vmem:[%s511 + $0x138] sm:$0xff]
        %v539 = vld [vmem:[%s511 + $0x140] sm:$0xff]
        %v540 = vld [vmem:[%s511 + $0x150] sm:$0xff]
        %v541 = vld [vmem:[%s511 + $0x158] sm:$0xff]
        %v542 = vld [vmem:[%s511 + $0x168] sm:$0xff]
        %v543 = vld [vmem:[%s511 + $0x170] sm:$0xff]
        %v544 = vld [vmem:[%s511 + $0x1] sm:$0xff]
        %v545 = vld [vmem:[%s511 + $0x9] sm:$0xff]
        %v546 = vld [vmem:[%s511 + $0x19] sm:$0xff]
        %v547 = vld [vmem:[%s511 + $0x21] sm:$0xff]
        %v548 = vld [vmem:[%s511 + $0x31] sm:$0xff]
        %v549 = vld [vmem:[%s511 + $0x39] sm:$0xff]
        %v550 = vld [vmem:[%s511 + $0x49] sm:$0xff]
        %v551 = vld [vmem:[%s511 + $0x51] sm:$0xff]
        %v552 = vld [vmem:[%s511 + $0x61] sm:$0xff]
        %v553 = vld [vmem:[%s511 + $0x69] sm:$0xff]
        %v554 = vld [vmem:[%s511 + $0x79] sm:$0xff]
        %v555 = vld [vmem:[%s511 + $0x81] sm:$0xff]
        %v556 = vld [vmem:[%s511 + $0x91] sm:$0xff]
        %v557 = vld [vmem:[%s511 + $0x99] sm:$0xff]
        %v558 = vld [vmem:[%s511 + $0xa9] sm:$0xff]
        %v559 = vld [vmem:[%s511 + $0xb1] sm:$0xff]
        %v560 = vld [vmem:[%s511 + $0xc1] sm:$0xff]
        %v561 = vld [vmem:[%s511 + $0xc9] sm:$0xff]
        %v562 = vld [vmem:[%s511 + $0xd9] sm:$0xff]
        %v563 = vld [vmem:[%s511 + $0xe1] sm:$0xff]
        %v564 = vld [vmem:[%s511 + $0xf1] sm:$0xff]
        %v565 = vld [vmem:[%s511 + $0xf9] sm:$0xff]
        %v566 = vld [vmem:[%s511 + $0x109] sm:$0xff]
        %v567 = vld [vmem:[%s511 + $0x111] sm:$0xff]
        %v568 = vld [vmem:[%s511 + $0x121] sm:$0xff]
        %v569 = vld [vmem:[%s511 + $0x129] sm:$0xff]
        %v570 = vld [vmem:[%s511 + $0x139] sm:$0xff]
        %v571 = vld [vmem:[%s511 + $0x141] sm:$0xff]
        %v572 = vld [vmem:[%s511 + $0x151] sm:$0xff]
        %v573 = vld [vmem:[%s511 + $0x159] sm:$0xff]
        %v574 = vld [vmem:[%s511 + $0x169] sm:$0xff]
        %v575 = vld [vmem:[%s511 + $0x171] sm:$0xff]
        %v576 = vld [vmem:[%s511 + $0x2] sm:$0xff]
        %v577 = vld [vmem:[%s511 + $0xa] sm:$0xff]
        %v578 = vld [vmem:[%s511 + $0x1a] sm:$0xff]
        %v579 = vld [vmem:[%s511 + $0x22] sm:$0xff]
        %v580 = vld [vmem:[%s511 + $0x32] sm:$0xff]
        %v581 = vld [vmem:[%s511 + $0x3a] sm:$0xff]
        %v582 = vld [vmem:[%s511 + $0x4a] sm:$0xff]
        %v583 = vld [vmem:[%s511 + $0x52] sm:$0xff]
        %v584 = vld [vmem:[%s511 + $0x62] sm:$0xff]
        %v585 = vld [vmem:[%s511 + $0x6a] sm:$0xff]
        %v586 = vld [vmem:[%s511 + $0x7a] sm:$0xff]
        %v587 = vld [vmem:[%s511 + $0x82] sm:$0xff]
        %v588 = vld [vmem:[%s511 + $0x92] sm:$0xff]
        %v589 = vld [vmem:[%s511 + $0x9a] sm:$0xff]
        %v590 = vld [vmem:[%s511 + $0xaa] sm:$0xff]
        %v591 = vld [vmem:[%s511 + $0xb2] sm:$0xff]
        %v592 = vld [vmem:[%s511 + $0xc2] sm:$0xff]
        %v593 = vld [vmem:[%s511 + $0xca] sm:$0xff]
        %v594 = vld [vmem:[%s511 + $0xda] sm:$0xff]
        %v595 = vld [vmem:[%s511 + $0xe2] sm:$0xff]
        %v596 = vld [vmem:[%s511 + $0xf2] sm:$0xff]
        %v597 = vld [vmem:[%s511 + $0xfa] sm:$0xff]
        %v598 = vld [vmem:[%s511 + $0x10a] sm:$0xff]
        %v599 = vld [vmem:[%s511 + $0x112] sm:$0xff]
        %v600 = vld [vmem:[%s511 + $0x122] sm:$0xff]
        %v601 = vld [vmem:[%s511 + $0x12a] sm:$0xff]
        %v602 = vld [vmem:[%s511 + $0x13a] sm:$0xff]
        %v603 = vld [vmem:[%s511 + $0x142] sm:$0xff]
        %v604 = vld [vmem:[%s511 + $0x152] sm:$0xff]
        %v605 = vld [vmem:[%s511 + $0x15a] sm:$0xff]
        %v606 = vld [vmem:[%s511 + $0x16a] sm:$0xff]
        %v607 = vld [vmem:[%s511 + $0x172] sm:$0xff]
        %v608 = vld [vmem:[%s511 + $0x3] sm:$0xff]
        %v609 = vld [vmem:[%s511 + $0xb] sm:$0xff]
        %v610 = vld [vmem:[%s511 + $0x1b] sm:$0xff]
        %v611 = vld [vmem:[%s511 + $0x23] sm:$0xff]
        %v612 = vld [vmem:[%s511 + $0x33] sm:$0xff]
        %v613 = vld [vmem:[%s511 + $0x3b] sm:$0xff]
        %v614 = vld [vmem:[%s511 + $0x4b] sm:$0xff]
        %v615 = vld [vmem:[%s511 + $0x53] sm:$0xff]
        %v616 = vld [vmem:[%s511 + $0x63] sm:$0xff]
        %v617 = vld [vmem:[%s511 + $0x6b] sm:$0xff]
        %v618 = vld [vmem:[%s511 + $0x7b] sm:$0xff]
        %v619 = vld [vmem:[%s511 + $0x83] sm:$0xff]
        %v620 = vld [vmem:[%s511 + $0x93] sm:$0xff]
        %v621 = vld [vmem:[%s511 + $0x9b] sm:$0xff]
        %v622 = vld [vmem:[%s511 + $0xab] sm:$0xff]
        %v623 = vld [vmem:[%s511 + $0xb3] sm:$0xff]
        %v624 = vld [vmem:[%s511 + $0xc3] sm:$0xff]
        %v625 = vld [vmem:[%s511 + $0xcb] sm:$0xff]
        %v626 = vld [vmem:[%s511 + $0xdb] sm:$0xff]
        %v627 = vld [vmem:[%s511 + $0xe3] sm:$0xff]
        %v628 = vld [vmem:[%s511 + $0xf3] sm:$0xff]
        %v629 = vld [vmem:[%s511 + $0xfb] sm:$0xff]
        %v630 = vld [vmem:[%s511 + $0x10b] sm:$0xff]
        %v631 = vld [vmem:[%s511 + $0x113] sm:$0xff]
        %v632 = vld [vmem:[%s511 + $0x123] sm:$0xff]
        %v633 = vld [vmem:[%s511 + $0x12b] sm:$0xff]
        %v634 = vld [vmem:[%s511 + $0x13b] sm:$0xff]
        %v635 = vld [vmem:[%s511 + $0x143] sm:$0xff]
        %v636 = vld [vmem:[%s511 + $0x153] sm:$0xff]
        %v637 = vld [vmem:[%s511 + $0x15b] sm:$0xff]
        %v638 = vld [vmem:[%s511 + $0x16b] sm:$0xff]
        %v639 = vld [vmem:[%s511 + $0x173] sm:$0xff]
        %v640 = vld [vmem:[%s511 + $0x4] sm:$0xff]
        %v641 = vld [vmem:[%s511 + $0xc] sm:$0xff]
        %v642 = vld [vmem:[%s511 + $0x1c] sm:$0xff]
        %v643 = vld [vmem:[%s511 + $0x24] sm:$0xff]
        %v644 = vld [vmem:[%s511 + $0x34] sm:$0xff]
        %v645 = vld [vmem:[%s511 + $0x3c] sm:$0xff]
        %v646 = vld [vmem:[%s511 + $0x4c] sm:$0xff]
        %v647 = vld [vmem:[%s511 + $0x54] sm:$0xff]
        %v648 = vld [vmem:[%s511 + $0x64] sm:$0xff]
        %v649 = vld [vmem:[%s511 + $0x6c] sm:$0xff]
        %v650 = vld [vmem:[%s511 + $0x7c] sm:$0xff]
        %v651 = vld [vmem:[%s511 + $0x84] sm:$0xff]
        %v652 = vld [vmem:[%s511 + $0x94] sm:$0xff]
        %v653 = vld [vmem:[%s511 + $0x9c] sm:$0xff]
        %v654 = vld [vmem:[%s511 + $0xac] sm:$0xff]
        %v655 = vld [vmem:[%s511 + $0xb4] sm:$0xff]
        %v656 = vld [vmem:[%s511 + $0xc4] sm:$0xff]
        %v657 = vld [vmem:[%s511 + $0xcc] sm:$0xff]
        %v658 = vld [vmem:[%s511 + $0xdc] sm:$0xff]
        %v659 = vld [vmem:[%s511 + $0xe4] sm:$0xff]
        %v660 = vld [vmem:[%s511 + $0xf4] sm:$0xff]
        %v661 = vld [vmem:[%s511 + $0xfc] sm:$0xff]
        %v662 = vld [vmem:[%s511 + $0x10c] sm:$0xff]
        %v663 = vld [vmem:[%s511 + $0x114] sm:$0xff]
        %v664 = vld [vmem:[%s511 + $0x124] sm:$0xff]
        %v665 = vld [vmem:[%s511 + $0x12c] sm:$0xff]
        %v666 = vld [vmem:[%s511 + $0x13c] sm:$0xff]
        %v667 = vld [vmem:[%s511 + $0x144] sm:$0xff]
        %v668 = vld [vmem:[%s511 + $0x154] sm:$0xff]
        %v669 = vld [vmem:[%s511 + $0x15c] sm:$0xff]
        %v670 = vld [vmem:[%s511 + $0x16c] sm:$0xff]
        %v671 = vld [vmem:[%s511 + $0x174] sm:$0xff]
        %v672 = vld [vmem:[%s318] sm:$0xff]
        %v673 = vld [vmem:[%s318 + $0x8] sm:$0xff]
        %v674 = vld [vmem:[%s318 + $0x18] sm:$0xff]
        %v675 = vld [vmem:[%s318 + $0x20] sm:$0xff]
        %v676 = vld [vmem:[%s318 + $0x30] sm:$0xff]
        %v677 = vld [vmem:[%s318 + $0x38] sm:$0xff]
        %v678 = vld [vmem:[%s318 + $0x48] sm:$0xff]
        %v679 = vld [vmem:[%s318 + $0x50] sm:$0xff]
        %v680 = vld [vmem:[%s318 + $0x60] sm:$0xff]
        %v681 = vld [vmem:[%s318 + $0x68] sm:$0xff]
        %v682 = vld [vmem:[%s318 + $0x78] sm:$0xff]
        %v683 = vld [vmem:[%s318 + $0x80] sm:$0xff]
        %v684 = vld [vmem:[%s318 + $0x90] sm:$0xff]
        %v685 = vld [vmem:[%s318 + $0x98] sm:$0xff]
        %v686 = vld [vmem:[%s318 + $0xa8] sm:$0xff]
        %v687 = vld [vmem:[%s318 + $0xb0] sm:$0xff]
        %v688 = vld [vmem:[%s318 + $0xc0] sm:$0xff]
        %v689 = vld [vmem:[%s318 + $0xc8] sm:$0xff]
        %v690 = vld [vmem:[%s318 + $0xd8] sm:$0xff]
        %v691 = vld [vmem:[%s318 + $0xe0] sm:$0xff]
        %v692 = vld [vmem:[%s318 + $0xf0] sm:$0xff]
        %v693 = vld [vmem:[%s318 + $0xf8] sm:$0xff]
        %v694 = vld [vmem:[%s318 + $0x108] sm:$0xff]
        %v695 = vld [vmem:[%s318 + $0x110] sm:$0xff]
        %v696 = vld [vmem:[%s318 + $0x120] sm:$0xff]
        %v697 = vld [vmem:[%s318 + $0x128] sm:$0xff]
        %v698 = vld [vmem:[%s318 + $0x138] sm:$0xff]
        %v699 = vld [vmem:[%s318 + $0x140] sm:$0xff]
        %v700 = vld [vmem:[%s318 + $0x150] sm:$0xff]
        %v701 = vld [vmem:[%s318 + $0x158] sm:$0xff]
        %v702 = vld [vmem:[%s318 + $0x168] sm:$0xff]
        %v703 = vld [vmem:[%s318 + $0x170] sm:$0xff]
        %v704 = vld [vmem:[%s318 + $0x1] sm:$0xff]
        %v705 = vld [vmem:[%s318 + $0x9] sm:$0xff]
        %v706 = vld [vmem:[%s318 + $0x19] sm:$0xff]
        %v707 = vld [vmem:[%s318 + $0x21] sm:$0xff]
        %v708 = vld [vmem:[%s318 + $0x31] sm:$0xff]
        %v709 = vld [vmem:[%s318 + $0x39] sm:$0xff]
        %v710 = vld [vmem:[%s318 + $0x49] sm:$0xff]
        %v711 = vld [vmem:[%s318 + $0x51] sm:$0xff]
        %v712 = vld [vmem:[%s318 + $0x61] sm:$0xff]
        %v713 = vld [vmem:[%s318 + $0x69] sm:$0xff]
        %v714 = vld [vmem:[%s318 + $0x79] sm:$0xff]
        %v715 = vld [vmem:[%s318 + $0x81] sm:$0xff]
        %v716 = vld [vmem:[%s318 + $0x91] sm:$0xff]
        %v717 = vld [vmem:[%s318 + $0x99] sm:$0xff]
        %v718 = vld [vmem:[%s318 + $0xa9] sm:$0xff]
        %v719 = vld [vmem:[%s318 + $0xb1] sm:$0xff]
        %v720 = vld [vmem:[%s318 + $0xc1] sm:$0xff]
        %v721 = vld [vmem:[%s318 + $0xc9] sm:$0xff]
        %v722 = vld [vmem:[%s318 + $0xd9] sm:$0xff]
        %v723 = vld [vmem:[%s318 + $0xe1] sm:$0xff]
        %v724 = vld [vmem:[%s318 + $0xf1] sm:$0xff]
        %v725 = vld [vmem:[%s318 + $0xf9] sm:$0xff]
        %v726 = vld [vmem:[%s318 + $0x109] sm:$0xff]
        %v727 = vld [vmem:[%s318 + $0x111] sm:$0xff]
        %v728 = vld [vmem:[%s318 + $0x121] sm:$0xff]
        %v729 = vld [vmem:[%s318 + $0x129] sm:$0xff]
        %v730 = vld [vmem:[%s318 + $0x139] sm:$0xff]
        %v731 = vld [vmem:[%s318 + $0x141] sm:$0xff]
        %v732 = vld [vmem:[%s318 + $0x151] sm:$0xff]
        %v733 = vld [vmem:[%s318 + $0x159] sm:$0xff]
        %v734 = vld [vmem:[%s318 + $0x169] sm:$0xff]
        %v735 = vld [vmem:[%s318 + $0x171] sm:$0xff]
        %v736 = vld [vmem:[%s318 + $0x2] sm:$0xff]
        %v737 = vld [vmem:[%s318 + $0xa] sm:$0xff]
        %v738 = vld [vmem:[%s318 + $0x1a] sm:$0xff]
        %v739 = vld [vmem:[%s318 + $0x22] sm:$0xff]
        %v740 = vld [vmem:[%s318 + $0x32] sm:$0xff]
        %v741 = vld [vmem:[%s318 + $0x3a] sm:$0xff]
        %v742 = vld [vmem:[%s318 + $0x4a] sm:$0xff]
        %v743 = vld [vmem:[%s318 + $0x52] sm:$0xff]
        %v744 = vld [vmem:[%s318 + $0x62] sm:$0xff]
        %v745 = vld [vmem:[%s318 + $0x6a] sm:$0xff]
        %v746 = vld [vmem:[%s318 + $0x7a] sm:$0xff]
        %v747 = vld [vmem:[%s318 + $0x82] sm:$0xff]
        %v748 = vld [vmem:[%s318 + $0x92] sm:$0xff]
        %v749 = vld [vmem:[%s318 + $0x9a] sm:$0xff]
        %v750 = vld [vmem:[%s318 + $0xaa] sm:$0xff]
        %v751 = vld [vmem:[%s318 + $0xb2] sm:$0xff]
        %v752 = vld [vmem:[%s318 + $0xc2] sm:$0xff]
        %v753 = vld [vmem:[%s318 + $0xca] sm:$0xff]
        %v754 = vld [vmem:[%s318 + $0xda] sm:$0xff]
        %v755 = vld [vmem:[%s318 + $0xe2] sm:$0xff]
        %v756 = vld [vmem:[%s318 + $0xf2] sm:$0xff]
        %v757 = vld [vmem:[%s318 + $0xfa] sm:$0xff]
        %v758 = vld [vmem:[%s318 + $0x10a] sm:$0xff]
        %v759 = vld [vmem:[%s318 + $0x112] sm:$0xff]
        %v760 = vld [vmem:[%s318 + $0x122] sm:$0xff]
        %v761 = vld [vmem:[%s318 + $0x12a] sm:$0xff]
        %v762 = vld [vmem:[%s318 + $0x13a] sm:$0xff]
        %v763 = vld [vmem:[%s318 + $0x142] sm:$0xff]
        %v764 = vld [vmem:[%s318 + $0x152] sm:$0xff]
        %v765 = vld [vmem:[%s318 + $0x15a] sm:$0xff]
        %v766 = vld [vmem:[%s318 + $0x16a] sm:$0xff]
        %v767 = vld [vmem:[%s318 + $0x172] sm:$0xff]
        %v768 = vld [vmem:[%s318 + $0x3] sm:$0xff]
        %v769 = vld [vmem:[%s318 + $0xb] sm:$0xff]
        %v770 = vld [vmem:[%s318 + $0x1b] sm:$0xff]
        %v771 = vld [vmem:[%s318 + $0x23] sm:$0xff]
        %v772 = vld [vmem:[%s318 + $0x33] sm:$0xff]
        %v773 = vld [vmem:[%s318 + $0x3b] sm:$0xff]
        %v774 = vld [vmem:[%s318 + $0x4b] sm:$0xff]
        %v775 = vld [vmem:[%s318 + $0x53] sm:$0xff]
        %v776 = vld [vmem:[%s318 + $0x63] sm:$0xff]
        %v777 = vld [vmem:[%s318 + $0x6b] sm:$0xff]
        %v778 = vld [vmem:[%s318 + $0x7b] sm:$0xff]
        %v779 = vld [vmem:[%s318 + $0x83] sm:$0xff]
        %v780 = vld [vmem:[%s318 + $0x93] sm:$0xff]
        %v781 = vld [vmem:[%s318 + $0x9b] sm:$0xff]
        %v782 = vld [vmem:[%s318 + $0xab] sm:$0xff]
        %v783 = vld [vmem:[%s318 + $0xb3] sm:$0xff]
        %v784 = vld [vmem:[%s318 + $0xc3] sm:$0xff]
        %v785 = vld [vmem:[%s318 + $0xcb] sm:$0xff]
        %v786 = vld [vmem:[%s318 + $0xdb] sm:$0xff]
        %v787 = vld [vmem:[%s318 + $0xe3] sm:$0xff]
        %v788 = vld [vmem:[%s318 + $0xf3] sm:$0xff]
        %v789 = vld [vmem:[%s318 + $0xfb] sm:$0xff]
        %v790 = vld [vmem:[%s318 + $0x10b] sm:$0xff]
        %v791 = vld [vmem:[%s318 + $0x113] sm:$0xff]
        %v792 = vld [vmem:[%s318 + $0x123] sm:$0xff]
        %v793 = vld [vmem:[%s318 + $0x12b] sm:$0xff]
        %v794 = vld [vmem:[%s318 + $0x13b] sm:$0xff]
        %v795 = vld [vmem:[%s318 + $0x143] sm:$0xff]
        %v796 = vld [vmem:[%s318 + $0x153] sm:$0xff]
        %v797 = vld [vmem:[%s318 + $0x15b] sm:$0xff]
        %v798 = vld [vmem:[%s318 + $0x16b] sm:$0xff]
        %v799 = vld [vmem:[%s318 + $0x173] sm:$0xff]
        %v800 = vld [vmem:[%s318 + $0x4] sm:$0xff]
        %v801 = vld [vmem:[%s318 + $0xc] sm:$0xff]
        %v802 = vld [vmem:[%s318 + $0x1c] sm:$0xff]
        %v803 = vld [vmem:[%s318 + $0x24] sm:$0xff]
        %v804 = vld [vmem:[%s318 + $0x34] sm:$0xff]
        %v805 = vld [vmem:[%s318 + $0x3c] sm:$0xff]
        %v806 = vld [vmem:[%s318 + $0x4c] sm:$0xff]
        %v807 = vld [vmem:[%s318 + $0x54] sm:$0xff]
        %v808 = vld [vmem:[%s318 + $0x64] sm:$0xff]
        %v809 = vld [vmem:[%s318 + $0x6c] sm:$0xff]
        %v810 = vld [vmem:[%s318 + $0x7c] sm:$0xff]
        %v811 = vld [vmem:[%s318 + $0x84] sm:$0xff]
        %v812 = vld [vmem:[%s318 + $0x94] sm:$0xff]
        %v813 = vld [vmem:[%s318 + $0x9c] sm:$0xff]
        %v814 = vld [vmem:[%s318 + $0xac] sm:$0xff]
        %v815 = vld [vmem:[%s318 + $0xb4] sm:$0xff]
        %v816 = vld [vmem:[%s318 + $0xc4] sm:$0xff]
        %v817 = vld [vmem:[%s318 + $0xcc] sm:$0xff]
        %v818 = vld [vmem:[%s318 + $0xdc] sm:$0xff]
        %v819 = vld [vmem:[%s318 + $0xe4] sm:$0xff]
        %v820 = vld [vmem:[%s318 + $0xf4] sm:$0xff]
        %v821 = vld [vmem:[%s318 + $0xfc] sm:$0xff]
        %v822 = vld [vmem:[%s318 + $0x10c] sm:$0xff]
        %v823 = vld [vmem:[%s318 + $0x114] sm:$0xff]
        %v824 = vld [vmem:[%s318 + $0x124] sm:$0xff]
        %v825 = vld [vmem:[%s318 + $0x12c] sm:$0xff]
        %v826 = vld [vmem:[%s318 + $0x13c] sm:$0xff]
        %v827 = vld [vmem:[%s318 + $0x144] sm:$0xff]
        %v828 = vld [vmem:[%s318 + $0x154] sm:$0xff]
        %v829 = vld [vmem:[%s318 + $0x15c] sm:$0xff]
        %v830 = vld [vmem:[%s318 + $0x16c] sm:$0xff]
        %v831 = vld [vmem:[%s318 + $0x174] sm:$0xff]
        %s832 = scalar_lea.vmem [#allocation2], 72
        %v833 = vld [vmem:[%s832] sm:$0xff]
        %v834 = vld [vmem:[%s832 + $0x8] sm:$0xff]
        %v835 = vld [vmem:[%s832 + $0x18] sm:$0xff]
        %v836 = vld [vmem:[%s832 + $0x20] sm:$0xff]
        %v837 = vld [vmem:[%s832 + $0x30] sm:$0xff]
        %v838 = vld [vmem:[%s832 + $0x38] sm:$0xff]
        %v839 = vld [vmem:[%s832 + $0x48] sm:$0xff]
        %v840 = vld [vmem:[%s832 + $0x50] sm:$0xff]
        %v841 = vld [vmem:[%s832 + $0x60] sm:$0xff]
        %v842 = vld [vmem:[%s832 + $0x68] sm:$0xff]
        %v843 = vld [vmem:[%s832 + $0x78] sm:$0xff]
        %v844 = vld [vmem:[%s832 + $0x80] sm:$0xff]
        %v845 = vld [vmem:[%s832 + $0x90] sm:$0xff]
        %v846 = vld [vmem:[%s832 + $0x98] sm:$0xff]
        %v847 = vld [vmem:[%s832 + $0xa8] sm:$0xff]
        %v848 = vld [vmem:[%s832 + $0xb0] sm:$0xff]
        %v849 = vld [vmem:[%s832 + $0xc0] sm:$0xff]
        %v850 = vld [vmem:[%s832 + $0xc8] sm:$0xff]
        %v851 = vld [vmem:[%s832 + $0xd8] sm:$0xff]
        %v852 = vld [vmem:[%s832 + $0xe0] sm:$0xff]
        %v853 = vld [vmem:[%s832 + $0xf0] sm:$0xff]
        %v854 = vld [vmem:[%s832 + $0xf8] sm:$0xff]
        %v855 = vld [vmem:[%s832 + $0x108] sm:$0xff]
        %v856 = vld [vmem:[%s832 + $0x110] sm:$0xff]
        %v857 = vld [vmem:[%s832 + $0x120] sm:$0xff]
        %v858 = vld [vmem:[%s832 + $0x128] sm:$0xff]
        %v859 = vld [vmem:[%s832 + $0x138] sm:$0xff]
        %v860 = vld [vmem:[%s832 + $0x140] sm:$0xff]
        %v861 = vld [vmem:[%s832 + $0x150] sm:$0xff]
        %v862 = vld [vmem:[%s832 + $0x158] sm:$0xff]
        %v863 = vld [vmem:[%s832 + $0x168] sm:$0xff]
        %v864 = vld [vmem:[%s832 + $0x170] sm:$0xff]
        %v865 = vld [vmem:[%s832 + $0x1] sm:$0xff]
        %v866 = vld [vmem:[%s832 + $0x9] sm:$0xff]
        %v867 = vld [vmem:[%s832 + $0x19] sm:$0xff]
        %v868 = vld [vmem:[%s832 + $0x21] sm:$0xff]
        %v869 = vld [vmem:[%s832 + $0x31] sm:$0xff]
        %v870 = vld [vmem:[%s832 + $0x39] sm:$0xff]
        %v871 = vld [vmem:[%s832 + $0x49] sm:$0xff]
        %v872 = vld [vmem:[%s832 + $0x51] sm:$0xff]
        %v873 = vld [vmem:[%s832 + $0x61] sm:$0xff]
        %v874 = vld [vmem:[%s832 + $0x69] sm:$0xff]
        %v875 = vld [vmem:[%s832 + $0x79] sm:$0xff]
        %v876 = vld [vmem:[%s832 + $0x81] sm:$0xff]
        %v877 = vld [vmem:[%s832 + $0x91] sm:$0xff]
        %v878 = vld [vmem:[%s832 + $0x99] sm:$0xff]
        %v879 = vld [vmem:[%s832 + $0xa9] sm:$0xff]
        %v880 = vld [vmem:[%s832 + $0xb1] sm:$0xff]
        %v881 = vld [vmem:[%s832 + $0xc1] sm:$0xff]
        %v882 = vld [vmem:[%s832 + $0xc9] sm:$0xff]
        %v883 = vld [vmem:[%s832 + $0xd9] sm:$0xff]
        %v884 = vld [vmem:[%s832 + $0xe1] sm:$0xff]
        %v885 = vld [vmem:[%s832 + $0xf1] sm:$0xff]
        %v886 = vld [vmem:[%s832 + $0xf9] sm:$0xff]
        %v887 = vld [vmem:[%s832 + $0x109] sm:$0xff]
        %v888 = vld [vmem:[%s832 + $0x111] sm:$0xff]
        %v889 = vld [vmem:[%s832 + $0x121] sm:$0xff]
        %v890 = vld [vmem:[%s832 + $0x129] sm:$0xff]
        %v891 = vld [vmem:[%s832 + $0x139] sm:$0xff]
        %v892 = vld [vmem:[%s832 + $0x141] sm:$0xff]
        %v893 = vld [vmem:[%s832 + $0x151] sm:$0xff]
        %v894 = vld [vmem:[%s832 + $0x159] sm:$0xff]
        %v895 = vld [vmem:[%s832 + $0x169] sm:$0xff]
        %v896 = vld [vmem:[%s832 + $0x171] sm:$0xff]
        %v897 = vld [vmem:[%s832 + $0x2] sm:$0xff]
        %v898 = vld [vmem:[%s832 + $0xa] sm:$0xff]
        %v899 = vld [vmem:[%s832 + $0x1a] sm:$0xff]
        %v900 = vld [vmem:[%s832 + $0x22] sm:$0xff]
        %v901 = vld [vmem:[%s832 + $0x32] sm:$0xff]
        %v902 = vld [vmem:[%s832 + $0x3a] sm:$0xff]
        %v903 = vld [vmem:[%s832 + $0x4a] sm:$0xff]
        %v904 = vld [vmem:[%s832 + $0x52] sm:$0xff]
        %v905 = vld [vmem:[%s832 + $0x62] sm:$0xff]
        %v906 = vld [vmem:[%s832 + $0x6a] sm:$0xff]
        %v907 = vld [vmem:[%s832 + $0x7a] sm:$0xff]
        %v908 = vld [vmem:[%s832 + $0x82] sm:$0xff]
        %v909 = vld [vmem:[%s832 + $0x92] sm:$0xff]
        %v910 = vld [vmem:[%s832 + $0x9a] sm:$0xff]
        %v911 = vld [vmem:[%s832 + $0xaa] sm:$0xff]
        %v912 = vld [vmem:[%s832 + $0xb2] sm:$0xff]
        %v913 = vld [vmem:[%s832 + $0xc2] sm:$0xff]
        %v914 = vld [vmem:[%s832 + $0xca] sm:$0xff]
        %v915 = vld [vmem:[%s832 + $0xda] sm:$0xff]
        %v916 = vld [vmem:[%s832 + $0xe2] sm:$0xff]
        %v917 = vld [vmem:[%s832 + $0xf2] sm:$0xff]
        %v918 = vld [vmem:[%s832 + $0xfa] sm:$0xff]
        %v919 = vld [vmem:[%s832 + $0x10a] sm:$0xff]
        %v920 = vld [vmem:[%s832 + $0x112] sm:$0xff]
        %v921 = vld [vmem:[%s832 + $0x122] sm:$0xff]
        %v922 = vld [vmem:[%s832 + $0x12a] sm:$0xff]
        %v923 = vld [vmem:[%s832 + $0x13a] sm:$0xff]
        %v924 = vld [vmem:[%s832 + $0x142] sm:$0xff]
        %v925 = vld [vmem:[%s832 + $0x152] sm:$0xff]
        %v926 = vld [vmem:[%s832 + $0x15a] sm:$0xff]
        %v927 = vld [vmem:[%s832 + $0x16a] sm:$0xff]
        %v928 = vld [vmem:[%s832 + $0x172] sm:$0xff]
        %v929 = vld [vmem:[%s832 + $0x3] sm:$0xff]
        %v930 = vld [vmem:[%s832 + $0xb] sm:$0xff]
        %v931 = vld [vmem:[%s832 + $0x1b] sm:$0xff]
        %v932 = vld [vmem:[%s832 + $0x23] sm:$0xff]
        %v933 = vld [vmem:[%s832 + $0x33] sm:$0xff]
        %v934 = vld [vmem:[%s832 + $0x3b] sm:$0xff]
        %v935 = vld [vmem:[%s832 + $0x4b] sm:$0xff]
        %v936 = vld [vmem:[%s832 + $0x53] sm:$0xff]
        %v937 = vld [vmem:[%s832 + $0x63] sm:$0xff]
        %v938 = vld [vmem:[%s832 + $0x6b] sm:$0xff]
        %v939 = vld [vmem:[%s832 + $0x7b] sm:$0xff]
        %v940 = vld [vmem:[%s832 + $0x83] sm:$0xff]
        %v941 = vld [vmem:[%s832 + $0x93] sm:$0xff]
        %v942 = vld [vmem:[%s832 + $0x9b] sm:$0xff]
        %v943 = vld [vmem:[%s832 + $0xab] sm:$0xff]
        %v944 = vld [vmem:[%s832 + $0xb3] sm:$0xff]
        %v945 = vld [vmem:[%s832 + $0xc3] sm:$0xff]
        %v946 = vld [vmem:[%s832 + $0xcb] sm:$0xff]
        %v947 = vld [vmem:[%s832 + $0xdb] sm:$0xff]
        %v948 = vld [vmem:[%s832 + $0xe3] sm:$0xff]
        %v949 = vld [vmem:[%s832 + $0xf3] sm:$0xff]
        %v950 = vld [vmem:[%s832 + $0xfb] sm:$0xff]
        %v951 = vld [vmem:[%s832 + $0x10b] sm:$0xff]
        %v952 = vld [vmem:[%s832 + $0x113] sm:$0xff]
        %v953 = vld [vmem:[%s832 + $0x123] sm:$0xff]
        %v954 = vld [vmem:[%s832 + $0x12b] sm:$0xff]
        %v955 = vld [vmem:[%s832 + $0x13b] sm:$0xff]
        %v956 = vld [vmem:[%s832 + $0x143] sm:$0xff]
        %v957 = vld [vmem:[%s832 + $0x153] sm:$0xff]
        %v958 = vld [vmem:[%s832 + $0x15b] sm:$0xff]
        %v959 = vld [vmem:[%s832 + $0x16b] sm:$0xff]
        %v960 = vld [vmem:[%s832 + $0x173] sm:$0xff]
        %v961 = vld [vmem:[%s832 + $0x4] sm:$0xff]
        %v962 = vld [vmem:[%s832 + $0xc] sm:$0xff]
        %v963 = vld [vmem:[%s832 + $0x1c] sm:$0xff]
        %v964 = vld [vmem:[%s832 + $0x24] sm:$0xff]
        %v965 = vld [vmem:[%s832 + $0x34] sm:$0xff]
        %v966 = vld [vmem:[%s832 + $0x3c] sm:$0xff]
        %v967 = vld [vmem:[%s832 + $0x4c] sm:$0xff]
        %v968 = vld [vmem:[%s832 + $0x54] sm:$0xff]
        %v969 = vld [vmem:[%s832 + $0x64] sm:$0xff]
        %v970 = vld [vmem:[%s832 + $0x6c] sm:$0xff]
        %v971 = vld [vmem:[%s832 + $0x7c] sm:$0xff]
        %v972 = vld [vmem:[%s832 + $0x84] sm:$0xff]
        %v973 = vld [vmem:[%s832 + $0x94] sm:$0xff]
        %v974 = vld [vmem:[%s832 + $0x9c] sm:$0xff]
        %v975 = vld [vmem:[%s832 + $0xac] sm:$0xff]
        %v976 = vld [vmem:[%s832 + $0xb4] sm:$0xff]
        %v977 = vld [vmem:[%s832 + $0xc4] sm:$0xff]
        %v978 = vld [vmem:[%s832 + $0xcc] sm:$0xff]
        %v979 = vld [vmem:[%s832 + $0xdc] sm:$0xff]
        %v980 = vld [vmem:[%s832 + $0xe4] sm:$0xff]
        %v981 = vld [vmem:[%s832 + $0xf4] sm:$0xff]
        %v982 = vld [vmem:[%s832 + $0xfc] sm:$0xff]
        %v983 = vld [vmem:[%s832 + $0x10c] sm:$0xff]
        %v984 = vld [vmem:[%s832 + $0x114] sm:$0xff]
        %v985 = vld [vmem:[%s832 + $0x124] sm:$0xff]
        %v986 = vld [vmem:[%s832 + $0x12c] sm:$0xff]
        %v987 = vld [vmem:[%s832 + $0x13c] sm:$0xff]
        %v988 = vld [vmem:[%s832 + $0x144] sm:$0xff]
        %v989 = vld [vmem:[%s832 + $0x154] sm:$0xff]
        %v990 = vld [vmem:[%s832 + $0x15c] sm:$0xff]
        %v991 = vld [vmem:[%s832 + $0x16c] sm:$0xff]
        %v992 = vld [vmem:[%s832 + $0x174] sm:$0xff]
        %s993 = scalar_lea.vmem [#allocation2], 96
        %v994 = vld [vmem:[%s993] sm:$0xff]
        %v995 = vld [vmem:[%s993 + $0x8] sm:$0xff]
        %v996 = vld [vmem:[%s993 + $0x18] sm:$0xff]
        %v997 = vld [vmem:[%s993 + $0x20] sm:$0xff]
        %v998 = vld [vmem:[%s993 + $0x30] sm:$0xff]
        %v999 = vld [vmem:[%s993 + $0x38] sm:$0xff]
        %v1000 = vld [vmem:[%s993 + $0x48] sm:$0xff]
        %v1001 = vld [vmem:[%s993 + $0x50] sm:$0xff]
        %v1002 = vld [vmem:[%s993 + $0x60] sm:$0xff]
        %v1003 = vld [vmem:[%s993 + $0x68] sm:$0xff]
        %v1004 = vld [vmem:[%s993 + $0x78] sm:$0xff]
        %v1005 = vld [vmem:[%s993 + $0x80] sm:$0xff]
        %v1006 = vld [vmem:[%s993 + $0x90] sm:$0xff]
        %v1007 = vld [vmem:[%s993 + $0x98] sm:$0xff]
        %v1008 = vld [vmem:[%s993 + $0xa8] sm:$0xff]
        %v1009 = vld [vmem:[%s993 + $0xb0] sm:$0xff]
        %v1010 = vld [vmem:[%s993 + $0xc0] sm:$0xff]
        %v1011 = vld [vmem:[%s993 + $0xc8] sm:$0xff]
        %v1012 = vld [vmem:[%s993 + $0xd8] sm:$0xff]
        %v1013 = vld [vmem:[%s993 + $0xe0] sm:$0xff]
        %v1014 = vld [vmem:[%s993 + $0xf0] sm:$0xff]
        %v1015 = vld [vmem:[%s993 + $0xf8] sm:$0xff]
        %v1016 = vld [vmem:[%s993 + $0x108] sm:$0xff]
        %v1017 = vld [vmem:[%s993 + $0x110] sm:$0xff]
        %v1018 = vld [vmem:[%s993 + $0x120] sm:$0xff]
        %v1019 = vld [vmem:[%s993 + $0x128] sm:$0xff]
        %v1020 = vld [vmem:[%s993 + $0x138] sm:$0xff]
        %v1021 = vld [vmem:[%s993 + $0x140] sm:$0xff]
        %v1022 = vld [vmem:[%s993 + $0x150] sm:$0xff]
        %v1023 = vld [vmem:[%s993 + $0x158] sm:$0xff]
        %v1024 = vld [vmem:[%s993 + $0x168] sm:$0xff]
        %v1025 = vld [vmem:[%s993 + $0x170] sm:$0xff]
        %v1026 = vld [vmem:[%s993 + $0x1] sm:$0xff]
        %v1027 = vld [vmem:[%s993 + $0x9] sm:$0xff]
        %v1028 = vld [vmem:[%s993 + $0x19] sm:$0xff]
        %v1029 = vld [vmem:[%s993 + $0x21] sm:$0xff]
        %v1030 = vld [vmem:[%s993 + $0x31] sm:$0xff]
        %v1031 = vld [vmem:[%s993 + $0x39] sm:$0xff]
        %v1032 = vld [vmem:[%s993 + $0x49] sm:$0xff]
        %v1033 = vld [vmem:[%s993 + $0x51] sm:$0xff]
        %v1034 = vld [vmem:[%s993 + $0x61] sm:$0xff]
        %v1035 = vld [vmem:[%s993 + $0x69] sm:$0xff]
        %v1036 = vld [vmem:[%s993 + $0x79] sm:$0xff]
        %v1037 = vld [vmem:[%s993 + $0x81] sm:$0xff]
        %v1038 = vld [vmem:[%s993 + $0x91] sm:$0xff]
        %v1039 = vld [vmem:[%s993 + $0x99] sm:$0xff]
        %v1040 = vld [vmem:[%s993 + $0xa9] sm:$0xff]
        %v1041 = vld [vmem:[%s993 + $0xb1] sm:$0xff]
        %v1042 = vld [vmem:[%s993 + $0xc1] sm:$0xff]
        %v1043 = vld [vmem:[%s993 + $0xc9] sm:$0xff]
        %v1044 = vld [vmem:[%s993 + $0xd9] sm:$0xff]
        %v1045 = vld [vmem:[%s993 + $0xe1] sm:$0xff]
        %v1046 = vld [vmem:[%s993 + $0xf1] sm:$0xff]
        %v1047 = vld [vmem:[%s993 + $0xf9] sm:$0xff]
        %v1048 = vld [vmem:[%s993 + $0x109] sm:$0xff]
        %v1049 = vld [vmem:[%s993 + $0x111] sm:$0xff]
        %v1050 = vld [vmem:[%s993 + $0x121] sm:$0xff]
        %v1051 = vld [vmem:[%s993 + $0x129] sm:$0xff]
        %v1052 = vld [vmem:[%s993 + $0x139] sm:$0xff]
        %v1053 = vld [vmem:[%s993 + $0x141] sm:$0xff]
        %v1054 = vld [vmem:[%s993 + $0x151] sm:$0xff]
        %v1055 = vld [vmem:[%s993 + $0x159] sm:$0xff]
        %v1056 = vld [vmem:[%s993 + $0x169] sm:$0xff]
        %v1057 = vld [vmem:[%s993 + $0x171] sm:$0xff]
        %v1058 = vld [vmem:[%s993 + $0x2] sm:$0xff]
        %v1059 = vld [vmem:[%s993 + $0xa] sm:$0xff]
        %v1060 = vld [vmem:[%s993 + $0x1a] sm:$0xff]
        %v1061 = vld [vmem:[%s993 + $0x22] sm:$0xff]
        %v1062 = vld [vmem:[%s993 + $0x32] sm:$0xff]
        %v1063 = vld [vmem:[%s993 + $0x3a] sm:$0xff]
        %v1064 = vld [vmem:[%s993 + $0x4a] sm:$0xff]
        %v1065 = vld [vmem:[%s993 + $0x52] sm:$0xff]
        %v1066 = vld [vmem:[%s993 + $0x62] sm:$0xff]
        %v1067 = vld [vmem:[%s993 + $0x6a] sm:$0xff]
        %v1068 = vld [vmem:[%s993 + $0x7a] sm:$0xff]
        %v1069 = vld [vmem:[%s993 + $0x82] sm:$0xff]
        %v1070 = vld [vmem:[%s993 + $0x92] sm:$0xff]
        %v1071 = vld [vmem:[%s993 + $0x9a] sm:$0xff]
        %v1072 = vld [vmem:[%s993 + $0xaa] sm:$0xff]
        %v1073 = vld [vmem:[%s993 + $0xb2] sm:$0xff]
        %v1074 = vld [vmem:[%s993 + $0xc2] sm:$0xff]
        %v1075 = vld [vmem:[%s993 + $0xca] sm:$0xff]
        %v1076 = vld [vmem:[%s993 + $0xda] sm:$0xff]
        %v1077 = vld [vmem:[%s993 + $0xe2] sm:$0xff]
        %v1078 = vld [vmem:[%s993 + $0xf2] sm:$0xff]
        %v1079 = vld [vmem:[%s993 + $0xfa] sm:$0xff]
        %v1080 = vld [vmem:[%s993 + $0x10a] sm:$0xff]
        %v1081 = vld [vmem:[%s993 + $0x112] sm:$0xff]
        %v1082 = vld [vmem:[%s993 + $0x122] sm:$0xff]
        %v1083 = vld [vmem:[%s993 + $0x12a] sm:$0xff]
        %v1084 = vld [vmem:[%s993 + $0x13a] sm:$0xff]
        %v1085 = vld [vmem:[%s993 + $0x142] sm:$0xff]
        %v1086 = vld [vmem:[%s993 + $0x152] sm:$0xff]
        %v1087 = vld [vmem:[%s993 + $0x15a] sm:$0xff]
        %v1088 = vld [vmem:[%s993 + $0x16a] sm:$0xff]
        %v1089 = vld [vmem:[%s993 + $0x172] sm:$0xff]
        %v1090 = vld [vmem:[%s993 + $0x3] sm:$0xff]
        %v1091 = vld [vmem:[%s993 + $0xb] sm:$0xff]
        %v1092 = vld [vmem:[%s993 + $0x1b] sm:$0xff]
        %v1093 = vld [vmem:[%s993 + $0x23] sm:$0xff]
        %v1094 = vld [vmem:[%s993 + $0x33] sm:$0xff]
        %v1095 = vld [vmem:[%s993 + $0x3b] sm:$0xff]
        %v1096 = vld [vmem:[%s993 + $0x4b] sm:$0xff]
        %v1097 = vld [vmem:[%s993 + $0x53] sm:$0xff]
        %v1098 = vld [vmem:[%s993 + $0x63] sm:$0xff]
        %v1099 = vld [vmem:[%s993 + $0x6b] sm:$0xff]
        %v1100 = vld [vmem:[%s993 + $0x7b] sm:$0xff]
        %v1101 = vld [vmem:[%s993 + $0x83] sm:$0xff]
        %v1102 = vld [vmem:[%s993 + $0x93] sm:$0xff]
        %v1103 = vld [vmem:[%s993 + $0x9b] sm:$0xff]
        %v1104 = vld [vmem:[%s993 + $0xab] sm:$0xff]
        %v1105 = vld [vmem:[%s993 + $0xb3] sm:$0xff]
        %v1106 = vld [vmem:[%s993 + $0xc3] sm:$0xff]
        %v1107 = vld [vmem:[%s993 + $0xcb] sm:$0xff]
        %v1108 = vld [vmem:[%s993 + $0xdb] sm:$0xff]
        %v1109 = vld [vmem:[%s993 + $0xe3] sm:$0xff]
        %v1110 = vld [vmem:[%s993 + $0xf3] sm:$0xff]
        %v1111 = vld [vmem:[%s993 + $0xfb] sm:$0xff]
        %v1112 = vld [vmem:[%s993 + $0x10b] sm:$0xff]
        %v1113 = vld [vmem:[%s993 + $0x113] sm:$0xff]
        %v1114 = vld [vmem:[%s993 + $0x123] sm:$0xff]
        %v1115 = vld [vmem:[%s993 + $0x12b] sm:$0xff]
        %v1116 = vld [vmem:[%s993 + $0x13b] sm:$0xff]
        %v1117 = vld [vmem:[%s993 + $0x143] sm:$0xff]
        %v1118 = vld [vmem:[%s993 + $0x153] sm:$0xff]
        %v1119 = vld [vmem:[%s993 + $0x15b] sm:$0xff]
        %v1120 = vld [vmem:[%s993 + $0x16b] sm:$0xff]
        %v1121 = vld [vmem:[%s993 + $0x173] sm:$0xff]
        %v1122 = vld [vmem:[%s993 + $0x4] sm:$0xff]
        %v1123 = vld [vmem:[%s993 + $0xc] sm:$0xff]
        %v1124 = vld [vmem:[%s993 + $0x1c] sm:$0xff]
        %v1125 = vld [vmem:[%s993 + $0x24] sm:$0xff]
        %v1126 = vld [vmem:[%s993 + $0x34] sm:$0xff]
        %v1127 = vld [vmem:[%s993 + $0x3c] sm:$0xff]
        %v1128 = vld [vmem:[%s993 + $0x4c] sm:$0xff]
        %v1129 = vld [vmem:[%s993 + $0x54] sm:$0xff]
        %v1130 = vld [vmem:[%s993 + $0x64] sm:$0xff]
        %v1131 = vld [vmem:[%s993 + $0x6c] sm:$0xff]
        %v1132 = vld [vmem:[%s993 + $0x7c] sm:$0xff]
        %v1133 = vld [vmem:[%s993 + $0x84] sm:$0xff]
        %v1134 = vld [vmem:[%s993 + $0x94] sm:$0xff]
        %v1135 = vld [vmem:[%s993 + $0x9c] sm:$0xff]
        %v1136 = vld [vmem:[%s993 + $0xac] sm:$0xff]
        %v1137 = vld [vmem:[%s993 + $0xb4] sm:$0xff]
        %v1138 = vld [vmem:[%s993 + $0xc4] sm:$0xff]
        %v1139 = vld [vmem:[%s993 + $0xcc] sm:$0xff]
        %v1140 = vld [vmem:[%s993 + $0xdc] sm:$0xff]
        %v1141 = vld [vmem:[%s993 + $0xe4] sm:$0xff]
        %v1142 = vld [vmem:[%s993 + $0xf4] sm:$0xff]
        %v1143 = vld [vmem:[%s993 + $0xfc] sm:$0xff]
        %v1144 = vld [vmem:[%s993 + $0x10c] sm:$0xff]
        %v1145 = vld [vmem:[%s993 + $0x114] sm:$0xff]
        %v1146 = vld [vmem:[%s993 + $0x124] sm:$0xff]
        %v1147 = vld [vmem:[%s993 + $0x12c] sm:$0xff]
        %v1148 = vld [vmem:[%s993 + $0x13c] sm:$0xff]
        %v1149 = vld [vmem:[%s993 + $0x144] sm:$0xff]
        %v1150 = vld [vmem:[%s993 + $0x154] sm:$0xff]
        %v1151 = vld [vmem:[%s993 + $0x15c] sm:$0xff]
        %v1152 = vld [vmem:[%s993 + $0x16c] sm:$0xff]
        %v1153 = vld [vmem:[%s993 + $0x174] sm:$0xff]
        %1186 = vrot.lane.b32.xlu0 %v383, 4
        %v1187 = vpop.permute.xlu0 %1186
        %1188 = vrot.lane.b32.xlu0 %v384, 4
        %v1189 = vpop.permute.xlu0 %1188
        %1190 = vrot.lane.b32.xlu0 %v385, 4
        %v1191 = vpop.permute.xlu0 %1190
        %1192 = vrot.lane.b32.xlu0 %v386, 4
        %v1193 = vpop.permute.xlu0 %1192
        %1194 = vrot.lane.b32.xlu0 %v387, 4
        %v1195 = vpop.permute.xlu0 %1194
        %1196 = vrot.lane.b32.xlu0 %v388, 4
        %v1197 = vpop.permute.xlu0 %1196
        %1198 = vrot.lane.b32.xlu0 %v389, 4
        %v1199 = vpop.permute.xlu0 %1198
        %1200 = vrot.lane.b32.xlu0 %v390, 4
        %v1201 = vpop.permute.xlu0 %1200
        %1202 = vrot.lane.b32.xlu0 %v391, 4
        %v1203 = vpop.permute.xlu0 %1202
        %1204 = vrot.lane.b32.xlu0 %v392, 4
        %v1205 = vpop.permute.xlu0 %1204
        %1206 = vrot.lane.b32.xlu0 %v393, 4
        %v1207 = vpop.permute.xlu0 %1206
        %1208 = vrot.lane.b32.xlu0 %v394, 4
        %v1209 = vpop.permute.xlu0 %1208
        %1210 = vrot.lane.b32.xlu0 %v395, 4
        %v1211 = vpop.permute.xlu0 %1210
        %1212 = vrot.lane.b32.xlu0 %v396, 4
        %v1213 = vpop.permute.xlu0 %1212
        %1214 = vrot.lane.b32.xlu0 %v397, 4
        %v1215 = vpop.permute.xlu0 %1214
        %1216 = vrot.lane.b32.xlu0 %v398, 4
        %v1217 = vpop.permute.xlu0 %1216
        %1218 = vrot.lane.b32.xlu0 %v399, 4
        %v1219 = vpop.permute.xlu0 %1218
        %1220 = vrot.lane.b32.xlu0 %v400, 4
        %v1221 = vpop.permute.xlu0 %1220
        %1222 = vrot.lane.b32.xlu0 %v401, 4
        %v1223 = vpop.permute.xlu0 %1222
        %1224 = vrot.lane.b32.xlu0 %v402, 4
        %v1225 = vpop.permute.xlu0 %1224
        %1226 = vrot.lane.b32.xlu0 %v403, 4
        %v1227 = vpop.permute.xlu0 %1226
        %1228 = vrot.lane.b32.xlu0 %v404, 4
        %v1229 = vpop.permute.xlu0 %1228
        %1230 = vrot.lane.b32.xlu0 %v405, 4
        %v1231 = vpop.permute.xlu0 %1230
        %1232 = vrot.lane.b32.xlu0 %v406, 4
        %v1233 = vpop.permute.xlu0 %1232
        %1234 = vrot.lane.b32.xlu0 %v407, 4
        %v1235 = vpop.permute.xlu0 %1234
        %1236 = vrot.lane.b32.xlu0 %v408, 4
        %v1237 = vpop.permute.xlu0 %1236
        %1238 = vrot.lane.b32.xlu0 %v409, 4
        %v1239 = vpop.permute.xlu0 %1238
        %1240 = vrot.lane.b32.xlu0 %v410, 4
        %v1241 = vpop.permute.xlu0 %1240
        %1242 = vrot.lane.b32.xlu0 %v411, 4
        %v1243 = vpop.permute.xlu0 %1242
        %1244 = vrot.lane.b32.xlu0 %v412, 4
        %v1245 = vpop.permute.xlu0 %1244
        %1246 = vrot.lane.b32.xlu0 %v413, 4
        %v1247 = vpop.permute.xlu0 %1246
        %1248 = vrot.lane.b32.xlu0 %v414, 4
        %v1249 = vpop.permute.xlu0 %1248
        %1314 = vrot.lane.b32.xlu0 %v415, 8
        %v1315 = vpop.permute.xlu0 %1314
        %1316 = vrot.lane.b32.xlu0 %v416, 8
        %v1317 = vpop.permute.xlu0 %1316
        %1318 = vrot.lane.b32.xlu0 %v417, 8
        %v1319 = vpop.permute.xlu0 %1318
        %1320 = vrot.lane.b32.xlu0 %v418, 8
        %v1321 = vpop.permute.xlu0 %1320
        %1322 = vrot.lane.b32.xlu0 %v419, 8
        %v1323 = vpop.permute.xlu0 %1322
        %1324 = vrot.lane.b32.xlu0 %v420, 8
        %v1325 = vpop.permute.xlu0 %1324
        %1326 = vrot.lane.b32.xlu0 %v421, 8
        %v1327 = vpop.permute.xlu0 %1326
        %1328 = vrot.lane.b32.xlu0 %v422, 8
        %v1329 = vpop.permute.xlu0 %1328
        %1330 = vrot.lane.b32.xlu0 %v423, 8
        %v1331 = vpop.permute.xlu0 %1330
        %1332 = vrot.lane.b32.xlu0 %v424, 8
        %v1333 = vpop.permute.xlu0 %1332
        %1334 = vrot.lane.b32.xlu0 %v425, 8
        %v1335 = vpop.permute.xlu0 %1334
        %1336 = vrot.lane.b32.xlu0 %v426, 8
        %v1337 = vpop.permute.xlu0 %1336
        %1338 = vrot.lane.b32.xlu0 %v427, 8
        %v1339 = vpop.permute.xlu0 %1338
        %1340 = vrot.lane.b32.xlu0 %v428, 8
        %v1341 = vpop.permute.xlu0 %1340
        %1342 = vrot.lane.b32.xlu0 %v429, 8
        %v1343 = vpop.permute.xlu0 %1342
        %1344 = vrot.lane.b32.xlu0 %v430, 8
        %v1345 = vpop.permute.xlu0 %1344
        %1346 = vrot.lane.b32.xlu0 %v431, 8
        %v1347 = vpop.permute.xlu0 %1346
        %1348 = vrot.lane.b32.xlu0 %v432, 8
        %v1349 = vpop.permute.xlu0 %1348
        %1350 = vrot.lane.b32.xlu0 %v433, 8
        %v1351 = vpop.permute.xlu0 %1350
        %1352 = vrot.lane.b32.xlu0 %v434, 8
        %v1353 = vpop.permute.xlu0 %1352
        %1354 = vrot.lane.b32.xlu0 %v435, 8
        %v1355 = vpop.permute.xlu0 %1354
        %1356 = vrot.lane.b32.xlu0 %v436, 8
        %v1357 = vpop.permute.xlu0 %1356
        %1358 = vrot.lane.b32.xlu0 %v437, 8
        %v1359 = vpop.permute.xlu0 %1358
        %1360 = vrot.lane.b32.xlu0 %v438, 8
        %v1361 = vpop.permute.xlu0 %1360
        %1362 = vrot.lane.b32.xlu0 %v439, 8
        %v1363 = vpop.permute.xlu0 %1362
        %1364 = vrot.lane.b32.xlu0 %v440, 8
        %v1365 = vpop.permute.xlu0 %1364
        %1366 = vrot.lane.b32.xlu0 %v441, 8
        %v1367 = vpop.permute.xlu0 %1366
        %1368 = vrot.lane.b32.xlu0 %v442, 8
        %v1369 = vpop.permute.xlu0 %1368
        %1370 = vrot.lane.b32.xlu0 %v443, 8
        %v1371 = vpop.permute.xlu0 %1370
        %1372 = vrot.lane.b32.xlu0 %v444, 8
        %v1373 = vpop.permute.xlu0 %1372
        %1374 = vrot.lane.b32.xlu0 %v445, 8
        %v1375 = vpop.permute.xlu0 %1374
        %1376 = vrot.lane.b32.xlu0 %v446, 8
        %v1377 = vpop.permute.xlu0 %1376
        %1442 = vrot.lane.b32.xlu0 %v447, 12
        %v1443 = vpop.permute.xlu0 %1442
        %1444 = vrot.lane.b32.xlu0 %v448, 12
        %v1445 = vpop.permute.xlu0 %1444
        %1446 = vrot.lane.b32.xlu0 %v449, 12
        %v1447 = vpop.permute.xlu0 %1446
        %1448 = vrot.lane.b32.xlu0 %v450, 12
        %v1449 = vpop.permute.xlu0 %1448
        %1450 = vrot.lane.b32.xlu0 %v451, 12
        %v1451 = vpop.permute.xlu0 %1450
        %1452 = vrot.lane.b32.xlu0 %v452, 12
        %v1453 = vpop.permute.xlu0 %1452
        %1454 = vrot.lane.b32.xlu0 %v453, 12
        %v1455 = vpop.permute.xlu0 %1454
        %1456 = vrot.lane.b32.xlu0 %v454, 12
        %v1457 = vpop.permute.xlu0 %1456
        %1458 = vrot.lane.b32.xlu0 %v455, 12
        %v1459 = vpop.permute.xlu0 %1458
        %1460 = vrot.lane.b32.xlu0 %v456, 12
        %v1461 = vpop.permute.xlu0 %1460
        %1462 = vrot.lane.b32.xlu0 %v457, 12
        %v1463 = vpop.permute.xlu0 %1462
        %1464 = vrot.lane.b32.xlu0 %v458, 12
        %v1465 = vpop.permute.xlu0 %1464
        %1466 = vrot.lane.b32.xlu0 %v459, 12
        %v1467 = vpop.permute.xlu0 %1466
        %1468 = vrot.lane.b32.xlu0 %v460, 12
        %v1469 = vpop.permute.xlu0 %1468
        %1470 = vrot.lane.b32.xlu0 %v461, 12
        %v1471 = vpop.permute.xlu0 %1470
        %1472 = vrot.lane.b32.xlu0 %v462, 12
        %v1473 = vpop.permute.xlu0 %1472
        %1474 = vrot.lane.b32.xlu0 %v463, 12
        %v1475 = vpop.permute.xlu0 %1474
        %1476 = vrot.lane.b32.xlu0 %v464, 12
        %v1477 = vpop.permute.xlu0 %1476
        %1478 = vrot.lane.b32.xlu0 %v465, 12
        %v1479 = vpop.permute.xlu0 %1478
        %1480 = vrot.lane.b32.xlu0 %v466, 12
        %v1481 = vpop.permute.xlu0 %1480
        %1482 = vrot.lane.b32.xlu0 %v467, 12
        %v1483 = vpop.permute.xlu0 %1482
        %1484 = vrot.lane.b32.xlu0 %v468, 12
        %v1485 = vpop.permute.xlu0 %1484
        %1486 = vrot.lane.b32.xlu0 %v469, 12
        %v1487 = vpop.permute.xlu0 %1486
        %1488 = vrot.lane.b32.xlu0 %v470, 12
        %v1489 = vpop.permute.xlu0 %1488
        %1490 = vrot.lane.b32.xlu0 %v471, 12
        %v1491 = vpop.permute.xlu0 %1490
        %1492 = vrot.lane.b32.xlu0 %v472, 12
        %v1493 = vpop.permute.xlu0 %1492
        %1494 = vrot.lane.b32.xlu0 %v473, 12
        %v1495 = vpop.permute.xlu0 %1494
        %1496 = vrot.lane.b32.xlu0 %v474, 12
        %v1497 = vpop.permute.xlu0 %1496
        %1498 = vrot.lane.b32.xlu0 %v475, 12
        %v1499 = vpop.permute.xlu0 %1498
        %1500 = vrot.lane.b32.xlu0 %v476, 12
        %v1501 = vpop.permute.xlu0 %1500
        %1502 = vrot.lane.b32.xlu0 %v477, 12
        %v1503 = vpop.permute.xlu0 %1502
        %1504 = vrot.lane.b32.xlu0 %v478, 12
        %v1505 = vpop.permute.xlu0 %1504
        %1570 = vrot.lane.b32.xlu0 %v479, 16
        %v1571 = vpop.permute.xlu0 %1570
        %1572 = vrot.lane.b32.xlu0 %v480, 16
        %v1573 = vpop.permute.xlu0 %1572
        %1574 = vrot.lane.b32.xlu0 %v481, 16
        %v1575 = vpop.permute.xlu0 %1574
        %1576 = vrot.lane.b32.xlu0 %v482, 16
        %v1577 = vpop.permute.xlu0 %1576
        %1578 = vrot.lane.b32.xlu0 %v483, 16
        %v1579 = vpop.permute.xlu0 %1578
        %1580 = vrot.lane.b32.xlu0 %v484, 16
        %v1581 = vpop.permute.xlu0 %1580
        %1582 = vrot.lane.b32.xlu0 %v485, 16
        %v1583 = vpop.permute.xlu0 %1582
        %1584 = vrot.lane.b32.xlu0 %v486, 16
        %v1585 = vpop.permute.xlu0 %1584
        %1586 = vrot.lane.b32.xlu0 %v487, 16
        %v1587 = vpop.permute.xlu0 %1586
        %1588 = vrot.lane.b32.xlu0 %v488, 16
        %v1589 = vpop.permute.xlu0 %1588
        %1590 = vrot.lane.b32.xlu0 %v489, 16
        %v1591 = vpop.permute.xlu0 %1590
        %1592 = vrot.lane.b32.xlu0 %v490, 16
        %v1593 = vpop.permute.xlu0 %1592
        %1594 = vrot.lane.b32.xlu0 %v491, 16
        %v1595 = vpop.permute.xlu0 %1594
        %1596 = vrot.lane.b32.xlu0 %v492, 16
        %v1597 = vpop.permute.xlu0 %1596
        %1598 = vrot.lane.b32.xlu0 %v493, 16
        %v1599 = vpop.permute.xlu0 %1598
        %1600 = vrot.lane.b32.xlu0 %v494, 16
        %v1601 = vpop.permute.xlu0 %1600
        %1602 = vrot.lane.b32.xlu0 %v495, 16
        %v1603 = vpop.permute.xlu0 %1602
        %1604 = vrot.lane.b32.xlu0 %v496, 16
        %v1605 = vpop.permute.xlu0 %1604
        %1606 = vrot.lane.b32.xlu0 %v497, 16
        %v1607 = vpop.permute.xlu0 %1606
        %1608 = vrot.lane.b32.xlu0 %v498, 16
        %v1609 = vpop.permute.xlu0 %1608
        %1610 = vrot.lane.b32.xlu0 %v499, 16
        %v1611 = vpop.permute.xlu0 %1610
        %1612 = vrot.lane.b32.xlu0 %v500, 16
        %v1613 = vpop.permute.xlu0 %1612
        %1614 = vrot.lane.b32.xlu0 %v501, 16
        %v1615 = vpop.permute.xlu0 %1614
        %1616 = vrot.lane.b32.xlu0 %v502, 16
        %v1617 = vpop.permute.xlu0 %1616
        %1618 = vrot.lane.b32.xlu0 %v503, 16
        %v1619 = vpop.permute.xlu0 %1618
        %1620 = vrot.lane.b32.xlu0 %v504, 16
        %v1621 = vpop.permute.xlu0 %1620
        %1622 = vrot.lane.b32.xlu0 %v505, 16
        %v1623 = vpop.permute.xlu0 %1622
        %1624 = vrot.lane.b32.xlu0 %v506, 16
        %v1625 = vpop.permute.xlu0 %1624
        %1626 = vrot.lane.b32.xlu0 %v507, 16
        %v1627 = vpop.permute.xlu0 %1626
        %1628 = vrot.lane.b32.xlu0 %v508, 16
        %v1629 = vpop.permute.xlu0 %1628
        %1630 = vrot.lane.b32.xlu0 %v509, 16
        %v1631 = vpop.permute.xlu0 %1630
        %1632 = vrot.lane.b32.xlu0 %v510, 16
        %v1633 = vpop.permute.xlu0 %1632
        %1698 = vrot.lane.b32.xlu0 %v512, 20
        %v1699 = vpop.permute.xlu0 %1698
        %1700 = vrot.lane.b32.xlu0 %v513, 20
        %v1701 = vpop.permute.xlu0 %1700
        %1702 = vrot.lane.b32.xlu0 %v514, 20
        %v1703 = vpop.permute.xlu0 %1702
        %1704 = vrot.lane.b32.xlu0 %v515, 20
        %v1705 = vpop.permute.xlu0 %1704
        %1706 = vrot.lane.b32.xlu0 %v516, 20
        %v1707 = vpop.permute.xlu0 %1706
        %1708 = vrot.lane.b32.xlu0 %v517, 20
        %v1709 = vpop.permute.xlu0 %1708
        %1710 = vrot.lane.b32.xlu0 %v518, 20
        %v1711 = vpop.permute.xlu0 %1710
        %1712 = vrot.lane.b32.xlu0 %v519, 20
        %v1713 = vpop.permute.xlu0 %1712
        %1714 = vrot.lane.b32.xlu0 %v520, 20
        %v1715 = vpop.permute.xlu0 %1714
        %1716 = vrot.lane.b32.xlu0 %v521, 20
        %v1717 = vpop.permute.xlu0 %1716
        %1718 = vrot.lane.b32.xlu0 %v522, 20
        %v1719 = vpop.permute.xlu0 %1718
        %1720 = vrot.lane.b32.xlu0 %v523, 20
        %v1721 = vpop.permute.xlu0 %1720
        %1722 = vrot.lane.b32.xlu0 %v524, 20
        %v1723 = vpop.permute.xlu0 %1722
        %1724 = vrot.lane.b32.xlu0 %v525, 20
        %v1725 = vpop.permute.xlu0 %1724
        %1726 = vrot.lane.b32.xlu0 %v526, 20
        %v1727 = vpop.permute.xlu0 %1726
        %1728 = vrot.lane.b32.xlu0 %v527, 20
        %v1729 = vpop.permute.xlu0 %1728
        %1730 = vrot.lane.b32.xlu0 %v528, 20
        %v1731 = vpop.permute.xlu0 %1730
        %1732 = vrot.lane.b32.xlu0 %v529, 20
        %v1733 = vpop.permute.xlu0 %1732
        %1734 = vrot.lane.b32.xlu0 %v530, 20
        %v1735 = vpop.permute.xlu0 %1734
        %1736 = vrot.lane.b32.xlu0 %v531, 20
        %v1737 = vpop.permute.xlu0 %1736
        %1738 = vrot.lane.b32.xlu0 %v532, 20
        %v1739 = vpop.permute.xlu0 %1738
        %1740 = vrot.lane.b32.xlu0 %v533, 20
        %v1741 = vpop.permute.xlu0 %1740
        %1742 = vrot.lane.b32.xlu0 %v534, 20
        %v1743 = vpop.permute.xlu0 %1742
        %1744 = vrot.lane.b32.xlu0 %v535, 20
        %v1745 = vpop.permute.xlu0 %1744
        %1746 = vrot.lane.b32.xlu0 %v536, 20
        %v1747 = vpop.permute.xlu0 %1746
        %1748 = vrot.lane.b32.xlu0 %v537, 20
        %v1749 = vpop.permute.xlu0 %1748
        %1750 = vrot.lane.b32.xlu0 %v538, 20
        %v1751 = vpop.permute.xlu0 %1750
        %1752 = vrot.lane.b32.xlu0 %v539, 20
        %v1753 = vpop.permute.xlu0 %1752
        %1754 = vrot.lane.b32.xlu0 %v540, 20
        %v1755 = vpop.permute.xlu0 %1754
        %1756 = vrot.lane.b32.xlu0 %v541, 20
        %v1757 = vpop.permute.xlu0 %1756
        %1758 = vrot.lane.b32.xlu0 %v542, 20
        %v1759 = vpop.permute.xlu0 %1758
        %1760 = vrot.lane.b32.xlu0 %v543, 20
        %v1761 = vpop.permute.xlu0 %1760
        %1826 = vrot.lane.b32.xlu0 %v544, 24
        %v1827 = vpop.permute.xlu0 %1826
        %1828 = vrot.lane.b32.xlu0 %v545, 24
        %v1829 = vpop.permute.xlu0 %1828
        %1830 = vrot.lane.b32.xlu0 %v546, 24
        %v1831 = vpop.permute.xlu0 %1830
        %1832 = vrot.lane.b32.xlu0 %v547, 24
        %v1833 = vpop.permute.xlu0 %1832
        %1834 = vrot.lane.b32.xlu0 %v548, 24
        %v1835 = vpop.permute.xlu0 %1834
        %1836 = vrot.lane.b32.xlu0 %v549, 24
        %v1837 = vpop.permute.xlu0 %1836
        %1838 = vrot.lane.b32.xlu0 %v550, 24
        %v1839 = vpop.permute.xlu0 %1838
        %1840 = vrot.lane.b32.xlu0 %v551, 24
        %v1841 = vpop.permute.xlu0 %1840
        %1842 = vrot.lane.b32.xlu0 %v552, 24
        %v1843 = vpop.permute.xlu0 %1842
        %1844 = vrot.lane.b32.xlu0 %v553, 24
        %v1845 = vpop.permute.xlu0 %1844
        %1846 = vrot.lane.b32.xlu0 %v554, 24
        %v1847 = vpop.permute.xlu0 %1846
        %1848 = vrot.lane.b32.xlu0 %v555, 24
        %v1849 = vpop.permute.xlu0 %1848
        %1850 = vrot.lane.b32.xlu0 %v556, 24
        %v1851 = vpop.permute.xlu0 %1850
        %1852 = vrot.lane.b32.xlu0 %v557, 24
        %v1853 = vpop.permute.xlu0 %1852
        %1854 = vrot.lane.b32.xlu0 %v558, 24
        %v1855 = vpop.permute.xlu0 %1854
        %1856 = vrot.lane.b32.xlu0 %v559, 24
        %v1857 = vpop.permute.xlu0 %1856
        %1858 = vrot.lane.b32.xlu0 %v560, 24
        %v1859 = vpop.permute.xlu0 %1858
        %1860 = vrot.lane.b32.xlu0 %v561, 24
        %v1861 = vpop.permute.xlu0 %1860
        %1862 = vrot.lane.b32.xlu0 %v562, 24
        %v1863 = vpop.permute.xlu0 %1862
        %1864 = vrot.lane.b32.xlu0 %v563, 24
        %v1865 = vpop.permute.xlu0 %1864
        %1866 = vrot.lane.b32.xlu0 %v564, 24
        %v1867 = vpop.permute.xlu0 %1866
        %1868 = vrot.lane.b32.xlu0 %v565, 24
        %v1869 = vpop.permute.xlu0 %1868
        %1870 = vrot.lane.b32.xlu0 %v566, 24
        %v1871 = vpop.permute.xlu0 %1870
        %1872 = vrot.lane.b32.xlu0 %v567, 24
        %v1873 = vpop.permute.xlu0 %1872
        %1874 = vrot.lane.b32.xlu0 %v568, 24
        %v1875 = vpop.permute.xlu0 %1874
        %1876 = vrot.lane.b32.xlu0 %v569, 24
        %v1877 = vpop.permute.xlu0 %1876
        %1878 = vrot.lane.b32.xlu0 %v570, 24
        %v1879 = vpop.permute.xlu0 %1878
        %1880 = vrot.lane.b32.xlu0 %v571, 24
        %v1881 = vpop.permute.xlu0 %1880
        %1882 = vrot.lane.b32.xlu0 %v572, 24
        %v1883 = vpop.permute.xlu0 %1882
        %1884 = vrot.lane.b32.xlu0 %v573, 24
        %v1885 = vpop.permute.xlu0 %1884
        %1886 = vrot.lane.b32.xlu0 %v574, 24
        %v1887 = vpop.permute.xlu0 %1886
        %1888 = vrot.lane.b32.xlu0 %v575, 24
        %v1889 = vpop.permute.xlu0 %1888
        %1954 = vrot.lane.b32.xlu0 %v576, 28
        %v1955 = vpop.permute.xlu0 %1954
        %1956 = vrot.lane.b32.xlu0 %v577, 28
        %v1957 = vpop.permute.xlu0 %1956
        %1958 = vrot.lane.b32.xlu0 %v578, 28
        %v1959 = vpop.permute.xlu0 %1958
        %1960 = vrot.lane.b32.xlu0 %v579, 28
        %v1961 = vpop.permute.xlu0 %1960
        %1962 = vrot.lane.b32.xlu0 %v580, 28
        %v1963 = vpop.permute.xlu0 %1962
        %1964 = vrot.lane.b32.xlu0 %v581, 28
        %v1965 = vpop.permute.xlu0 %1964
        %1966 = vrot.lane.b32.xlu0 %v582, 28
        %v1967 = vpop.permute.xlu0 %1966
        %1968 = vrot.lane.b32.xlu0 %v583, 28
        %v1969 = vpop.permute.xlu0 %1968
        %1970 = vrot.lane.b32.xlu0 %v584, 28
        %v1971 = vpop.permute.xlu0 %1970
        %1972 = vrot.lane.b32.xlu0 %v585, 28
        %v1973 = vpop.permute.xlu0 %1972
        %1974 = vrot.lane.b32.xlu0 %v586, 28
        %v1975 = vpop.permute.xlu0 %1974
        %1976 = vrot.lane.b32.xlu0 %v587, 28
        %v1977 = vpop.permute.xlu0 %1976
        %1978 = vrot.lane.b32.xlu0 %v588, 28
        %v1979 = vpop.permute.xlu0 %1978
        %1980 = vrot.lane.b32.xlu0 %v589, 28
        %v1981 = vpop.permute.xlu0 %1980
        %1982 = vrot.lane.b32.xlu0 %v590, 28
        %v1983 = vpop.permute.xlu0 %1982
        %1984 = vrot.lane.b32.xlu0 %v591, 28
        %v1985 = vpop.permute.xlu0 %1984
        %1986 = vrot.lane.b32.xlu0 %v592, 28
        %v1987 = vpop.permute.xlu0 %1986
        %1988 = vrot.lane.b32.xlu0 %v593, 28
        %v1989 = vpop.permute.xlu0 %1988
        %1990 = vrot.lane.b32.xlu0 %v594, 28
        %v1991 = vpop.permute.xlu0 %1990
        %1992 = vrot.lane.b32.xlu0 %v595, 28
        %v1993 = vpop.permute.xlu0 %1992
        %1994 = vrot.lane.b32.xlu0 %v596, 28
        %v1995 = vpop.permute.xlu0 %1994
        %1996 = vrot.lane.b32.xlu0 %v597, 28
        %v1997 = vpop.permute.xlu0 %1996
        %1998 = vrot.lane.b32.xlu0 %v598, 28
        %v1999 = vpop.permute.xlu0 %1998
        %2000 = vrot.lane.b32.xlu0 %v599, 28
        %v2001 = vpop.permute.xlu0 %2000
        %2002 = vrot.lane.b32.xlu0 %v600, 28
        %v2003 = vpop.permute.xlu0 %2002
        %2004 = vrot.lane.b32.xlu0 %v601, 28
        %v2005 = vpop.permute.xlu0 %2004
        %2006 = vrot.lane.b32.xlu0 %v602, 28
        %v2007 = vpop.permute.xlu0 %2006
        %2008 = vrot.lane.b32.xlu0 %v603, 28
        %v2009 = vpop.permute.xlu0 %2008
        %2010 = vrot.lane.b32.xlu0 %v604, 28
        %v2011 = vpop.permute.xlu0 %2010
        %2012 = vrot.lane.b32.xlu0 %v605, 28
        %v2013 = vpop.permute.xlu0 %2012
        %2014 = vrot.lane.b32.xlu0 %v606, 28
        %v2015 = vpop.permute.xlu0 %2014
        %2016 = vrot.lane.b32.xlu0 %v607, 28
        %v2017 = vpop.permute.xlu0 %2016
        %2082 = vrot.lane.b32.xlu0 %v608, 32
        %v2083 = vpop.permute.xlu0 %2082
        %2084 = vrot.lane.b32.xlu0 %v609, 32
        %v2085 = vpop.permute.xlu0 %2084
        %2086 = vrot.lane.b32.xlu0 %v610, 32
        %v2087 = vpop.permute.xlu0 %2086
        %2088 = vrot.lane.b32.xlu0 %v611, 32
        %v2089 = vpop.permute.xlu0 %2088
        %2090 = vrot.lane.b32.xlu0 %v612, 32
        %v2091 = vpop.permute.xlu0 %2090
        %2092 = vrot.lane.b32.xlu0 %v613, 32
        %v2093 = vpop.permute.xlu0 %2092
        %2094 = vrot.lane.b32.xlu0 %v614, 32
        %v2095 = vpop.permute.xlu0 %2094
        %2096 = vrot.lane.b32.xlu0 %v615, 32
        %v2097 = vpop.permute.xlu0 %2096
        %2098 = vrot.lane.b32.xlu0 %v616, 32
        %v2099 = vpop.permute.xlu0 %2098
        %2100 = vrot.lane.b32.xlu0 %v617, 32
        %v2101 = vpop.permute.xlu0 %2100
        %2102 = vrot.lane.b32.xlu0 %v618, 32
        %v2103 = vpop.permute.xlu0 %2102
        %2104 = vrot.lane.b32.xlu0 %v619, 32
        %v2105 = vpop.permute.xlu0 %2104
        %2106 = vrot.lane.b32.xlu0 %v620, 32
        %v2107 = vpop.permute.xlu0 %2106
        %2108 = vrot.lane.b32.xlu0 %v621, 32
        %v2109 = vpop.permute.xlu0 %2108
        %2110 = vrot.lane.b32.xlu0 %v622, 32
        %v2111 = vpop.permute.xlu0 %2110
        %2112 = vrot.lane.b32.xlu0 %v623, 32
        %v2113 = vpop.permute.xlu0 %2112
        %2114 = vrot.lane.b32.xlu0 %v624, 32
        %v2115 = vpop.permute.xlu0 %2114
        %2116 = vrot.lane.b32.xlu0 %v625, 32
        %v2117 = vpop.permute.xlu0 %2116
        %2118 = vrot.lane.b32.xlu0 %v626, 32
        %v2119 = vpop.permute.xlu0 %2118
        %2120 = vrot.lane.b32.xlu0 %v627, 32
        %v2121 = vpop.permute.xlu0 %2120
        %2122 = vrot.lane.b32.xlu0 %v628, 32
        %v2123 = vpop.permute.xlu0 %2122
        %2124 = vrot.lane.b32.xlu0 %v629, 32
        %v2125 = vpop.permute.xlu0 %2124
        %2126 = vrot.lane.b32.xlu0 %v630, 32
        %v2127 = vpop.permute.xlu0 %2126
        %2128 = vrot.lane.b32.xlu0 %v631, 32
        %v2129 = vpop.permute.xlu0 %2128
        %2130 = vrot.lane.b32.xlu0 %v632, 32
        %v2131 = vpop.permute.xlu0 %2130
        %2132 = vrot.lane.b32.xlu0 %v633, 32
        %v2133 = vpop.permute.xlu0 %2132
        %2134 = vrot.lane.b32.xlu0 %v634, 32
        %v2135 = vpop.permute.xlu0 %2134
        %2136 = vrot.lane.b32.xlu0 %v635, 32
        %v2137 = vpop.permute.xlu0 %2136
        %2138 = vrot.lane.b32.xlu0 %v636, 32
        %v2139 = vpop.permute.xlu0 %2138
        %2140 = vrot.lane.b32.xlu0 %v637, 32
        %v2141 = vpop.permute.xlu0 %2140
        %2142 = vrot.lane.b32.xlu0 %v638, 32
        %v2143 = vpop.permute.xlu0 %2142
        %2144 = vrot.lane.b32.xlu0 %v639, 32
        %v2145 = vpop.permute.xlu0 %2144
        %2210 = vrot.lane.b32.xlu0 %v640, 36
        %v2211 = vpop.permute.xlu0 %2210
        %2212 = vrot.lane.b32.xlu0 %v641, 36
        %v2213 = vpop.permute.xlu0 %2212
        %2214 = vrot.lane.b32.xlu0 %v642, 36
        %v2215 = vpop.permute.xlu0 %2214
        %2216 = vrot.lane.b32.xlu0 %v643, 36
        %v2217 = vpop.permute.xlu0 %2216
        %2218 = vrot.lane.b32.xlu0 %v644, 36
        %v2219 = vpop.permute.xlu0 %2218
        %2220 = vrot.lane.b32.xlu0 %v645, 36
        %v2221 = vpop.permute.xlu0 %2220
        %2222 = vrot.lane.b32.xlu0 %v646, 36
        %v2223 = vpop.permute.xlu0 %2222
        %2224 = vrot.lane.b32.xlu0 %v647, 36
        %v2225 = vpop.permute.xlu0 %2224
        %2226 = vrot.lane.b32.xlu0 %v648, 36
        %v2227 = vpop.permute.xlu0 %2226
        %2228 = vrot.lane.b32.xlu0 %v649, 36
        %v2229 = vpop.permute.xlu0 %2228
        %2230 = vrot.lane.b32.xlu0 %v650, 36
        %v2231 = vpop.permute.xlu0 %2230
        %2232 = vrot.lane.b32.xlu0 %v651, 36
        %v2233 = vpop.permute.xlu0 %2232
        %2234 = vrot.lane.b32.xlu0 %v652, 36
        %v2235 = vpop.permute.xlu0 %2234
        %2236 = vrot.lane.b32.xlu0 %v653, 36
        %v2237 = vpop.permute.xlu0 %2236
        %2238 = vrot.lane.b32.xlu0 %v654, 36
        %v2239 = vpop.permute.xlu0 %2238
        %2240 = vrot.lane.b32.xlu0 %v655, 36
        %v2241 = vpop.permute.xlu0 %2240
        %2242 = vrot.lane.b32.xlu0 %v656, 36
        %v2243 = vpop.permute.xlu0 %2242
        %2244 = vrot.lane.b32.xlu0 %v657, 36
        %v2245 = vpop.permute.xlu0 %2244
        %2246 = vrot.lane.b32.xlu0 %v658, 36
        %v2247 = vpop.permute.xlu0 %2246
        %2248 = vrot.lane.b32.xlu0 %v659, 36
        %v2249 = vpop.permute.xlu0 %2248
        %2250 = vrot.lane.b32.xlu0 %v660, 36
        %v2251 = vpop.permute.xlu0 %2250
        %2252 = vrot.lane.b32.xlu0 %v661, 36
        %v2253 = vpop.permute.xlu0 %2252
        %2254 = vrot.lane.b32.xlu0 %v662, 36
        %v2255 = vpop.permute.xlu0 %2254
        %2256 = vrot.lane.b32.xlu0 %v663, 36
        %v2257 = vpop.permute.xlu0 %2256
        %2258 = vrot.lane.b32.xlu0 %v664, 36
        %v2259 = vpop.permute.xlu0 %2258
        %2260 = vrot.lane.b32.xlu0 %v665, 36
        %v2261 = vpop.permute.xlu0 %2260
        %2262 = vrot.lane.b32.xlu0 %v666, 36
        %v2263 = vpop.permute.xlu0 %2262
        %2264 = vrot.lane.b32.xlu0 %v667, 36
        %v2265 = vpop.permute.xlu0 %2264
        %2266 = vrot.lane.b32.xlu0 %v668, 36
        %v2267 = vpop.permute.xlu0 %2266
        %2268 = vrot.lane.b32.xlu0 %v669, 36
        %v2269 = vpop.permute.xlu0 %2268
        %2270 = vrot.lane.b32.xlu0 %v670, 36
        %v2271 = vpop.permute.xlu0 %2270
        %2272 = vrot.lane.b32.xlu0 %v671, 36
        %v2273 = vpop.permute.xlu0 %2272
        %2338 = vrot.lane.b32.xlu0 %v672, 40
        %v2339 = vpop.permute.xlu0 %2338
        %2340 = vrot.lane.b32.xlu0 %v673, 40
        %v2341 = vpop.permute.xlu0 %2340
        %2342 = vrot.lane.b32.xlu0 %v674, 40
        %v2343 = vpop.permute.xlu0 %2342
        %2344 = vrot.lane.b32.xlu0 %v675, 40
        %v2345 = vpop.permute.xlu0 %2344
        %2346 = vrot.lane.b32.xlu0 %v676, 40
        %v2347 = vpop.permute.xlu0 %2346
        %2348 = vrot.lane.b32.xlu0 %v677, 40
        %v2349 = vpop.permute.xlu0 %2348
        %2350 = vrot.lane.b32.xlu0 %v678, 40
        %v2351 = vpop.permute.xlu0 %2350
        %2352 = vrot.lane.b32.xlu0 %v679, 40
        %v2353 = vpop.permute.xlu0 %2352
        %2354 = vrot.lane.b32.xlu0 %v680, 40
        %v2355 = vpop.permute.xlu0 %2354
        %2356 = vrot.lane.b32.xlu0 %v681, 40
        %v2357 = vpop.permute.xlu0 %2356
        %2358 = vrot.lane.b32.xlu0 %v682, 40
        %v2359 = vpop.permute.xlu0 %2358
        %2360 = vrot.lane.b32.xlu0 %v683, 40
        %v2361 = vpop.permute.xlu0 %2360
        %2362 = vrot.lane.b32.xlu0 %v684, 40
        %v2363 = vpop.permute.xlu0 %2362
        %2364 = vrot.lane.b32.xlu0 %v685, 40
        %v2365 = vpop.permute.xlu0 %2364
        %2366 = vrot.lane.b32.xlu0 %v686, 40
        %v2367 = vpop.permute.xlu0 %2366
        %2368 = vrot.lane.b32.xlu0 %v687, 40
        %v2369 = vpop.permute.xlu0 %2368
        %2370 = vrot.lane.b32.xlu0 %v688, 40
        %v2371 = vpop.permute.xlu0 %2370
        %2372 = vrot.lane.b32.xlu0 %v689, 40
        %v2373 = vpop.permute.xlu0 %2372
        %2374 = vrot.lane.b32.xlu0 %v690, 40
        %v2375 = vpop.permute.xlu0 %2374
        %2376 = vrot.lane.b32.xlu0 %v691, 40
        %v2377 = vpop.permute.xlu0 %2376
        %2378 = vrot.lane.b32.xlu0 %v692, 40
        %v2379 = vpop.permute.xlu0 %2378
        %2380 = vrot.lane.b32.xlu0 %v693, 40
        %v2381 = vpop.permute.xlu0 %2380
        %2382 = vrot.lane.b32.xlu0 %v694, 40
        %v2383 = vpop.permute.xlu0 %2382
        %2384 = vrot.lane.b32.xlu0 %v695, 40
        %v2385 = vpop.permute.xlu0 %2384
        %2386 = vrot.lane.b32.xlu0 %v696, 40
        %v2387 = vpop.permute.xlu0 %2386
        %2388 = vrot.lane.b32.xlu0 %v697, 40
        %v2389 = vpop.permute.xlu0 %2388
        %2390 = vrot.lane.b32.xlu0 %v698, 40
        %v2391 = vpop.permute.xlu0 %2390
        %2392 = vrot.lane.b32.xlu0 %v699, 40
        %v2393 = vpop.permute.xlu0 %2392
        %2394 = vrot.lane.b32.xlu0 %v700, 40
        %v2395 = vpop.permute.xlu0 %2394
        %2396 = vrot.lane.b32.xlu0 %v701, 40
        %v2397 = vpop.permute.xlu0 %2396
        %2398 = vrot.lane.b32.xlu0 %v702, 40
        %v2399 = vpop.permute.xlu0 %2398
        %2400 = vrot.lane.b32.xlu0 %v703, 40
        %v2401 = vpop.permute.xlu0 %2400
        %2466 = vrot.lane.b32.xlu0 %v704, 44
        %v2467 = vpop.permute.xlu0 %2466
        %2468 = vrot.lane.b32.xlu0 %v705, 44
        %v2469 = vpop.permute.xlu0 %2468
        %2470 = vrot.lane.b32.xlu0 %v706, 44
        %v2471 = vpop.permute.xlu0 %2470
        %2472 = vrot.lane.b32.xlu0 %v707, 44
        %v2473 = vpop.permute.xlu0 %2472
        %2474 = vrot.lane.b32.xlu0 %v708, 44
        %v2475 = vpop.permute.xlu0 %2474
        %2476 = vrot.lane.b32.xlu0 %v709, 44
        %v2477 = vpop.permute.xlu0 %2476
        %2478 = vrot.lane.b32.xlu0 %v710, 44
        %v2479 = vpop.permute.xlu0 %2478
        %2480 = vrot.lane.b32.xlu0 %v711, 44
        %v2481 = vpop.permute.xlu0 %2480
        %2482 = vrot.lane.b32.xlu0 %v712, 44
        %v2483 = vpop.permute.xlu0 %2482
        %2484 = vrot.lane.b32.xlu0 %v713, 44
        %v2485 = vpop.permute.xlu0 %2484
        %2486 = vrot.lane.b32.xlu0 %v714, 44
        %v2487 = vpop.permute.xlu0 %2486
        %2488 = vrot.lane.b32.xlu0 %v715, 44
        %v2489 = vpop.permute.xlu0 %2488
        %2490 = vrot.lane.b32.xlu0 %v716, 44
        %v2491 = vpop.permute.xlu0 %2490
        %2492 = vrot.lane.b32.xlu0 %v717, 44
        %v2493 = vpop.permute.xlu0 %2492
        %2494 = vrot.lane.b32.xlu0 %v718, 44
        %v2495 = vpop.permute.xlu0 %2494
        %2496 = vrot.lane.b32.xlu0 %v719, 44
        %v2497 = vpop.permute.xlu0 %2496
        %2498 = vrot.lane.b32.xlu0 %v720, 44
        %v2499 = vpop.permute.xlu0 %2498
        %2500 = vrot.lane.b32.xlu0 %v721, 44
        %v2501 = vpop.permute.xlu0 %2500
        %2502 = vrot.lane.b32.xlu0 %v722, 44
        %v2503 = vpop.permute.xlu0 %2502
        %2504 = vrot.lane.b32.xlu0 %v723, 44
        %v2505 = vpop.permute.xlu0 %2504
        %2506 = vrot.lane.b32.xlu0 %v724, 44
        %v2507 = vpop.permute.xlu0 %2506
        %2508 = vrot.lane.b32.xlu0 %v725, 44
        %v2509 = vpop.permute.xlu0 %2508
        %2510 = vrot.lane.b32.xlu0 %v726, 44
        %v2511 = vpop.permute.xlu0 %2510
        %2512 = vrot.lane.b32.xlu0 %v727, 44
        %v2513 = vpop.permute.xlu0 %2512
        %2514 = vrot.lane.b32.xlu0 %v728, 44
        %v2515 = vpop.permute.xlu0 %2514
        %2516 = vrot.lane.b32.xlu0 %v729, 44
        %v2517 = vpop.permute.xlu0 %2516
        %2518 = vrot.lane.b32.xlu0 %v730, 44
        %v2519 = vpop.permute.xlu0 %2518
        %2520 = vrot.lane.b32.xlu0 %v731, 44
        %v2521 = vpop.permute.xlu0 %2520
        %2522 = vrot.lane.b32.xlu0 %v732, 44
        %v2523 = vpop.permute.xlu0 %2522
        %2524 = vrot.lane.b32.xlu0 %v733, 44
        %v2525 = vpop.permute.xlu0 %2524
        %2526 = vrot.lane.b32.xlu0 %v734, 44
        %v2527 = vpop.permute.xlu0 %2526
        %2528 = vrot.lane.b32.xlu0 %v735, 44
        %v2529 = vpop.permute.xlu0 %2528
        %2594 = vrot.lane.b32.xlu0 %v736, 48
        %v2595 = vpop.permute.xlu0 %2594
        %2596 = vrot.lane.b32.xlu0 %v737, 48
        %v2597 = vpop.permute.xlu0 %2596
        %2598 = vrot.lane.b32.xlu0 %v738, 48
        %v2599 = vpop.permute.xlu0 %2598
        %2600 = vrot.lane.b32.xlu0 %v739, 48
        %v2601 = vpop.permute.xlu0 %2600
        %2602 = vrot.lane.b32.xlu0 %v740, 48
        %v2603 = vpop.permute.xlu0 %2602
        %2604 = vrot.lane.b32.xlu0 %v741, 48
        %v2605 = vpop.permute.xlu0 %2604
        %2606 = vrot.lane.b32.xlu0 %v742, 48
        %v2607 = vpop.permute.xlu0 %2606
        %2608 = vrot.lane.b32.xlu0 %v743, 48
        %v2609 = vpop.permute.xlu0 %2608
        %2610 = vrot.lane.b32.xlu0 %v744, 48
        %v2611 = vpop.permute.xlu0 %2610
        %2612 = vrot.lane.b32.xlu0 %v745, 48
        %v2613 = vpop.permute.xlu0 %2612
        %2614 = vrot.lane.b32.xlu0 %v746, 48
        %v2615 = vpop.permute.xlu0 %2614
        %2616 = vrot.lane.b32.xlu0 %v747, 48
        %v2617 = vpop.permute.xlu0 %2616
        %2618 = vrot.lane.b32.xlu0 %v748, 48
        %v2619 = vpop.permute.xlu0 %2618
        %2620 = vrot.lane.b32.xlu0 %v749, 48
        %v2621 = vpop.permute.xlu0 %2620
        %2622 = vrot.lane.b32.xlu0 %v750, 48
        %v2623 = vpop.permute.xlu0 %2622
        %2624 = vrot.lane.b32.xlu0 %v751, 48
        %v2625 = vpop.permute.xlu0 %2624
        %2626 = vrot.lane.b32.xlu0 %v752, 48
        %v2627 = vpop.permute.xlu0 %2626
        %2628 = vrot.lane.b32.xlu0 %v753, 48
        %v2629 = vpop.permute.xlu0 %2628
        %2630 = vrot.lane.b32.xlu0 %v754, 48
        %v2631 = vpop.permute.xlu0 %2630
        %2632 = vrot.lane.b32.xlu0 %v755, 48
        %v2633 = vpop.permute.xlu0 %2632
        %2634 = vrot.lane.b32.xlu0 %v756, 48
        %v2635 = vpop.permute.xlu0 %2634
        %2636 = vrot.lane.b32.xlu0 %v757, 48
        %v2637 = vpop.permute.xlu0 %2636
        %2638 = vrot.lane.b32.xlu0 %v758, 48
        %v2639 = vpop.permute.xlu0 %2638
        %2640 = vrot.lane.b32.xlu0 %v759, 48
        %v2641 = vpop.permute.xlu0 %2640
        %2642 = vrot.lane.b32.xlu0 %v760, 48
        %v2643 = vpop.permute.xlu0 %2642
        %2644 = vrot.lane.b32.xlu0 %v761, 48
        %v2645 = vpop.permute.xlu0 %2644
        %2646 = vrot.lane.b32.xlu0 %v762, 48
        %v2647 = vpop.permute.xlu0 %2646
        %2648 = vrot.lane.b32.xlu0 %v763, 48
        %v2649 = vpop.permute.xlu0 %2648
        %2650 = vrot.lane.b32.xlu0 %v764, 48
        %v2651 = vpop.permute.xlu0 %2650
        %2652 = vrot.lane.b32.xlu0 %v765, 48
        %v2653 = vpop.permute.xlu0 %2652
        %2654 = vrot.lane.b32.xlu0 %v766, 48
        %v2655 = vpop.permute.xlu0 %2654
        %2656 = vrot.lane.b32.xlu0 %v767, 48
        %v2657 = vpop.permute.xlu0 %2656
        %2722 = vrot.lane.b32.xlu0 %v768, 52
        %v2723 = vpop.permute.xlu0 %2722
        %2724 = vrot.lane.b32.xlu0 %v769, 52
        %v2725 = vpop.permute.xlu0 %2724
        %2726 = vrot.lane.b32.xlu0 %v770, 52
        %v2727 = vpop.permute.xlu0 %2726
        %2728 = vrot.lane.b32.xlu0 %v771, 52
        %v2729 = vpop.permute.xlu0 %2728
        %2730 = vrot.lane.b32.xlu0 %v772, 52
        %v2731 = vpop.permute.xlu0 %2730
        %2732 = vrot.lane.b32.xlu0 %v773, 52
        %v2733 = vpop.permute.xlu0 %2732
        %2734 = vrot.lane.b32.xlu0 %v774, 52
        %v2735 = vpop.permute.xlu0 %2734
        %2736 = vrot.lane.b32.xlu0 %v775, 52
        %v2737 = vpop.permute.xlu0 %2736
        %2738 = vrot.lane.b32.xlu0 %v776, 52
        %v2739 = vpop.permute.xlu0 %2738
        %2740 = vrot.lane.b32.xlu0 %v777, 52
        %v2741 = vpop.permute.xlu0 %2740
        %2742 = vrot.lane.b32.xlu0 %v778, 52
        %v2743 = vpop.permute.xlu0 %2742
        %2744 = vrot.lane.b32.xlu0 %v779, 52
        %v2745 = vpop.permute.xlu0 %2744
        %2746 = vrot.lane.b32.xlu0 %v780, 52
        %v2747 = vpop.permute.xlu0 %2746
        %2748 = vrot.lane.b32.xlu0 %v781, 52
        %v2749 = vpop.permute.xlu0 %2748
        %2750 = vrot.lane.b32.xlu0 %v782, 52
        %v2751 = vpop.permute.xlu0 %2750
        %2752 = vrot.lane.b32.xlu0 %v783, 52
        %v2753 = vpop.permute.xlu0 %2752
        %2754 = vrot.lane.b32.xlu0 %v784, 52
        %v2755 = vpop.permute.xlu0 %2754
        %2756 = vrot.lane.b32.xlu0 %v785, 52
        %v2757 = vpop.permute.xlu0 %2756
        %2758 = vrot.lane.b32.xlu0 %v786, 52
        %v2759 = vpop.permute.xlu0 %2758
        %2760 = vrot.lane.b32.xlu0 %v787, 52
        %v2761 = vpop.permute.xlu0 %2760
        %2762 = vrot.lane.b32.xlu0 %v788, 52
        %v2763 = vpop.permute.xlu0 %2762
        %2764 = vrot.lane.b32.xlu0 %v789, 52
        %v2765 = vpop.permute.xlu0 %2764
        %2766 = vrot.lane.b32.xlu0 %v790, 52
        %v2767 = vpop.permute.xlu0 %2766
        %2768 = vrot.lane.b32.xlu0 %v791, 52
        %v2769 = vpop.permute.xlu0 %2768
        %2770 = vrot.lane.b32.xlu0 %v792, 52
        %v2771 = vpop.permute.xlu0 %2770
        %2772 = vrot.lane.b32.xlu0 %v793, 52
        %v2773 = vpop.permute.xlu0 %2772
        %2774 = vrot.lane.b32.xlu0 %v794, 52
        %v2775 = vpop.permute.xlu0 %2774
        %2776 = vrot.lane.b32.xlu0 %v795, 52
        %v2777 = vpop.permute.xlu0 %2776
        %2778 = vrot.lane.b32.xlu0 %v796, 52
        %v2779 = vpop.permute.xlu0 %2778
        %2780 = vrot.lane.b32.xlu0 %v797, 52
        %v2781 = vpop.permute.xlu0 %2780
        %2782 = vrot.lane.b32.xlu0 %v798, 52
        %v2783 = vpop.permute.xlu0 %2782
        %2784 = vrot.lane.b32.xlu0 %v799, 52
        %v2785 = vpop.permute.xlu0 %2784
        %2850 = vrot.lane.b32.xlu0 %v800, 56
        %v2851 = vpop.permute.xlu0 %2850
        %2852 = vrot.lane.b32.xlu0 %v801, 56
        %v2853 = vpop.permute.xlu0 %2852
        %2854 = vrot.lane.b32.xlu0 %v802, 56
        %v2855 = vpop.permute.xlu0 %2854
        %2856 = vrot.lane.b32.xlu0 %v803, 56
        %v2857 = vpop.permute.xlu0 %2856
        %2858 = vrot.lane.b32.xlu0 %v804, 56
        %v2859 = vpop.permute.xlu0 %2858
        %2860 = vrot.lane.b32.xlu0 %v805, 56
        %v2861 = vpop.permute.xlu0 %2860
        %2862 = vrot.lane.b32.xlu0 %v806, 56
        %v2863 = vpop.permute.xlu0 %2862
        %2864 = vrot.lane.b32.xlu0 %v807, 56
        %v2865 = vpop.permute.xlu0 %2864
        %2866 = vrot.lane.b32.xlu0 %v808, 56
        %v2867 = vpop.permute.xlu0 %2866
        %2868 = vrot.lane.b32.xlu0 %v809, 56
        %v2869 = vpop.permute.xlu0 %2868
        %2870 = vrot.lane.b32.xlu0 %v810, 56
        %v2871 = vpop.permute.xlu0 %2870
        %2872 = vrot.lane.b32.xlu0 %v811, 56
        %v2873 = vpop.permute.xlu0 %2872
        %2874 = vrot.lane.b32.xlu0 %v812, 56
        %v2875 = vpop.permute.xlu0 %2874
        %2876 = vrot.lane.b32.xlu0 %v813, 56
        %v2877 = vpop.permute.xlu0 %2876
        %2878 = vrot.lane.b32.xlu0 %v814, 56
        %v2879 = vpop.permute.xlu0 %2878
        %2880 = vrot.lane.b32.xlu0 %v815, 56
        %v2881 = vpop.permute.xlu0 %2880
        %2882 = vrot.lane.b32.xlu0 %v816, 56
        %v2883 = vpop.permute.xlu0 %2882
        %2884 = vrot.lane.b32.xlu0 %v817, 56
        %v2885 = vpop.permute.xlu0 %2884
        %2886 = vrot.lane.b32.xlu0 %v818, 56
        %v2887 = vpop.permute.xlu0 %2886
        %2888 = vrot.lane.b32.xlu0 %v819, 56
        %v2889 = vpop.permute.xlu0 %2888
        %2890 = vrot.lane.b32.xlu0 %v820, 56
        %v2891 = vpop.permute.xlu0 %2890
        %2892 = vrot.lane.b32.xlu0 %v821, 56
        %v2893 = vpop.permute.xlu0 %2892
        %2894 = vrot.lane.b32.xlu0 %v822, 56
        %v2895 = vpop.permute.xlu0 %2894
        %2896 = vrot.lane.b32.xlu0 %v823, 56
        %v2897 = vpop.permute.xlu0 %2896
        %2898 = vrot.lane.b32.xlu0 %v824, 56
        %v2899 = vpop.permute.xlu0 %2898
        %2900 = vrot.lane.b32.xlu0 %v825, 56
        %v2901 = vpop.permute.xlu0 %2900
        %2902 = vrot.lane.b32.xlu0 %v826, 56
        %v2903 = vpop.permute.xlu0 %2902
        %2904 = vrot.lane.b32.xlu0 %v827, 56
        %v2905 = vpop.permute.xlu0 %2904
        %2906 = vrot.lane.b32.xlu0 %v828, 56
        %v2907 = vpop.permute.xlu0 %2906
        %2908 = vrot.lane.b32.xlu0 %v829, 56
        %v2909 = vpop.permute.xlu0 %2908
        %2910 = vrot.lane.b32.xlu0 %v830, 56
        %v2911 = vpop.permute.xlu0 %2910
        %2912 = vrot.lane.b32.xlu0 %v831, 56
        %v2913 = vpop.permute.xlu0 %2912
        %2978 = vrot.lane.b32.xlu0 %v833, 60
        %v2979 = vpop.permute.xlu0 %2978
        %2980 = vrot.lane.b32.xlu0 %v834, 60
        %v2981 = vpop.permute.xlu0 %2980
        %2982 = vrot.lane.b32.xlu0 %v835, 60
        %v2983 = vpop.permute.xlu0 %2982
        %2984 = vrot.lane.b32.xlu0 %v836, 60
        %v2985 = vpop.permute.xlu0 %2984
        %2986 = vrot.lane.b32.xlu0 %v837, 60
        %v2987 = vpop.permute.xlu0 %2986
        %2988 = vrot.lane.b32.xlu0 %v838, 60
        %v2989 = vpop.permute.xlu0 %2988
        %2990 = vrot.lane.b32.xlu0 %v839, 60
        %v2991 = vpop.permute.xlu0 %2990
        %2992 = vrot.lane.b32.xlu0 %v840, 60
        %v2993 = vpop.permute.xlu0 %2992
        %2994 = vrot.lane.b32.xlu0 %v841, 60
        %v2995 = vpop.permute.xlu0 %2994
        %2996 = vrot.lane.b32.xlu0 %v842, 60
        %v2997 = vpop.permute.xlu0 %2996
        %2998 = vrot.lane.b32.xlu0 %v843, 60
        %v2999 = vpop.permute.xlu0 %2998
        %3000 = vrot.lane.b32.xlu0 %v844, 60
        %v3001 = vpop.permute.xlu0 %3000
        %3002 = vrot.lane.b32.xlu0 %v845, 60
        %v3003 = vpop.permute.xlu0 %3002
        %3004 = vrot.lane.b32.xlu0 %v846, 60
        %v3005 = vpop.permute.xlu0 %3004
        %3006 = vrot.lane.b32.xlu0 %v847, 60
        %v3007 = vpop.permute.xlu0 %3006
        %3008 = vrot.lane.b32.xlu0 %v848, 60
        %v3009 = vpop.permute.xlu0 %3008
        %3010 = vrot.lane.b32.xlu0 %v849, 60
        %v3011 = vpop.permute.xlu0 %3010
        %3012 = vrot.lane.b32.xlu0 %v850, 60
        %v3013 = vpop.permute.xlu0 %3012
        %3014 = vrot.lane.b32.xlu0 %v851, 60
        %v3015 = vpop.permute.xlu0 %3014
        %3016 = vrot.lane.b32.xlu0 %v852, 60
        %v3017 = vpop.permute.xlu0 %3016
        %3018 = vrot.lane.b32.xlu0 %v853, 60
        %v3019 = vpop.permute.xlu0 %3018
        %3020 = vrot.lane.b32.xlu0 %v854, 60
        %v3021 = vpop.permute.xlu0 %3020
        %3022 = vrot.lane.b32.xlu0 %v855, 60
        %v3023 = vpop.permute.xlu0 %3022
        %3024 = vrot.lane.b32.xlu0 %v856, 60
        %v3025 = vpop.permute.xlu0 %3024
        %3026 = vrot.lane.b32.xlu0 %v857, 60
        %v3027 = vpop.permute.xlu0 %3026
        %3028 = vrot.lane.b32.xlu0 %v858, 60
        %v3029 = vpop.permute.xlu0 %3028
        %3030 = vrot.lane.b32.xlu0 %v859, 60
        %v3031 = vpop.permute.xlu0 %3030
        %3032 = vrot.lane.b32.xlu0 %v860, 60
        %v3033 = vpop.permute.xlu0 %3032
        %3034 = vrot.lane.b32.xlu0 %v861, 60
        %v3035 = vpop.permute.xlu0 %3034
        %3036 = vrot.lane.b32.xlu0 %v862, 60
        %v3037 = vpop.permute.xlu0 %3036
        %3038 = vrot.lane.b32.xlu0 %v863, 60
        %v3039 = vpop.permute.xlu0 %3038
        %3040 = vrot.lane.b32.xlu0 %v864, 60
        %v3041 = vpop.permute.xlu0 %3040
        %v3074 = vsel %vm224, %v351, %v1187
        %v3075 = vsel %vm224, %v352, %v1189
        %v3076 = vsel %vm224, %v353, %v1191
        %v3077 = vsel %vm224, %v354, %v1193
        %v3078 = vsel %vm224, %v355, %v1195
        %v3079 = vsel %vm224, %v356, %v1197
        %v3080 = vsel %vm224, %v357, %v1199
        %v3081 = vsel %vm224, %v358, %v1201
        %v3082 = vsel %vm224, %v359, %v1203
        %v3083 = vsel %vm224, %v360, %v1205
        %v3084 = vsel %vm224, %v361, %v1207
        %v3085 = vsel %vm224, %v362, %v1209
        %v3086 = vsel %vm224, %v363, %v1211
        %v3087 = vsel %vm224, %v364, %v1213
        %v3088 = vsel %vm224, %v365, %v1215
        %v3089 = vsel %vm224, %v366, %v1217
        %v3090 = vsel %vm224, %v367, %v1219
        %v3091 = vsel %vm224, %v368, %v1221
        %v3092 = vsel %vm224, %v369, %v1223
        %v3093 = vsel %vm224, %v370, %v1225
        %v3094 = vsel %vm224, %v371, %v1227
        %v3095 = vsel %vm224, %v372, %v1229
        %v3096 = vsel %vm224, %v373, %v1231
        %v3097 = vsel %vm224, %v374, %v1233
        %v3098 = vsel %vm224, %v375, %v1235
        %v3099 = vsel %vm224, %v376, %v1237
        %v3100 = vsel %vm224, %v377, %v1239
        %v3101 = vsel %vm224, %v378, %v1241
        %v3102 = vsel %vm224, %v379, %v1243
        %v3103 = vsel %vm224, %v380, %v1245
        %v3104 = vsel %vm224, %v381, %v1247
        %v3105 = vsel %vm224, %v382, %v1249
        %vm3106 = vcmask 64512
        %v3107 = vsel %vm3106, %v3074, %v1315
        %v3108 = vsel %vm3106, %v3075, %v1317
        %v3109 = vsel %vm3106, %v3076, %v1319
        %v3110 = vsel %vm3106, %v3077, %v1321
        %v3111 = vsel %vm3106, %v3078, %v1323
        %v3112 = vsel %vm3106, %v3079, %v1325
        %v3113 = vsel %vm3106, %v3080, %v1327
        %v3114 = vsel %vm3106, %v3081, %v1329
        %v3115 = vsel %vm3106, %v3082, %v1331
        %v3116 = vsel %vm3106, %v3083, %v1333
        %v3117 = vsel %vm3106, %v3084, %v1335
        %v3118 = vsel %vm3106, %v3085, %v1337
        %v3119 = vsel %vm3106, %v3086, %v1339
        %v3120 = vsel %vm3106, %v3087, %v1341
        %v3121 = vsel %vm3106, %v3088, %v1343
        %v3122 = vsel %vm3106, %v3089, %v1345
        %v3123 = vsel %vm3106, %v3090, %v1347
        %v3124 = vsel %vm3106, %v3091, %v1349
        %v3125 = vsel %vm3106, %v3092, %v1351
        %v3126 = vsel %vm3106, %v3093, %v1353
        %v3127 = vsel %vm3106, %v3094, %v1355
        %v3128 = vsel %vm3106, %v3095, %v1357
        %v3129 = vsel %vm3106, %v3096, %v1359
        %v3130 = vsel %vm3106, %v3097, %v1361
        %v3131 = vsel %vm3106, %v3098, %v1363
        %v3132 = vsel %vm3106, %v3099, %v1365
        %v3133 = vsel %vm3106, %v3100, %v1367
        %v3134 = vsel %vm3106, %v3101, %v1369
        %v3135 = vsel %vm3106, %v3102, %v1371
        %v3136 = vsel %vm3106, %v3103, %v1373
        %v3137 = vsel %vm3106, %v3104, %v1375
        %v3138 = vsel %vm3106, %v3105, %v1377
        %vm3139 = vcmask 97280
        %v3140 = vsel %vm3139, %v3107, %v1443
        %v3141 = vsel %vm3139, %v3108, %v1445
        %v3142 = vsel %vm3139, %v3109, %v1447
        %v3143 = vsel %vm3139, %v3110, %v1449
        %v3144 = vsel %vm3139, %v3111, %v1451
        %v3145 = vsel %vm3139, %v3112, %v1453
        %v3146 = vsel %vm3139, %v3113, %v1455
        %v3147 = vsel %vm3139, %v3114, %v1457
        %v3148 = vsel %vm3139, %v3115, %v1459
        %v3149 = vsel %vm3139, %v3116, %v1461
        %v3150 = vsel %vm3139, %v3117, %v1463
        %v3151 = vsel %vm3139, %v3118, %v1465
        %v3152 = vsel %vm3139, %v3119, %v1467
        %v3153 = vsel %vm3139, %v3120, %v1469
        %v3154 = vsel %vm3139, %v3121, %v1471
        %v3155 = vsel %vm3139, %v3122, %v1473
        %v3156 = vsel %vm3139, %v3123, %v1475
        %v3157 = vsel %vm3139, %v3124, %v1477
        %v3158 = vsel %vm3139, %v3125, %v1479
        %v3159 = vsel %vm3139, %v3126, %v1481
        %v3160 = vsel %vm3139, %v3127, %v1483
        %v3161 = vsel %vm3139, %v3128, %v1485
        %v3162 = vsel %vm3139, %v3129, %v1487
        %v3163 = vsel %vm3139, %v3130, %v1489
        %v3164 = vsel %vm3139, %v3131, %v1491
        %v3165 = vsel %vm3139, %v3132, %v1493
        %v3166 = vsel %vm3139, %v3133, %v1495
        %v3167 = vsel %vm3139, %v3134, %v1497
        %v3168 = vsel %vm3139, %v3135, %v1499
        %v3169 = vsel %vm3139, %v3136, %v1501
        %v3170 = vsel %vm3139, %v3137, %v1503
        %v3171 = vsel %vm3139, %v3138, %v1505
        %vm3172 = vcmask 130048
        %v3173 = vsel %vm3172, %v3140, %v1571
        %v3174 = vsel %vm3172, %v3141, %v1573
        %v3175 = vsel %vm3172, %v3142, %v1575
        %v3176 = vsel %vm3172, %v3143, %v1577
        %v3177 = vsel %vm3172, %v3144, %v1579
        %v3178 = vsel %vm3172, %v3145, %v1581
        %v3179 = vsel %vm3172, %v3146, %v1583
        %v3180 = vsel %vm3172, %v3147, %v1585
        %v3181 = vsel %vm3172, %v3148, %v1587
        %v3182 = vsel %vm3172, %v3149, %v1589
        %v3183 = vsel %vm3172, %v3150, %v1591
        %v3184 = vsel %vm3172, %v3151, %v1593
        %v3185 = vsel %vm3172, %v3152, %v1595
        %v3186 = vsel %vm3172, %v3153, %v1597
        %v3187 = vsel %vm3172, %v3154, %v1599
        %v3188 = vsel %vm3172, %v3155, %v1601
        %v3189 = vsel %vm3172, %v3156, %v1603
        %v3190 = vsel %vm3172, %v3157, %v1605
        %v3191 = vsel %vm3172, %v3158, %v1607
        %v3192 = vsel %vm3172, %v3159, %v1609
        %v3193 = vsel %vm3172, %v3160, %v1611
        %v3194 = vsel %vm3172, %v3161, %v1613
        %v3195 = vsel %vm3172, %v3162, %v1615
        %v3196 = vsel %vm3172, %v3163, %v1617
        %v3197 = vsel %vm3172, %v3164, %v1619
        %v3198 = vsel %vm3172, %v3165, %v1621
        %v3199 = vsel %vm3172, %v3166, %v1623
        %v3200 = vsel %vm3172, %v3167, %v1625
        %v3201 = vsel %vm3172, %v3168, %v1627
        %v3202 = vsel %vm3172, %v3169, %v1629
        %v3203 = vsel %vm3172, %v3170, %v1631
        %v3204 = vsel %vm3172, %v3171, %v1633
        %vm3205 = vcmask 162816
        %v3206 = vsel %vm3205, %v3173, %v1699
        %v3207 = vsel %vm3205, %v3174, %v1701
        %v3208 = vsel %vm3205, %v3175, %v1703
        %v3209 = vsel %vm3205, %v3176, %v1705
        %v3210 = vsel %vm3205, %v3177, %v1707
        %v3211 = vsel %vm3205, %v3178, %v1709
        %v3212 = vsel %vm3205, %v3179, %v1711
        %v3213 = vsel %vm3205, %v3180, %v1713
        %v3214 = vsel %vm3205, %v3181, %v1715
        %v3215 = vsel %vm3205, %v3182, %v1717
        %v3216 = vsel %vm3205, %v3183, %v1719
        %v3217 = vsel %vm3205, %v3184, %v1721
        %v3218 = vsel %vm3205, %v3185, %v1723
        %v3219 = vsel %vm3205, %v3186, %v1725
        %v3220 = vsel %vm3205, %v3187, %v1727
        %v3221 = vsel %vm3205, %v3188, %v1729
        %v3222 = vsel %vm3205, %v3189, %v1731
        %v3223 = vsel %vm3205, %v3190, %v1733
        %v3224 = vsel %vm3205, %v3191, %v1735
        %v3225 = vsel %vm3205, %v3192, %v1737
        %v3226 = vsel %vm3205, %v3193, %v1739
        %v3227 = vsel %vm3205, %v3194, %v1741
        %v3228 = vsel %vm3205, %v3195, %v1743
        %v3229 = vsel %vm3205, %v3196, %v1745
        %v3230 = vsel %vm3205, %v3197, %v1747
        %v3231 = vsel %vm3205, %v3198, %v1749
        %v3232 = vsel %vm3205, %v3199, %v1751
        %v3233 = vsel %vm3205, %v3200, %v1753
        %v3234 = vsel %vm3205, %v3201, %v1755
        %v3235 = vsel %vm3205, %v3202, %v1757
        %v3236 = vsel %vm3205, %v3203, %v1759
        %v3237 = vsel %vm3205, %v3204, %v1761
        %vm3238 = vcmask 195584
        %v3239 = vsel %vm3238, %v3206, %v1827
        %v3240 = vsel %vm3238, %v3207, %v1829
        %v3241 = vsel %vm3238, %v3208, %v1831
        %v3242 = vsel %vm3238, %v3209, %v1833
        %v3243 = vsel %vm3238, %v3210, %v1835
        %v3244 = vsel %vm3238, %v3211, %v1837
        %v3245 = vsel %vm3238, %v3212, %v1839
        %v3246 = vsel %vm3238, %v3213, %v1841
        %v3247 = vsel %vm3238, %v3214, %v1843
        %v3248 = vsel %vm3238, %v3215, %v1845
        %v3249 = vsel %vm3238, %v3216, %v1847
        %v3250 = vsel %vm3238, %v3217, %v1849
        %v3251 = vsel %vm3238, %v3218, %v1851
        %v3252 = vsel %vm3238, %v3219, %v1853
        %v3253 = vsel %vm3238, %v3220, %v1855
        %v3254 = vsel %vm3238, %v3221, %v1857
        %v3255 = vsel %vm3238, %v3222, %v1859
        %v3256 = vsel %vm3238, %v3223, %v1861
        %v3257 = vsel %vm3238, %v3224, %v1863
        %v3258 = vsel %vm3238, %v3225, %v1865
        %v3259 = vsel %vm3238, %v3226, %v1867
        %v3260 = vsel %vm3238, %v3227, %v1869
        %v3261 = vsel %vm3238, %v3228, %v1871
        %v3262 = vsel %vm3238, %v3229, %v1873
        %v3263 = vsel %vm3238, %v3230, %v1875
        %v3264 = vsel %vm3238, %v3231, %v1877
        %v3265 = vsel %vm3238, %v3232, %v1879
        %v3266 = vsel %vm3238, %v3233, %v1881
        %v3267 = vsel %vm3238, %v3234, %v1883
        %v3268 = vsel %vm3238, %v3235, %v1885
        %v3269 = vsel %vm3238, %v3236, %v1887
        %v3270 = vsel %vm3238, %v3237, %v1889
        %vm3271 = vcmask 228352
        %v3272 = vsel %vm3271, %v3239, %v1955
        %v3273 = vsel %vm3271, %v3240, %v1957
        %v3274 = vsel %vm3271, %v3241, %v1959
        %v3275 = vsel %vm3271, %v3242, %v1961
        %v3276 = vsel %vm3271, %v3243, %v1963
        %v3277 = vsel %vm3271, %v3244, %v1965
        %v3278 = vsel %vm3271, %v3245, %v1967
        %v3279 = vsel %vm3271, %v3246, %v1969
        %v3280 = vsel %vm3271, %v3247, %v1971
        %v3281 = vsel %vm3271, %v3248, %v1973
        %v3282 = vsel %vm3271, %v3249, %v1975
        %v3283 = vsel %vm3271, %v3250, %v1977
        %v3284 = vsel %vm3271, %v3251, %v1979
        %v3285 = vsel %vm3271, %v3252, %v1981
        %v3286 = vsel %vm3271, %v3253, %v1983
        %v3287 = vsel %vm3271, %v3254, %v1985
        %v3288 = vsel %vm3271, %v3255, %v1987
        %v3289 = vsel %vm3271, %v3256, %v1989
        %v3290 = vsel %vm3271, %v3257, %v1991
        %v3291 = vsel %vm3271, %v3258, %v1993
        %v3292 = vsel %vm3271, %v3259, %v1995
        %v3293 = vsel %vm3271, %v3260, %v1997
        %v3294 = vsel %vm3271, %v3261, %v1999
        %v3295 = vsel %vm3271, %v3262, %v2001
        %v3296 = vsel %vm3271, %v3263, %v2003
        %v3297 = vsel %vm3271, %v3264, %v2005
        %v3298 = vsel %vm3271, %v3265, %v2007
        %v3299 = vsel %vm3271, %v3266, %v2009
        %v3300 = vsel %vm3271, %v3267, %v2011
        %v3301 = vsel %vm3271, %v3268, %v2013
        %v3302 = vsel %vm3271, %v3269, %v2015
        %v3303 = vsel %vm3271, %v3270, %v2017
        %vm3304 = vcmask 261120
        %v3305 = vsel %vm3304, %v3272, %v2083
        %v3306 = vsel %vm3304, %v3273, %v2085
        %v3307 = vsel %vm3304, %v3274, %v2087
        %v3308 = vsel %vm3304, %v3275, %v2089
        %v3309 = vsel %vm3304, %v3276, %v2091
        %v3310 = vsel %vm3304, %v3277, %v2093
        %v3311 = vsel %vm3304, %v3278, %v2095
        %v3312 = vsel %vm3304, %v3279, %v2097
        %v3313 = vsel %vm3304, %v3280, %v2099
        %v3314 = vsel %vm3304, %v3281, %v2101
        %v3315 = vsel %vm3304, %v3282, %v2103
        %v3316 = vsel %vm3304, %v3283, %v2105
        %v3317 = vsel %vm3304, %v3284, %v2107
        %v3318 = vsel %vm3304, %v3285, %v2109
        %v3319 = vsel %vm3304, %v3286, %v2111
        %v3320 = vsel %vm3304, %v3287, %v2113
        %v3321 = vsel %vm3304, %v3288, %v2115
        %v3322 = vsel %vm3304, %v3289, %v2117
        %v3323 = vsel %vm3304, %v3290, %v2119
        %v3324 = vsel %vm3304, %v3291, %v2121
        %v3325 = vsel %vm3304, %v3292, %v2123
        %v3326 = vsel %vm3304, %v3293, %v2125
        %v3327 = vsel %vm3304, %v3294, %v2127
        %v3328 = vsel %vm3304, %v3295, %v2129
        %v3329 = vsel %vm3304, %v3296, %v2131
        %v3330 = vsel %vm3304, %v3297, %v2133
        %v3331 = vsel %vm3304, %v3298, %v2135
        %v3332 = vsel %vm3304, %v3299, %v2137
        %v3333 = vsel %vm3304, %v3300, %v2139
        %v3334 = vsel %vm3304, %v3301, %v2141
        %v3335 = vsel %vm3304, %v3302, %v2143
        %v3336 = vsel %vm3304, %v3303, %v2145
        %vm3337 = vcmask 293888
        %v3338 = vsel %vm3337, %v3305, %v2211
        %v3339 = vsel %vm3337, %v3306, %v2213
        %v3340 = vsel %vm3337, %v3307, %v2215
        %v3341 = vsel %vm3337, %v3308, %v2217
        %v3342 = vsel %vm3337, %v3309, %v2219
        %v3343 = vsel %vm3337, %v3310, %v2221
        %v3344 = vsel %vm3337, %v3311, %v2223
        %v3345 = vsel %vm3337, %v3312, %v2225
        %v3346 = vsel %vm3337, %v3313, %v2227
        %v3347 = vsel %vm3337, %v3314, %v2229
        %v3348 = vsel %vm3337, %v3315, %v2231
        %v3349 = vsel %vm3337, %v3316, %v2233
        %v3350 = vsel %vm3337, %v3317, %v2235
        %v3351 = vsel %vm3337, %v3318, %v2237
        %v3352 = vsel %vm3337, %v3319, %v2239
        %v3353 = vsel %vm3337, %v3320, %v2241
        %v3354 = vsel %vm3337, %v3321, %v2243
        %v3355 = vsel %vm3337, %v3322, %v2245
        %v3356 = vsel %vm3337, %v3323, %v2247
        %v3357 = vsel %vm3337, %v3324, %v2249
        %v3358 = vsel %vm3337, %v3325, %v2251
        %v3359 = vsel %vm3337, %v3326, %v2253
        %v3360 = vsel %vm3337, %v3327, %v2255
        %v3361 = vsel %vm3337, %v3328, %v2257
        %v3362 = vsel %vm3337, %v3329, %v2259
        %v3363 = vsel %vm3337, %v3330, %v2261
        %v3364 = vsel %vm3337, %v3331, %v2263
        %v3365 = vsel %vm3337, %v3332, %v2265
        %v3366 = vsel %vm3337, %v3333, %v2267
        %v3367 = vsel %vm3337, %v3334, %v2269
        %v3368 = vsel %vm3337, %v3335, %v2271
        %v3369 = vsel %vm3337, %v3336, %v2273
        %vm3370 = vcmask 326656
        %v3371 = vsel %vm3370, %v3338, %v2339
        %v3372 = vsel %vm3370, %v3339, %v2341
        %v3373 = vsel %vm3370, %v3340, %v2343
        %v3374 = vsel %vm3370, %v3341, %v2345
        %v3375 = vsel %vm3370, %v3342, %v2347
        %v3376 = vsel %vm3370, %v3343, %v2349
        %v3377 = vsel %vm3370, %v3344, %v2351
        %v3378 = vsel %vm3370, %v3345, %v2353
        %v3379 = vsel %vm3370, %v3346, %v2355
        %v3380 = vsel %vm3370, %v3347, %v2357
        %v3381 = vsel %vm3370, %v3348, %v2359
        %v3382 = vsel %vm3370, %v3349, %v2361
        %v3383 = vsel %vm3370, %v3350, %v2363
        %v3384 = vsel %vm3370, %v3351, %v2365
        %v3385 = vsel %vm3370, %v3352, %v2367
        %v3386 = vsel %vm3370, %v3353, %v2369
        %v3387 = vsel %vm3370, %v3354, %v2371
        %v3388 = vsel %vm3370, %v3355, %v2373
        %v3389 = vsel %vm3370, %v3356, %v2375
        %v3390 = vsel %vm3370, %v3357, %v2377
        %v3391 = vsel %vm3370, %v3358, %v2379
        %v3392 = vsel %vm3370, %v3359, %v2381
        %v3393 = vsel %vm3370, %v3360, %v2383
        %v3394 = vsel %vm3370, %v3361, %v2385
        %v3395 = vsel %vm3370, %v3362, %v2387
        %v3396 = vsel %vm3370, %v3363, %v2389
        %v3397 = vsel %vm3370, %v3364, %v2391
        %v3398 = vsel %vm3370, %v3365, %v2393
        %v3399 = vsel %vm3370, %v3366, %v2395
        %v3400 = vsel %vm3370, %v3367, %v2397
        %v3401 = vsel %vm3370, %v3368, %v2399
        %v3402 = vsel %vm3370, %v3369, %v2401
        %vm3403 = vcmask 359424
        %v3404 = vsel %vm3403, %v3371, %v2467
        %v3405 = vsel %vm3403, %v3372, %v2469
        %v3406 = vsel %vm3403, %v3373, %v2471
        %v3407 = vsel %vm3403, %v3374, %v2473
        %v3408 = vsel %vm3403, %v3375, %v2475
        %v3409 = vsel %vm3403, %v3376, %v2477
        %v3410 = vsel %vm3403, %v3377, %v2479
        %v3411 = vsel %vm3403, %v3378, %v2481
        %v3412 = vsel %vm3403, %v3379, %v2483
        %v3413 = vsel %vm3403, %v3380, %v2485
        %v3414 = vsel %vm3403, %v3381, %v2487
        %v3415 = vsel %vm3403, %v3382, %v2489
        %v3416 = vsel %vm3403, %v3383, %v2491
        %v3417 = vsel %vm3403, %v3384, %v2493
        %v3418 = vsel %vm3403, %v3385, %v2495
        %v3419 = vsel %vm3403, %v3386, %v2497
        %v3420 = vsel %vm3403, %v3387, %v2499
        %v3421 = vsel %vm3403, %v3388, %v2501
        %v3422 = vsel %vm3403, %v3389, %v2503
        %v3423 = vsel %vm3403, %v3390, %v2505
        %v3424 = vsel %vm3403, %v3391, %v2507
        %v3425 = vsel %vm3403, %v3392, %v2509
        %v3426 = vsel %vm3403, %v3393, %v2511
        %v3427 = vsel %vm3403, %v3394, %v2513
        %v3428 = vsel %vm3403, %v3395, %v2515
        %v3429 = vsel %vm3403, %v3396, %v2517
        %v3430 = vsel %vm3403, %v3397, %v2519
        %v3431 = vsel %vm3403, %v3398, %v2521
        %v3432 = vsel %vm3403, %v3399, %v2523
        %v3433 = vsel %vm3403, %v3400, %v2525
        %v3434 = vsel %vm3403, %v3401, %v2527
        %v3435 = vsel %vm3403, %v3402, %v2529
        %vm3436 = vcmask 392192
        %v3437 = vsel %vm3436, %v3404, %v2595
        %v3438 = vsel %vm3436, %v3405, %v2597
        %v3439 = vsel %vm3436, %v3406, %v2599
        %v3440 = vsel %vm3436, %v3407, %v2601
        %v3441 = vsel %vm3436, %v3408, %v2603
        %v3442 = vsel %vm3436, %v3409, %v2605
        %v3443 = vsel %vm3436, %v3410, %v2607
        %v3444 = vsel %vm3436, %v3411, %v2609
        %v3445 = vsel %vm3436, %v3412, %v2611
        %v3446 = vsel %vm3436, %v3413, %v2613
        %v3447 = vsel %vm3436, %v3414, %v2615
        %v3448 = vsel %vm3436, %v3415, %v2617
        %v3449 = vsel %vm3436, %v3416, %v2619
        %v3450 = vsel %vm3436, %v3417, %v2621
        %v3451 = vsel %vm3436, %v3418, %v2623
        %v3452 = vsel %vm3436, %v3419, %v2625
        %v3453 = vsel %vm3436, %v3420, %v2627
        %v3454 = vsel %vm3436, %v3421, %v2629
        %v3455 = vsel %vm3436, %v3422, %v2631
        %v3456 = vsel %vm3436, %v3423, %v2633
        %v3457 = vsel %vm3436, %v3424, %v2635
        %v3458 = vsel %vm3436, %v3425, %v2637
        %v3459 = vsel %vm3436, %v3426, %v2639
        %v3460 = vsel %vm3436, %v3427, %v2641
        %v3461 = vsel %vm3436, %v3428, %v2643
        %v3462 = vsel %vm3436, %v3429, %v2645
        %v3463 = vsel %vm3436, %v3430, %v2647
        %v3464 = vsel %vm3436, %v3431, %v2649
        %v3465 = vsel %vm3436, %v3432, %v2651
        %v3466 = vsel %vm3436, %v3433, %v2653
        %v3467 = vsel %vm3436, %v3434, %v2655
        %v3468 = vsel %vm3436, %v3435, %v2657
        %vm3469 = vcmask 424960
        %v3470 = vsel %vm3469, %v3437, %v2723
        %v3471 = vsel %vm3469, %v3438, %v2725
        %v3472 = vsel %vm3469, %v3439, %v2727
        %v3473 = vsel %vm3469, %v3440, %v2729
        %v3474 = vsel %vm3469, %v3441, %v2731
        %v3475 = vsel %vm3469, %v3442, %v2733
        %v3476 = vsel %vm3469, %v3443, %v2735
        %v3477 = vsel %vm3469, %v3444, %v2737
        %v3478 = vsel %vm3469, %v3445, %v2739
        %v3479 = vsel %vm3469, %v3446, %v2741
        %v3480 = vsel %vm3469, %v3447, %v2743
        %v3481 = vsel %vm3469, %v3448, %v2745
        %v3482 = vsel %vm3469, %v3449, %v2747
        %v3483 = vsel %vm3469, %v3450, %v2749
        %v3484 = vsel %vm3469, %v3451, %v2751
        %v3485 = vsel %vm3469, %v3452, %v2753
        %v3486 = vsel %vm3469, %v3453, %v2755
        %v3487 = vsel %vm3469, %v3454, %v2757
        %v3488 = vsel %vm3469, %v3455, %v2759
        %v3489 = vsel %vm3469, %v3456, %v2761
        %v3490 = vsel %vm3469, %v3457, %v2763
        %v3491 = vsel %vm3469, %v3458, %v2765
        %v3492 = vsel %vm3469, %v3459, %v2767
        %v3493 = vsel %vm3469, %v3460, %v2769
        %v3494 = vsel %vm3469, %v3461, %v2771
        %v3495 = vsel %vm3469, %v3462, %v2773
        %v3496 = vsel %vm3469, %v3463, %v2775
        %v3497 = vsel %vm3469, %v3464, %v2777
        %v3498 = vsel %vm3469, %v3465, %v2779
        %v3499 = vsel %vm3469, %v3466, %v2781
        %v3500 = vsel %vm3469, %v3467, %v2783
        %v3501 = vsel %vm3469, %v3468, %v2785
        %vm3502 = vcmask 457728
        %v3503 = vsel %vm3502, %v3470, %v2851
        %v3504 = vsel %vm3502, %v3471, %v2853
        %v3505 = vsel %vm3502, %v3472, %v2855
        %v3506 = vsel %vm3502, %v3473, %v2857
        %v3507 = vsel %vm3502, %v3474, %v2859
        %v3508 = vsel %vm3502, %v3475, %v2861
        %v3509 = vsel %vm3502, %v3476, %v2863
        %v3510 = vsel %vm3502, %v3477, %v2865
        %v3511 = vsel %vm3502, %v3478, %v2867
        %v3512 = vsel %vm3502, %v3479, %v2869
        %v3513 = vsel %vm3502, %v3480, %v2871
        %v3514 = vsel %vm3502, %v3481, %v2873
        %v3515 = vsel %vm3502, %v3482, %v2875
        %v3516 = vsel %vm3502, %v3483, %v2877
        %v3517 = vsel %vm3502, %v3484, %v2879
        %v3518 = vsel %vm3502, %v3485, %v2881
        %v3519 = vsel %vm3502, %v3486, %v2883
        %v3520 = vsel %vm3502, %v3487, %v2885
        %v3521 = vsel %vm3502, %v3488, %v2887
        %v3522 = vsel %vm3502, %v3489, %v2889
        %v3523 = vsel %vm3502, %v3490, %v2891
        %v3524 = vsel %vm3502, %v3491, %v2893
        %v3525 = vsel %vm3502, %v3492, %v2895
        %v3526 = vsel %vm3502, %v3493, %v2897
        %v3527 = vsel %vm3502, %v3494, %v2899
        %v3528 = vsel %vm3502, %v3495, %v2901
        %v3529 = vsel %vm3502, %v3496, %v2903
        %v3530 = vsel %vm3502, %v3497, %v2905
        %v3531 = vsel %vm3502, %v3498, %v2907
        %v3532 = vsel %vm3502, %v3499, %v2909
        %v3533 = vsel %vm3502, %v3500, %v2911
        %v3534 = vsel %vm3502, %v3501, %v2913
        %vm3535 = vcmask 490496
        %v3536 = vsel %vm3535, %v3503, %v2979
        %v3537 = vsel %vm3535, %v3504, %v2981
        %v3538 = vsel %vm3535, %v3505, %v2983
        %v3539 = vsel %vm3535, %v3506, %v2985
        %v3540 = vsel %vm3535, %v3507, %v2987
        %v3541 = vsel %vm3535, %v3508, %v2989
        %v3542 = vsel %vm3535, %v3509, %v2991
        %v3543 = vsel %vm3535, %v3510, %v2993
        %v3544 = vsel %vm3535, %v3511, %v2995
        %v3545 = vsel %vm3535, %v3512, %v2997
        %v3546 = vsel %vm3535, %v3513, %v2999
        %v3547 = vsel %vm3535, %v3514, %v3001
        %v3548 = vsel %vm3535, %v3515, %v3003
        %v3549 = vsel %vm3535, %v3516, %v3005
        %v3550 = vsel %vm3535, %v3517, %v3007
        %v3551 = vsel %vm3535, %v3518, %v3009
        %v3552 = vsel %vm3535, %v3519, %v3011
        %v3553 = vsel %vm3535, %v3520, %v3013
        %v3554 = vsel %vm3535, %v3521, %v3015
        %v3555 = vsel %vm3535, %v3522, %v3017
        %v3556 = vsel %vm3535, %v3523, %v3019
        %v3557 = vsel %vm3535, %v3524, %v3021
        %v3558 = vsel %vm3535, %v3525, %v3023
        %v3559 = vsel %vm3535, %v3526, %v3025
        %v3560 = vsel %vm3535, %v3527, %v3027
        %v3561 = vsel %vm3535, %v3528, %v3029
        %v3562 = vsel %vm3535, %v3529, %v3031
        %v3563 = vsel %vm3535, %v3530, %v3033
        %v3564 = vsel %vm3535, %v3531, %v3035
        %v3565 = vsel %vm3535, %v3532, %v3037
        %v3566 = vsel %vm3535, %v3533, %v3039
        %v3567 = vsel %vm3535, %v3534, %v3041
        %3600 = vrot.lane.b32.xlu0 %v897, 4
        %v3601 = vpop.permute.xlu0 %3600
        %3602 = vrot.lane.b32.xlu0 %v898, 4
        %v3603 = vpop.permute.xlu0 %3602
        %3604 = vrot.lane.b32.xlu0 %v899, 4
        %v3605 = vpop.permute.xlu0 %3604
        %3606 = vrot.lane.b32.xlu0 %v900, 4
        %v3607 = vpop.permute.xlu0 %3606
        %3608 = vrot.lane.b32.xlu0 %v901, 4
        %v3609 = vpop.permute.xlu0 %3608
        %3610 = vrot.lane.b32.xlu0 %v902, 4
        %v3611 = vpop.permute.xlu0 %3610
        %3612 = vrot.lane.b32.xlu0 %v903, 4
        %v3613 = vpop.permute.xlu0 %3612
        %3614 = vrot.lane.b32.xlu0 %v904, 4
        %v3615 = vpop.permute.xlu0 %3614
        %3616 = vrot.lane.b32.xlu0 %v905, 4
        %v3617 = vpop.permute.xlu0 %3616
        %3618 = vrot.lane.b32.xlu0 %v906, 4
        %v3619 = vpop.permute.xlu0 %3618
        %3620 = vrot.lane.b32.xlu0 %v907, 4
        %v3621 = vpop.permute.xlu0 %3620
        %3622 = vrot.lane.b32.xlu0 %v908, 4
        %v3623 = vpop.permute.xlu0 %3622
        %3624 = vrot.lane.b32.xlu0 %v909, 4
        %v3625 = vpop.permute.xlu0 %3624
        %3626 = vrot.lane.b32.xlu0 %v910, 4
        %v3627 = vpop.permute.xlu0 %3626
        %3628 = vrot.lane.b32.xlu0 %v911, 4
        %v3629 = vpop.permute.xlu0 %3628
        %3630 = vrot.lane.b32.xlu0 %v912, 4
        %v3631 = vpop.permute.xlu0 %3630
        %3632 = vrot.lane.b32.xlu0 %v913, 4
        %v3633 = vpop.permute.xlu0 %3632
        %3634 = vrot.lane.b32.xlu0 %v914, 4
        %v3635 = vpop.permute.xlu0 %3634
        %3636 = vrot.lane.b32.xlu0 %v915, 4
        %v3637 = vpop.permute.xlu0 %3636
        %3638 = vrot.lane.b32.xlu0 %v916, 4
        %v3639 = vpop.permute.xlu0 %3638
        %3640 = vrot.lane.b32.xlu0 %v917, 4
        %v3641 = vpop.permute.xlu0 %3640
        %3642 = vrot.lane.b32.xlu0 %v918, 4
        %v3643 = vpop.permute.xlu0 %3642
        %3644 = vrot.lane.b32.xlu0 %v919, 4
        %v3645 = vpop.permute.xlu0 %3644
        %3646 = vrot.lane.b32.xlu0 %v920, 4
        %v3647 = vpop.permute.xlu0 %3646
        %3648 = vrot.lane.b32.xlu0 %v921, 4
        %v3649 = vpop.permute.xlu0 %3648
        %3650 = vrot.lane.b32.xlu0 %v922, 4
        %v3651 = vpop.permute.xlu0 %3650
        %3652 = vrot.lane.b32.xlu0 %v923, 4
        %v3653 = vpop.permute.xlu0 %3652
        %3654 = vrot.lane.b32.xlu0 %v924, 4
        %v3655 = vpop.permute.xlu0 %3654
        %3656 = vrot.lane.b32.xlu0 %v925, 4
        %v3657 = vpop.permute.xlu0 %3656
        %3658 = vrot.lane.b32.xlu0 %v926, 4
        %v3659 = vpop.permute.xlu0 %3658
        %3660 = vrot.lane.b32.xlu0 %v927, 4
        %v3661 = vpop.permute.xlu0 %3660
        %3662 = vrot.lane.b32.xlu0 %v928, 4
        %v3663 = vpop.permute.xlu0 %3662
        %3728 = vrot.lane.b32.xlu0 %v929, 8
        %v3729 = vpop.permute.xlu0 %3728
        %3730 = vrot.lane.b32.xlu0 %v930, 8
        %v3731 = vpop.permute.xlu0 %3730
        %3732 = vrot.lane.b32.xlu0 %v931, 8
        %v3733 = vpop.permute.xlu0 %3732
        %3734 = vrot.lane.b32.xlu0 %v932, 8
        %v3735 = vpop.permute.xlu0 %3734
        %3736 = vrot.lane.b32.xlu0 %v933, 8
        %v3737 = vpop.permute.xlu0 %3736
        %3738 = vrot.lane.b32.xlu0 %v934, 8
        %v3739 = vpop.permute.xlu0 %3738
        %3740 = vrot.lane.b32.xlu0 %v935, 8
        %v3741 = vpop.permute.xlu0 %3740
        %3742 = vrot.lane.b32.xlu0 %v936, 8
        %v3743 = vpop.permute.xlu0 %3742
        %3744 = vrot.lane.b32.xlu0 %v937, 8
        %v3745 = vpop.permute.xlu0 %3744
        %3746 = vrot.lane.b32.xlu0 %v938, 8
        %v3747 = vpop.permute.xlu0 %3746
        %3748 = vrot.lane.b32.xlu0 %v939, 8
        %v3749 = vpop.permute.xlu0 %3748
        %3750 = vrot.lane.b32.xlu0 %v940, 8
        %v3751 = vpop.permute.xlu0 %3750
        %3752 = vrot.lane.b32.xlu0 %v941, 8
        %v3753 = vpop.permute.xlu0 %3752
        %3754 = vrot.lane.b32.xlu0 %v942, 8
        %v3755 = vpop.permute.xlu0 %3754
        %3756 = vrot.lane.b32.xlu0 %v943, 8
        %v3757 = vpop.permute.xlu0 %3756
        %3758 = vrot.lane.b32.xlu0 %v944, 8
        %v3759 = vpop.permute.xlu0 %3758
        %3760 = vrot.lane.b32.xlu0 %v945, 8
        %v3761 = vpop.permute.xlu0 %3760
        %3762 = vrot.lane.b32.xlu0 %v946, 8
        %v3763 = vpop.permute.xlu0 %3762
        %3764 = vrot.lane.b32.xlu0 %v947, 8
        %v3765 = vpop.permute.xlu0 %3764
        %3766 = vrot.lane.b32.xlu0 %v948, 8
        %v3767 = vpop.permute.xlu0 %3766
        %3768 = vrot.lane.b32.xlu0 %v949, 8
        %v3769 = vpop.permute.xlu0 %3768
        %3770 = vrot.lane.b32.xlu0 %v950, 8
        %v3771 = vpop.permute.xlu0 %3770
        %3772 = vrot.lane.b32.xlu0 %v951, 8
        %v3773 = vpop.permute.xlu0 %3772
        %3774 = vrot.lane.b32.xlu0 %v952, 8
        %v3775 = vpop.permute.xlu0 %3774
        %3776 = vrot.lane.b32.xlu0 %v953, 8
        %v3777 = vpop.permute.xlu0 %3776
        %3778 = vrot.lane.b32.xlu0 %v954, 8
        %v3779 = vpop.permute.xlu0 %3778
        %3780 = vrot.lane.b32.xlu0 %v955, 8
        %v3781 = vpop.permute.xlu0 %3780
        %3782 = vrot.lane.b32.xlu0 %v956, 8
        %v3783 = vpop.permute.xlu0 %3782
        %3784 = vrot.lane.b32.xlu0 %v957, 8
        %v3785 = vpop.permute.xlu0 %3784
        %3786 = vrot.lane.b32.xlu0 %v958, 8
        %v3787 = vpop.permute.xlu0 %3786
        %3788 = vrot.lane.b32.xlu0 %v959, 8
        %v3789 = vpop.permute.xlu0 %3788
        %3790 = vrot.lane.b32.xlu0 %v960, 8
        %v3791 = vpop.permute.xlu0 %3790
        %3856 = vrot.lane.b32.xlu0 %v961, 12
        %v3857 = vpop.permute.xlu0 %3856
        %3858 = vrot.lane.b32.xlu0 %v962, 12
        %v3859 = vpop.permute.xlu0 %3858
        %3860 = vrot.lane.b32.xlu0 %v963, 12
        %v3861 = vpop.permute.xlu0 %3860
        %3862 = vrot.lane.b32.xlu0 %v964, 12
        %v3863 = vpop.permute.xlu0 %3862
        %3864 = vrot.lane.b32.xlu0 %v965, 12
        %v3865 = vpop.permute.xlu0 %3864
        %3866 = vrot.lane.b32.xlu0 %v966, 12
        %v3867 = vpop.permute.xlu0 %3866
        %3868 = vrot.lane.b32.xlu0 %v967, 12
        %v3869 = vpop.permute.xlu0 %3868
        %3870 = vrot.lane.b32.xlu0 %v968, 12
        %v3871 = vpop.permute.xlu0 %3870
        %3872 = vrot.lane.b32.xlu0 %v969, 12
        %v3873 = vpop.permute.xlu0 %3872
        %3874 = vrot.lane.b32.xlu0 %v970, 12
        %v3875 = vpop.permute.xlu0 %3874
        %3876 = vrot.lane.b32.xlu0 %v971, 12
        %v3877 = vpop.permute.xlu0 %3876
        %3878 = vrot.lane.b32.xlu0 %v972, 12
        %v3879 = vpop.permute.xlu0 %3878
        %3880 = vrot.lane.b32.xlu0 %v973, 12
        %v3881 = vpop.permute.xlu0 %3880
        %3882 = vrot.lane.b32.xlu0 %v974, 12
        %v3883 = vpop.permute.xlu0 %3882
        %3884 = vrot.lane.b32.xlu0 %v975, 12
        %v3885 = vpop.permute.xlu0 %3884
        %3886 = vrot.lane.b32.xlu0 %v976, 12
        %v3887 = vpop.permute.xlu0 %3886
        %3888 = vrot.lane.b32.xlu0 %v977, 12
        %v3889 = vpop.permute.xlu0 %3888
        %3890 = vrot.lane.b32.xlu0 %v978, 12
        %v3891 = vpop.permute.xlu0 %3890
        %3892 = vrot.lane.b32.xlu0 %v979, 12
        %v3893 = vpop.permute.xlu0 %3892
        %3894 = vrot.lane.b32.xlu0 %v980, 12
        %v3895 = vpop.permute.xlu0 %3894
        %3896 = vrot.lane.b32.xlu0 %v981, 12
        %v3897 = vpop.permute.xlu0 %3896
        %3898 = vrot.lane.b32.xlu0 %v982, 12
        %v3899 = vpop.permute.xlu0 %3898
        %3900 = vrot.lane.b32.xlu0 %v983, 12
        %v3901 = vpop.permute.xlu0 %3900
        %3902 = vrot.lane.b32.xlu0 %v984, 12
        %v3903 = vpop.permute.xlu0 %3902
        %3904 = vrot.lane.b32.xlu0 %v985, 12
        %v3905 = vpop.permute.xlu0 %3904
        %3906 = vrot.lane.b32.xlu0 %v986, 12
        %v3907 = vpop.permute.xlu0 %3906
        %3908 = vrot.lane.b32.xlu0 %v987, 12
        %v3909 = vpop.permute.xlu0 %3908
        %3910 = vrot.lane.b32.xlu0 %v988, 12
        %v3911 = vpop.permute.xlu0 %3910
        %3912 = vrot.lane.b32.xlu0 %v989, 12
        %v3913 = vpop.permute.xlu0 %3912
        %3914 = vrot.lane.b32.xlu0 %v990, 12
        %v3915 = vpop.permute.xlu0 %3914
        %3916 = vrot.lane.b32.xlu0 %v991, 12
        %v3917 = vpop.permute.xlu0 %3916
        %3918 = vrot.lane.b32.xlu0 %v992, 12
        %v3919 = vpop.permute.xlu0 %3918
        %3984 = vrot.lane.b32.xlu0 %v994, 16
        %v3985 = vpop.permute.xlu0 %3984
        %3986 = vrot.lane.b32.xlu0 %v995, 16
        %v3987 = vpop.permute.xlu0 %3986
        %3988 = vrot.lane.b32.xlu0 %v996, 16
        %v3989 = vpop.permute.xlu0 %3988
        %3990 = vrot.lane.b32.xlu0 %v997, 16
        %v3991 = vpop.permute.xlu0 %3990
        %3992 = vrot.lane.b32.xlu0 %v998, 16
        %v3993 = vpop.permute.xlu0 %3992
        %3994 = vrot.lane.b32.xlu0 %v999, 16
        %v3995 = vpop.permute.xlu0 %3994
        %3996 = vrot.lane.b32.xlu0 %v1000, 16
        %v3997 = vpop.permute.xlu0 %3996
        %3998 = vrot.lane.b32.xlu0 %v1001, 16
        %v3999 = vpop.permute.xlu0 %3998
        %4000 = vrot.lane.b32.xlu0 %v1002, 16
        %v4001 = vpop.permute.xlu0 %4000
        %4002 = vrot.lane.b32.xlu0 %v1003, 16
        %v4003 = vpop.permute.xlu0 %4002
        %4004 = vrot.lane.b32.xlu0 %v1004, 16
        %v4005 = vpop.permute.xlu0 %4004
        %4006 = vrot.lane.b32.xlu0 %v1005, 16
        %v4007 = vpop.permute.xlu0 %4006
        %4008 = vrot.lane.b32.xlu0 %v1006, 16
        %v4009 = vpop.permute.xlu0 %4008
        %4010 = vrot.lane.b32.xlu0 %v1007, 16
        %v4011 = vpop.permute.xlu0 %4010
        %4012 = vrot.lane.b32.xlu0 %v1008, 16
        %v4013 = vpop.permute.xlu0 %4012
        %4014 = vrot.lane.b32.xlu0 %v1009, 16
        %v4015 = vpop.permute.xlu0 %4014
        %4016 = vrot.lane.b32.xlu0 %v1010, 16
        %v4017 = vpop.permute.xlu0 %4016
        %4018 = vrot.lane.b32.xlu0 %v1011, 16
        %v4019 = vpop.permute.xlu0 %4018
        %4020 = vrot.lane.b32.xlu0 %v1012, 16
        %v4021 = vpop.permute.xlu0 %4020
        %4022 = vrot.lane.b32.xlu0 %v1013, 16
        %v4023 = vpop.permute.xlu0 %4022
        %4024 = vrot.lane.b32.xlu0 %v1014, 16
        %v4025 = vpop.permute.xlu0 %4024
        %4026 = vrot.lane.b32.xlu0 %v1015, 16
        %v4027 = vpop.permute.xlu0 %4026
        %4028 = vrot.lane.b32.xlu0 %v1016, 16
        %v4029 = vpop.permute.xlu0 %4028
        %4030 = vrot.lane.b32.xlu0 %v1017, 16
        %v4031 = vpop.permute.xlu0 %4030
        %4032 = vrot.lane.b32.xlu0 %v1018, 16
        %v4033 = vpop.permute.xlu0 %4032
        %4034 = vrot.lane.b32.xlu0 %v1019, 16
        %v4035 = vpop.permute.xlu0 %4034
        %4036 = vrot.lane.b32.xlu0 %v1020, 16
        %v4037 = vpop.permute.xlu0 %4036
        %4038 = vrot.lane.b32.xlu0 %v1021, 16
        %v4039 = vpop.permute.xlu0 %4038
        %4040 = vrot.lane.b32.xlu0 %v1022, 16
        %v4041 = vpop.permute.xlu0 %4040
        %4042 = vrot.lane.b32.xlu0 %v1023, 16
        %v4043 = vpop.permute.xlu0 %4042
        %4044 = vrot.lane.b32.xlu0 %v1024, 16
        %v4045 = vpop.permute.xlu0 %4044
        %4046 = vrot.lane.b32.xlu0 %v1025, 16
        %v4047 = vpop.permute.xlu0 %4046
        %4112 = vrot.lane.b32.xlu0 %v1026, 20
        %v4113 = vpop.permute.xlu0 %4112
        %4114 = vrot.lane.b32.xlu0 %v1027, 20
        %v4115 = vpop.permute.xlu0 %4114
        %4116 = vrot.lane.b32.xlu0 %v1028, 20
        %v4117 = vpop.permute.xlu0 %4116
        %4118 = vrot.lane.b32.xlu0 %v1029, 20
        %v4119 = vpop.permute.xlu0 %4118
        %4120 = vrot.lane.b32.xlu0 %v1030, 20
        %v4121 = vpop.permute.xlu0 %4120
        %4122 = vrot.lane.b32.xlu0 %v1031, 20
        %v4123 = vpop.permute.xlu0 %4122
        %4124 = vrot.lane.b32.xlu0 %v1032, 20
        %v4125 = vpop.permute.xlu0 %4124
        %4126 = vrot.lane.b32.xlu0 %v1033, 20
        %v4127 = vpop.permute.xlu0 %4126
        %4128 = vrot.lane.b32.xlu0 %v1034, 20
        %v4129 = vpop.permute.xlu0 %4128
        %4130 = vrot.lane.b32.xlu0 %v1035, 20
        %v4131 = vpop.permute.xlu0 %4130
        %4132 = vrot.lane.b32.xlu0 %v1036, 20
        %v4133 = vpop.permute.xlu0 %4132
        %4134 = vrot.lane.b32.xlu0 %v1037, 20
        %v4135 = vpop.permute.xlu0 %4134
        %4136 = vrot.lane.b32.xlu0 %v1038, 20
        %v4137 = vpop.permute.xlu0 %4136
        %4138 = vrot.lane.b32.xlu0 %v1039, 20
        %v4139 = vpop.permute.xlu0 %4138
        %4140 = vrot.lane.b32.xlu0 %v1040, 20
        %v4141 = vpop.permute.xlu0 %4140
        %4142 = vrot.lane.b32.xlu0 %v1041, 20
        %v4143 = vpop.permute.xlu0 %4142
        %4144 = vrot.lane.b32.xlu0 %v1042, 20
        %v4145 = vpop.permute.xlu0 %4144
        %4146 = vrot.lane.b32.xlu0 %v1043, 20
        %v4147 = vpop.permute.xlu0 %4146
        %4148 = vrot.lane.b32.xlu0 %v1044, 20
        %v4149 = vpop.permute.xlu0 %4148
        %4150 = vrot.lane.b32.xlu0 %v1045, 20
        %v4151 = vpop.permute.xlu0 %4150
        %4152 = vrot.lane.b32.xlu0 %v1046, 20
        %v4153 = vpop.permute.xlu0 %4152
        %4154 = vrot.lane.b32.xlu0 %v1047, 20
        %v4155 = vpop.permute.xlu0 %4154
        %4156 = vrot.lane.b32.xlu0 %v1048, 20
        %v4157 = vpop.permute.xlu0 %4156
        %4158 = vrot.lane.b32.xlu0 %v1049, 20
        %v4159 = vpop.permute.xlu0 %4158
        %4160 = vrot.lane.b32.xlu0 %v1050, 20
        %v4161 = vpop.permute.xlu0 %4160
        %4162 = vrot.lane.b32.xlu0 %v1051, 20
        %v4163 = vpop.permute.xlu0 %4162
        %4164 = vrot.lane.b32.xlu0 %v1052, 20
        %v4165 = vpop.permute.xlu0 %4164
        %4166 = vrot.lane.b32.xlu0 %v1053, 20
        %v4167 = vpop.permute.xlu0 %4166
        %4168 = vrot.lane.b32.xlu0 %v1054, 20
        %v4169 = vpop.permute.xlu0 %4168
        %4170 = vrot.lane.b32.xlu0 %v1055, 20
        %v4171 = vpop.permute.xlu0 %4170
        %4172 = vrot.lane.b32.xlu0 %v1056, 20
        %v4173 = vpop.permute.xlu0 %4172
        %4174 = vrot.lane.b32.xlu0 %v1057, 20
        %v4175 = vpop.permute.xlu0 %4174
        %4240 = vrot.lane.b32.xlu0 %v1058, 24
        %v4241 = vpop.permute.xlu0 %4240
        %4242 = vrot.lane.b32.xlu0 %v1059, 24
        %v4243 = vpop.permute.xlu0 %4242
        %4244 = vrot.lane.b32.xlu0 %v1060, 24
        %v4245 = vpop.permute.xlu0 %4244
        %4246 = vrot.lane.b32.xlu0 %v1061, 24
        %v4247 = vpop.permute.xlu0 %4246
        %4248 = vrot.lane.b32.xlu0 %v1062, 24
        %v4249 = vpop.permute.xlu0 %4248
        %4250 = vrot.lane.b32.xlu0 %v1063, 24
        %v4251 = vpop.permute.xlu0 %4250
        %4252 = vrot.lane.b32.xlu0 %v1064, 24
        %v4253 = vpop.permute.xlu0 %4252
        %4254 = vrot.lane.b32.xlu0 %v1065, 24
        %v4255 = vpop.permute.xlu0 %4254
        %4256 = vrot.lane.b32.xlu0 %v1066, 24
        %v4257 = vpop.permute.xlu0 %4256
        %4258 = vrot.lane.b32.xlu0 %v1067, 24
        %v4259 = vpop.permute.xlu0 %4258
        %4260 = vrot.lane.b32.xlu0 %v1068, 24
        %v4261 = vpop.permute.xlu0 %4260
        %4262 = vrot.lane.b32.xlu0 %v1069, 24
        %v4263 = vpop.permute.xlu0 %4262
        %4264 = vrot.lane.b32.xlu0 %v1070, 24
        %v4265 = vpop.permute.xlu0 %4264
        %4266 = vrot.lane.b32.xlu0 %v1071, 24
        %v4267 = vpop.permute.xlu0 %4266
        %4268 = vrot.lane.b32.xlu0 %v1072, 24
        %v4269 = vpop.permute.xlu0 %4268
        %4270 = vrot.lane.b32.xlu0 %v1073, 24
        %v4271 = vpop.permute.xlu0 %4270
        %4272 = vrot.lane.b32.xlu0 %v1074, 24
        %v4273 = vpop.permute.xlu0 %4272
        %4274 = vrot.lane.b32.xlu0 %v1075, 24
        %v4275 = vpop.permute.xlu0 %4274
        %4276 = vrot.lane.b32.xlu0 %v1076, 24
        %v4277 = vpop.permute.xlu0 %4276
        %4278 = vrot.lane.b32.xlu0 %v1077, 24
        %v4279 = vpop.permute.xlu0 %4278
        %4280 = vrot.lane.b32.xlu0 %v1078, 24
        %v4281 = vpop.permute.xlu0 %4280
        %4282 = vrot.lane.b32.xlu0 %v1079, 24
        %v4283 = vpop.permute.xlu0 %4282
        %4284 = vrot.lane.b32.xlu0 %v1080, 24
        %v4285 = vpop.permute.xlu0 %4284
        %4286 = vrot.lane.b32.xlu0 %v1081, 24
        %v4287 = vpop.permute.xlu0 %4286
        %4288 = vrot.lane.b32.xlu0 %v1082, 24
        %v4289 = vpop.permute.xlu0 %4288
        %4290 = vrot.lane.b32.xlu0 %v1083, 24
        %v4291 = vpop.permute.xlu0 %4290
        %4292 = vrot.lane.b32.xlu0 %v1084, 24
        %v4293 = vpop.permute.xlu0 %4292
        %4294 = vrot.lane.b32.xlu0 %v1085, 24
        %v4295 = vpop.permute.xlu0 %4294
        %4296 = vrot.lane.b32.xlu0 %v1086, 24
        %v4297 = vpop.permute.xlu0 %4296
        %4298 = vrot.lane.b32.xlu0 %v1087, 24
        %v4299 = vpop.permute.xlu0 %4298
        %4300 = vrot.lane.b32.xlu0 %v1088, 24
        %v4301 = vpop.permute.xlu0 %4300
        %4302 = vrot.lane.b32.xlu0 %v1089, 24
        %v4303 = vpop.permute.xlu0 %4302
        %4368 = vrot.lane.b32.xlu0 %v1090, 28
        %v4369 = vpop.permute.xlu0 %4368
        %4370 = vrot.lane.b32.xlu0 %v1091, 28
        %v4371 = vpop.permute.xlu0 %4370
        %4372 = vrot.lane.b32.xlu0 %v1092, 28
        %v4373 = vpop.permute.xlu0 %4372
        %4374 = vrot.lane.b32.xlu0 %v1093, 28
        %v4375 = vpop.permute.xlu0 %4374
        %4376 = vrot.lane.b32.xlu0 %v1094, 28
        %v4377 = vpop.permute.xlu0 %4376
        %4378 = vrot.lane.b32.xlu0 %v1095, 28
        %v4379 = vpop.permute.xlu0 %4378
        %4380 = vrot.lane.b32.xlu0 %v1096, 28
        %v4381 = vpop.permute.xlu0 %4380
        %4382 = vrot.lane.b32.xlu0 %v1097, 28
        %v4383 = vpop.permute.xlu0 %4382
        %4384 = vrot.lane.b32.xlu0 %v1098, 28
        %v4385 = vpop.permute.xlu0 %4384
        %4386 = vrot.lane.b32.xlu0 %v1099, 28
        %v4387 = vpop.permute.xlu0 %4386
        %4388 = vrot.lane.b32.xlu0 %v1100, 28
        %v4389 = vpop.permute.xlu0 %4388
        %4390 = vrot.lane.b32.xlu0 %v1101, 28
        %v4391 = vpop.permute.xlu0 %4390
        %4392 = vrot.lane.b32.xlu0 %v1102, 28
        %v4393 = vpop.permute.xlu0 %4392
        %4394 = vrot.lane.b32.xlu0 %v1103, 28
        %v4395 = vpop.permute.xlu0 %4394
        %4396 = vrot.lane.b32.xlu0 %v1104, 28
        %v4397 = vpop.permute.xlu0 %4396
        %4398 = vrot.lane.b32.xlu0 %v1105, 28
        %v4399 = vpop.permute.xlu0 %4398
        %4400 = vrot.lane.b32.xlu0 %v1106, 28
        %v4401 = vpop.permute.xlu0 %4400
        %4402 = vrot.lane.b32.xlu0 %v1107, 28
        %v4403 = vpop.permute.xlu0 %4402
        %4404 = vrot.lane.b32.xlu0 %v1108, 28
        %v4405 = vpop.permute.xlu0 %4404
        %4406 = vrot.lane.b32.xlu0 %v1109, 28
        %v4407 = vpop.permute.xlu0 %4406
        %4408 = vrot.lane.b32.xlu0 %v1110, 28
        %v4409 = vpop.permute.xlu0 %4408
        %4410 = vrot.lane.b32.xlu0 %v1111, 28
        %v4411 = vpop.permute.xlu0 %4410
        %4412 = vrot.lane.b32.xlu0 %v1112, 28
        %v4413 = vpop.permute.xlu0 %4412
        %4414 = vrot.lane.b32.xlu0 %v1113, 28
        %v4415 = vpop.permute.xlu0 %4414
        %4416 = vrot.lane.b32.xlu0 %v1114, 28
        %v4417 = vpop.permute.xlu0 %4416
        %4418 = vrot.lane.b32.xlu0 %v1115, 28
        %v4419 = vpop.permute.xlu0 %4418
        %4420 = vrot.lane.b32.xlu0 %v1116, 28
        %v4421 = vpop.permute.xlu0 %4420
        %4422 = vrot.lane.b32.xlu0 %v1117, 28
        %v4423 = vpop.permute.xlu0 %4422
        %4424 = vrot.lane.b32.xlu0 %v1118, 28
        %v4425 = vpop.permute.xlu0 %4424
        %4426 = vrot.lane.b32.xlu0 %v1119, 28
        %v4427 = vpop.permute.xlu0 %4426
        %4428 = vrot.lane.b32.xlu0 %v1120, 28
        %v4429 = vpop.permute.xlu0 %4428
        %4430 = vrot.lane.b32.xlu0 %v1121, 28
        %v4431 = vpop.permute.xlu0 %4430
        %4496 = vrot.lane.b32.xlu0 %v1122, 32
        %v4497 = vpop.permute.xlu0 %4496
        %4498 = vrot.lane.b32.xlu0 %v1123, 32
        %v4499 = vpop.permute.xlu0 %4498
        %4500 = vrot.lane.b32.xlu0 %v1124, 32
        %v4501 = vpop.permute.xlu0 %4500
        %4502 = vrot.lane.b32.xlu0 %v1125, 32
        %v4503 = vpop.permute.xlu0 %4502
        %4504 = vrot.lane.b32.xlu0 %v1126, 32
        %v4505 = vpop.permute.xlu0 %4504
        %4506 = vrot.lane.b32.xlu0 %v1127, 32
        %v4507 = vpop.permute.xlu0 %4506
        %4508 = vrot.lane.b32.xlu0 %v1128, 32
        %v4509 = vpop.permute.xlu0 %4508
        %4510 = vrot.lane.b32.xlu0 %v1129, 32
        %v4511 = vpop.permute.xlu0 %4510
        %4512 = vrot.lane.b32.xlu0 %v1130, 32
        %v4513 = vpop.permute.xlu0 %4512
        %4514 = vrot.lane.b32.xlu0 %v1131, 32
        %v4515 = vpop.permute.xlu0 %4514
        %4516 = vrot.lane.b32.xlu0 %v1132, 32
        %v4517 = vpop.permute.xlu0 %4516
        %4518 = vrot.lane.b32.xlu0 %v1133, 32
        %v4519 = vpop.permute.xlu0 %4518
        %4520 = vrot.lane.b32.xlu0 %v1134, 32
        %v4521 = vpop.permute.xlu0 %4520
        %4522 = vrot.lane.b32.xlu0 %v1135, 32
        %v4523 = vpop.permute.xlu0 %4522
        %4524 = vrot.lane.b32.xlu0 %v1136, 32
        %v4525 = vpop.permute.xlu0 %4524
        %4526 = vrot.lane.b32.xlu0 %v1137, 32
        %v4527 = vpop.permute.xlu0 %4526
        %4528 = vrot.lane.b32.xlu0 %v1138, 32
        %v4529 = vpop.permute.xlu0 %4528
        %4530 = vrot.lane.b32.xlu0 %v1139, 32
        %v4531 = vpop.permute.xlu0 %4530
        %4532 = vrot.lane.b32.xlu0 %v1140, 32
        %v4533 = vpop.permute.xlu0 %4532
        %4534 = vrot.lane.b32.xlu0 %v1141, 32
        %v4535 = vpop.permute.xlu0 %4534
        %4536 = vrot.lane.b32.xlu0 %v1142, 32
        %v4537 = vpop.permute.xlu0 %4536
        %4538 = vrot.lane.b32.xlu0 %v1143, 32
        %v4539 = vpop.permute.xlu0 %4538
        %4540 = vrot.lane.b32.xlu0 %v1144, 32
        %v4541 = vpop.permute.xlu0 %4540
        %4542 = vrot.lane.b32.xlu0 %v1145, 32
        %v4543 = vpop.permute.xlu0 %4542
        %4544 = vrot.lane.b32.xlu0 %v1146, 32
        %v4545 = vpop.permute.xlu0 %4544
        %4546 = vrot.lane.b32.xlu0 %v1147, 32
        %v4547 = vpop.permute.xlu0 %4546
        %4548 = vrot.lane.b32.xlu0 %v1148, 32
        %v4549 = vpop.permute.xlu0 %4548
        %4550 = vrot.lane.b32.xlu0 %v1149, 32
        %v4551 = vpop.permute.xlu0 %4550
        %4552 = vrot.lane.b32.xlu0 %v1150, 32
        %v4553 = vpop.permute.xlu0 %4552
        %4554 = vrot.lane.b32.xlu0 %v1151, 32
        %v4555 = vpop.permute.xlu0 %4554
        %4556 = vrot.lane.b32.xlu0 %v1152, 32
        %v4557 = vpop.permute.xlu0 %4556
        %4558 = vrot.lane.b32.xlu0 %v1153, 32
        %v4559 = vpop.permute.xlu0 %4558
        %v4592 = vsel %vm224, %v865, %v3601
        %v4593 = vsel %vm224, %v866, %v3603
        %v4594 = vsel %vm224, %v867, %v3605
        %v4595 = vsel %vm224, %v868, %v3607
        %v4596 = vsel %vm224, %v869, %v3609
        %v4597 = vsel %vm224, %v870, %v3611
        %v4598 = vsel %vm224, %v871, %v3613
        %v4599 = vsel %vm224, %v872, %v3615
        %v4600 = vsel %vm224, %v873, %v3617
        %v4601 = vsel %vm224, %v874, %v3619
        %v4602 = vsel %vm224, %v875, %v3621
        %v4603 = vsel %vm224, %v876, %v3623
        %v4604 = vsel %vm224, %v877, %v3625
        %v4605 = vsel %vm224, %v878, %v3627
        %v4606 = vsel %vm224, %v879, %v3629
        %v4607 = vsel %vm224, %v880, %v3631
        %v4608 = vsel %vm224, %v881, %v3633
        %v4609 = vsel %vm224, %v882, %v3635
        %v4610 = vsel %vm224, %v883, %v3637
        %v4611 = vsel %vm224, %v884, %v3639
        %v4612 = vsel %vm224, %v885, %v3641
        %v4613 = vsel %vm224, %v886, %v3643
        %v4614 = vsel %vm224, %v887, %v3645
        %v4615 = vsel %vm224, %v888, %v3647
        %v4616 = vsel %vm224, %v889, %v3649
        %v4617 = vsel %vm224, %v890, %v3651
        %v4618 = vsel %vm224, %v891, %v3653
        %v4619 = vsel %vm224, %v892, %v3655
        %v4620 = vsel %vm224, %v893, %v3657
        %v4621 = vsel %vm224, %v894, %v3659
        %v4622 = vsel %vm224, %v895, %v3661
        %v4623 = vsel %vm224, %v896, %v3663
        %v4624 = vsel %vm3106, %v4592, %v3729
        %v4625 = vsel %vm3106, %v4593, %v3731
        %v4626 = vsel %vm3106, %v4594, %v3733
        %v4627 = vsel %vm3106, %v4595, %v3735
        %v4628 = vsel %vm3106, %v4596, %v3737
        %v4629 = vsel %vm3106, %v4597, %v3739
        %v4630 = vsel %vm3106, %v4598, %v3741
        %v4631 = vsel %vm3106, %v4599, %v3743
        %v4632 = vsel %vm3106, %v4600, %v3745
        %v4633 = vsel %vm3106, %v4601, %v3747
        %v4634 = vsel %vm3106, %v4602, %v3749
        %v4635 = vsel %vm3106, %v4603, %v3751
        %v4636 = vsel %vm3106, %v4604, %v3753
        %v4637 = vsel %vm3106, %v4605, %v3755
        %v4638 = vsel %vm3106, %v4606, %v3757
        %v4639 = vsel %vm3106, %v4607, %v3759
        %v4640 = vsel %vm3106, %v4608, %v3761
        %v4641 = vsel %vm3106, %v4609, %v3763
        %v4642 = vsel %vm3106, %v4610, %v3765
        %v4643 = vsel %vm3106, %v4611, %v3767
        %v4644 = vsel %vm3106, %v4612, %v3769
        %v4645 = vsel %vm3106, %v4613, %v3771
        %v4646 = vsel %vm3106, %v4614, %v3773
        %v4647 = vsel %vm3106, %v4615, %v3775
        %v4648 = vsel %vm3106, %v4616, %v3777
        %v4649 = vsel %vm3106, %v4617, %v3779
        %v4650 = vsel %vm3106, %v4618, %v3781
        %v4651 = vsel %vm3106, %v4619, %v3783
        %v4652 = vsel %vm3106, %v4620, %v3785
        %v4653 = vsel %vm3106, %v4621, %v3787
        %v4654 = vsel %vm3106, %v4622, %v3789
        %v4655 = vsel %vm3106, %v4623, %v3791
        %v4656 = vsel %vm3139, %v4624, %v3857
        %v4657 = vsel %vm3139, %v4625, %v3859
        %v4658 = vsel %vm3139, %v4626, %v3861
        %v4659 = vsel %vm3139, %v4627, %v3863
        %v4660 = vsel %vm3139, %v4628, %v3865
        %v4661 = vsel %vm3139, %v4629, %v3867
        %v4662 = vsel %vm3139, %v4630, %v3869
        %v4663 = vsel %vm3139, %v4631, %v3871
        %v4664 = vsel %vm3139, %v4632, %v3873
        %v4665 = vsel %vm3139, %v4633, %v3875
        %v4666 = vsel %vm3139, %v4634, %v3877
        %v4667 = vsel %vm3139, %v4635, %v3879
        %v4668 = vsel %vm3139, %v4636, %v3881
        %v4669 = vsel %vm3139, %v4637, %v3883
        %v4670 = vsel %vm3139, %v4638, %v3885
        %v4671 = vsel %vm3139, %v4639, %v3887
        %v4672 = vsel %vm3139, %v4640, %v3889
        %v4673 = vsel %vm3139, %v4641, %v3891
        %v4674 = vsel %vm3139, %v4642, %v3893
        %v4675 = vsel %vm3139, %v4643, %v3895
        %v4676 = vsel %vm3139, %v4644, %v3897
        %v4677 = vsel %vm3139, %v4645, %v3899
        %v4678 = vsel %vm3139, %v4646, %v3901
        %v4679 = vsel %vm3139, %v4647, %v3903
        %v4680 = vsel %vm3139, %v4648, %v3905
        %v4681 = vsel %vm3139, %v4649, %v3907
        %v4682 = vsel %vm3139, %v4650, %v3909
        %v4683 = vsel %vm3139, %v4651, %v3911
        %v4684 = vsel %vm3139, %v4652, %v3913
        %v4685 = vsel %vm3139, %v4653, %v3915
        %v4686 = vsel %vm3139, %v4654, %v3917
        %v4687 = vsel %vm3139, %v4655, %v3919
        %v4688 = vsel %vm3172, %v4656, %v3985
        %v4689 = vsel %vm3172, %v4657, %v3987
        %v4690 = vsel %vm3172, %v4658, %v3989
        %v4691 = vsel %vm3172, %v4659, %v3991
        %v4692 = vsel %vm3172, %v4660, %v3993
        %v4693 = vsel %vm3172, %v4661, %v3995
        %v4694 = vsel %vm3172, %v4662, %v3997
        %v4695 = vsel %vm3172, %v4663, %v3999
        %v4696 = vsel %vm3172, %v4664, %v4001
        %v4697 = vsel %vm3172, %v4665, %v4003
        %v4698 = vsel %vm3172, %v4666, %v4005
        %v4699 = vsel %vm3172, %v4667, %v4007
        %v4700 = vsel %vm3172, %v4668, %v4009
        %v4701 = vsel %vm3172, %v4669, %v4011
        %v4702 = vsel %vm3172, %v4670, %v4013
        %v4703 = vsel %vm3172, %v4671, %v4015
        %v4704 = vsel %vm3172, %v4672, %v4017
        %v4705 = vsel %vm3172, %v4673, %v4019
        %v4706 = vsel %vm3172, %v4674, %v4021
        %v4707 = vsel %vm3172, %v4675, %v4023
        %v4708 = vsel %vm3172, %v4676, %v4025
        %v4709 = vsel %vm3172, %v4677, %v4027
        %v4710 = vsel %vm3172, %v4678, %v4029
        %v4711 = vsel %vm3172, %v4679, %v4031
        %v4712 = vsel %vm3172, %v4680, %v4033
        %v4713 = vsel %vm3172, %v4681, %v4035
        %v4714 = vsel %vm3172, %v4682, %v4037
        %v4715 = vsel %vm3172, %v4683, %v4039
        %v4716 = vsel %vm3172, %v4684, %v4041
        %v4717 = vsel %vm3172, %v4685, %v4043
        %v4718 = vsel %vm3172, %v4686, %v4045
        %v4719 = vsel %vm3172, %v4687, %v4047
        %v4720 = vsel %vm3205, %v4688, %v4113
        %v4721 = vsel %vm3205, %v4689, %v4115
        %v4722 = vsel %vm3205, %v4690, %v4117
        %v4723 = vsel %vm3205, %v4691, %v4119
        %v4724 = vsel %vm3205, %v4692, %v4121
        %v4725 = vsel %vm3205, %v4693, %v4123
        %v4726 = vsel %vm3205, %v4694, %v4125
        %v4727 = vsel %vm3205, %v4695, %v4127
        %v4728 = vsel %vm3205, %v4696, %v4129
        %v4729 = vsel %vm3205, %v4697, %v4131
        %v4730 = vsel %vm3205, %v4698, %v4133
        %v4731 = vsel %vm3205, %v4699, %v4135
        %v4732 = vsel %vm3205, %v4700, %v4137
        %v4733 = vsel %vm3205, %v4701, %v4139
        %v4734 = vsel %vm3205, %v4702, %v4141
        %v4735 = vsel %vm3205, %v4703, %v4143
        %v4736 = vsel %vm3205, %v4704, %v4145
        %v4737 = vsel %vm3205, %v4705, %v4147
        %v4738 = vsel %vm3205, %v4706, %v4149
        %v4739 = vsel %vm3205, %v4707, %v4151
        %v4740 = vsel %vm3205, %v4708, %v4153
        %v4741 = vsel %vm3205, %v4709, %v4155
        %v4742 = vsel %vm3205, %v4710, %v4157
        %v4743 = vsel %vm3205, %v4711, %v4159
        %v4744 = vsel %vm3205, %v4712, %v4161
        %v4745 = vsel %vm3205, %v4713, %v4163
        %v4746 = vsel %vm3205, %v4714, %v4165
        %v4747 = vsel %vm3205, %v4715, %v4167
        %v4748 = vsel %vm3205, %v4716, %v4169
        %v4749 = vsel %vm3205, %v4717, %v4171
        %v4750 = vsel %vm3205, %v4718, %v4173
        %v4751 = vsel %vm3205, %v4719, %v4175
        %v4752 = vsel %vm3238, %v4720, %v4241
        %v4753 = vsel %vm3238, %v4721, %v4243
        %v4754 = vsel %vm3238, %v4722, %v4245
        %v4755 = vsel %vm3238, %v4723, %v4247
        %v4756 = vsel %vm3238, %v4724, %v4249
        %v4757 = vsel %vm3238, %v4725, %v4251
        %v4758 = vsel %vm3238, %v4726, %v4253
        %v4759 = vsel %vm3238, %v4727, %v4255
        %v4760 = vsel %vm3238, %v4728, %v4257
        %v4761 = vsel %vm3238, %v4729, %v4259
        %v4762 = vsel %vm3238, %v4730, %v4261
        %v4763 = vsel %vm3238, %v4731, %v4263
        %v4764 = vsel %vm3238, %v4732, %v4265
        %v4765 = vsel %vm3238, %v4733, %v4267
        %v4766 = vsel %vm3238, %v4734, %v4269
        %v4767 = vsel %vm3238, %v4735, %v4271
        %v4768 = vsel %vm3238, %v4736, %v4273
        %v4769 = vsel %vm3238, %v4737, %v4275
        %v4770 = vsel %vm3238, %v4738, %v4277
        %v4771 = vsel %vm3238, %v4739, %v4279
        %v4772 = vsel %vm3238, %v4740, %v4281
        %v4773 = vsel %vm3238, %v4741, %v4283
        %v4774 = vsel %vm3238, %v4742, %v4285
        %v4775 = vsel %vm3238, %v4743, %v4287
        %v4776 = vsel %vm3238, %v4744, %v4289
        %v4777 = vsel %vm3238, %v4745, %v4291
        %v4778 = vsel %vm3238, %v4746, %v4293
        %v4779 = vsel %vm3238, %v4747, %v4295
        %v4780 = vsel %vm3238, %v4748, %v4297
        %v4781 = vsel %vm3238, %v4749, %v4299
        %v4782 = vsel %vm3238, %v4750, %v4301
        %v4783 = vsel %vm3238, %v4751, %v4303
        %v4784 = vsel %vm3271, %v4752, %v4369
        %v4785 = vsel %vm3271, %v4753, %v4371
        %v4786 = vsel %vm3271, %v4754, %v4373
        %v4787 = vsel %vm3271, %v4755, %v4375
        %v4788 = vsel %vm3271, %v4756, %v4377
        %v4789 = vsel %vm3271, %v4757, %v4379
        %v4790 = vsel %vm3271, %v4758, %v4381
        %v4791 = vsel %vm3271, %v4759, %v4383
        %v4792 = vsel %vm3271, %v4760, %v4385
        %v4793 = vsel %vm3271, %v4761, %v4387
        %v4794 = vsel %vm3271, %v4762, %v4389
        %v4795 = vsel %vm3271, %v4763, %v4391
        %v4796 = vsel %vm3271, %v4764, %v4393
        %v4797 = vsel %vm3271, %v4765, %v4395
        %v4798 = vsel %vm3271, %v4766, %v4397
        %v4799 = vsel %vm3271, %v4767, %v4399
        %v4800 = vsel %vm3271, %v4768, %v4401
        %v4801 = vsel %vm3271, %v4769, %v4403
        %v4802 = vsel %vm3271, %v4770, %v4405
        %v4803 = vsel %vm3271, %v4771, %v4407
        %v4804 = vsel %vm3271, %v4772, %v4409
        %v4805 = vsel %vm3271, %v4773, %v4411
        %v4806 = vsel %vm3271, %v4774, %v4413
        %v4807 = vsel %vm3271, %v4775, %v4415
        %v4808 = vsel %vm3271, %v4776, %v4417
        %v4809 = vsel %vm3271, %v4777, %v4419
        %v4810 = vsel %vm3271, %v4778, %v4421
        %v4811 = vsel %vm3271, %v4779, %v4423
        %v4812 = vsel %vm3271, %v4780, %v4425
        %v4813 = vsel %vm3271, %v4781, %v4427
        %v4814 = vsel %vm3271, %v4782, %v4429
        %v4815 = vsel %vm3271, %v4783, %v4431
        %v4816 = vsel %vm3304, %v4784, %v4497
        %v4817 = vsel %vm3304, %v4785, %v4499
        %v4818 = vsel %vm3304, %v4786, %v4501
        %v4819 = vsel %vm3304, %v4787, %v4503
        %v4820 = vsel %vm3304, %v4788, %v4505
        %v4821 = vsel %vm3304, %v4789, %v4507
        %v4822 = vsel %vm3304, %v4790, %v4509
        %v4823 = vsel %vm3304, %v4791, %v4511
        %v4824 = vsel %vm3304, %v4792, %v4513
        %v4825 = vsel %vm3304, %v4793, %v4515
        %v4826 = vsel %vm3304, %v4794, %v4517
        %v4827 = vsel %vm3304, %v4795, %v4519
        %v4828 = vsel %vm3304, %v4796, %v4521
        %v4829 = vsel %vm3304, %v4797, %v4523
        %v4830 = vsel %vm3304, %v4798, %v4525
        %v4831 = vsel %vm3304, %v4799, %v4527
        %v4832 = vsel %vm3304, %v4800, %v4529
        %v4833 = vsel %vm3304, %v4801, %v4531
        %v4834 = vsel %vm3304, %v4802, %v4533
        %v4835 = vsel %vm3304, %v4803, %v4535
        %v4836 = vsel %vm3304, %v4804, %v4537
        %v4837 = vsel %vm3304, %v4805, %v4539
        %v4838 = vsel %vm3304, %v4806, %v4541
        %v4839 = vsel %vm3304, %v4807, %v4543
        %v4840 = vsel %vm3304, %v4808, %v4545
        %v4841 = vsel %vm3304, %v4809, %v4547
        %v4842 = vsel %vm3304, %v4810, %v4549
        %v4843 = vsel %vm3304, %v4811, %v4551
        %v4844 = vsel %vm3304, %v4812, %v4553
        %v4845 = vsel %vm3304, %v4813, %v4555
        %v4846 = vsel %vm3304, %v4814, %v4557
        %v4847 = vsel %vm3304, %v4815, %v4559
        %4880 = vrot.lane.b32.xlu0 %v4816, 64
        %v4881 = vpop.permute.xlu0 %4880
        %4882 = vrot.lane.b32.xlu0 %v4817, 64
        %v4883 = vpop.permute.xlu0 %4882
        %4884 = vrot.lane.b32.xlu0 %v4818, 64
        %v4885 = vpop.permute.xlu0 %4884
        %4886 = vrot.lane.b32.xlu0 %v4819, 64
        %v4887 = vpop.permute.xlu0 %4886
        %4888 = vrot.lane.b32.xlu0 %v4820, 64
        %v4889 = vpop.permute.xlu0 %4888
        %4890 = vrot.lane.b32.xlu0 %v4821, 64
        %v4891 = vpop.permute.xlu0 %4890
        %4892 = vrot.lane.b32.xlu0 %v4822, 64
        %v4893 = vpop.permute.xlu0 %4892
        %4894 = vrot.lane.b32.xlu0 %v4823, 64
        %v4895 = vpop.permute.xlu0 %4894
        %4896 = vrot.lane.b32.xlu0 %v4824, 64
        %v4897 = vpop.permute.xlu0 %4896
        %4898 = vrot.lane.b32.xlu0 %v4825, 64
        %v4899 = vpop.permute.xlu0 %4898
        %4900 = vrot.lane.b32.xlu0 %v4826, 64
        %v4901 = vpop.permute.xlu0 %4900
        %4902 = vrot.lane.b32.xlu0 %v4827, 64
        %v4903 = vpop.permute.xlu0 %4902
        %4904 = vrot.lane.b32.xlu0 %v4828, 64
        %v4905 = vpop.permute.xlu0 %4904
        %4906 = vrot.lane.b32.xlu0 %v4829, 64
        %v4907 = vpop.permute.xlu0 %4906
        %4908 = vrot.lane.b32.xlu0 %v4830, 64
        %v4909 = vpop.permute.xlu0 %4908
        %4910 = vrot.lane.b32.xlu0 %v4831, 64
        %v4911 = vpop.permute.xlu0 %4910
        %4912 = vrot.lane.b32.xlu0 %v4832, 64
        %v4913 = vpop.permute.xlu0 %4912
        %4914 = vrot.lane.b32.xlu0 %v4833, 64
        %v4915 = vpop.permute.xlu0 %4914
        %4916 = vrot.lane.b32.xlu0 %v4834, 64
        %v4917 = vpop.permute.xlu0 %4916
        %4918 = vrot.lane.b32.xlu0 %v4835, 64
        %v4919 = vpop.permute.xlu0 %4918
        %4920 = vrot.lane.b32.xlu0 %v4836, 64
        %v4921 = vpop.permute.xlu0 %4920
        %4922 = vrot.lane.b32.xlu0 %v4837, 64
        %v4923 = vpop.permute.xlu0 %4922
        %4924 = vrot.lane.b32.xlu0 %v4838, 64
        %v4925 = vpop.permute.xlu0 %4924
        %4926 = vrot.lane.b32.xlu0 %v4839, 64
        %v4927 = vpop.permute.xlu0 %4926
        %4928 = vrot.lane.b32.xlu0 %v4840, 64
        %v4929 = vpop.permute.xlu0 %4928
        %4930 = vrot.lane.b32.xlu0 %v4841, 64
        %v4931 = vpop.permute.xlu0 %4930
        %4932 = vrot.lane.b32.xlu0 %v4842, 64
        %v4933 = vpop.permute.xlu0 %4932
        %4934 = vrot.lane.b32.xlu0 %v4843, 64
        %v4935 = vpop.permute.xlu0 %4934
        %4936 = vrot.lane.b32.xlu0 %v4844, 64
        %v4937 = vpop.permute.xlu0 %4936
        %4938 = vrot.lane.b32.xlu0 %v4845, 64
        %v4939 = vpop.permute.xlu0 %4938
        %4940 = vrot.lane.b32.xlu0 %v4846, 64
        %v4941 = vpop.permute.xlu0 %4940
        %4942 = vrot.lane.b32.xlu0 %v4847, 64
        %v4943 = vpop.permute.xlu0 %4942
        %vm4976 = vcmask 523264
        %v4977 = vsel %vm4976, %v3536, %v4881
        %v4978 = vsel %vm4976, %v3537, %v4883
        %v4979 = vsel %vm4976, %v3538, %v4885
        %v4980 = vsel %vm4976, %v3539, %v4887
        %v4981 = vsel %vm4976, %v3540, %v4889
        %v4982 = vsel %vm4976, %v3541, %v4891
        %v4983 = vsel %vm4976, %v3542, %v4893
        %v4984 = vsel %vm4976, %v3543, %v4895
        %v4985 = vsel %vm4976, %v3544, %v4897
        %v4986 = vsel %vm4976, %v3545, %v4899
        %v4987 = vsel %vm4976, %v3546, %v4901
        %v4988 = vsel %vm4976, %v3547, %v4903
        %v4989 = vsel %vm4976, %v3548, %v4905
        %v4990 = vsel %vm4976, %v3549, %v4907
        %v4991 = vsel %vm4976, %v3550, %v4909
        %v4992 = vsel %vm4976, %v3551, %v4911
        %v4993 = vsel %vm4976, %v3552, %v4913
        %v4994 = vsel %vm4976, %v3553, %v4915
        %v4995 = vsel %vm4976, %v3554, %v4917
        %v4996 = vsel %vm4976, %v3555, %v4919
        %v4997 = vsel %vm4976, %v3556, %v4921
        %v4998 = vsel %vm4976, %v3557, %v4923
        %v4999 = vsel %vm4976, %v3558, %v4925
        %v5000 = vsel %vm4976, %v3559, %v4927
        %v5001 = vsel %vm4976, %v3560, %v4929
        %v5002 = vsel %vm4976, %v3561, %v4931
        %v5003 = vsel %vm4976, %v3562, %v4933
        %v5004 = vsel %vm4976, %v3563, %v4935
        %v5005 = vsel %vm4976, %v3564, %v4937
        %v5006 = vsel %vm4976, %v3565, %v4939
        %v5007 = vsel %vm4976, %v3566, %v4941
        %v5008 = vsel %vm4976, %v3567, %v4943
        %v5009 = vpack.c.bf16 %v4978, %v4977
        %v5010 = vpack.c.bf16 %v4980, %v4979
        %v5011 = vpack.c.bf16 %v4982, %v4981
        %v5012 = vpack.c.bf16 %v4984, %v4983
        %v5013 = vpack.c.bf16 %v4986, %v4985
        %v5014 = vpack.c.bf16 %v4988, %v4987
        %v5015 = vpack.c.bf16 %v4990, %v4989
        %v5016 = vpack.c.bf16 %v4992, %v4991
        %v5017 = vpack.c.bf16 %v4994, %v4993
        %v5018 = vpack.c.bf16 %v4996, %v4995
        %v5019 = vpack.c.bf16 %v4998, %v4997
        %v5020 = vpack.c.bf16 %v5000, %v4999
        %v5021 = vpack.c.bf16 %v5002, %v5001
        %v5022 = vpack.c.bf16 %v5004, %v5003
        %v5023 = vpack.c.bf16 %v5006, %v5005
        %v5024 = vpack.c.bf16 %v5008, %v5007
        %v5025 = vld [vmem:[%s1] sm:$0xff]
        %v5026 = vld [vmem:[%s1 + $0x8] sm:$0xff]
        %v5027 = vld [vmem:[%s1 + $0x10] sm:$0xff]
        %v5028 = vld [vmem:[%s1 + $0x18] sm:$0xff]
        %v5029 = vld [vmem:[%s1 + $0x20] sm:$0xff]
        %v5030 = vld [vmem:[%s1 + $0x28] sm:$0xff]
        %v5031 = vld [vmem:[%s1 + $0x30] sm:$0xff]
        %v5032 = vld [vmem:[%s1 + $0x38] sm:$0xff]
        %v5033 = vld [vmem:[%s1 + $0x40] sm:$0xff]
        %v5034 = vld [vmem:[%s1 + $0x48] sm:$0xff]
        %v5035 = vld [vmem:[%s1 + $0x50] sm:$0xff]
        %v5036 = vld [vmem:[%s1 + $0x58] sm:$0xff]
        %v5037 = vld [vmem:[%s1 + $0x60] sm:$0xf]
        %v5038 = vpack.c.bf16 %v5026, %v5025
        %v5039 = vpack.c.bf16 %v5028, %v5027
        %v5040 = vpack.c.bf16 %v5030, %v5029
        %v5041 = vpack.c.bf16 %v5032, %v5031
        %v5042 = vpack.c.bf16 %v5034, %v5033
        %v5043 = vpack.c.bf16 %v5036, %v5035
        %v5044 = vpack.c.bf16 %v5037, %v5037
        %v5045 = vld [vmem:[%s2] sm:$0x1]
        %v5047 = vlaneseq
        %v5048 = vshrl.u32 %v5047, 7
        %v5049 = vsub.s32 0, %v5048
        %v5050 = vrot.slane %v5045, %v5049
        %vm5052 = vcmask 818176
        %v5054 = vsel %vm5052, %v5009, 0
        %v5057 = vsel %vm5052, %v5010, 0
        %v5060 = vsel %vm5052, %v5011, 0
        %v5063 = vsel %vm5052, %v5012, 0
        %v5066 = vsel %vm5052, %v5013, 0
        %v5069 = vsel %vm5052, %v5014, 0
        %v5072 = vsel %vm5052, %v5015, 0
        %v5075 = vsel %vm5052, %v5016, 0
        %v5078 = vsel %vm5052, %v5017, 0
        %v5081 = vsel %vm5052, %v5018, 0
        %v5084 = vsel %vm5052, %v5019, 0
        %v5087 = vsel %vm5052, %v5020, 0
        %v5090 = vsel %vm5052, %v5021, 0
        %v5093 = vsel %vm5052, %v5022, 0
        %v5096 = vsel %vm5052, %v5023, 0
        %v5099 = vsel %vm5052, %v5024, 0
        %vm5101 = vcmask 1041408
        %v5103 = vsel %vm5101, %v5044, 0
        %5105 = vmatprep.subr.bf16.mxu0 0
        %5106 = vmatpush1.bf16.msra.mxu0 0
        %5107 = vmatprep.subr.bf16.mxu0 0
        %5108 = vmatpush1.bf16.msra.mxu0 %v5103
        %5109 = vmatprep.subr.bf16.mxu0 0
        %5110 = vmatpush1.bf16.msra.mxu0 %v5043
        %5111 = vmatprep.subr.bf16.mxu0 0
        %5112 = vmatpush1.bf16.msra.mxu0 %v5042
        %5113 = vmatprep.subr.bf16.mxu0 0
        %5114 = vmatpush1.bf16.msra.mxu0 %v5041
        %5115 = vmatprep.subr.bf16.mxu0 0
        %5116 = vmatpush1.bf16.msra.mxu0 %v5040
        %5117 = vmatprep.subr.bf16.mxu0 0
        %5118 = vmatpush1.bf16.msra.mxu0 %v5039
        %5119 = vmatprep.subr.bf16.mxu0 0
        %5120 = vmatpush1.bf16.msra.mxu0 %v5038
        %5121 = vmatprep.subr.bf16.mxu0 0
        %5122 = vmatpush2.bf16.msra.mxu0 0
        %5123 = vmatprep.subr.bf16.mxu0 0
        %5124 = vmatpush2.bf16.msra.mxu0 0
        %5125 = vmatprep.subr.bf16.mxu0 0
        %5126 = vmatpush2.bf16.msra.mxu0 0
        %5127 = vmatprep.subr.bf16.mxu0 0
        %5128 = vmatpush2.bf16.msra.mxu0 0
        %5129 = vmatprep.subr.bf16.mxu0 0
        %5130 = vmatpush2.bf16.msra.mxu0 0
        %5131 = vmatprep.subr.bf16.mxu0 0
        %5132 = vmatpush2.bf16.msra.mxu0 0
        %5133 = vmatprep.subr.bf16.mxu0 0
        %5134 = vmatpush2.bf16.msra.mxu0 0
        %5135 = vmatprep.subr.bf16.mxu0 0
        %5136 = vmatpush2.bf16.msra.mxu0 0
        %5137 = vmatprep.mubr.bf16.mxu0 0
        %5138 = vmatmul.mubr.bf16.gmra.mxu0 %v5054
        %v5139 = vpop.f32.mrf.mxu0
        %v5140 = vadd.f32 %v5050, %v5139
        %v5141 = vpop.f32.mrf.mxu0
        %v5142 = vpop.f32.mrf.mxu0
        %v5143 = vadd.f32 %v5050, %v5142
        %v5144 = vpop.f32.mrf.mxu0
        %5145 = vmatprep.mubr.bf16.mxu0 0
        %5146 = vmatmul.mubr.bf16.gmra.mxu0 %v5057
        %v5147 = vpop.f32.mrf.mxu0
        %v5148 = vadd.f32 %v5050, %v5147
        %v5149 = vpop.f32.mrf.mxu0
        %v5150 = vpop.f32.mrf.mxu0
        %v5151 = vadd.f32 %v5050, %v5150
        %v5152 = vpop.f32.mrf.mxu0
        %5153 = vmatprep.mubr.bf16.mxu0 0
        %5154 = vmatmul.mubr.bf16.gmra.mxu0 %v5060
        %v5155 = vpop.f32.mrf.mxu0
        %v5156 = vadd.f32 %v5050, %v5155
        %v5157 = vpop.f32.mrf.mxu0
        %v5158 = vpop.f32.mrf.mxu0
        %v5159 = vadd.f32 %v5050, %v5158
        %v5160 = vpop.f32.mrf.mxu0
        %5161 = vmatprep.mubr.bf16.mxu0 0
        %5162 = vmatmul.mubr.bf16.gmra.mxu0 %v5063
        %v5163 = vpop.f32.mrf.mxu0
        %v5164 = vadd.f32 %v5050, %v5163
        %v5165 = vpop.f32.mrf.mxu0
        %v5166 = vpop.f32.mrf.mxu0
        %v5167 = vadd.f32 %v5050, %v5166
        %v5168 = vpop.f32.mrf.mxu0
        %5169 = vmatprep.mubr.bf16.mxu0 0
        %5170 = vmatmul.mubr.bf16.gmra.mxu0 %v5066
        %v5171 = vpop.f32.mrf.mxu0
        %v5172 = vadd.f32 %v5050, %v5171
        %v5173 = vpop.f32.mrf.mxu0
        %v5174 = vpop.f32.mrf.mxu0
        %v5175 = vadd.f32 %v5050, %v5174
        %v5176 = vpop.f32.mrf.mxu0
        %5177 = vmatprep.mubr.bf16.mxu0 0
        %5178 = vmatmul.mubr.bf16.gmra.mxu0 %v5069
        %v5179 = vpop.f32.mrf.mxu0
        %v5180 = vadd.f32 %v5050, %v5179
        %v5181 = vpop.f32.mrf.mxu0
        %v5182 = vpop.f32.mrf.mxu0
        %v5183 = vadd.f32 %v5050, %v5182
        %v5184 = vpop.f32.mrf.mxu0
        %5185 = vmatprep.mubr.bf16.mxu0 0
        %5186 = vmatmul.mubr.bf16.gmra.mxu0 %v5072
        %v5187 = vpop.f32.mrf.mxu0
        %v5188 = vadd.f32 %v5050, %v5187
        %v5189 = vpop.f32.mrf.mxu0
        %v5190 = vpop.f32.mrf.mxu0
        %v5191 = vadd.f32 %v5050, %v5190
        %v5192 = vpop.f32.mrf.mxu0
        %5193 = vmatprep.mubr.bf16.mxu0 0
        %5194 = vmatmul.mubr.bf16.gmra.mxu0 %v5075
        %v5195 = vpop.f32.mrf.mxu0
        %v5196 = vadd.f32 %v5050, %v5195
        %v5197 = vpop.f32.mrf.mxu0
        %v5198 = vpop.f32.mrf.mxu0
        %v5199 = vadd.f32 %v5050, %v5198
        %v5200 = vpop.f32.mrf.mxu0
        %5201 = vmatprep.mubr.bf16.mxu0 0
        %5202 = vmatmul.mubr.bf16.gmra.mxu0 %v5078
        %v5203 = vpop.f32.mrf.mxu0
        %v5204 = vadd.f32 %v5050, %v5203
        %v5205 = vpop.f32.mrf.mxu0
        %v5206 = vpop.f32.mrf.mxu0
        %v5207 = vadd.f32 %v5050, %v5206
        %v5208 = vpop.f32.mrf.mxu0
        %5209 = vmatprep.mubr.bf16.mxu0 0
        %5210 = vmatmul.mubr.bf16.gmra.mxu0 %v5081
        %v5211 = vpop.f32.mrf.mxu0
        %v5212 = vadd.f32 %v5050, %v5211
        %v5213 = vpop.f32.mrf.mxu0
        %v5214 = vpop.f32.mrf.mxu0
        %v5215 = vadd.f32 %v5050, %v5214
        %v5216 = vpop.f32.mrf.mxu0
        %5217 = vmatprep.mubr.bf16.mxu0 0
        %5218 = vmatmul.mubr.bf16.gmra.mxu0 %v5084
        %v5219 = vpop.f32.mrf.mxu0
        %v5220 = vadd.f32 %v5050, %v5219
        %v5221 = vpop.f32.mrf.mxu0
        %v5222 = vpop.f32.mrf.mxu0
        %v5223 = vadd.f32 %v5050, %v5222
        %v5224 = vpop.f32.mrf.mxu0
        %5225 = vmatprep.mubr.bf16.mxu0 0
        %5226 = vmatmul.mubr.bf16.gmra.mxu0 %v5087
        %v5227 = vpop.f32.mrf.mxu0
        %v5228 = vadd.f32 %v5050, %v5227
        %v5229 = vpop.f32.mrf.mxu0
        %v5230 = vpop.f32.mrf.mxu0
        %v5231 = vadd.f32 %v5050, %v5230
        %v5232 = vpop.f32.mrf.mxu0
        %5233 = vmatprep.mubr.bf16.mxu0 0
        %5234 = vmatmul.mubr.bf16.gmra.mxu0 %v5090
        %v5235 = vpop.f32.mrf.mxu0
        %v5236 = vadd.f32 %v5050, %v5235
        %v5237 = vpop.f32.mrf.mxu0
        %v5238 = vpop.f32.mrf.mxu0
        %v5239 = vadd.f32 %v5050, %v5238
        %v5240 = vpop.f32.mrf.mxu0
        %5241 = vmatprep.mubr.bf16.mxu0 0
        %5242 = vmatmul.mubr.bf16.gmra.mxu0 %v5093
        %v5243 = vpop.f32.mrf.mxu0
        %v5244 = vadd.f32 %v5050, %v5243
        %v5245 = vpop.f32.mrf.mxu0
        %v5246 = vpop.f32.mrf.mxu0
        %v5247 = vadd.f32 %v5050, %v5246
        %v5248 = vpop.f32.mrf.mxu0
        %5249 = vmatprep.mubr.bf16.mxu0 0
        %5250 = vmatmul.mubr.bf16.gmra.mxu0 %v5096
        %v5251 = vpop.f32.mrf.mxu0
        %v5252 = vadd.f32 %v5050, %v5251
        %v5253 = vpop.f32.mrf.mxu0
        %v5254 = vpop.f32.mrf.mxu0
        %v5255 = vadd.f32 %v5050, %v5254
        %v5256 = vpop.f32.mrf.mxu0
        %5257 = vmatprep.mubr.bf16.mxu0 0
        %5258 = vmatmul.mubr.bf16.gmra.mxu0 %v5099
        %v5259 = vpop.f32.mrf.mxu0
        %v5260 = vadd.f32 %v5050, %v5259
        %v5261 = vpop.f32.mrf.mxu0
        %v5262 = vpop.f32.mrf.mxu0
        %v5263 = vadd.f32 %v5050, %v5262
        %v5264 = vpop.f32.mrf.mxu0
        %5265 = vdwg.mxu0
        %v5266 = vmax.f32 %v5140, 0.0
        %v5267 = vmax.f32 %v5143, 0.0
        %v5268 = vmax.f32 %v5148, 0.0
        %v5269 = vmax.f32 %v5151, 0.0
        %v5270 = vmax.f32 %v5156, 0.0
        %v5271 = vmax.f32 %v5159, 0.0
        %v5272 = vmax.f32 %v5164, 0.0
        %v5273 = vmax.f32 %v5167, 0.0
        %v5274 = vmax.f32 %v5172, 0.0
        %v5275 = vmax.f32 %v5175, 0.0
        %v5276 = vmax.f32 %v5180, 0.0
        %v5277 = vmax.f32 %v5183, 0.0
        %v5278 = vmax.f32 %v5188, 0.0
        %v5279 = vmax.f32 %v5191, 0.0
        %v5280 = vmax.f32 %v5196, 0.0
        %v5281 = vmax.f32 %v5199, 0.0
        %v5282 = vmax.f32 %v5204, 0.0
        %v5283 = vmax.f32 %v5207, 0.0
        %v5284 = vmax.f32 %v5212, 0.0
        %v5285 = vmax.f32 %v5215, 0.0
        %v5286 = vmax.f32 %v5220, 0.0
        %v5287 = vmax.f32 %v5223, 0.0
        %v5288 = vmax.f32 %v5228, 0.0
        %v5289 = vmax.f32 %v5231, 0.0
        %v5290 = vmax.f32 %v5236, 0.0
        %v5291 = vmax.f32 %v5239, 0.0
        %v5292 = vmax.f32 %v5244, 0.0
        %v5293 = vmax.f32 %v5247, 0.0
        %v5294 = vmax.f32 %v5252, 0.0
        %v5295 = vmax.f32 %v5255, 0.0
        %v5296 = vmax.f32 %v5260, 0.0
        %v5297 = vmax.f32 %v5263, 0.0
        %5298 = vst.msk [vmem:[#allocation3] sm:$0xff] %vm3205, 0.0
        %5299 = vst.msk [vmem:[#allocation3 + $0x8] sm:$0xff] %vm3205, 0.0
        %vm5300 = vcmask 158720
        %5301 = vst.msk [vmem:[#allocation3 + $0x10] sm:$0xf] %vm5300, 0.0
        %5302 = vst.msk [vmem:[#allocation3 + $0x18] sm:$0xff] %vm3205, 0.0
        %5303 = vst.msk [vmem:[#allocation3 + $0x20] sm:$0xff] %vm3205, 0.0
        %5304 = vst.msk [vmem:[#allocation3 + $0x28] sm:$0xf] %vm5300, 0.0
        %5305 = vst.msk [vmem:[#allocation3 + $0x30] sm:$0xff] %vm3205, 0.0
        %5306 = vst.msk [vmem:[#allocation3 + $0x38] sm:$0xff] %vm3205, 0.0
        %5307 = vst.msk [vmem:[#allocation3 + $0x40] sm:$0xf] %vm5300, 0.0
        %5308 = vst.msk [vmem:[#allocation3 + $0x48] sm:$0xff] %vm3205, 0.0
        %5309 = vst.msk [vmem:[#allocation3 + $0x50] sm:$0xff] %vm3205, 0.0
        %5310 = vst.msk [vmem:[#allocation3 + $0x58] sm:$0xf] %vm5300, 0.0
        %5311 = vst.msk [vmem:[#allocation3 + $0x60] sm:$0xff] %vm3205, 0.0
        %5312 = vst.msk [vmem:[#allocation3 + $0x68] sm:$0xff] %vm3205, 0.0
        %5313 = vst.msk [vmem:[#allocation3 + $0x70] sm:$0xf] %vm5300, 0.0
        %5314 = vst.msk [vmem:[#allocation3 + $0x78] sm:$0xff] %vm3205, 0.0
        %5315 = vst.msk [vmem:[#allocation3 + $0x80] sm:$0xff] %vm3205, 0.0
        %5316 = vst.msk [vmem:[#allocation3 + $0x88] sm:$0xf] %vm5300, 0.0
        %5317 = vst.msk [vmem:[#allocation3 + $0x90] sm:$0xff] %vm3205, 0.0
        %5318 = vst.msk [vmem:[#allocation3 + $0x98] sm:$0xff] %vm3205, 0.0
        %5319 = vst.msk [vmem:[#allocation3 + $0xa0] sm:$0xf] %vm5300, 0.0
        %5320 = vst.msk [vmem:[#allocation3 + $0xa8] sm:$0xff] %vm3205, 0.0
        %5321 = vst.msk [vmem:[#allocation3 + $0xb0] sm:$0xff] %vm3205, 0.0
        %5322 = vst.msk [vmem:[#allocation3 + $0xb8] sm:$0xf] %vm5300, 0.0
        %5323 = vst.msk [vmem:[#allocation3 + $0xc0] sm:$0xff] %vm3205, 0.0
        %5324 = vst.msk [vmem:[#allocation3 + $0xc8] sm:$0xff] %vm3205, 0.0
        %5325 = vst.msk [vmem:[#allocation3 + $0xd0] sm:$0xf] %vm5300, 0.0
        %5326 = vst.msk [vmem:[#allocation3 + $0xd8] sm:$0xff] %vm3205, 0.0
        %5327 = vst.msk [vmem:[#allocation3 + $0xe0] sm:$0xff] %vm3205, 0.0
        %5328 = vst.msk [vmem:[#allocation3 + $0xe8] sm:$0xf] %vm5300, 0.0
        %5329 = vst.msk [vmem:[#allocation3 + $0xf0] sm:$0xff] %vm3205, 0.0
        %5330 = vst.msk [vmem:[#allocation3 + $0xf8] sm:$0xff] %vm3205, 0.0
        %5331 = vst.msk [vmem:[#allocation3 + $0x100] sm:$0xf] %vm5300, 0.0
        %5332 = vst.msk [vmem:[#allocation3 + $0x108] sm:$0xff] %vm3205, 0.0
        %5333 = vst.msk [vmem:[#allocation3 + $0x110] sm:$0xff] %vm3205, 0.0
        %5334 = vst.msk [vmem:[#allocation3 + $0x118] sm:$0xf] %vm5300, 0.0
        %5335 = vst.msk [vmem:[#allocation3 + $0x120] sm:$0xff] %vm3205, 0.0
        %5336 = vst.msk [vmem:[#allocation3 + $0x128] sm:$0xff] %vm3205, 0.0
        %5337 = vst.msk [vmem:[#allocation3 + $0x130] sm:$0xf] %vm5300, 0.0
        %5338 = vst.msk [vmem:[#allocation3 + $0x138] sm:$0xff] %vm3205, 0.0
        %5339 = vst.msk [vmem:[#allocation3 + $0x140] sm:$0xff] %vm3205, 0.0
        %5340 = vst.msk [vmem:[#allocation3 + $0x148] sm:$0xf] %vm5300, 0.0
        %5341 = vst.msk [vmem:[#allocation3 + $0x150] sm:$0xff] %vm3205, 0.0
        %5342 = vst.msk [vmem:[#allocation3 + $0x158] sm:$0xff] %vm3205, 0.0
        %5343 = vst.msk [vmem:[#allocation3 + $0x160] sm:$0xf] %vm5300, 0.0
        %5344 = vst.msk [vmem:[#allocation3 + $0x168] sm:$0xff] %vm3205, 0.0
        %5345 = vst.msk [vmem:[#allocation3 + $0x170] sm:$0xff] %vm3205, 0.0
        %5346 = vst.msk [vmem:[#allocation3 + $0x178] sm:$0xf] %vm5300, 0.0
        %5347 = vst.msk [vmem:[#allocation3 + $0x180] sm:$0xff] %vm3205, 0.0
        %5348 = vst.msk [vmem:[#allocation3 + $0x188] sm:$0xff] %vm3205, 0.0
        %5349 = vst.msk [vmem:[#allocation3 + $0x190] sm:$0xf] %vm5300, 0.0
        %5350 = vst.msk [vmem:[#allocation3 + $0x198] sm:$0xff] %vm3205, 0.0
        %5351 = vst.msk [vmem:[#allocation3 + $0x1a0] sm:$0xff] %vm3205, 0.0
        %5352 = vst.msk [vmem:[#allocation3 + $0x1a8] sm:$0xf] %vm5300, 0.0
        %5353 = vst.msk [vmem:[#allocation3 + $0x1b0] sm:$0xff] %vm3205, 0.0
        %5354 = vst.msk [vmem:[#allocation3 + $0x1b8] sm:$0xff] %vm3205, 0.0
        %5355 = vst.msk [vmem:[#allocation3 + $0x1c0] sm:$0xf] %vm5300, 0.0
        %5356 = vst.msk [vmem:[#allocation3 + $0x1c8] sm:$0xff] %vm3205, 0.0
        %5357 = vst.msk [vmem:[#allocation3 + $0x1d0] sm:$0xff] %vm3205, 0.0
        %5358 = vst.msk [vmem:[#allocation3 + $0x1d8] sm:$0xf] %vm5300, 0.0
        %s5359 = scalar_lea.vmem [#allocation3], 48
        %5360 = vst.msk [vmem:[%s5359 + $0x2] sm:$0xff] %vm3205, %v5266
        %5361 = vst.msk [vmem:[%s5359 + $0xa] sm:$0xff] %vm3205, %v5267
        %5362 = vst.msk [vmem:[%s5359 + $0x1a] sm:$0xff] %vm3205, %v5268
        %5363 = vst.msk [vmem:[%s5359 + $0x22] sm:$0xff] %vm3205, %v5269
        %5364 = vst.msk [vmem:[%s5359 + $0x32] sm:$0xff] %vm3205, %v5270
        %5365 = vst.msk [vmem:[%s5359 + $0x3a] sm:$0xff] %vm3205, %v5271
        %5366 = vst.msk [vmem:[%s5359 + $0x4a] sm:$0xff] %vm3205, %v5272
        %5367 = vst.msk [vmem:[%s5359 + $0x52] sm:$0xff] %vm3205, %v5273
        %5368 = vst.msk [vmem:[%s5359 + $0x62] sm:$0xff] %vm3205, %v5274
        %5369 = vst.msk [vmem:[%s5359 + $0x6a] sm:$0xff] %vm3205, %v5275
        %5370 = vst.msk [vmem:[%s5359 + $0x7a] sm:$0xff] %vm3205, %v5276
        %5371 = vst.msk [vmem:[%s5359 + $0x82] sm:$0xff] %vm3205, %v5277
        %5372 = vst.msk [vmem:[%s5359 + $0x92] sm:$0xff] %vm3205, %v5278
        %5373 = vst.msk [vmem:[%s5359 + $0x9a] sm:$0xff] %vm3205, %v5279
        %5374 = vst.msk [vmem:[%s5359 + $0xaa] sm:$0xff] %vm3205, %v5280
        %5375 = vst.msk [vmem:[%s5359 + $0xb2] sm:$0xff] %vm3205, %v5281
        %5376 = vst.msk [vmem:[%s5359 + $0xc2] sm:$0xff] %vm3205, %v5282
        %5377 = vst.msk [vmem:[%s5359 + $0xca] sm:$0xff] %vm3205, %v5283
        %5378 = vst.msk [vmem:[%s5359 + $0xda] sm:$0xff] %vm3205, %v5284
        %5379 = vst.msk [vmem:[%s5359 + $0xe2] sm:$0xff] %vm3205, %v5285
        %5380 = vst.msk [vmem:[%s5359 + $0xf2] sm:$0xff] %vm3205, %v5286
        %5381 = vst.msk [vmem:[%s5359 + $0xfa] sm:$0xff] %vm3205, %v5287
        %5382 = vst.msk [vmem:[%s5359 + $0x10a] sm:$0xff] %vm3205, %v5288
        %5383 = vst.msk [vmem:[%s5359 + $0x112] sm:$0xff] %vm3205, %v5289
        %5384 = vst.msk [vmem:[%s5359 + $0x122] sm:$0xff] %vm3205, %v5290
        %5385 = vst.msk [vmem:[%s5359 + $0x12a] sm:$0xff] %vm3205, %v5291
        %5386 = vst.msk [vmem:[%s5359 + $0x13a] sm:$0xff] %vm3205, %v5292
        %5387 = vst.msk [vmem:[%s5359 + $0x142] sm:$0xff] %vm3205, %v5293
        %5388 = vst.msk [vmem:[%s5359 + $0x152] sm:$0xff] %vm3205, %v5294
        %5389 = vst.msk [vmem:[%s5359 + $0x15a] sm:$0xff] %vm3205, %v5295
        %5390 = vst.msk [vmem:[%s5359 + $0x16a] sm:$0xff] %vm3205, %v5296
        %5391 = vst.msk [vmem:[%s5359 + $0x172] sm:$0xff] %vm3205, %v5297
        %v5392 = vld [vmem:[#allocation3] sm:$0xff]
        %v5393 = vld [vmem:[#allocation3 + $0x8] sm:$0xff]
        %v5394 = vld [vmem:[#allocation3 + $0x18] sm:$0xff]
        %v5395 = vld [vmem:[#allocation3 + $0x20] sm:$0xff]
        %v5396 = vld [vmem:[#allocation3 + $0x30] sm:$0xff]
        %v5397 = vld [vmem:[#allocation3 + $0x38] sm:$0xff]
        %v5398 = vld [vmem:[#allocation3 + $0x48] sm:$0xff]
        %v5399 = vld [vmem:[#allocation3 + $0x50] sm:$0xff]
        %v5400 = vld [vmem:[#allocation3 + $0x60] sm:$0xff]
        %v5401 = vld [vmem:[#allocation3 + $0x68] sm:$0xff]
        %v5402 = vld [vmem:[#allocation3 + $0x78] sm:$0xff]
        %v5403 = vld [vmem:[#allocation3 + $0x80] sm:$0xff]
        %v5404 = vld [vmem:[#allocation3 + $0x90] sm:$0xff]
        %v5405 = vld [vmem:[#allocation3 + $0x98] sm:$0xff]
        %v5406 = vld [vmem:[#allocation3 + $0xa8] sm:$0xff]
        %v5407 = vld [vmem:[#allocation3 + $0xb0] sm:$0xff]
        %v5408 = vld [vmem:[#allocation3 + $0xc0] sm:$0xff]
        %v5409 = vld [vmem:[#allocation3 + $0xc8] sm:$0xff]
        %v5410 = vld [vmem:[#allocation3 + $0xd8] sm:$0xff]
        %v5411 = vld [vmem:[#allocation3 + $0xe0] sm:$0xff]
        %v5412 = vld [vmem:[#allocation3 + $0xf0] sm:$0xff]
        %v5413 = vld [vmem:[#allocation3 + $0xf8] sm:$0xff]
        %v5414 = vld [vmem:[#allocation3 + $0x108] sm:$0xff]
        %v5415 = vld [vmem:[#allocation3 + $0x110] sm:$0xff]
        %v5416 = vld [vmem:[#allocation3 + $0x120] sm:$0xff]
        %v5417 = vld [vmem:[#allocation3 + $0x128] sm:$0xff]
        %v5418 = vld [vmem:[#allocation3 + $0x138] sm:$0xff]
        %v5419 = vld [vmem:[#allocation3 + $0x140] sm:$0xff]
        %v5420 = vld [vmem:[#allocation3 + $0x150] sm:$0xff]
        %v5421 = vld [vmem:[#allocation3 + $0x158] sm:$0xff]
        %v5422 = vld [vmem:[#allocation3 + $0x168] sm:$0xff]
        %v5423 = vld [vmem:[#allocation3 + $0x170] sm:$0xff]
        %v5424 = vld [vmem:[#allocation3 + $0x1] sm:$0xff]
        %v5425 = vld [vmem:[#allocation3 + $0x9] sm:$0xff]
        %v5426 = vld [vmem:[#allocation3 + $0x19] sm:$0xff]
        %v5427 = vld [vmem:[#allocation3 + $0x21] sm:$0xff]
        %v5428 = vld [vmem:[#allocation3 + $0x31] sm:$0xff]
        %v5429 = vld [vmem:[#allocation3 + $0x39] sm:$0xff]
        %v5430 = vld [vmem:[#allocation3 + $0x49] sm:$0xff]
        %v5431 = vld [vmem:[#allocation3 + $0x51] sm:$0xff]
        %v5432 = vld [vmem:[#allocation3 + $0x61] sm:$0xff]
        %v5433 = vld [vmem:[#allocation3 + $0x69] sm:$0xff]
        %v5434 = vld [vmem:[#allocation3 + $0x79] sm:$0xff]
        %v5435 = vld [vmem:[#allocation3 + $0x81] sm:$0xff]
        %v5436 = vld [vmem:[#allocation3 + $0x91] sm:$0xff]
        %v5437 = vld [vmem:[#allocation3 + $0x99] sm:$0xff]
        %v5438 = vld [vmem:[#allocation3 + $0xa9] sm:$0xff]
        %v5439 = vld [vmem:[#allocation3 + $0xb1] sm:$0xff]
        %v5440 = vld [vmem:[#allocation3 + $0xc1] sm:$0xff]
        %v5441 = vld [vmem:[#allocation3 + $0xc9] sm:$0xff]
        %v5442 = vld [vmem:[#allocation3 + $0xd9] sm:$0xff]
        %v5443 = vld [vmem:[#allocation3 + $0xe1] sm:$0xff]
        %v5444 = vld [vmem:[#allocation3 + $0xf1] sm:$0xff]
        %v5445 = vld [vmem:[#allocation3 + $0xf9] sm:$0xff]
        %v5446 = vld [vmem:[#allocation3 + $0x109] sm:$0xff]
        %v5447 = vld [vmem:[#allocation3 + $0x111] sm:$0xff]
        %v5448 = vld [vmem:[#allocation3 + $0x121] sm:$0xff]
        %v5449 = vld [vmem:[#allocation3 + $0x129] sm:$0xff]
        %v5450 = vld [vmem:[#allocation3 + $0x139] sm:$0xff]
        %v5451 = vld [vmem:[#allocation3 + $0x141] sm:$0xff]
        %v5452 = vld [vmem:[#allocation3 + $0x151] sm:$0xff]
        %v5453 = vld [vmem:[#allocation3 + $0x159] sm:$0xff]
        %v5454 = vld [vmem:[#allocation3 + $0x169] sm:$0xff]
        %v5455 = vld [vmem:[#allocation3 + $0x171] sm:$0xff]
        %v5456 = vld [vmem:[#allocation3 + $0x2] sm:$0xff]
        %v5457 = vld [vmem:[#allocation3 + $0xa] sm:$0xff]
        %v5458 = vld [vmem:[#allocation3 + $0x1a] sm:$0xff]
        %v5459 = vld [vmem:[#allocation3 + $0x22] sm:$0xff]
        %v5460 = vld [vmem:[#allocation3 + $0x32] sm:$0xff]
        %v5461 = vld [vmem:[#allocation3 + $0x3a] sm:$0xff]
        %v5462 = vld [vmem:[#allocation3 + $0x4a] sm:$0xff]
        %v5463 = vld [vmem:[#allocation3 + $0x52] sm:$0xff]
        %v5464 = vld [vmem:[#allocation3 + $0x62] sm:$0xff]
        %v5465 = vld [vmem:[#allocation3 + $0x6a] sm:$0xff]
        %v5466 = vld [vmem:[#allocation3 + $0x7a] sm:$0xff]
        %v5467 = vld [vmem:[#allocation3 + $0x82] sm:$0xff]
        %v5468 = vld [vmem:[#allocation3 + $0x92] sm:$0xff]
        %v5469 = vld [vmem:[#allocation3 + $0x9a] sm:$0xff]
        %v5470 = vld [vmem:[#allocation3 + $0xaa] sm:$0xff]
        %v5471 = vld [vmem:[#allocation3 + $0xb2] sm:$0xff]
        %v5472 = vld [vmem:[#allocation3 + $0xc2] sm:$0xff]
        %v5473 = vld [vmem:[#allocation3 + $0xca] sm:$0xff]
        %v5474 = vld [vmem:[#allocation3 + $0xda] sm:$0xff]
        %v5475 = vld [vmem:[#allocation3 + $0xe2] sm:$0xff]
        %v5476 = vld [vmem:[#allocation3 + $0xf2] sm:$0xff]
        %v5477 = vld [vmem:[#allocation3 + $0xfa] sm:$0xff]
        %v5478 = vld [vmem:[#allocation3 + $0x10a] sm:$0xff]
        %v5479 = vld [vmem:[#allocation3 + $0x112] sm:$0xff]
        %v5480 = vld [vmem:[#allocation3 + $0x122] sm:$0xff]
        %v5481 = vld [vmem:[#allocation3 + $0x12a] sm:$0xff]
        %v5482 = vld [vmem:[#allocation3 + $0x13a] sm:$0xff]
        %v5483 = vld [vmem:[#allocation3 + $0x142] sm:$0xff]
        %v5484 = vld [vmem:[#allocation3 + $0x152] sm:$0xff]
        %v5485 = vld [vmem:[#allocation3 + $0x15a] sm:$0xff]
        %v5486 = vld [vmem:[#allocation3 + $0x16a] sm:$0xff]
        %v5487 = vld [vmem:[#allocation3 + $0x172] sm:$0xff]
        %v5488 = vld [vmem:[#allocation3 + $0x3] sm:$0xff]
        %v5489 = vld [vmem:[#allocation3 + $0xb] sm:$0xff]
        %v5490 = vld [vmem:[#allocation3 + $0x1b] sm:$0xff]
        %v5491 = vld [vmem:[#allocation3 + $0x23] sm:$0xff]
        %v5492 = vld [vmem:[#allocation3 + $0x33] sm:$0xff]
        %v5493 = vld [vmem:[#allocation3 + $0x3b] sm:$0xff]
        %v5494 = vld [vmem:[#allocation3 + $0x4b] sm:$0xff]
        %v5495 = vld [vmem:[#allocation3 + $0x53] sm:$0xff]
        %v5496 = vld [vmem:[#allocation3 + $0x63] sm:$0xff]
        %v5497 = vld [vmem:[#allocation3 + $0x6b] sm:$0xff]
        %v5498 = vld [vmem:[#allocation3 + $0x7b] sm:$0xff]
        %v5499 = vld [vmem:[#allocation3 + $0x83] sm:$0xff]
        %v5500 = vld [vmem:[#allocation3 + $0x93] sm:$0xff]
        %v5501 = vld [vmem:[#allocation3 + $0x9b] sm:$0xff]
        %v5502 = vld [vmem:[#allocation3 + $0xab] sm:$0xff]
        %v5503 = vld [vmem:[#allocation3 + $0xb3] sm:$0xff]
        %v5504 = vld [vmem:[#allocation3 + $0xc3] sm:$0xff]
        %v5505 = vld [vmem:[#allocation3 + $0xcb] sm:$0xff]
        %v5506 = vld [vmem:[#allocation3 + $0xdb] sm:$0xff]
        %v5507 = vld [vmem:[#allocation3 + $0xe3] sm:$0xff]
        %v5508 = vld [vmem:[#allocation3 + $0xf3] sm:$0xff]
        %v5509 = vld [vmem:[#allocation3 + $0xfb] sm:$0xff]
        %v5510 = vld [vmem:[#allocation3 + $0x10b] sm:$0xff]
        %v5511 = vld [vmem:[#allocation3 + $0x113] sm:$0xff]
        %v5512 = vld [vmem:[#allocation3 + $0x123] sm:$0xff]
        %v5513 = vld [vmem:[#allocation3 + $0x12b] sm:$0xff]
        %v5514 = vld [vmem:[#allocation3 + $0x13b] sm:$0xff]
        %v5515 = vld [vmem:[#allocation3 + $0x143] sm:$0xff]
        %v5516 = vld [vmem:[#allocation3 + $0x153] sm:$0xff]
        %v5517 = vld [vmem:[#allocation3 + $0x15b] sm:$0xff]
        %v5518 = vld [vmem:[#allocation3 + $0x16b] sm:$0xff]
        %v5519 = vld [vmem:[#allocation3 + $0x173] sm:$0xff]
        %v5520 = vld [vmem:[#allocation3 + $0x4] sm:$0xff]
        %v5521 = vld [vmem:[#allocation3 + $0xc] sm:$0xff]
        %v5522 = vld [vmem:[#allocation3 + $0x1c] sm:$0xff]
        %v5523 = vld [vmem:[#allocation3 + $0x24] sm:$0xff]
        %v5524 = vld [vmem:[#allocation3 + $0x34] sm:$0xff]
        %v5525 = vld [vmem:[#allocation3 + $0x3c] sm:$0xff]
        %v5526 = vld [vmem:[#allocation3 + $0x4c] sm:$0xff]
        %v5527 = vld [vmem:[#allocation3 + $0x54] sm:$0xff]
        %v5528 = vld [vmem:[#allocation3 + $0x64] sm:$0xff]
        %v5529 = vld [vmem:[#allocation3 + $0x6c] sm:$0xff]
        %v5530 = vld [vmem:[#allocation3 + $0x7c] sm:$0xff]
        %v5531 = vld [vmem:[#allocation3 + $0x84] sm:$0xff]
        %v5532 = vld [vmem:[#allocation3 + $0x94] sm:$0xff]
        %v5533 = vld [vmem:[#allocation3 + $0x9c] sm:$0xff]
        %v5534 = vld [vmem:[#allocation3 + $0xac] sm:$0xff]
        %v5535 = vld [vmem:[#allocation3 + $0xb4] sm:$0xff]
        %v5536 = vld [vmem:[#allocation3 + $0xc4] sm:$0xff]
        %v5537 = vld [vmem:[#allocation3 + $0xcc] sm:$0xff]
        %v5538 = vld [vmem:[#allocation3 + $0xdc] sm:$0xff]
        %v5539 = vld [vmem:[#allocation3 + $0xe4] sm:$0xff]
        %v5540 = vld [vmem:[#allocation3 + $0xf4] sm:$0xff]
        %v5541 = vld [vmem:[#allocation3 + $0xfc] sm:$0xff]
        %v5542 = vld [vmem:[#allocation3 + $0x10c] sm:$0xff]
        %v5543 = vld [vmem:[#allocation3 + $0x114] sm:$0xff]
        %v5544 = vld [vmem:[#allocation3 + $0x124] sm:$0xff]
        %v5545 = vld [vmem:[#allocation3 + $0x12c] sm:$0xff]
        %v5546 = vld [vmem:[#allocation3 + $0x13c] sm:$0xff]
        %v5547 = vld [vmem:[#allocation3 + $0x144] sm:$0xff]
        %v5548 = vld [vmem:[#allocation3 + $0x154] sm:$0xff]
        %v5549 = vld [vmem:[#allocation3 + $0x15c] sm:$0xff]
        %v5550 = vld [vmem:[#allocation3 + $0x16c] sm:$0xff]
        %v5551 = vld [vmem:[#allocation3 + $0x174] sm:$0xff]
        %s5552 = scalar_lea.vmem [#allocation3], 24
        %v5553 = vld [vmem:[%s5552] sm:$0xff]
        %v5554 = vld [vmem:[%s5552 + $0x8] sm:$0xff]
        %v5555 = vld [vmem:[%s5552 + $0x18] sm:$0xff]
        %v5556 = vld [vmem:[%s5552 + $0x20] sm:$0xff]
        %v5557 = vld [vmem:[%s5552 + $0x30] sm:$0xff]
        %v5558 = vld [vmem:[%s5552 + $0x38] sm:$0xff]
        %v5559 = vld [vmem:[%s5552 + $0x48] sm:$0xff]
        %v5560 = vld [vmem:[%s5552 + $0x50] sm:$0xff]
        %v5561 = vld [vmem:[%s5552 + $0x60] sm:$0xff]
        %v5562 = vld [vmem:[%s5552 + $0x68] sm:$0xff]
        %v5563 = vld [vmem:[%s5552 + $0x78] sm:$0xff]
        %v5564 = vld [vmem:[%s5552 + $0x80] sm:$0xff]
        %v5565 = vld [vmem:[%s5552 + $0x90] sm:$0xff]
        %v5566 = vld [vmem:[%s5552 + $0x98] sm:$0xff]
        %v5567 = vld [vmem:[%s5552 + $0xa8] sm:$0xff]
        %v5568 = vld [vmem:[%s5552 + $0xb0] sm:$0xff]
        %v5569 = vld [vmem:[%s5552 + $0xc0] sm:$0xff]
        %v5570 = vld [vmem:[%s5552 + $0xc8] sm:$0xff]
        %v5571 = vld [vmem:[%s5552 + $0xd8] sm:$0xff]
        %v5572 = vld [vmem:[%s5552 + $0xe0] sm:$0xff]
        %v5573 = vld [vmem:[%s5552 + $0xf0] sm:$0xff]
        %v5574 = vld [vmem:[%s5552 + $0xf8] sm:$0xff]
        %v5575 = vld [vmem:[%s5552 + $0x108] sm:$0xff]
        %v5576 = vld [vmem:[%s5552 + $0x110] sm:$0xff]
        %v5577 = vld [vmem:[%s5552 + $0x120] sm:$0xff]
        %v5578 = vld [vmem:[%s5552 + $0x128] sm:$0xff]
        %v5579 = vld [vmem:[%s5552 + $0x138] sm:$0xff]
        %v5580 = vld [vmem:[%s5552 + $0x140] sm:$0xff]
        %v5581 = vld [vmem:[%s5552 + $0x150] sm:$0xff]
        %v5582 = vld [vmem:[%s5552 + $0x158] sm:$0xff]
        %v5583 = vld [vmem:[%s5552 + $0x168] sm:$0xff]
        %v5584 = vld [vmem:[%s5552 + $0x170] sm:$0xff]
        %v5585 = vld [vmem:[%s5552 + $0x1] sm:$0xff]
        %v5586 = vld [vmem:[%s5552 + $0x9] sm:$0xff]
        %v5587 = vld [vmem:[%s5552 + $0x19] sm:$0xff]
        %v5588 = vld [vmem:[%s5552 + $0x21] sm:$0xff]
        %v5589 = vld [vmem:[%s5552 + $0x31] sm:$0xff]
        %v5590 = vld [vmem:[%s5552 + $0x39] sm:$0xff]
        %v5591 = vld [vmem:[%s5552 + $0x49] sm:$0xff]
        %v5592 = vld [vmem:[%s5552 + $0x51] sm:$0xff]
        %v5593 = vld [vmem:[%s5552 + $0x61] sm:$0xff]
        %v5594 = vld [vmem:[%s5552 + $0x69] sm:$0xff]
        %v5595 = vld [vmem:[%s5552 + $0x79] sm:$0xff]
        %v5596 = vld [vmem:[%s5552 + $0x81] sm:$0xff]
        %v5597 = vld [vmem:[%s5552 + $0x91] sm:$0xff]
        %v5598 = vld [vmem:[%s5552 + $0x99] sm:$0xff]
        %v5599 = vld [vmem:[%s5552 + $0xa9] sm:$0xff]
        %v5600 = vld [vmem:[%s5552 + $0xb1] sm:$0xff]
        %v5601 = vld [vmem:[%s5552 + $0xc1] sm:$0xff]
        %v5602 = vld [vmem:[%s5552 + $0xc9] sm:$0xff]
        %v5603 = vld [vmem:[%s5552 + $0xd9] sm:$0xff]
        %v5604 = vld [vmem:[%s5552 + $0xe1] sm:$0xff]
        %v5605 = vld [vmem:[%s5552 + $0xf1] sm:$0xff]
        %v5606 = vld [vmem:[%s5552 + $0xf9] sm:$0xff]
        %v5607 = vld [vmem:[%s5552 + $0x109] sm:$0xff]
        %v5608 = vld [vmem:[%s5552 + $0x111] sm:$0xff]
        %v5609 = vld [vmem:[%s5552 + $0x121] sm:$0xff]
        %v5610 = vld [vmem:[%s5552 + $0x129] sm:$0xff]
        %v5611 = vld [vmem:[%s5552 + $0x139] sm:$0xff]
        %v5612 = vld [vmem:[%s5552 + $0x141] sm:$0xff]
        %v5613 = vld [vmem:[%s5552 + $0x151] sm:$0xff]
        %v5614 = vld [vmem:[%s5552 + $0x159] sm:$0xff]
        %v5615 = vld [vmem:[%s5552 + $0x169] sm:$0xff]
        %v5616 = vld [vmem:[%s5552 + $0x171] sm:$0xff]
        %v5617 = vld [vmem:[%s5552 + $0x2] sm:$0xff]
        %v5618 = vld [vmem:[%s5552 + $0xa] sm:$0xff]
        %v5619 = vld [vmem:[%s5552 + $0x1a] sm:$0xff]
        %v5620 = vld [vmem:[%s5552 + $0x22] sm:$0xff]
        %v5621 = vld [vmem:[%s5552 + $0x32] sm:$0xff]
        %v5622 = vld [vmem:[%s5552 + $0x3a] sm:$0xff]
        %v5623 = vld [vmem:[%s5552 + $0x4a] sm:$0xff]
        %v5624 = vld [vmem:[%s5552 + $0x52] sm:$0xff]
        %v5625 = vld [vmem:[%s5552 + $0x62] sm:$0xff]
        %v5626 = vld [vmem:[%s5552 + $0x6a] sm:$0xff]
        %v5627 = vld [vmem:[%s5552 + $0x7a] sm:$0xff]
        %v5628 = vld [vmem:[%s5552 + $0x82] sm:$0xff]
        %v5629 = vld [vmem:[%s5552 + $0x92] sm:$0xff]
        %v5630 = vld [vmem:[%s5552 + $0x9a] sm:$0xff]
        %v5631 = vld [vmem:[%s5552 + $0xaa] sm:$0xff]
        %v5632 = vld [vmem:[%s5552 + $0xb2] sm:$0xff]
        %v5633 = vld [vmem:[%s5552 + $0xc2] sm:$0xff]
        %v5634 = vld [vmem:[%s5552 + $0xca] sm:$0xff]
        %v5635 = vld [vmem:[%s5552 + $0xda] sm:$0xff]
        %v5636 = vld [vmem:[%s5552 + $0xe2] sm:$0xff]
        %v5637 = vld [vmem:[%s5552 + $0xf2] sm:$0xff]
        %v5638 = vld [vmem:[%s5552 + $0xfa] sm:$0xff]
        %v5639 = vld [vmem:[%s5552 + $0x10a] sm:$0xff]
        %v5640 = vld [vmem:[%s5552 + $0x112] sm:$0xff]
        %v5641 = vld [vmem:[%s5552 + $0x122] sm:$0xff]
        %v5642 = vld [vmem:[%s5552 + $0x12a] sm:$0xff]
        %v5643 = vld [vmem:[%s5552 + $0x13a] sm:$0xff]
        %v5644 = vld [vmem:[%s5552 + $0x142] sm:$0xff]
        %v5645 = vld [vmem:[%s5552 + $0x152] sm:$0xff]
        %v5646 = vld [vmem:[%s5552 + $0x15a] sm:$0xff]
        %v5647 = vld [vmem:[%s5552 + $0x16a] sm:$0xff]
        %v5648 = vld [vmem:[%s5552 + $0x172] sm:$0xff]
        %v5649 = vld [vmem:[%s5552 + $0x3] sm:$0xff]
        %v5650 = vld [vmem:[%s5552 + $0xb] sm:$0xff]
        %v5651 = vld [vmem:[%s5552 + $0x1b] sm:$0xff]
        %v5652 = vld [vmem:[%s5552 + $0x23] sm:$0xff]
        %v5653 = vld [vmem:[%s5552 + $0x33] sm:$0xff]
        %v5654 = vld [vmem:[%s5552 + $0x3b] sm:$0xff]
        %v5655 = vld [vmem:[%s5552 + $0x4b] sm:$0xff]
        %v5656 = vld [vmem:[%s5552 + $0x53] sm:$0xff]
        %v5657 = vld [vmem:[%s5552 + $0x63] sm:$0xff]
        %v5658 = vld [vmem:[%s5552 + $0x6b] sm:$0xff]
        %v5659 = vld [vmem:[%s5552 + $0x7b] sm:$0xff]
        %v5660 = vld [vmem:[%s5552 + $0x83] sm:$0xff]
        %v5661 = vld [vmem:[%s5552 + $0x93] sm:$0xff]
        %v5662 = vld [vmem:[%s5552 + $0x9b] sm:$0xff]
        %v5663 = vld [vmem:[%s5552 + $0xab] sm:$0xff]
        %v5664 = vld [vmem:[%s5552 + $0xb3] sm:$0xff]
        %v5665 = vld [vmem:[%s5552 + $0xc3] sm:$0xff]
        %v5666 = vld [vmem:[%s5552 + $0xcb] sm:$0xff]
        %v5667 = vld [vmem:[%s5552 + $0xdb] sm:$0xff]
        %v5668 = vld [vmem:[%s5552 + $0xe3] sm:$0xff]
        %v5669 = vld [vmem:[%s5552 + $0xf3] sm:$0xff]
        %v5670 = vld [vmem:[%s5552 + $0xfb] sm:$0xff]
        %v5671 = vld [vmem:[%s5552 + $0x10b] sm:$0xff]
        %v5672 = vld [vmem:[%s5552 + $0x113] sm:$0xff]
        %v5673 = vld [vmem:[%s5552 + $0x123] sm:$0xff]
        %v5674 = vld [vmem:[%s5552 + $0x12b] sm:$0xff]
        %v5675 = vld [vmem:[%s5552 + $0x13b] sm:$0xff]
        %v5676 = vld [vmem:[%s5552 + $0x143] sm:$0xff]
        %v5677 = vld [vmem:[%s5552 + $0x153] sm:$0xff]
        %v5678 = vld [vmem:[%s5552 + $0x15b] sm:$0xff]
        %v5679 = vld [vmem:[%s5552 + $0x16b] sm:$0xff]
        %v5680 = vld [vmem:[%s5552 + $0x173] sm:$0xff]
        %v5681 = vld [vmem:[%s5552 + $0x4] sm:$0xff]
        %v5682 = vld [vmem:[%s5552 + $0xc] sm:$0xff]
        %v5683 = vld [vmem:[%s5552 + $0x1c] sm:$0xff]
        %v5684 = vld [vmem:[%s5552 + $0x24] sm:$0xff]
        %v5685 = vld [vmem:[%s5552 + $0x34] sm:$0xff]
        %v5686 = vld [vmem:[%s5552 + $0x3c] sm:$0xff]
        %v5687 = vld [vmem:[%s5552 + $0x4c] sm:$0xff]
        %v5688 = vld [vmem:[%s5552 + $0x54] sm:$0xff]
        %v5689 = vld [vmem:[%s5552 + $0x64] sm:$0xff]
        %v5690 = vld [vmem:[%s5552 + $0x6c] sm:$0xff]
        %v5691 = vld [vmem:[%s5552 + $0x7c] sm:$0xff]
        %v5692 = vld [vmem:[%s5552 + $0x84] sm:$0xff]
        %v5693 = vld [vmem:[%s5552 + $0x94] sm:$0xff]
        %v5694 = vld [vmem:[%s5552 + $0x9c] sm:$0xff]
        %v5695 = vld [vmem:[%s5552 + $0xac] sm:$0xff]
        %v5696 = vld [vmem:[%s5552 + $0xb4] sm:$0xff]
        %v5697 = vld [vmem:[%s5552 + $0xc4] sm:$0xff]
        %v5698 = vld [vmem:[%s5552 + $0xcc] sm:$0xff]
        %v5699 = vld [vmem:[%s5552 + $0xdc] sm:$0xff]
        %v5700 = vld [vmem:[%s5552 + $0xe4] sm:$0xff]
        %v5701 = vld [vmem:[%s5552 + $0xf4] sm:$0xff]
        %v5702 = vld [vmem:[%s5552 + $0xfc] sm:$0xff]
        %v5703 = vld [vmem:[%s5552 + $0x10c] sm:$0xff]
        %v5704 = vld [vmem:[%s5552 + $0x114] sm:$0xff]
        %v5705 = vld [vmem:[%s5552 + $0x124] sm:$0xff]
        %v5706 = vld [vmem:[%s5552 + $0x12c] sm:$0xff]
        %v5707 = vld [vmem:[%s5552 + $0x13c] sm:$0xff]
        %v5708 = vld [vmem:[%s5552 + $0x144] sm:$0xff]
        %v5709 = vld [vmem:[%s5552 + $0x154] sm:$0xff]
        %v5710 = vld [vmem:[%s5552 + $0x15c] sm:$0xff]
        %v5711 = vld [vmem:[%s5552 + $0x16c] sm:$0xff]
        %v5712 = vld [vmem:[%s5552 + $0x174] sm:$0xff]
        %v5713 = vld [vmem:[%s5359] sm:$0xff]
        %v5714 = vld [vmem:[%s5359 + $0x8] sm:$0xff]
        %v5715 = vld [vmem:[%s5359 + $0x18] sm:$0xff]
        %v5716 = vld [vmem:[%s5359 + $0x20] sm:$0xff]
        %v5717 = vld [vmem:[%s5359 + $0x30] sm:$0xff]
        %v5718 = vld [vmem:[%s5359 + $0x38] sm:$0xff]
        %v5719 = vld [vmem:[%s5359 + $0x48] sm:$0xff]
        %v5720 = vld [vmem:[%s5359 + $0x50] sm:$0xff]
        %v5721 = vld [vmem:[%s5359 + $0x60] sm:$0xff]
        %v5722 = vld [vmem:[%s5359 + $0x68] sm:$0xff]
        %v5723 = vld [vmem:[%s5359 + $0x78] sm:$0xff]
        %v5724 = vld [vmem:[%s5359 + $0x80] sm:$0xff]
        %v5725 = vld [vmem:[%s5359 + $0x90] sm:$0xff]
        %v5726 = vld [vmem:[%s5359 + $0x98] sm:$0xff]
        %v5727 = vld [vmem:[%s5359 + $0xa8] sm:$0xff]
        %v5728 = vld [vmem:[%s5359 + $0xb0] sm:$0xff]
        %v5729 = vld [vmem:[%s5359 + $0xc0] sm:$0xff]
        %v5730 = vld [vmem:[%s5359 + $0xc8] sm:$0xff]
        %v5731 = vld [vmem:[%s5359 + $0xd8] sm:$0xff]
        %v5732 = vld [vmem:[%s5359 + $0xe0] sm:$0xff]
        %v5733 = vld [vmem:[%s5359 + $0xf0] sm:$0xff]
        %v5734 = vld [vmem:[%s5359 + $0xf8] sm:$0xff]
        %v5735 = vld [vmem:[%s5359 + $0x108] sm:$0xff]
        %v5736 = vld [vmem:[%s5359 + $0x110] sm:$0xff]
        %v5737 = vld [vmem:[%s5359 + $0x120] sm:$0xff]
        %v5738 = vld [vmem:[%s5359 + $0x128] sm:$0xff]
        %v5739 = vld [vmem:[%s5359 + $0x138] sm:$0xff]
        %v5740 = vld [vmem:[%s5359 + $0x140] sm:$0xff]
        %v5741 = vld [vmem:[%s5359 + $0x150] sm:$0xff]
        %v5742 = vld [vmem:[%s5359 + $0x158] sm:$0xff]
        %v5743 = vld [vmem:[%s5359 + $0x168] sm:$0xff]
        %v5744 = vld [vmem:[%s5359 + $0x170] sm:$0xff]
        %v5745 = vld [vmem:[%s5359 + $0x1] sm:$0xff]
        %v5746 = vld [vmem:[%s5359 + $0x9] sm:$0xff]
        %v5747 = vld [vmem:[%s5359 + $0x19] sm:$0xff]
        %v5748 = vld [vmem:[%s5359 + $0x21] sm:$0xff]
        %v5749 = vld [vmem:[%s5359 + $0x31] sm:$0xff]
        %v5750 = vld [vmem:[%s5359 + $0x39] sm:$0xff]
        %v5751 = vld [vmem:[%s5359 + $0x49] sm:$0xff]
        %v5752 = vld [vmem:[%s5359 + $0x51] sm:$0xff]
        %v5753 = vld [vmem:[%s5359 + $0x61] sm:$0xff]
        %v5754 = vld [vmem:[%s5359 + $0x69] sm:$0xff]
        %v5755 = vld [vmem:[%s5359 + $0x79] sm:$0xff]
        %v5756 = vld [vmem:[%s5359 + $0x81] sm:$0xff]
        %v5757 = vld [vmem:[%s5359 + $0x91] sm:$0xff]
        %v5758 = vld [vmem:[%s5359 + $0x99] sm:$0xff]
        %v5759 = vld [vmem:[%s5359 + $0xa9] sm:$0xff]
        %v5760 = vld [vmem:[%s5359 + $0xb1] sm:$0xff]
        %v5761 = vld [vmem:[%s5359 + $0xc1] sm:$0xff]
        %v5762 = vld [vmem:[%s5359 + $0xc9] sm:$0xff]
        %v5763 = vld [vmem:[%s5359 + $0xd9] sm:$0xff]
        %v5764 = vld [vmem:[%s5359 + $0xe1] sm:$0xff]
        %v5765 = vld [vmem:[%s5359 + $0xf1] sm:$0xff]
        %v5766 = vld [vmem:[%s5359 + $0xf9] sm:$0xff]
        %v5767 = vld [vmem:[%s5359 + $0x109] sm:$0xff]
        %v5768 = vld [vmem:[%s5359 + $0x111] sm:$0xff]
        %v5769 = vld [vmem:[%s5359 + $0x121] sm:$0xff]
        %v5770 = vld [vmem:[%s5359 + $0x129] sm:$0xff]
        %v5771 = vld [vmem:[%s5359 + $0x139] sm:$0xff]
        %v5772 = vld [vmem:[%s5359 + $0x141] sm:$0xff]
        %v5773 = vld [vmem:[%s5359 + $0x151] sm:$0xff]
        %v5774 = vld [vmem:[%s5359 + $0x159] sm:$0xff]
        %v5775 = vld [vmem:[%s5359 + $0x169] sm:$0xff]
        %v5776 = vld [vmem:[%s5359 + $0x171] sm:$0xff]
        %v5777 = vld [vmem:[%s5359 + $0x2] sm:$0xff]
        %v5778 = vld [vmem:[%s5359 + $0xa] sm:$0xff]
        %v5779 = vld [vmem:[%s5359 + $0x1a] sm:$0xff]
        %v5780 = vld [vmem:[%s5359 + $0x22] sm:$0xff]
        %v5781 = vld [vmem:[%s5359 + $0x32] sm:$0xff]
        %v5782 = vld [vmem:[%s5359 + $0x3a] sm:$0xff]
        %v5783 = vld [vmem:[%s5359 + $0x4a] sm:$0xff]
        %v5784 = vld [vmem:[%s5359 + $0x52] sm:$0xff]
        %v5785 = vld [vmem:[%s5359 + $0x62] sm:$0xff]
        %v5786 = vld [vmem:[%s5359 + $0x6a] sm:$0xff]
        %v5787 = vld [vmem:[%s5359 + $0x7a] sm:$0xff]
        %v5788 = vld [vmem:[%s5359 + $0x82] sm:$0xff]
        %v5789 = vld [vmem:[%s5359 + $0x92] sm:$0xff]
        %v5790 = vld [vmem:[%s5359 + $0x9a] sm:$0xff]
        %v5791 = vld [vmem:[%s5359 + $0xaa] sm:$0xff]
        %v5792 = vld [vmem:[%s5359 + $0xb2] sm:$0xff]
        %v5793 = vld [vmem:[%s5359 + $0xc2] sm:$0xff]
        %v5794 = vld [vmem:[%s5359 + $0xca] sm:$0xff]
        %v5795 = vld [vmem:[%s5359 + $0xda] sm:$0xff]
        %v5796 = vld [vmem:[%s5359 + $0xe2] sm:$0xff]
        %v5797 = vld [vmem:[%s5359 + $0xf2] sm:$0xff]
        %v5798 = vld [vmem:[%s5359 + $0xfa] sm:$0xff]
        %v5799 = vld [vmem:[%s5359 + $0x10a] sm:$0xff]
        %v5800 = vld [vmem:[%s5359 + $0x112] sm:$0xff]
        %v5801 = vld [vmem:[%s5359 + $0x122] sm:$0xff]
        %v5802 = vld [vmem:[%s5359 + $0x12a] sm:$0xff]
        %v5803 = vld [vmem:[%s5359 + $0x13a] sm:$0xff]
        %v5804 = vld [vmem:[%s5359 + $0x142] sm:$0xff]
        %v5805 = vld [vmem:[%s5359 + $0x152] sm:$0xff]
        %v5806 = vld [vmem:[%s5359 + $0x15a] sm:$0xff]
        %v5807 = vld [vmem:[%s5359 + $0x16a] sm:$0xff]
        %v5808 = vld [vmem:[%s5359 + $0x172] sm:$0xff]
        %v5809 = vld [vmem:[%s5359 + $0x3] sm:$0xff]
        %v5810 = vld [vmem:[%s5359 + $0xb] sm:$0xff]
        %v5811 = vld [vmem:[%s5359 + $0x1b] sm:$0xff]
        %v5812 = vld [vmem:[%s5359 + $0x23] sm:$0xff]
        %v5813 = vld [vmem:[%s5359 + $0x33] sm:$0xff]
        %v5814 = vld [vmem:[%s5359 + $0x3b] sm:$0xff]
        %v5815 = vld [vmem:[%s5359 + $0x4b] sm:$0xff]
        %v5816 = vld [vmem:[%s5359 + $0x53] sm:$0xff]
        %v5817 = vld [vmem:[%s5359 + $0x63] sm:$0xff]
        %v5818 = vld [vmem:[%s5359 + $0x6b] sm:$0xff]
        %v5819 = vld [vmem:[%s5359 + $0x7b] sm:$0xff]
        %v5820 = vld [vmem:[%s5359 + $0x83] sm:$0xff]
        %v5821 = vld [vmem:[%s5359 + $0x93] sm:$0xff]
        %v5822 = vld [vmem:[%s5359 + $0x9b] sm:$0xff]
        %v5823 = vld [vmem:[%s5359 + $0xab] sm:$0xff]
        %v5824 = vld [vmem:[%s5359 + $0xb3] sm:$0xff]
        %v5825 = vld [vmem:[%s5359 + $0xc3] sm:$0xff]
        %v5826 = vld [vmem:[%s5359 + $0xcb] sm:$0xff]
        %v5827 = vld [vmem:[%s5359 + $0xdb] sm:$0xff]
        %v5828 = vld [vmem:[%s5359 + $0xe3] sm:$0xff]
        %v5829 = vld [vmem:[%s5359 + $0xf3] sm:$0xff]
        %v5830 = vld [vmem:[%s5359 + $0xfb] sm:$0xff]
        %v5831 = vld [vmem:[%s5359 + $0x10b] sm:$0xff]
        %v5832 = vld [vmem:[%s5359 + $0x113] sm:$0xff]
        %v5833 = vld [vmem:[%s5359 + $0x123] sm:$0xff]
        %v5834 = vld [vmem:[%s5359 + $0x12b] sm:$0xff]
        %v5835 = vld [vmem:[%s5359 + $0x13b] sm:$0xff]
        %v5836 = vld [vmem:[%s5359 + $0x143] sm:$0xff]
        %v5837 = vld [vmem:[%s5359 + $0x153] sm:$0xff]
        %v5838 = vld [vmem:[%s5359 + $0x15b] sm:$0xff]
        %v5839 = vld [vmem:[%s5359 + $0x16b] sm:$0xff]
        %v5840 = vld [vmem:[%s5359 + $0x173] sm:$0xff]
        %v5841 = vld [vmem:[%s5359 + $0x4] sm:$0xff]
        %v5842 = vld [vmem:[%s5359 + $0xc] sm:$0xff]
        %v5843 = vld [vmem:[%s5359 + $0x1c] sm:$0xff]
        %v5844 = vld [vmem:[%s5359 + $0x24] sm:$0xff]
        %v5845 = vld [vmem:[%s5359 + $0x34] sm:$0xff]
        %v5846 = vld [vmem:[%s5359 + $0x3c] sm:$0xff]
        %v5847 = vld [vmem:[%s5359 + $0x4c] sm:$0xff]
        %v5848 = vld [vmem:[%s5359 + $0x54] sm:$0xff]
        %v5849 = vld [vmem:[%s5359 + $0x64] sm:$0xff]
        %v5850 = vld [vmem:[%s5359 + $0x6c] sm:$0xff]
        %v5851 = vld [vmem:[%s5359 + $0x7c] sm:$0xff]
        %v5852 = vld [vmem:[%s5359 + $0x84] sm:$0xff]
        %v5853 = vld [vmem:[%s5359 + $0x94] sm:$0xff]
        %v5854 = vld [vmem:[%s5359 + $0x9c] sm:$0xff]
        %v5855 = vld [vmem:[%s5359 + $0xac] sm:$0xff]
        %v5856 = vld [vmem:[%s5359 + $0xb4] sm:$0xff]
        %v5857 = vld [vmem:[%s5359 + $0xc4] sm:$0xff]
        %v5858 = vld [vmem:[%s5359 + $0xcc] sm:$0xff]
        %v5859 = vld [vmem:[%s5359 + $0xdc] sm:$0xff]
        %v5860 = vld [vmem:[%s5359 + $0xe4] sm:$0xff]
        %v5861 = vld [vmem:[%s5359 + $0xf4] sm:$0xff]
        %v5862 = vld [vmem:[%s5359 + $0xfc] sm:$0xff]
        %v5863 = vld [vmem:[%s5359 + $0x10c] sm:$0xff]
        %v5864 = vld [vmem:[%s5359 + $0x114] sm:$0xff]
        %v5865 = vld [vmem:[%s5359 + $0x124] sm:$0xff]
        %v5866 = vld [vmem:[%s5359 + $0x12c] sm:$0xff]
        %v5867 = vld [vmem:[%s5359 + $0x13c] sm:$0xff]
        %v5868 = vld [vmem:[%s5359 + $0x144] sm:$0xff]
        %v5869 = vld [vmem:[%s5359 + $0x154] sm:$0xff]
        %v5870 = vld [vmem:[%s5359 + $0x15c] sm:$0xff]
        %v5871 = vld [vmem:[%s5359 + $0x16c] sm:$0xff]
        %v5872 = vld [vmem:[%s5359 + $0x174] sm:$0xff]
        %s5873 = scalar_lea.vmem [#allocation3], 72
        %v5874 = vld [vmem:[%s5873] sm:$0xff]
        %v5875 = vld [vmem:[%s5873 + $0x8] sm:$0xff]
        %v5876 = vld [vmem:[%s5873 + $0x18] sm:$0xff]
        %v5877 = vld [vmem:[%s5873 + $0x20] sm:$0xff]
        %v5878 = vld [vmem:[%s5873 + $0x30] sm:$0xff]
        %v5879 = vld [vmem:[%s5873 + $0x38] sm:$0xff]
        %v5880 = vld [vmem:[%s5873 + $0x48] sm:$0xff]
        %v5881 = vld [vmem:[%s5873 + $0x50] sm:$0xff]
        %v5882 = vld [vmem:[%s5873 + $0x60] sm:$0xff]
        %v5883 = vld [vmem:[%s5873 + $0x68] sm:$0xff]
        %v5884 = vld [vmem:[%s5873 + $0x78] sm:$0xff]
        %v5885 = vld [vmem:[%s5873 + $0x80] sm:$0xff]
        %v5886 = vld [vmem:[%s5873 + $0x90] sm:$0xff]
        %v5887 = vld [vmem:[%s5873 + $0x98] sm:$0xff]
        %v5888 = vld [vmem:[%s5873 + $0xa8] sm:$0xff]
        %v5889 = vld [vmem:[%s5873 + $0xb0] sm:$0xff]
        %v5890 = vld [vmem:[%s5873 + $0xc0] sm:$0xff]
        %v5891 = vld [vmem:[%s5873 + $0xc8] sm:$0xff]
        %v5892 = vld [vmem:[%s5873 + $0xd8] sm:$0xff]
        %v5893 = vld [vmem:[%s5873 + $0xe0] sm:$0xff]
        %v5894 = vld [vmem:[%s5873 + $0xf0] sm:$0xff]
        %v5895 = vld [vmem:[%s5873 + $0xf8] sm:$0xff]
        %v5896 = vld [vmem:[%s5873 + $0x108] sm:$0xff]
        %v5897 = vld [vmem:[%s5873 + $0x110] sm:$0xff]
        %v5898 = vld [vmem:[%s5873 + $0x120] sm:$0xff]
        %v5899 = vld [vmem:[%s5873 + $0x128] sm:$0xff]
        %v5900 = vld [vmem:[%s5873 + $0x138] sm:$0xff]
        %v5901 = vld [vmem:[%s5873 + $0x140] sm:$0xff]
        %v5902 = vld [vmem:[%s5873 + $0x150] sm:$0xff]
        %v5903 = vld [vmem:[%s5873 + $0x158] sm:$0xff]
        %v5904 = vld [vmem:[%s5873 + $0x168] sm:$0xff]
        %v5905 = vld [vmem:[%s5873 + $0x170] sm:$0xff]
        %v5906 = vld [vmem:[%s5873 + $0x1] sm:$0xff]
        %v5907 = vld [vmem:[%s5873 + $0x9] sm:$0xff]
        %v5908 = vld [vmem:[%s5873 + $0x19] sm:$0xff]
        %v5909 = vld [vmem:[%s5873 + $0x21] sm:$0xff]
        %v5910 = vld [vmem:[%s5873 + $0x31] sm:$0xff]
        %v5911 = vld [vmem:[%s5873 + $0x39] sm:$0xff]
        %v5912 = vld [vmem:[%s5873 + $0x49] sm:$0xff]
        %v5913 = vld [vmem:[%s5873 + $0x51] sm:$0xff]
        %v5914 = vld [vmem:[%s5873 + $0x61] sm:$0xff]
        %v5915 = vld [vmem:[%s5873 + $0x69] sm:$0xff]
        %v5916 = vld [vmem:[%s5873 + $0x79] sm:$0xff]
        %v5917 = vld [vmem:[%s5873 + $0x81] sm:$0xff]
        %v5918 = vld [vmem:[%s5873 + $0x91] sm:$0xff]
        %v5919 = vld [vmem:[%s5873 + $0x99] sm:$0xff]
        %v5920 = vld [vmem:[%s5873 + $0xa9] sm:$0xff]
        %v5921 = vld [vmem:[%s5873 + $0xb1] sm:$0xff]
        %v5922 = vld [vmem:[%s5873 + $0xc1] sm:$0xff]
        %v5923 = vld [vmem:[%s5873 + $0xc9] sm:$0xff]
        %v5924 = vld [vmem:[%s5873 + $0xd9] sm:$0xff]
        %v5925 = vld [vmem:[%s5873 + $0xe1] sm:$0xff]
        %v5926 = vld [vmem:[%s5873 + $0xf1] sm:$0xff]
        %v5927 = vld [vmem:[%s5873 + $0xf9] sm:$0xff]
        %v5928 = vld [vmem:[%s5873 + $0x109] sm:$0xff]
        %v5929 = vld [vmem:[%s5873 + $0x111] sm:$0xff]
        %v5930 = vld [vmem:[%s5873 + $0x121] sm:$0xff]
        %v5931 = vld [vmem:[%s5873 + $0x129] sm:$0xff]
        %v5932 = vld [vmem:[%s5873 + $0x139] sm:$0xff]
        %v5933 = vld [vmem:[%s5873 + $0x141] sm:$0xff]
        %v5934 = vld [vmem:[%s5873 + $0x151] sm:$0xff]
        %v5935 = vld [vmem:[%s5873 + $0x159] sm:$0xff]
        %v5936 = vld [vmem:[%s5873 + $0x169] sm:$0xff]
        %v5937 = vld [vmem:[%s5873 + $0x171] sm:$0xff]
        %v5938 = vld [vmem:[%s5873 + $0x2] sm:$0xff]
        %v5939 = vld [vmem:[%s5873 + $0xa] sm:$0xff]
        %v5940 = vld [vmem:[%s5873 + $0x1a] sm:$0xff]
        %v5941 = vld [vmem:[%s5873 + $0x22] sm:$0xff]
        %v5942 = vld [vmem:[%s5873 + $0x32] sm:$0xff]
        %v5943 = vld [vmem:[%s5873 + $0x3a] sm:$0xff]
        %v5944 = vld [vmem:[%s5873 + $0x4a] sm:$0xff]
        %v5945 = vld [vmem:[%s5873 + $0x52] sm:$0xff]
        %v5946 = vld [vmem:[%s5873 + $0x62] sm:$0xff]
        %v5947 = vld [vmem:[%s5873 + $0x6a] sm:$0xff]
        %v5948 = vld [vmem:[%s5873 + $0x7a] sm:$0xff]
        %v5949 = vld [vmem:[%s5873 + $0x82] sm:$0xff]
        %v5950 = vld [vmem:[%s5873 + $0x92] sm:$0xff]
        %v5951 = vld [vmem:[%s5873 + $0x9a] sm:$0xff]
        %v5952 = vld [vmem:[%s5873 + $0xaa] sm:$0xff]
        %v5953 = vld [vmem:[%s5873 + $0xb2] sm:$0xff]
        %v5954 = vld [vmem:[%s5873 + $0xc2] sm:$0xff]
        %v5955 = vld [vmem:[%s5873 + $0xca] sm:$0xff]
        %v5956 = vld [vmem:[%s5873 + $0xda] sm:$0xff]
        %v5957 = vld [vmem:[%s5873 + $0xe2] sm:$0xff]
        %v5958 = vld [vmem:[%s5873 + $0xf2] sm:$0xff]
        %v5959 = vld [vmem:[%s5873 + $0xfa] sm:$0xff]
        %v5960 = vld [vmem:[%s5873 + $0x10a] sm:$0xff]
        %v5961 = vld [vmem:[%s5873 + $0x112] sm:$0xff]
        %v5962 = vld [vmem:[%s5873 + $0x122] sm:$0xff]
        %v5963 = vld [vmem:[%s5873 + $0x12a] sm:$0xff]
        %v5964 = vld [vmem:[%s5873 + $0x13a] sm:$0xff]
        %v5965 = vld [vmem:[%s5873 + $0x142] sm:$0xff]
        %v5966 = vld [vmem:[%s5873 + $0x152] sm:$0xff]
        %v5967 = vld [vmem:[%s5873 + $0x15a] sm:$0xff]
        %v5968 = vld [vmem:[%s5873 + $0x16a] sm:$0xff]
        %v5969 = vld [vmem:[%s5873 + $0x172] sm:$0xff]
        %v5970 = vld [vmem:[%s5873 + $0x3] sm:$0xff]
        %v5971 = vld [vmem:[%s5873 + $0xb] sm:$0xff]
        %v5972 = vld [vmem:[%s5873 + $0x1b] sm:$0xff]
        %v5973 = vld [vmem:[%s5873 + $0x23] sm:$0xff]
        %v5974 = vld [vmem:[%s5873 + $0x33] sm:$0xff]
        %v5975 = vld [vmem:[%s5873 + $0x3b] sm:$0xff]
        %v5976 = vld [vmem:[%s5873 + $0x4b] sm:$0xff]
        %v5977 = vld [vmem:[%s5873 + $0x53] sm:$0xff]
        %v5978 = vld [vmem:[%s5873 + $0x63] sm:$0xff]
        %v5979 = vld [vmem:[%s5873 + $0x6b] sm:$0xff]
        %v5980 = vld [vmem:[%s5873 + $0x7b] sm:$0xff]
        %v5981 = vld [vmem:[%s5873 + $0x83] sm:$0xff]
        %v5982 = vld [vmem:[%s5873 + $0x93] sm:$0xff]
        %v5983 = vld [vmem:[%s5873 + $0x9b] sm:$0xff]
        %v5984 = vld [vmem:[%s5873 + $0xab] sm:$0xff]
        %v5985 = vld [vmem:[%s5873 + $0xb3] sm:$0xff]
        %v5986 = vld [vmem:[%s5873 + $0xc3] sm:$0xff]
        %v5987 = vld [vmem:[%s5873 + $0xcb] sm:$0xff]
        %v5988 = vld [vmem:[%s5873 + $0xdb] sm:$0xff]
        %v5989 = vld [vmem:[%s5873 + $0xe3] sm:$0xff]
        %v5990 = vld [vmem:[%s5873 + $0xf3] sm:$0xff]
        %v5991 = vld [vmem:[%s5873 + $0xfb] sm:$0xff]
        %v5992 = vld [vmem:[%s5873 + $0x10b] sm:$0xff]
        %v5993 = vld [vmem:[%s5873 + $0x113] sm:$0xff]
        %v5994 = vld [vmem:[%s5873 + $0x123] sm:$0xff]
        %v5995 = vld [vmem:[%s5873 + $0x12b] sm:$0xff]
        %v5996 = vld [vmem:[%s5873 + $0x13b] sm:$0xff]
        %v5997 = vld [vmem:[%s5873 + $0x143] sm:$0xff]
        %v5998 = vld [vmem:[%s5873 + $0x153] sm:$0xff]
        %v5999 = vld [vmem:[%s5873 + $0x15b] sm:$0xff]
        %v6000 = vld [vmem:[%s5873 + $0x16b] sm:$0xff]
        %v6001 = vld [vmem:[%s5873 + $0x173] sm:$0xff]
        %v6002 = vld [vmem:[%s5873 + $0x4] sm:$0xff]
        %v6003 = vld [vmem:[%s5873 + $0xc] sm:$0xff]
        %v6004 = vld [vmem:[%s5873 + $0x1c] sm:$0xff]
        %v6005 = vld [vmem:[%s5873 + $0x24] sm:$0xff]
        %v6006 = vld [vmem:[%s5873 + $0x34] sm:$0xff]
        %v6007 = vld [vmem:[%s5873 + $0x3c] sm:$0xff]
        %v6008 = vld [vmem:[%s5873 + $0x4c] sm:$0xff]
        %v6009 = vld [vmem:[%s5873 + $0x54] sm:$0xff]
        %v6010 = vld [vmem:[%s5873 + $0x64] sm:$0xff]
        %v6011 = vld [vmem:[%s5873 + $0x6c] sm:$0xff]
        %v6012 = vld [vmem:[%s5873 + $0x7c] sm:$0xff]
        %v6013 = vld [vmem:[%s5873 + $0x84] sm:$0xff]
        %v6014 = vld [vmem:[%s5873 + $0x94] sm:$0xff]
        %v6015 = vld [vmem:[%s5873 + $0x9c] sm:$0xff]
        %v6016 = vld [vmem:[%s5873 + $0xac] sm:$0xff]
        %v6017 = vld [vmem:[%s5873 + $0xb4] sm:$0xff]
        %v6018 = vld [vmem:[%s5873 + $0xc4] sm:$0xff]
        %v6019 = vld [vmem:[%s5873 + $0xcc] sm:$0xff]
        %v6020 = vld [vmem:[%s5873 + $0xdc] sm:$0xff]
        %v6021 = vld [vmem:[%s5873 + $0xe4] sm:$0xff]
        %v6022 = vld [vmem:[%s5873 + $0xf4] sm:$0xff]
        %v6023 = vld [vmem:[%s5873 + $0xfc] sm:$0xff]
        %v6024 = vld [vmem:[%s5873 + $0x10c] sm:$0xff]
        %v6025 = vld [vmem:[%s5873 + $0x114] sm:$0xff]
        %v6026 = vld [vmem:[%s5873 + $0x124] sm:$0xff]
        %v6027 = vld [vmem:[%s5873 + $0x12c] sm:$0xff]
        %v6028 = vld [vmem:[%s5873 + $0x13c] sm:$0xff]
        %v6029 = vld [vmem:[%s5873 + $0x144] sm:$0xff]
        %v6030 = vld [vmem:[%s5873 + $0x154] sm:$0xff]
        %v6031 = vld [vmem:[%s5873 + $0x15c] sm:$0xff]
        %v6032 = vld [vmem:[%s5873 + $0x16c] sm:$0xff]
        %v6033 = vld [vmem:[%s5873 + $0x174] sm:$0xff]
        %s6034 = scalar_lea.vmem [#allocation3], 96
        %v6035 = vld [vmem:[%s6034] sm:$0xff]
        %v6036 = vld [vmem:[%s6034 + $0x8] sm:$0xff]
        %v6037 = vld [vmem:[%s6034 + $0x18] sm:$0xff]
        %v6038 = vld [vmem:[%s6034 + $0x20] sm:$0xff]
        %v6039 = vld [vmem:[%s6034 + $0x30] sm:$0xff]
        %v6040 = vld [vmem:[%s6034 + $0x38] sm:$0xff]
        %v6041 = vld [vmem:[%s6034 + $0x48] sm:$0xff]
        %v6042 = vld [vmem:[%s6034 + $0x50] sm:$0xff]
        %v6043 = vld [vmem:[%s6034 + $0x60] sm:$0xff]
        %v6044 = vld [vmem:[%s6034 + $0x68] sm:$0xff]
        %v6045 = vld [vmem:[%s6034 + $0x78] sm:$0xff]
        %v6046 = vld [vmem:[%s6034 + $0x80] sm:$0xff]
        %v6047 = vld [vmem:[%s6034 + $0x90] sm:$0xff]
        %v6048 = vld [vmem:[%s6034 + $0x98] sm:$0xff]
        %v6049 = vld [vmem:[%s6034 + $0xa8] sm:$0xff]
        %v6050 = vld [vmem:[%s6034 + $0xb0] sm:$0xff]
        %v6051 = vld [vmem:[%s6034 + $0xc0] sm:$0xff]
        %v6052 = vld [vmem:[%s6034 + $0xc8] sm:$0xff]
        %v6053 = vld [vmem:[%s6034 + $0xd8] sm:$0xff]
        %v6054 = vld [vmem:[%s6034 + $0xe0] sm:$0xff]
        %v6055 = vld [vmem:[%s6034 + $0xf0] sm:$0xff]
        %v6056 = vld [vmem:[%s6034 + $0xf8] sm:$0xff]
        %v6057 = vld [vmem:[%s6034 + $0x108] sm:$0xff]
        %v6058 = vld [vmem:[%s6034 + $0x110] sm:$0xff]
        %v6059 = vld [vmem:[%s6034 + $0x120] sm:$0xff]
        %v6060 = vld [vmem:[%s6034 + $0x128] sm:$0xff]
        %v6061 = vld [vmem:[%s6034 + $0x138] sm:$0xff]
        %v6062 = vld [vmem:[%s6034 + $0x140] sm:$0xff]
        %v6063 = vld [vmem:[%s6034 + $0x150] sm:$0xff]
        %v6064 = vld [vmem:[%s6034 + $0x158] sm:$0xff]
        %v6065 = vld [vmem:[%s6034 + $0x168] sm:$0xff]
        %v6066 = vld [vmem:[%s6034 + $0x170] sm:$0xff]
        %v6067 = vld [vmem:[%s6034 + $0x1] sm:$0xff]
        %v6068 = vld [vmem:[%s6034 + $0x9] sm:$0xff]
        %v6069 = vld [vmem:[%s6034 + $0x19] sm:$0xff]
        %v6070 = vld [vmem:[%s6034 + $0x21] sm:$0xff]
        %v6071 = vld [vmem:[%s6034 + $0x31] sm:$0xff]
        %v6072 = vld [vmem:[%s6034 + $0x39] sm:$0xff]
        %v6073 = vld [vmem:[%s6034 + $0x49] sm:$0xff]
        %v6074 = vld [vmem:[%s6034 + $0x51] sm:$0xff]
        %v6075 = vld [vmem:[%s6034 + $0x61] sm:$0xff]
        %v6076 = vld [vmem:[%s6034 + $0x69] sm:$0xff]
        %v6077 = vld [vmem:[%s6034 + $0x79] sm:$0xff]
        %v6078 = vld [vmem:[%s6034 + $0x81] sm:$0xff]
        %v6079 = vld [vmem:[%s6034 + $0x91] sm:$0xff]
        %v6080 = vld [vmem:[%s6034 + $0x99] sm:$0xff]
        %v6081 = vld [vmem:[%s6034 + $0xa9] sm:$0xff]
        %v6082 = vld [vmem:[%s6034 + $0xb1] sm:$0xff]
        %v6083 = vld [vmem:[%s6034 + $0xc1] sm:$0xff]
        %v6084 = vld [vmem:[%s6034 + $0xc9] sm:$0xff]
        %v6085 = vld [vmem:[%s6034 + $0xd9] sm:$0xff]
        %v6086 = vld [vmem:[%s6034 + $0xe1] sm:$0xff]
        %v6087 = vld [vmem:[%s6034 + $0xf1] sm:$0xff]
        %v6088 = vld [vmem:[%s6034 + $0xf9] sm:$0xff]
        %v6089 = vld [vmem:[%s6034 + $0x109] sm:$0xff]
        %v6090 = vld [vmem:[%s6034 + $0x111] sm:$0xff]
        %v6091 = vld [vmem:[%s6034 + $0x121] sm:$0xff]
        %v6092 = vld [vmem:[%s6034 + $0x129] sm:$0xff]
        %v6093 = vld [vmem:[%s6034 + $0x139] sm:$0xff]
        %v6094 = vld [vmem:[%s6034 + $0x141] sm:$0xff]
        %v6095 = vld [vmem:[%s6034 + $0x151] sm:$0xff]
        %v6096 = vld [vmem:[%s6034 + $0x159] sm:$0xff]
        %v6097 = vld [vmem:[%s6034 + $0x169] sm:$0xff]
        %v6098 = vld [vmem:[%s6034 + $0x171] sm:$0xff]
        %v6099 = vld [vmem:[%s6034 + $0x2] sm:$0xff]
        %v6100 = vld [vmem:[%s6034 + $0xa] sm:$0xff]
        %v6101 = vld [vmem:[%s6034 + $0x1a] sm:$0xff]
        %v6102 = vld [vmem:[%s6034 + $0x22] sm:$0xff]
        %v6103 = vld [vmem:[%s6034 + $0x32] sm:$0xff]
        %v6104 = vld [vmem:[%s6034 + $0x3a] sm:$0xff]
        %v6105 = vld [vmem:[%s6034 + $0x4a] sm:$0xff]
        %v6106 = vld [vmem:[%s6034 + $0x52] sm:$0xff]
        %v6107 = vld [vmem:[%s6034 + $0x62] sm:$0xff]
        %v6108 = vld [vmem:[%s6034 + $0x6a] sm:$0xff]
        %v6109 = vld [vmem:[%s6034 + $0x7a] sm:$0xff]
        %v6110 = vld [vmem:[%s6034 + $0x82] sm:$0xff]
        %v6111 = vld [vmem:[%s6034 + $0x92] sm:$0xff]
        %v6112 = vld [vmem:[%s6034 + $0x9a] sm:$0xff]
        %v6113 = vld [vmem:[%s6034 + $0xaa] sm:$0xff]
        %v6114 = vld [vmem:[%s6034 + $0xb2] sm:$0xff]
        %v6115 = vld [vmem:[%s6034 + $0xc2] sm:$0xff]
        %v6116 = vld [vmem:[%s6034 + $0xca] sm:$0xff]
        %v6117 = vld [vmem:[%s6034 + $0xda] sm:$0xff]
        %v6118 = vld [vmem:[%s6034 + $0xe2] sm:$0xff]
        %v6119 = vld [vmem:[%s6034 + $0xf2] sm:$0xff]
        %v6120 = vld [vmem:[%s6034 + $0xfa] sm:$0xff]
        %v6121 = vld [vmem:[%s6034 + $0x10a] sm:$0xff]
        %v6122 = vld [vmem:[%s6034 + $0x112] sm:$0xff]
        %v6123 = vld [vmem:[%s6034 + $0x122] sm:$0xff]
        %v6124 = vld [vmem:[%s6034 + $0x12a] sm:$0xff]
        %v6125 = vld [vmem:[%s6034 + $0x13a] sm:$0xff]
        %v6126 = vld [vmem:[%s6034 + $0x142] sm:$0xff]
        %v6127 = vld [vmem:[%s6034 + $0x152] sm:$0xff]
        %v6128 = vld [vmem:[%s6034 + $0x15a] sm:$0xff]
        %v6129 = vld [vmem:[%s6034 + $0x16a] sm:$0xff]
        %v6130 = vld [vmem:[%s6034 + $0x172] sm:$0xff]
        %v6131 = vld [vmem:[%s6034 + $0x3] sm:$0xff]
        %v6132 = vld [vmem:[%s6034 + $0xb] sm:$0xff]
        %v6133 = vld [vmem:[%s6034 + $0x1b] sm:$0xff]
        %v6134 = vld [vmem:[%s6034 + $0x23] sm:$0xff]
        %v6135 = vld [vmem:[%s6034 + $0x33] sm:$0xff]
        %v6136 = vld [vmem:[%s6034 + $0x3b] sm:$0xff]
        %v6137 = vld [vmem:[%s6034 + $0x4b] sm:$0xff]
        %v6138 = vld [vmem:[%s6034 + $0x53] sm:$0xff]
        %v6139 = vld [vmem:[%s6034 + $0x63] sm:$0xff]
        %v6140 = vld [vmem:[%s6034 + $0x6b] sm:$0xff]
        %v6141 = vld [vmem:[%s6034 + $0x7b] sm:$0xff]
        %v6142 = vld [vmem:[%s6034 + $0x83] sm:$0xff]
        %v6143 = vld [vmem:[%s6034 + $0x93] sm:$0xff]
        %v6144 = vld [vmem:[%s6034 + $0x9b] sm:$0xff]
        %v6145 = vld [vmem:[%s6034 + $0xab] sm:$0xff]
        %v6146 = vld [vmem:[%s6034 + $0xb3] sm:$0xff]
        %v6147 = vld [vmem:[%s6034 + $0xc3] sm:$0xff]
        %v6148 = vld [vmem:[%s6034 + $0xcb] sm:$0xff]
        %v6149 = vld [vmem:[%s6034 + $0xdb] sm:$0xff]
        %v6150 = vld [vmem:[%s6034 + $0xe3] sm:$0xff]
        %v6151 = vld [vmem:[%s6034 + $0xf3] sm:$0xff]
        %v6152 = vld [vmem:[%s6034 + $0xfb] sm:$0xff]
        %v6153 = vld [vmem:[%s6034 + $0x10b] sm:$0xff]
        %v6154 = vld [vmem:[%s6034 + $0x113] sm:$0xff]
        %v6155 = vld [vmem:[%s6034 + $0x123] sm:$0xff]
        %v6156 = vld [vmem:[%s6034 + $0x12b] sm:$0xff]
        %v6157 = vld [vmem:[%s6034 + $0x13b] sm:$0xff]
        %v6158 = vld [vmem:[%s6034 + $0x143] sm:$0xff]
        %v6159 = vld [vmem:[%s6034 + $0x153] sm:$0xff]
        %v6160 = vld [vmem:[%s6034 + $0x15b] sm:$0xff]
        %v6161 = vld [vmem:[%s6034 + $0x16b] sm:$0xff]
        %v6162 = vld [vmem:[%s6034 + $0x173] sm:$0xff]
        %v6163 = vld [vmem:[%s6034 + $0x4] sm:$0xff]
        %v6164 = vld [vmem:[%s6034 + $0xc] sm:$0xff]
        %v6165 = vld [vmem:[%s6034 + $0x1c] sm:$0xff]
        %v6166 = vld [vmem:[%s6034 + $0x24] sm:$0xff]
        %v6167 = vld [vmem:[%s6034 + $0x34] sm:$0xff]
        %v6168 = vld [vmem:[%s6034 + $0x3c] sm:$0xff]
        %v6169 = vld [vmem:[%s6034 + $0x4c] sm:$0xff]
        %v6170 = vld [vmem:[%s6034 + $0x54] sm:$0xff]
        %v6171 = vld [vmem:[%s6034 + $0x64] sm:$0xff]
        %v6172 = vld [vmem:[%s6034 + $0x6c] sm:$0xff]
        %v6173 = vld [vmem:[%s6034 + $0x7c] sm:$0xff]
        %v6174 = vld [vmem:[%s6034 + $0x84] sm:$0xff]
        %v6175 = vld [vmem:[%s6034 + $0x94] sm:$0xff]
        %v6176 = vld [vmem:[%s6034 + $0x9c] sm:$0xff]
        %v6177 = vld [vmem:[%s6034 + $0xac] sm:$0xff]
        %v6178 = vld [vmem:[%s6034 + $0xb4] sm:$0xff]
        %v6179 = vld [vmem:[%s6034 + $0xc4] sm:$0xff]
        %v6180 = vld [vmem:[%s6034 + $0xcc] sm:$0xff]
        %v6181 = vld [vmem:[%s6034 + $0xdc] sm:$0xff]
        %v6182 = vld [vmem:[%s6034 + $0xe4] sm:$0xff]
        %v6183 = vld [vmem:[%s6034 + $0xf4] sm:$0xff]
        %v6184 = vld [vmem:[%s6034 + $0xfc] sm:$0xff]
        %v6185 = vld [vmem:[%s6034 + $0x10c] sm:$0xff]
        %v6186 = vld [vmem:[%s6034 + $0x114] sm:$0xff]
        %v6187 = vld [vmem:[%s6034 + $0x124] sm:$0xff]
        %v6188 = vld [vmem:[%s6034 + $0x12c] sm:$0xff]
        %v6189 = vld [vmem:[%s6034 + $0x13c] sm:$0xff]
        %v6190 = vld [vmem:[%s6034 + $0x144] sm:$0xff]
        %v6191 = vld [vmem:[%s6034 + $0x154] sm:$0xff]
        %v6192 = vld [vmem:[%s6034 + $0x15c] sm:$0xff]
        %v6193 = vld [vmem:[%s6034 + $0x16c] sm:$0xff]
        %v6194 = vld [vmem:[%s6034 + $0x174] sm:$0xff]
        %6227 = vrot.lane.b32.xlu0 %v5424, 20
        %v6228 = vpop.permute.xlu0 %6227
        %6229 = vrot.lane.b32.xlu0 %v5425, 20
        %v6230 = vpop.permute.xlu0 %6229
        %6231 = vrot.lane.b32.xlu0 %v5426, 20
        %v6232 = vpop.permute.xlu0 %6231
        %6233 = vrot.lane.b32.xlu0 %v5427, 20
        %v6234 = vpop.permute.xlu0 %6233
        %6235 = vrot.lane.b32.xlu0 %v5428, 20
        %v6236 = vpop.permute.xlu0 %6235
        %6237 = vrot.lane.b32.xlu0 %v5429, 20
        %v6238 = vpop.permute.xlu0 %6237
        %6239 = vrot.lane.b32.xlu0 %v5430, 20
        %v6240 = vpop.permute.xlu0 %6239
        %6241 = vrot.lane.b32.xlu0 %v5431, 20
        %v6242 = vpop.permute.xlu0 %6241
        %6243 = vrot.lane.b32.xlu0 %v5432, 20
        %v6244 = vpop.permute.xlu0 %6243
        %6245 = vrot.lane.b32.xlu0 %v5433, 20
        %v6246 = vpop.permute.xlu0 %6245
        %6247 = vrot.lane.b32.xlu0 %v5434, 20
        %v6248 = vpop.permute.xlu0 %6247
        %6249 = vrot.lane.b32.xlu0 %v5435, 20
        %v6250 = vpop.permute.xlu0 %6249
        %6251 = vrot.lane.b32.xlu0 %v5436, 20
        %v6252 = vpop.permute.xlu0 %6251
        %6253 = vrot.lane.b32.xlu0 %v5437, 20
        %v6254 = vpop.permute.xlu0 %6253
        %6255 = vrot.lane.b32.xlu0 %v5438, 20
        %v6256 = vpop.permute.xlu0 %6255
        %6257 = vrot.lane.b32.xlu0 %v5439, 20
        %v6258 = vpop.permute.xlu0 %6257
        %6259 = vrot.lane.b32.xlu0 %v5440, 20
        %v6260 = vpop.permute.xlu0 %6259
        %6261 = vrot.lane.b32.xlu0 %v5441, 20
        %v6262 = vpop.permute.xlu0 %6261
        %6263 = vrot.lane.b32.xlu0 %v5442, 20
        %v6264 = vpop.permute.xlu0 %6263
        %6265 = vrot.lane.b32.xlu0 %v5443, 20
        %v6266 = vpop.permute.xlu0 %6265
        %6267 = vrot.lane.b32.xlu0 %v5444, 20
        %v6268 = vpop.permute.xlu0 %6267
        %6269 = vrot.lane.b32.xlu0 %v5445, 20
        %v6270 = vpop.permute.xlu0 %6269
        %6271 = vrot.lane.b32.xlu0 %v5446, 20
        %v6272 = vpop.permute.xlu0 %6271
        %6273 = vrot.lane.b32.xlu0 %v5447, 20
        %v6274 = vpop.permute.xlu0 %6273
        %6275 = vrot.lane.b32.xlu0 %v5448, 20
        %v6276 = vpop.permute.xlu0 %6275
        %6277 = vrot.lane.b32.xlu0 %v5449, 20
        %v6278 = vpop.permute.xlu0 %6277
        %6279 = vrot.lane.b32.xlu0 %v5450, 20
        %v6280 = vpop.permute.xlu0 %6279
        %6281 = vrot.lane.b32.xlu0 %v5451, 20
        %v6282 = vpop.permute.xlu0 %6281
        %6283 = vrot.lane.b32.xlu0 %v5452, 20
        %v6284 = vpop.permute.xlu0 %6283
        %6285 = vrot.lane.b32.xlu0 %v5453, 20
        %v6286 = vpop.permute.xlu0 %6285
        %6287 = vrot.lane.b32.xlu0 %v5454, 20
        %v6288 = vpop.permute.xlu0 %6287
        %6289 = vrot.lane.b32.xlu0 %v5455, 20
        %v6290 = vpop.permute.xlu0 %6289
        %6355 = vrot.lane.b32.xlu0 %v5456, 40
        %v6356 = vpop.permute.xlu0 %6355
        %6357 = vrot.lane.b32.xlu0 %v5457, 40
        %v6358 = vpop.permute.xlu0 %6357
        %6359 = vrot.lane.b32.xlu0 %v5458, 40
        %v6360 = vpop.permute.xlu0 %6359
        %6361 = vrot.lane.b32.xlu0 %v5459, 40
        %v6362 = vpop.permute.xlu0 %6361
        %6363 = vrot.lane.b32.xlu0 %v5460, 40
        %v6364 = vpop.permute.xlu0 %6363
        %6365 = vrot.lane.b32.xlu0 %v5461, 40
        %v6366 = vpop.permute.xlu0 %6365
        %6367 = vrot.lane.b32.xlu0 %v5462, 40
        %v6368 = vpop.permute.xlu0 %6367
        %6369 = vrot.lane.b32.xlu0 %v5463, 40
        %v6370 = vpop.permute.xlu0 %6369
        %6371 = vrot.lane.b32.xlu0 %v5464, 40
        %v6372 = vpop.permute.xlu0 %6371
        %6373 = vrot.lane.b32.xlu0 %v5465, 40
        %v6374 = vpop.permute.xlu0 %6373
        %6375 = vrot.lane.b32.xlu0 %v5466, 40
        %v6376 = vpop.permute.xlu0 %6375
        %6377 = vrot.lane.b32.xlu0 %v5467, 40
        %v6378 = vpop.permute.xlu0 %6377
        %6379 = vrot.lane.b32.xlu0 %v5468, 40
        %v6380 = vpop.permute.xlu0 %6379
        %6381 = vrot.lane.b32.xlu0 %v5469, 40
        %v6382 = vpop.permute.xlu0 %6381
        %6383 = vrot.lane.b32.xlu0 %v5470, 40
        %v6384 = vpop.permute.xlu0 %6383
        %6385 = vrot.lane.b32.xlu0 %v5471, 40
        %v6386 = vpop.permute.xlu0 %6385
        %6387 = vrot.lane.b32.xlu0 %v5472, 40
        %v6388 = vpop.permute.xlu0 %6387
        %6389 = vrot.lane.b32.xlu0 %v5473, 40
        %v6390 = vpop.permute.xlu0 %6389
        %6391 = vrot.lane.b32.xlu0 %v5474, 40
        %v6392 = vpop.permute.xlu0 %6391
        %6393 = vrot.lane.b32.xlu0 %v5475, 40
        %v6394 = vpop.permute.xlu0 %6393
        %6395 = vrot.lane.b32.xlu0 %v5476, 40
        %v6396 = vpop.permute.xlu0 %6395
        %6397 = vrot.lane.b32.xlu0 %v5477, 40
        %v6398 = vpop.permute.xlu0 %6397
        %6399 = vrot.lane.b32.xlu0 %v5478, 40
        %v6400 = vpop.permute.xlu0 %6399
        %6401 = vrot.lane.b32.xlu0 %v5479, 40
        %v6402 = vpop.permute.xlu0 %6401
        %6403 = vrot.lane.b32.xlu0 %v5480, 40
        %v6404 = vpop.permute.xlu0 %6403
        %6405 = vrot.lane.b32.xlu0 %v5481, 40
        %v6406 = vpop.permute.xlu0 %6405
        %6407 = vrot.lane.b32.xlu0 %v5482, 40
        %v6408 = vpop.permute.xlu0 %6407
        %6409 = vrot.lane.b32.xlu0 %v5483, 40
        %v6410 = vpop.permute.xlu0 %6409
        %6411 = vrot.lane.b32.xlu0 %v5484, 40
        %v6412 = vpop.permute.xlu0 %6411
        %6413 = vrot.lane.b32.xlu0 %v5485, 40
        %v6414 = vpop.permute.xlu0 %6413
        %6415 = vrot.lane.b32.xlu0 %v5486, 40
        %v6416 = vpop.permute.xlu0 %6415
        %6417 = vrot.lane.b32.xlu0 %v5487, 40
        %v6418 = vpop.permute.xlu0 %6417
        %6483 = vrot.lane.b32.xlu0 %v5488, 60
        %v6484 = vpop.permute.xlu0 %6483
        %6485 = vrot.lane.b32.xlu0 %v5489, 60
        %v6486 = vpop.permute.xlu0 %6485
        %6487 = vrot.lane.b32.xlu0 %v5490, 60
        %v6488 = vpop.permute.xlu0 %6487
        %6489 = vrot.lane.b32.xlu0 %v5491, 60
        %v6490 = vpop.permute.xlu0 %6489
        %6491 = vrot.lane.b32.xlu0 %v5492, 60
        %v6492 = vpop.permute.xlu0 %6491
        %6493 = vrot.lane.b32.xlu0 %v5493, 60
        %v6494 = vpop.permute.xlu0 %6493
        %6495 = vrot.lane.b32.xlu0 %v5494, 60
        %v6496 = vpop.permute.xlu0 %6495
        %6497 = vrot.lane.b32.xlu0 %v5495, 60
        %v6498 = vpop.permute.xlu0 %6497
        %6499 = vrot.lane.b32.xlu0 %v5496, 60
        %v6500 = vpop.permute.xlu0 %6499
        %6501 = vrot.lane.b32.xlu0 %v5497, 60
        %v6502 = vpop.permute.xlu0 %6501
        %6503 = vrot.lane.b32.xlu0 %v5498, 60
        %v6504 = vpop.permute.xlu0 %6503
        %6505 = vrot.lane.b32.xlu0 %v5499, 60
        %v6506 = vpop.permute.xlu0 %6505
        %6507 = vrot.lane.b32.xlu0 %v5500, 60
        %v6508 = vpop.permute.xlu0 %6507
        %6509 = vrot.lane.b32.xlu0 %v5501, 60
        %v6510 = vpop.permute.xlu0 %6509
        %6511 = vrot.lane.b32.xlu0 %v5502, 60
        %v6512 = vpop.permute.xlu0 %6511
        %6513 = vrot.lane.b32.xlu0 %v5503, 60
        %v6514 = vpop.permute.xlu0 %6513
        %6515 = vrot.lane.b32.xlu0 %v5504, 60
        %v6516 = vpop.permute.xlu0 %6515
        %6517 = vrot.lane.b32.xlu0 %v5505, 60
        %v6518 = vpop.permute.xlu0 %6517
        %6519 = vrot.lane.b32.xlu0 %v5506, 60
        %v6520 = vpop.permute.xlu0 %6519
        %6521 = vrot.lane.b32.xlu0 %v5507, 60
        %v6522 = vpop.permute.xlu0 %6521
        %6523 = vrot.lane.b32.xlu0 %v5508, 60
        %v6524 = vpop.permute.xlu0 %6523
        %6525 = vrot.lane.b32.xlu0 %v5509, 60
        %v6526 = vpop.permute.xlu0 %6525
        %6527 = vrot.lane.b32.xlu0 %v5510, 60
        %v6528 = vpop.permute.xlu0 %6527
        %6529 = vrot.lane.b32.xlu0 %v5511, 60
        %v6530 = vpop.permute.xlu0 %6529
        %6531 = vrot.lane.b32.xlu0 %v5512, 60
        %v6532 = vpop.permute.xlu0 %6531
        %6533 = vrot.lane.b32.xlu0 %v5513, 60
        %v6534 = vpop.permute.xlu0 %6533
        %6535 = vrot.lane.b32.xlu0 %v5514, 60
        %v6536 = vpop.permute.xlu0 %6535
        %6537 = vrot.lane.b32.xlu0 %v5515, 60
        %v6538 = vpop.permute.xlu0 %6537
        %6539 = vrot.lane.b32.xlu0 %v5516, 60
        %v6540 = vpop.permute.xlu0 %6539
        %6541 = vrot.lane.b32.xlu0 %v5517, 60
        %v6542 = vpop.permute.xlu0 %6541
        %6543 = vrot.lane.b32.xlu0 %v5518, 60
        %v6544 = vpop.permute.xlu0 %6543
        %6545 = vrot.lane.b32.xlu0 %v5519, 60
        %v6546 = vpop.permute.xlu0 %6545
        %6611 = vrot.lane.b32.xlu0 %v5520, 80
        %v6612 = vpop.permute.xlu0 %6611
        %6613 = vrot.lane.b32.xlu0 %v5521, 80
        %v6614 = vpop.permute.xlu0 %6613
        %6615 = vrot.lane.b32.xlu0 %v5522, 80
        %v6616 = vpop.permute.xlu0 %6615
        %6617 = vrot.lane.b32.xlu0 %v5523, 80
        %v6618 = vpop.permute.xlu0 %6617
        %6619 = vrot.lane.b32.xlu0 %v5524, 80
        %v6620 = vpop.permute.xlu0 %6619
        %6621 = vrot.lane.b32.xlu0 %v5525, 80
        %v6622 = vpop.permute.xlu0 %6621
        %6623 = vrot.lane.b32.xlu0 %v5526, 80
        %v6624 = vpop.permute.xlu0 %6623
        %6625 = vrot.lane.b32.xlu0 %v5527, 80
        %v6626 = vpop.permute.xlu0 %6625
        %6627 = vrot.lane.b32.xlu0 %v5528, 80
        %v6628 = vpop.permute.xlu0 %6627
        %6629 = vrot.lane.b32.xlu0 %v5529, 80
        %v6630 = vpop.permute.xlu0 %6629
        %6631 = vrot.lane.b32.xlu0 %v5530, 80
        %v6632 = vpop.permute.xlu0 %6631
        %6633 = vrot.lane.b32.xlu0 %v5531, 80
        %v6634 = vpop.permute.xlu0 %6633
        %6635 = vrot.lane.b32.xlu0 %v5532, 80
        %v6636 = vpop.permute.xlu0 %6635
        %6637 = vrot.lane.b32.xlu0 %v5533, 80
        %v6638 = vpop.permute.xlu0 %6637
        %6639 = vrot.lane.b32.xlu0 %v5534, 80
        %v6640 = vpop.permute.xlu0 %6639
        %6641 = vrot.lane.b32.xlu0 %v5535, 80
        %v6642 = vpop.permute.xlu0 %6641
        %6643 = vrot.lane.b32.xlu0 %v5536, 80
        %v6644 = vpop.permute.xlu0 %6643
        %6645 = vrot.lane.b32.xlu0 %v5537, 80
        %v6646 = vpop.permute.xlu0 %6645
        %6647 = vrot.lane.b32.xlu0 %v5538, 80
        %v6648 = vpop.permute.xlu0 %6647
        %6649 = vrot.lane.b32.xlu0 %v5539, 80
        %v6650 = vpop.permute.xlu0 %6649
        %6651 = vrot.lane.b32.xlu0 %v5540, 80
        %v6652 = vpop.permute.xlu0 %6651
        %6653 = vrot.lane.b32.xlu0 %v5541, 80
        %v6654 = vpop.permute.xlu0 %6653
        %6655 = vrot.lane.b32.xlu0 %v5542, 80
        %v6656 = vpop.permute.xlu0 %6655
        %6657 = vrot.lane.b32.xlu0 %v5543, 80
        %v6658 = vpop.permute.xlu0 %6657
        %6659 = vrot.lane.b32.xlu0 %v5544, 80
        %v6660 = vpop.permute.xlu0 %6659
        %6661 = vrot.lane.b32.xlu0 %v5545, 80
        %v6662 = vpop.permute.xlu0 %6661
        %6663 = vrot.lane.b32.xlu0 %v5546, 80
        %v6664 = vpop.permute.xlu0 %6663
        %6665 = vrot.lane.b32.xlu0 %v5547, 80
        %v6666 = vpop.permute.xlu0 %6665
        %6667 = vrot.lane.b32.xlu0 %v5548, 80
        %v6668 = vpop.permute.xlu0 %6667
        %6669 = vrot.lane.b32.xlu0 %v5549, 80
        %v6670 = vpop.permute.xlu0 %6669
        %6671 = vrot.lane.b32.xlu0 %v5550, 80
        %v6672 = vpop.permute.xlu0 %6671
        %6673 = vrot.lane.b32.xlu0 %v5551, 80
        %v6674 = vpop.permute.xlu0 %6673
        %6739 = vrot.lane.b32.xlu0 %v5553, 100
        %v6740 = vpop.permute.xlu0 %6739
        %6741 = vrot.lane.b32.xlu0 %v5554, 100
        %v6742 = vpop.permute.xlu0 %6741
        %6743 = vrot.lane.b32.xlu0 %v5555, 100
        %v6744 = vpop.permute.xlu0 %6743
        %6745 = vrot.lane.b32.xlu0 %v5556, 100
        %v6746 = vpop.permute.xlu0 %6745
        %6747 = vrot.lane.b32.xlu0 %v5557, 100
        %v6748 = vpop.permute.xlu0 %6747
        %6749 = vrot.lane.b32.xlu0 %v5558, 100
        %v6750 = vpop.permute.xlu0 %6749
        %6751 = vrot.lane.b32.xlu0 %v5559, 100
        %v6752 = vpop.permute.xlu0 %6751
        %6753 = vrot.lane.b32.xlu0 %v5560, 100
        %v6754 = vpop.permute.xlu0 %6753
        %6755 = vrot.lane.b32.xlu0 %v5561, 100
        %v6756 = vpop.permute.xlu0 %6755
        %6757 = vrot.lane.b32.xlu0 %v5562, 100
        %v6758 = vpop.permute.xlu0 %6757
        %6759 = vrot.lane.b32.xlu0 %v5563, 100
        %v6760 = vpop.permute.xlu0 %6759
        %6761 = vrot.lane.b32.xlu0 %v5564, 100
        %v6762 = vpop.permute.xlu0 %6761
        %6763 = vrot.lane.b32.xlu0 %v5565, 100
        %v6764 = vpop.permute.xlu0 %6763
        %6765 = vrot.lane.b32.xlu0 %v5566, 100
        %v6766 = vpop.permute.xlu0 %6765
        %6767 = vrot.lane.b32.xlu0 %v5567, 100
        %v6768 = vpop.permute.xlu0 %6767
        %6769 = vrot.lane.b32.xlu0 %v5568, 100
        %v6770 = vpop.permute.xlu0 %6769
        %6771 = vrot.lane.b32.xlu0 %v5569, 100
        %v6772 = vpop.permute.xlu0 %6771
        %6773 = vrot.lane.b32.xlu0 %v5570, 100
        %v6774 = vpop.permute.xlu0 %6773
        %6775 = vrot.lane.b32.xlu0 %v5571, 100
        %v6776 = vpop.permute.xlu0 %6775
        %6777 = vrot.lane.b32.xlu0 %v5572, 100
        %v6778 = vpop.permute.xlu0 %6777
        %6779 = vrot.lane.b32.xlu0 %v5573, 100
        %v6780 = vpop.permute.xlu0 %6779
        %6781 = vrot.lane.b32.xlu0 %v5574, 100
        %v6782 = vpop.permute.xlu0 %6781
        %6783 = vrot.lane.b32.xlu0 %v5575, 100
        %v6784 = vpop.permute.xlu0 %6783
        %6785 = vrot.lane.b32.xlu0 %v5576, 100
        %v6786 = vpop.permute.xlu0 %6785
        %6787 = vrot.lane.b32.xlu0 %v5577, 100
        %v6788 = vpop.permute.xlu0 %6787
        %6789 = vrot.lane.b32.xlu0 %v5578, 100
        %v6790 = vpop.permute.xlu0 %6789
        %6791 = vrot.lane.b32.xlu0 %v5579, 100
        %v6792 = vpop.permute.xlu0 %6791
        %6793 = vrot.lane.b32.xlu0 %v5580, 100
        %v6794 = vpop.permute.xlu0 %6793
        %6795 = vrot.lane.b32.xlu0 %v5581, 100
        %v6796 = vpop.permute.xlu0 %6795
        %6797 = vrot.lane.b32.xlu0 %v5582, 100
        %v6798 = vpop.permute.xlu0 %6797
        %6799 = vrot.lane.b32.xlu0 %v5583, 100
        %v6800 = vpop.permute.xlu0 %6799
        %6801 = vrot.lane.b32.xlu0 %v5584, 100
        %v6802 = vpop.permute.xlu0 %6801
        %6867 = vrot.lane.b32.xlu0 %v5585, 120
        %v6868 = vpop.permute.xlu0 %6867
        %6869 = vrot.lane.b32.xlu0 %v5586, 120
        %v6870 = vpop.permute.xlu0 %6869
        %6871 = vrot.lane.b32.xlu0 %v5587, 120
        %v6872 = vpop.permute.xlu0 %6871
        %6873 = vrot.lane.b32.xlu0 %v5588, 120
        %v6874 = vpop.permute.xlu0 %6873
        %6875 = vrot.lane.b32.xlu0 %v5589, 120
        %v6876 = vpop.permute.xlu0 %6875
        %6877 = vrot.lane.b32.xlu0 %v5590, 120
        %v6878 = vpop.permute.xlu0 %6877
        %6879 = vrot.lane.b32.xlu0 %v5591, 120
        %v6880 = vpop.permute.xlu0 %6879
        %6881 = vrot.lane.b32.xlu0 %v5592, 120
        %v6882 = vpop.permute.xlu0 %6881
        %6883 = vrot.lane.b32.xlu0 %v5593, 120
        %v6884 = vpop.permute.xlu0 %6883
        %6885 = vrot.lane.b32.xlu0 %v5594, 120
        %v6886 = vpop.permute.xlu0 %6885
        %6887 = vrot.lane.b32.xlu0 %v5595, 120
        %v6888 = vpop.permute.xlu0 %6887
        %6889 = vrot.lane.b32.xlu0 %v5596, 120
        %v6890 = vpop.permute.xlu0 %6889
        %6891 = vrot.lane.b32.xlu0 %v5597, 120
        %v6892 = vpop.permute.xlu0 %6891
        %6893 = vrot.lane.b32.xlu0 %v5598, 120
        %v6894 = vpop.permute.xlu0 %6893
        %6895 = vrot.lane.b32.xlu0 %v5599, 120
        %v6896 = vpop.permute.xlu0 %6895
        %6897 = vrot.lane.b32.xlu0 %v5600, 120
        %v6898 = vpop.permute.xlu0 %6897
        %6899 = vrot.lane.b32.xlu0 %v5601, 120
        %v6900 = vpop.permute.xlu0 %6899
        %6901 = vrot.lane.b32.xlu0 %v5602, 120
        %v6902 = vpop.permute.xlu0 %6901
        %6903 = vrot.lane.b32.xlu0 %v5603, 120
        %v6904 = vpop.permute.xlu0 %6903
        %6905 = vrot.lane.b32.xlu0 %v5604, 120
        %v6906 = vpop.permute.xlu0 %6905
        %6907 = vrot.lane.b32.xlu0 %v5605, 120
        %v6908 = vpop.permute.xlu0 %6907
        %6909 = vrot.lane.b32.xlu0 %v5606, 120
        %v6910 = vpop.permute.xlu0 %6909
        %6911 = vrot.lane.b32.xlu0 %v5607, 120
        %v6912 = vpop.permute.xlu0 %6911
        %6913 = vrot.lane.b32.xlu0 %v5608, 120
        %v6914 = vpop.permute.xlu0 %6913
        %6915 = vrot.lane.b32.xlu0 %v5609, 120
        %v6916 = vpop.permute.xlu0 %6915
        %6917 = vrot.lane.b32.xlu0 %v5610, 120
        %v6918 = vpop.permute.xlu0 %6917
        %6919 = vrot.lane.b32.xlu0 %v5611, 120
        %v6920 = vpop.permute.xlu0 %6919
        %6921 = vrot.lane.b32.xlu0 %v5612, 120
        %v6922 = vpop.permute.xlu0 %6921
        %6923 = vrot.lane.b32.xlu0 %v5613, 120
        %v6924 = vpop.permute.xlu0 %6923
        %6925 = vrot.lane.b32.xlu0 %v5614, 120
        %v6926 = vpop.permute.xlu0 %6925
        %6927 = vrot.lane.b32.xlu0 %v5615, 120
        %v6928 = vpop.permute.xlu0 %6927
        %6929 = vrot.lane.b32.xlu0 %v5616, 120
        %v6930 = vpop.permute.xlu0 %6929
        %6995 = vrot.lane.b32.xlu0 %v5617, 12
        %v6996 = vpop.permute.xlu0 %6995
        %6997 = vrot.lane.b32.xlu0 %v5618, 12
        %v6998 = vpop.permute.xlu0 %6997
        %6999 = vrot.lane.b32.xlu0 %v5619, 12
        %v7000 = vpop.permute.xlu0 %6999
        %7001 = vrot.lane.b32.xlu0 %v5620, 12
        %v7002 = vpop.permute.xlu0 %7001
        %7003 = vrot.lane.b32.xlu0 %v5621, 12
        %v7004 = vpop.permute.xlu0 %7003
        %7005 = vrot.lane.b32.xlu0 %v5622, 12
        %v7006 = vpop.permute.xlu0 %7005
        %7007 = vrot.lane.b32.xlu0 %v5623, 12
        %v7008 = vpop.permute.xlu0 %7007
        %7009 = vrot.lane.b32.xlu0 %v5624, 12
        %v7010 = vpop.permute.xlu0 %7009
        %7011 = vrot.lane.b32.xlu0 %v5625, 12
        %v7012 = vpop.permute.xlu0 %7011
        %7013 = vrot.lane.b32.xlu0 %v5626, 12
        %v7014 = vpop.permute.xlu0 %7013
        %7015 = vrot.lane.b32.xlu0 %v5627, 12
        %v7016 = vpop.permute.xlu0 %7015
        %7017 = vrot.lane.b32.xlu0 %v5628, 12
        %v7018 = vpop.permute.xlu0 %7017
        %7019 = vrot.lane.b32.xlu0 %v5629, 12
        %v7020 = vpop.permute.xlu0 %7019
        %7021 = vrot.lane.b32.xlu0 %v5630, 12
        %v7022 = vpop.permute.xlu0 %7021
        %7023 = vrot.lane.b32.xlu0 %v5631, 12
        %v7024 = vpop.permute.xlu0 %7023
        %7025 = vrot.lane.b32.xlu0 %v5632, 12
        %v7026 = vpop.permute.xlu0 %7025
        %7027 = vrot.lane.b32.xlu0 %v5633, 12
        %v7028 = vpop.permute.xlu0 %7027
        %7029 = vrot.lane.b32.xlu0 %v5634, 12
        %v7030 = vpop.permute.xlu0 %7029
        %7031 = vrot.lane.b32.xlu0 %v5635, 12
        %v7032 = vpop.permute.xlu0 %7031
        %7033 = vrot.lane.b32.xlu0 %v5636, 12
        %v7034 = vpop.permute.xlu0 %7033
        %7035 = vrot.lane.b32.xlu0 %v5637, 12
        %v7036 = vpop.permute.xlu0 %7035
        %7037 = vrot.lane.b32.xlu0 %v5638, 12
        %v7038 = vpop.permute.xlu0 %7037
        %7039 = vrot.lane.b32.xlu0 %v5639, 12
        %v7040 = vpop.permute.xlu0 %7039
        %7041 = vrot.lane.b32.xlu0 %v5640, 12
        %v7042 = vpop.permute.xlu0 %7041
        %7043 = vrot.lane.b32.xlu0 %v5641, 12
        %v7044 = vpop.permute.xlu0 %7043
        %7045 = vrot.lane.b32.xlu0 %v5642, 12
        %v7046 = vpop.permute.xlu0 %7045
        %7047 = vrot.lane.b32.xlu0 %v5643, 12
        %v7048 = vpop.permute.xlu0 %7047
        %7049 = vrot.lane.b32.xlu0 %v5644, 12
        %v7050 = vpop.permute.xlu0 %7049
        %7051 = vrot.lane.b32.xlu0 %v5645, 12
        %v7052 = vpop.permute.xlu0 %7051
        %7053 = vrot.lane.b32.xlu0 %v5646, 12
        %v7054 = vpop.permute.xlu0 %7053
        %7055 = vrot.lane.b32.xlu0 %v5647, 12
        %v7056 = vpop.permute.xlu0 %7055
        %7057 = vrot.lane.b32.xlu0 %v5648, 12
        %v7058 = vpop.permute.xlu0 %7057
        %7123 = vrot.lane.b32.xlu0 %v5649, 32
        %v7124 = vpop.permute.xlu0 %7123
        %7125 = vrot.lane.b32.xlu0 %v5650, 32
        %v7126 = vpop.permute.xlu0 %7125
        %7127 = vrot.lane.b32.xlu0 %v5651, 32
        %v7128 = vpop.permute.xlu0 %7127
        %7129 = vrot.lane.b32.xlu0 %v5652, 32
        %v7130 = vpop.permute.xlu0 %7129
        %7131 = vrot.lane.b32.xlu0 %v5653, 32
        %v7132 = vpop.permute.xlu0 %7131
        %7133 = vrot.lane.b32.xlu0 %v5654, 32
        %v7134 = vpop.permute.xlu0 %7133
        %7135 = vrot.lane.b32.xlu0 %v5655, 32
        %v7136 = vpop.permute.xlu0 %7135
        %7137 = vrot.lane.b32.xlu0 %v5656, 32
        %v7138 = vpop.permute.xlu0 %7137
        %7139 = vrot.lane.b32.xlu0 %v5657, 32
        %v7140 = vpop.permute.xlu0 %7139
        %7141 = vrot.lane.b32.xlu0 %v5658, 32
        %v7142 = vpop.permute.xlu0 %7141
        %7143 = vrot.lane.b32.xlu0 %v5659, 32
        %v7144 = vpop.permute.xlu0 %7143
        %7145 = vrot.lane.b32.xlu0 %v5660, 32
        %v7146 = vpop.permute.xlu0 %7145
        %7147 = vrot.lane.b32.xlu0 %v5661, 32
        %v7148 = vpop.permute.xlu0 %7147
        %7149 = vrot.lane.b32.xlu0 %v5662, 32
        %v7150 = vpop.permute.xlu0 %7149
        %7151 = vrot.lane.b32.xlu0 %v5663, 32
        %v7152 = vpop.permute.xlu0 %7151
        %7153 = vrot.lane.b32.xlu0 %v5664, 32
        %v7154 = vpop.permute.xlu0 %7153
        %7155 = vrot.lane.b32.xlu0 %v5665, 32
        %v7156 = vpop.permute.xlu0 %7155
        %7157 = vrot.lane.b32.xlu0 %v5666, 32
        %v7158 = vpop.permute.xlu0 %7157
        %7159 = vrot.lane.b32.xlu0 %v5667, 32
        %v7160 = vpop.permute.xlu0 %7159
        %7161 = vrot.lane.b32.xlu0 %v5668, 32
        %v7162 = vpop.permute.xlu0 %7161
        %7163 = vrot.lane.b32.xlu0 %v5669, 32
        %v7164 = vpop.permute.xlu0 %7163
        %7165 = vrot.lane.b32.xlu0 %v5670, 32
        %v7166 = vpop.permute.xlu0 %7165
        %7167 = vrot.lane.b32.xlu0 %v5671, 32
        %v7168 = vpop.permute.xlu0 %7167
        %7169 = vrot.lane.b32.xlu0 %v5672, 32
        %v7170 = vpop.permute.xlu0 %7169
        %7171 = vrot.lane.b32.xlu0 %v5673, 32
        %v7172 = vpop.permute.xlu0 %7171
        %7173 = vrot.lane.b32.xlu0 %v5674, 32
        %v7174 = vpop.permute.xlu0 %7173
        %7175 = vrot.lane.b32.xlu0 %v5675, 32
        %v7176 = vpop.permute.xlu0 %7175
        %7177 = vrot.lane.b32.xlu0 %v5676, 32
        %v7178 = vpop.permute.xlu0 %7177
        %7179 = vrot.lane.b32.xlu0 %v5677, 32
        %v7180 = vpop.permute.xlu0 %7179
        %7181 = vrot.lane.b32.xlu0 %v5678, 32
        %v7182 = vpop.permute.xlu0 %7181
        %7183 = vrot.lane.b32.xlu0 %v5679, 32
        %v7184 = vpop.permute.xlu0 %7183
        %7185 = vrot.lane.b32.xlu0 %v5680, 32
        %v7186 = vpop.permute.xlu0 %7185
        %7251 = vrot.lane.b32.xlu0 %v5681, 52
        %v7252 = vpop.permute.xlu0 %7251
        %7253 = vrot.lane.b32.xlu0 %v5682, 52
        %v7254 = vpop.permute.xlu0 %7253
        %7255 = vrot.lane.b32.xlu0 %v5683, 52
        %v7256 = vpop.permute.xlu0 %7255
        %7257 = vrot.lane.b32.xlu0 %v5684, 52
        %v7258 = vpop.permute.xlu0 %7257
        %7259 = vrot.lane.b32.xlu0 %v5685, 52
        %v7260 = vpop.permute.xlu0 %7259
        %7261 = vrot.lane.b32.xlu0 %v5686, 52
        %v7262 = vpop.permute.xlu0 %7261
        %7263 = vrot.lane.b32.xlu0 %v5687, 52
        %v7264 = vpop.permute.xlu0 %7263
        %7265 = vrot.lane.b32.xlu0 %v5688, 52
        %v7266 = vpop.permute.xlu0 %7265
        %7267 = vrot.lane.b32.xlu0 %v5689, 52
        %v7268 = vpop.permute.xlu0 %7267
        %7269 = vrot.lane.b32.xlu0 %v5690, 52
        %v7270 = vpop.permute.xlu0 %7269
        %7271 = vrot.lane.b32.xlu0 %v5691, 52
        %v7272 = vpop.permute.xlu0 %7271
        %7273 = vrot.lane.b32.xlu0 %v5692, 52
        %v7274 = vpop.permute.xlu0 %7273
        %7275 = vrot.lane.b32.xlu0 %v5693, 52
        %v7276 = vpop.permute.xlu0 %7275
        %7277 = vrot.lane.b32.xlu0 %v5694, 52
        %v7278 = vpop.permute.xlu0 %7277
        %7279 = vrot.lane.b32.xlu0 %v5695, 52
        %v7280 = vpop.permute.xlu0 %7279
        %7281 = vrot.lane.b32.xlu0 %v5696, 52
        %v7282 = vpop.permute.xlu0 %7281
        %7283 = vrot.lane.b32.xlu0 %v5697, 52
        %v7284 = vpop.permute.xlu0 %7283
        %7285 = vrot.lane.b32.xlu0 %v5698, 52
        %v7286 = vpop.permute.xlu0 %7285
        %7287 = vrot.lane.b32.xlu0 %v5699, 52
        %v7288 = vpop.permute.xlu0 %7287
        %7289 = vrot.lane.b32.xlu0 %v5700, 52
        %v7290 = vpop.permute.xlu0 %7289
        %7291 = vrot.lane.b32.xlu0 %v5701, 52
        %v7292 = vpop.permute.xlu0 %7291
        %7293 = vrot.lane.b32.xlu0 %v5702, 52
        %v7294 = vpop.permute.xlu0 %7293
        %7295 = vrot.lane.b32.xlu0 %v5703, 52
        %v7296 = vpop.permute.xlu0 %7295
        %7297 = vrot.lane.b32.xlu0 %v5704, 52
        %v7298 = vpop.permute.xlu0 %7297
        %7299 = vrot.lane.b32.xlu0 %v5705, 52
        %v7300 = vpop.permute.xlu0 %7299
        %7301 = vrot.lane.b32.xlu0 %v5706, 52
        %v7302 = vpop.permute.xlu0 %7301
        %7303 = vrot.lane.b32.xlu0 %v5707, 52
        %v7304 = vpop.permute.xlu0 %7303
        %7305 = vrot.lane.b32.xlu0 %v5708, 52
        %v7306 = vpop.permute.xlu0 %7305
        %7307 = vrot.lane.b32.xlu0 %v5709, 52
        %v7308 = vpop.permute.xlu0 %7307
        %7309 = vrot.lane.b32.xlu0 %v5710, 52
        %v7310 = vpop.permute.xlu0 %7309
        %7311 = vrot.lane.b32.xlu0 %v5711, 52
        %v7312 = vpop.permute.xlu0 %7311
        %7313 = vrot.lane.b32.xlu0 %v5712, 52
        %v7314 = vpop.permute.xlu0 %7313
        %7379 = vrot.lane.b32.xlu0 %v5713, 72
        %v7380 = vpop.permute.xlu0 %7379
        %7381 = vrot.lane.b32.xlu0 %v5714, 72
        %v7382 = vpop.permute.xlu0 %7381
        %7383 = vrot.lane.b32.xlu0 %v5715, 72
        %v7384 = vpop.permute.xlu0 %7383
        %7385 = vrot.lane.b32.xlu0 %v5716, 72
        %v7386 = vpop.permute.xlu0 %7385
        %7387 = vrot.lane.b32.xlu0 %v5717, 72
        %v7388 = vpop.permute.xlu0 %7387
        %7389 = vrot.lane.b32.xlu0 %v5718, 72
        %v7390 = vpop.permute.xlu0 %7389
        %7391 = vrot.lane.b32.xlu0 %v5719, 72
        %v7392 = vpop.permute.xlu0 %7391
        %7393 = vrot.lane.b32.xlu0 %v5720, 72
        %v7394 = vpop.permute.xlu0 %7393
        %7395 = vrot.lane.b32.xlu0 %v5721, 72
        %v7396 = vpop.permute.xlu0 %7395
        %7397 = vrot.lane.b32.xlu0 %v5722, 72
        %v7398 = vpop.permute.xlu0 %7397
        %7399 = vrot.lane.b32.xlu0 %v5723, 72
        %v7400 = vpop.permute.xlu0 %7399
        %7401 = vrot.lane.b32.xlu0 %v5724, 72
        %v7402 = vpop.permute.xlu0 %7401
        %7403 = vrot.lane.b32.xlu0 %v5725, 72
        %v7404 = vpop.permute.xlu0 %7403
        %7405 = vrot.lane.b32.xlu0 %v5726, 72
        %v7406 = vpop.permute.xlu0 %7405
        %7407 = vrot.lane.b32.xlu0 %v5727, 72
        %v7408 = vpop.permute.xlu0 %7407
        %7409 = vrot.lane.b32.xlu0 %v5728, 72
        %v7410 = vpop.permute.xlu0 %7409
        %7411 = vrot.lane.b32.xlu0 %v5729, 72
        %v7412 = vpop.permute.xlu0 %7411
        %7413 = vrot.lane.b32.xlu0 %v5730, 72
        %v7414 = vpop.permute.xlu0 %7413
        %7415 = vrot.lane.b32.xlu0 %v5731, 72
        %v7416 = vpop.permute.xlu0 %7415
        %7417 = vrot.lane.b32.xlu0 %v5732, 72
        %v7418 = vpop.permute.xlu0 %7417
        %7419 = vrot.lane.b32.xlu0 %v5733, 72
        %v7420 = vpop.permute.xlu0 %7419
        %7421 = vrot.lane.b32.xlu0 %v5734, 72
        %v7422 = vpop.permute.xlu0 %7421
        %7423 = vrot.lane.b32.xlu0 %v5735, 72
        %v7424 = vpop.permute.xlu0 %7423
        %7425 = vrot.lane.b32.xlu0 %v5736, 72
        %v7426 = vpop.permute.xlu0 %7425
        %7427 = vrot.lane.b32.xlu0 %v5737, 72
        %v7428 = vpop.permute.xlu0 %7427
        %7429 = vrot.lane.b32.xlu0 %v5738, 72
        %v7430 = vpop.permute.xlu0 %7429
        %7431 = vrot.lane.b32.xlu0 %v5739, 72
        %v7432 = vpop.permute.xlu0 %7431
        %7433 = vrot.lane.b32.xlu0 %v5740, 72
        %v7434 = vpop.permute.xlu0 %7433
        %7435 = vrot.lane.b32.xlu0 %v5741, 72
        %v7436 = vpop.permute.xlu0 %7435
        %7437 = vrot.lane.b32.xlu0 %v5742, 72
        %v7438 = vpop.permute.xlu0 %7437
        %7439 = vrot.lane.b32.xlu0 %v5743, 72
        %v7440 = vpop.permute.xlu0 %7439
        %7441 = vrot.lane.b32.xlu0 %v5744, 72
        %v7442 = vpop.permute.xlu0 %7441
        %7507 = vrot.lane.b32.xlu0 %v5745, 92
        %v7508 = vpop.permute.xlu0 %7507
        %7509 = vrot.lane.b32.xlu0 %v5746, 92
        %v7510 = vpop.permute.xlu0 %7509
        %7511 = vrot.lane.b32.xlu0 %v5747, 92
        %v7512 = vpop.permute.xlu0 %7511
        %7513 = vrot.lane.b32.xlu0 %v5748, 92
        %v7514 = vpop.permute.xlu0 %7513
        %7515 = vrot.lane.b32.xlu0 %v5749, 92
        %v7516 = vpop.permute.xlu0 %7515
        %7517 = vrot.lane.b32.xlu0 %v5750, 92
        %v7518 = vpop.permute.xlu0 %7517
        %7519 = vrot.lane.b32.xlu0 %v5751, 92
        %v7520 = vpop.permute.xlu0 %7519
        %7521 = vrot.lane.b32.xlu0 %v5752, 92
        %v7522 = vpop.permute.xlu0 %7521
        %7523 = vrot.lane.b32.xlu0 %v5753, 92
        %v7524 = vpop.permute.xlu0 %7523
        %7525 = vrot.lane.b32.xlu0 %v5754, 92
        %v7526 = vpop.permute.xlu0 %7525
        %7527 = vrot.lane.b32.xlu0 %v5755, 92
        %v7528 = vpop.permute.xlu0 %7527
        %7529 = vrot.lane.b32.xlu0 %v5756, 92
        %v7530 = vpop.permute.xlu0 %7529
        %7531 = vrot.lane.b32.xlu0 %v5757, 92
        %v7532 = vpop.permute.xlu0 %7531
        %7533 = vrot.lane.b32.xlu0 %v5758, 92
        %v7534 = vpop.permute.xlu0 %7533
        %7535 = vrot.lane.b32.xlu0 %v5759, 92
        %v7536 = vpop.permute.xlu0 %7535
        %7537 = vrot.lane.b32.xlu0 %v5760, 92
        %v7538 = vpop.permute.xlu0 %7537
        %7539 = vrot.lane.b32.xlu0 %v5761, 92
        %v7540 = vpop.permute.xlu0 %7539
        %7541 = vrot.lane.b32.xlu0 %v5762, 92
        %v7542 = vpop.permute.xlu0 %7541
        %7543 = vrot.lane.b32.xlu0 %v5763, 92
        %v7544 = vpop.permute.xlu0 %7543
        %7545 = vrot.lane.b32.xlu0 %v5764, 92
        %v7546 = vpop.permute.xlu0 %7545
        %7547 = vrot.lane.b32.xlu0 %v5765, 92
        %v7548 = vpop.permute.xlu0 %7547
        %7549 = vrot.lane.b32.xlu0 %v5766, 92
        %v7550 = vpop.permute.xlu0 %7549
        %7551 = vrot.lane.b32.xlu0 %v5767, 92
        %v7552 = vpop.permute.xlu0 %7551
        %7553 = vrot.lane.b32.xlu0 %v5768, 92
        %v7554 = vpop.permute.xlu0 %7553
        %7555 = vrot.lane.b32.xlu0 %v5769, 92
        %v7556 = vpop.permute.xlu0 %7555
        %7557 = vrot.lane.b32.xlu0 %v5770, 92
        %v7558 = vpop.permute.xlu0 %7557
        %7559 = vrot.lane.b32.xlu0 %v5771, 92
        %v7560 = vpop.permute.xlu0 %7559
        %7561 = vrot.lane.b32.xlu0 %v5772, 92
        %v7562 = vpop.permute.xlu0 %7561
        %7563 = vrot.lane.b32.xlu0 %v5773, 92
        %v7564 = vpop.permute.xlu0 %7563
        %7565 = vrot.lane.b32.xlu0 %v5774, 92
        %v7566 = vpop.permute.xlu0 %7565
        %7567 = vrot.lane.b32.xlu0 %v5775, 92
        %v7568 = vpop.permute.xlu0 %7567
        %7569 = vrot.lane.b32.xlu0 %v5776, 92
        %v7570 = vpop.permute.xlu0 %7569
        %7635 = vrot.lane.b32.xlu0 %v5777, 112
        %v7636 = vpop.permute.xlu0 %7635
        %7637 = vrot.lane.b32.xlu0 %v5778, 112
        %v7638 = vpop.permute.xlu0 %7637
        %7639 = vrot.lane.b32.xlu0 %v5779, 112
        %v7640 = vpop.permute.xlu0 %7639
        %7641 = vrot.lane.b32.xlu0 %v5780, 112
        %v7642 = vpop.permute.xlu0 %7641
        %7643 = vrot.lane.b32.xlu0 %v5781, 112
        %v7644 = vpop.permute.xlu0 %7643
        %7645 = vrot.lane.b32.xlu0 %v5782, 112
        %v7646 = vpop.permute.xlu0 %7645
        %7647 = vrot.lane.b32.xlu0 %v5783, 112
        %v7648 = vpop.permute.xlu0 %7647
        %7649 = vrot.lane.b32.xlu0 %v5784, 112
        %v7650 = vpop.permute.xlu0 %7649
        %7651 = vrot.lane.b32.xlu0 %v5785, 112
        %v7652 = vpop.permute.xlu0 %7651
        %7653 = vrot.lane.b32.xlu0 %v5786, 112
        %v7654 = vpop.permute.xlu0 %7653
        %7655 = vrot.lane.b32.xlu0 %v5787, 112
        %v7656 = vpop.permute.xlu0 %7655
        %7657 = vrot.lane.b32.xlu0 %v5788, 112
        %v7658 = vpop.permute.xlu0 %7657
        %7659 = vrot.lane.b32.xlu0 %v5789, 112
        %v7660 = vpop.permute.xlu0 %7659
        %7661 = vrot.lane.b32.xlu0 %v5790, 112
        %v7662 = vpop.permute.xlu0 %7661
        %7663 = vrot.lane.b32.xlu0 %v5791, 112
        %v7664 = vpop.permute.xlu0 %7663
        %7665 = vrot.lane.b32.xlu0 %v5792, 112
        %v7666 = vpop.permute.xlu0 %7665
        %7667 = vrot.lane.b32.xlu0 %v5793, 112
        %v7668 = vpop.permute.xlu0 %7667
        %7669 = vrot.lane.b32.xlu0 %v5794, 112
        %v7670 = vpop.permute.xlu0 %7669
        %7671 = vrot.lane.b32.xlu0 %v5795, 112
        %v7672 = vpop.permute.xlu0 %7671
        %7673 = vrot.lane.b32.xlu0 %v5796, 112
        %v7674 = vpop.permute.xlu0 %7673
        %7675 = vrot.lane.b32.xlu0 %v5797, 112
        %v7676 = vpop.permute.xlu0 %7675
        %7677 = vrot.lane.b32.xlu0 %v5798, 112
        %v7678 = vpop.permute.xlu0 %7677
        %7679 = vrot.lane.b32.xlu0 %v5799, 112
        %v7680 = vpop.permute.xlu0 %7679
        %7681 = vrot.lane.b32.xlu0 %v5800, 112
        %v7682 = vpop.permute.xlu0 %7681
        %7683 = vrot.lane.b32.xlu0 %v5801, 112
        %v7684 = vpop.permute.xlu0 %7683
        %7685 = vrot.lane.b32.xlu0 %v5802, 112
        %v7686 = vpop.permute.xlu0 %7685
        %7687 = vrot.lane.b32.xlu0 %v5803, 112
        %v7688 = vpop.permute.xlu0 %7687
        %7689 = vrot.lane.b32.xlu0 %v5804, 112
        %v7690 = vpop.permute.xlu0 %7689
        %7691 = vrot.lane.b32.xlu0 %v5805, 112
        %v7692 = vpop.permute.xlu0 %7691
        %7693 = vrot.lane.b32.xlu0 %v5806, 112
        %v7694 = vpop.permute.xlu0 %7693
        %7695 = vrot.lane.b32.xlu0 %v5807, 112
        %v7696 = vpop.permute.xlu0 %7695
        %7697 = vrot.lane.b32.xlu0 %v5808, 112
        %v7698 = vpop.permute.xlu0 %7697
        %7763 = vrot.lane.b32.xlu0 %v5809, 4
        %v7764 = vpop.permute.xlu0 %7763
        %7765 = vrot.lane.b32.xlu0 %v5810, 4
        %v7766 = vpop.permute.xlu0 %7765
        %7767 = vrot.lane.b32.xlu0 %v5811, 4
        %v7768 = vpop.permute.xlu0 %7767
        %7769 = vrot.lane.b32.xlu0 %v5812, 4
        %v7770 = vpop.permute.xlu0 %7769
        %7771 = vrot.lane.b32.xlu0 %v5813, 4
        %v7772 = vpop.permute.xlu0 %7771
        %7773 = vrot.lane.b32.xlu0 %v5814, 4
        %v7774 = vpop.permute.xlu0 %7773
        %7775 = vrot.lane.b32.xlu0 %v5815, 4
        %v7776 = vpop.permute.xlu0 %7775
        %7777 = vrot.lane.b32.xlu0 %v5816, 4
        %v7778 = vpop.permute.xlu0 %7777
        %7779 = vrot.lane.b32.xlu0 %v5817, 4
        %v7780 = vpop.permute.xlu0 %7779
        %7781 = vrot.lane.b32.xlu0 %v5818, 4
        %v7782 = vpop.permute.xlu0 %7781
        %7783 = vrot.lane.b32.xlu0 %v5819, 4
        %v7784 = vpop.permute.xlu0 %7783
        %7785 = vrot.lane.b32.xlu0 %v5820, 4
        %v7786 = vpop.permute.xlu0 %7785
        %7787 = vrot.lane.b32.xlu0 %v5821, 4
        %v7788 = vpop.permute.xlu0 %7787
        %7789 = vrot.lane.b32.xlu0 %v5822, 4
        %v7790 = vpop.permute.xlu0 %7789
        %7791 = vrot.lane.b32.xlu0 %v5823, 4
        %v7792 = vpop.permute.xlu0 %7791
        %7793 = vrot.lane.b32.xlu0 %v5824, 4
        %v7794 = vpop.permute.xlu0 %7793
        %7795 = vrot.lane.b32.xlu0 %v5825, 4
        %v7796 = vpop.permute.xlu0 %7795
        %7797 = vrot.lane.b32.xlu0 %v5826, 4
        %v7798 = vpop.permute.xlu0 %7797
        %7799 = vrot.lane.b32.xlu0 %v5827, 4
        %v7800 = vpop.permute.xlu0 %7799
        %7801 = vrot.lane.b32.xlu0 %v5828, 4
        %v7802 = vpop.permute.xlu0 %7801
        %7803 = vrot.lane.b32.xlu0 %v5829, 4
        %v7804 = vpop.permute.xlu0 %7803
        %7805 = vrot.lane.b32.xlu0 %v5830, 4
        %v7806 = vpop.permute.xlu0 %7805
        %7807 = vrot.lane.b32.xlu0 %v5831, 4
        %v7808 = vpop.permute.xlu0 %7807
        %7809 = vrot.lane.b32.xlu0 %v5832, 4
        %v7810 = vpop.permute.xlu0 %7809
        %7811 = vrot.lane.b32.xlu0 %v5833, 4
        %v7812 = vpop.permute.xlu0 %7811
        %7813 = vrot.lane.b32.xlu0 %v5834, 4
        %v7814 = vpop.permute.xlu0 %7813
        %7815 = vrot.lane.b32.xlu0 %v5835, 4
        %v7816 = vpop.permute.xlu0 %7815
        %7817 = vrot.lane.b32.xlu0 %v5836, 4
        %v7818 = vpop.permute.xlu0 %7817
        %7819 = vrot.lane.b32.xlu0 %v5837, 4
        %v7820 = vpop.permute.xlu0 %7819
        %7821 = vrot.lane.b32.xlu0 %v5838, 4
        %v7822 = vpop.permute.xlu0 %7821
        %7823 = vrot.lane.b32.xlu0 %v5839, 4
        %v7824 = vpop.permute.xlu0 %7823
        %7825 = vrot.lane.b32.xlu0 %v5840, 4
        %v7826 = vpop.permute.xlu0 %7825
        %7891 = vrot.lane.b32.xlu0 %v5841, 24
        %v7892 = vpop.permute.xlu0 %7891
        %7893 = vrot.lane.b32.xlu0 %v5842, 24
        %v7894 = vpop.permute.xlu0 %7893
        %7895 = vrot.lane.b32.xlu0 %v5843, 24
        %v7896 = vpop.permute.xlu0 %7895
        %7897 = vrot.lane.b32.xlu0 %v5844, 24
        %v7898 = vpop.permute.xlu0 %7897
        %7899 = vrot.lane.b32.xlu0 %v5845, 24
        %v7900 = vpop.permute.xlu0 %7899
        %7901 = vrot.lane.b32.xlu0 %v5846, 24
        %v7902 = vpop.permute.xlu0 %7901
        %7903 = vrot.lane.b32.xlu0 %v5847, 24
        %v7904 = vpop.permute.xlu0 %7903
        %7905 = vrot.lane.b32.xlu0 %v5848, 24
        %v7906 = vpop.permute.xlu0 %7905
        %7907 = vrot.lane.b32.xlu0 %v5849, 24
        %v7908 = vpop.permute.xlu0 %7907
        %7909 = vrot.lane.b32.xlu0 %v5850, 24
        %v7910 = vpop.permute.xlu0 %7909
        %7911 = vrot.lane.b32.xlu0 %v5851, 24
        %v7912 = vpop.permute.xlu0 %7911
        %7913 = vrot.lane.b32.xlu0 %v5852, 24
        %v7914 = vpop.permute.xlu0 %7913
        %7915 = vrot.lane.b32.xlu0 %v5853, 24
        %v7916 = vpop.permute.xlu0 %7915
        %7917 = vrot.lane.b32.xlu0 %v5854, 24
        %v7918 = vpop.permute.xlu0 %7917
        %7919 = vrot.lane.b32.xlu0 %v5855, 24
        %v7920 = vpop.permute.xlu0 %7919
        %7921 = vrot.lane.b32.xlu0 %v5856, 24
        %v7922 = vpop.permute.xlu0 %7921
        %7923 = vrot.lane.b32.xlu0 %v5857, 24
        %v7924 = vpop.permute.xlu0 %7923
        %7925 = vrot.lane.b32.xlu0 %v5858, 24
        %v7926 = vpop.permute.xlu0 %7925
        %7927 = vrot.lane.b32.xlu0 %v5859, 24
        %v7928 = vpop.permute.xlu0 %7927
        %7929 = vrot.lane.b32.xlu0 %v5860, 24
        %v7930 = vpop.permute.xlu0 %7929
        %7931 = vrot.lane.b32.xlu0 %v5861, 24
        %v7932 = vpop.permute.xlu0 %7931
        %7933 = vrot.lane.b32.xlu0 %v5862, 24
        %v7934 = vpop.permute.xlu0 %7933
        %7935 = vrot.lane.b32.xlu0 %v5863, 24
        %v7936 = vpop.permute.xlu0 %7935
        %7937 = vrot.lane.b32.xlu0 %v5864, 24
        %v7938 = vpop.permute.xlu0 %7937
        %7939 = vrot.lane.b32.xlu0 %v5865, 24
        %v7940 = vpop.permute.xlu0 %7939
        %7941 = vrot.lane.b32.xlu0 %v5866, 24
        %v7942 = vpop.permute.xlu0 %7941
        %7943 = vrot.lane.b32.xlu0 %v5867, 24
        %v7944 = vpop.permute.xlu0 %7943
        %7945 = vrot.lane.b32.xlu0 %v5868, 24
        %v7946 = vpop.permute.xlu0 %7945
        %7947 = vrot.lane.b32.xlu0 %v5869, 24
        %v7948 = vpop.permute.xlu0 %7947
        %7949 = vrot.lane.b32.xlu0 %v5870, 24
        %v7950 = vpop.permute.xlu0 %7949
        %7951 = vrot.lane.b32.xlu0 %v5871, 24
        %v7952 = vpop.permute.xlu0 %7951
        %7953 = vrot.lane.b32.xlu0 %v5872, 24
        %v7954 = vpop.permute.xlu0 %7953
        %8019 = vrot.lane.b32.xlu0 %v5874, 44
        %v8020 = vpop.permute.xlu0 %8019
        %8021 = vrot.lane.b32.xlu0 %v5875, 44
        %v8022 = vpop.permute.xlu0 %8021
        %8023 = vrot.lane.b32.xlu0 %v5876, 44
        %v8024 = vpop.permute.xlu0 %8023
        %8025 = vrot.lane.b32.xlu0 %v5877, 44
        %v8026 = vpop.permute.xlu0 %8025
        %8027 = vrot.lane.b32.xlu0 %v5878, 44
        %v8028 = vpop.permute.xlu0 %8027
        %8029 = vrot.lane.b32.xlu0 %v5879, 44
        %v8030 = vpop.permute.xlu0 %8029
        %8031 = vrot.lane.b32.xlu0 %v5880, 44
        %v8032 = vpop.permute.xlu0 %8031
        %8033 = vrot.lane.b32.xlu0 %v5881, 44
        %v8034 = vpop.permute.xlu0 %8033
        %8035 = vrot.lane.b32.xlu0 %v5882, 44
        %v8036 = vpop.permute.xlu0 %8035
        %8037 = vrot.lane.b32.xlu0 %v5883, 44
        %v8038 = vpop.permute.xlu0 %8037
        %8039 = vrot.lane.b32.xlu0 %v5884, 44
        %v8040 = vpop.permute.xlu0 %8039
        %8041 = vrot.lane.b32.xlu0 %v5885, 44
        %v8042 = vpop.permute.xlu0 %8041
        %8043 = vrot.lane.b32.xlu0 %v5886, 44
        %v8044 = vpop.permute.xlu0 %8043
        %8045 = vrot.lane.b32.xlu0 %v5887, 44
        %v8046 = vpop.permute.xlu0 %8045
        %8047 = vrot.lane.b32.xlu0 %v5888, 44
        %v8048 = vpop.permute.xlu0 %8047
        %8049 = vrot.lane.b32.xlu0 %v5889, 44
        %v8050 = vpop.permute.xlu0 %8049
        %8051 = vrot.lane.b32.xlu0 %v5890, 44
        %v8052 = vpop.permute.xlu0 %8051
        %8053 = vrot.lane.b32.xlu0 %v5891, 44
        %v8054 = vpop.permute.xlu0 %8053
        %8055 = vrot.lane.b32.xlu0 %v5892, 44
        %v8056 = vpop.permute.xlu0 %8055
        %8057 = vrot.lane.b32.xlu0 %v5893, 44
        %v8058 = vpop.permute.xlu0 %8057
        %8059 = vrot.lane.b32.xlu0 %v5894, 44
        %v8060 = vpop.permute.xlu0 %8059
        %8061 = vrot.lane.b32.xlu0 %v5895, 44
        %v8062 = vpop.permute.xlu0 %8061
        %8063 = vrot.lane.b32.xlu0 %v5896, 44
        %v8064 = vpop.permute.xlu0 %8063
        %8065 = vrot.lane.b32.xlu0 %v5897, 44
        %v8066 = vpop.permute.xlu0 %8065
        %8067 = vrot.lane.b32.xlu0 %v5898, 44
        %v8068 = vpop.permute.xlu0 %8067
        %8069 = vrot.lane.b32.xlu0 %v5899, 44
        %v8070 = vpop.permute.xlu0 %8069
        %8071 = vrot.lane.b32.xlu0 %v5900, 44
        %v8072 = vpop.permute.xlu0 %8071
        %8073 = vrot.lane.b32.xlu0 %v5901, 44
        %v8074 = vpop.permute.xlu0 %8073
        %8075 = vrot.lane.b32.xlu0 %v5902, 44
        %v8076 = vpop.permute.xlu0 %8075
        %8077 = vrot.lane.b32.xlu0 %v5903, 44
        %v8078 = vpop.permute.xlu0 %8077
        %8079 = vrot.lane.b32.xlu0 %v5904, 44
        %v8080 = vpop.permute.xlu0 %8079
        %8081 = vrot.lane.b32.xlu0 %v5905, 44
        %v8082 = vpop.permute.xlu0 %8081
        %v8115 = vsel %vm3205, %v5392, %v6228
        %v8116 = vsel %vm3205, %v5393, %v6230
        %v8117 = vsel %vm3205, %v5394, %v6232
        %v8118 = vsel %vm3205, %v5395, %v6234
        %v8119 = vsel %vm3205, %v5396, %v6236
        %v8120 = vsel %vm3205, %v5397, %v6238
        %v8121 = vsel %vm3205, %v5398, %v6240
        %v8122 = vsel %vm3205, %v5399, %v6242
        %v8123 = vsel %vm3205, %v5400, %v6244
        %v8124 = vsel %vm3205, %v5401, %v6246
        %v8125 = vsel %vm3205, %v5402, %v6248
        %v8126 = vsel %vm3205, %v5403, %v6250
        %v8127 = vsel %vm3205, %v5404, %v6252
        %v8128 = vsel %vm3205, %v5405, %v6254
        %v8129 = vsel %vm3205, %v5406, %v6256
        %v8130 = vsel %vm3205, %v5407, %v6258
        %v8131 = vsel %vm3205, %v5408, %v6260
        %v8132 = vsel %vm3205, %v5409, %v6262
        %v8133 = vsel %vm3205, %v5410, %v6264
        %v8134 = vsel %vm3205, %v5411, %v6266
        %v8135 = vsel %vm3205, %v5412, %v6268
        %v8136 = vsel %vm3205, %v5413, %v6270
        %v8137 = vsel %vm3205, %v5414, %v6272
        %v8138 = vsel %vm3205, %v5415, %v6274
        %v8139 = vsel %vm3205, %v5416, %v6276
        %v8140 = vsel %vm3205, %v5417, %v6278
        %v8141 = vsel %vm3205, %v5418, %v6280
        %v8142 = vsel %vm3205, %v5419, %v6282
        %v8143 = vsel %vm3205, %v5420, %v6284
        %v8144 = vsel %vm3205, %v5421, %v6286
        %v8145 = vsel %vm3205, %v5422, %v6288
        %v8146 = vsel %vm3205, %v5423, %v6290
        %v8147 = vsel %vm3370, %v8115, %v6356
        %v8148 = vsel %vm3370, %v8116, %v6358
        %v8149 = vsel %vm3370, %v8117, %v6360
        %v8150 = vsel %vm3370, %v8118, %v6362
        %v8151 = vsel %vm3370, %v8119, %v6364
        %v8152 = vsel %vm3370, %v8120, %v6366
        %v8153 = vsel %vm3370, %v8121, %v6368
        %v8154 = vsel %vm3370, %v8122, %v6370
        %v8155 = vsel %vm3370, %v8123, %v6372
        %v8156 = vsel %vm3370, %v8124, %v6374
        %v8157 = vsel %vm3370, %v8125, %v6376
        %v8158 = vsel %vm3370, %v8126, %v6378
        %v8159 = vsel %vm3370, %v8127, %v6380
        %v8160 = vsel %vm3370, %v8128, %v6382
        %v8161 = vsel %vm3370, %v8129, %v6384
        %v8162 = vsel %vm3370, %v8130, %v6386
        %v8163 = vsel %vm3370, %v8131, %v6388
        %v8164 = vsel %vm3370, %v8132, %v6390
        %v8165 = vsel %vm3370, %v8133, %v6392
        %v8166 = vsel %vm3370, %v8134, %v6394
        %v8167 = vsel %vm3370, %v8135, %v6396
        %v8168 = vsel %vm3370, %v8136, %v6398
        %v8169 = vsel %vm3370, %v8137, %v6400
        %v8170 = vsel %vm3370, %v8138, %v6402
        %v8171 = vsel %vm3370, %v8139, %v6404
        %v8172 = vsel %vm3370, %v8140, %v6406
        %v8173 = vsel %vm3370, %v8141, %v6408
        %v8174 = vsel %vm3370, %v8142, %v6410
        %v8175 = vsel %vm3370, %v8143, %v6412
        %v8176 = vsel %vm3370, %v8144, %v6414
        %v8177 = vsel %vm3370, %v8145, %v6416
        %v8178 = vsel %vm3370, %v8146, %v6418
        %v8179 = vsel %vm3535, %v8147, %v6484
        %v8180 = vsel %vm3535, %v8148, %v6486
        %v8181 = vsel %vm3535, %v8149, %v6488
        %v8182 = vsel %vm3535, %v8150, %v6490
        %v8183 = vsel %vm3535, %v8151, %v6492
        %v8184 = vsel %vm3535, %v8152, %v6494
        %v8185 = vsel %vm3535, %v8153, %v6496
        %v8186 = vsel %vm3535, %v8154, %v6498
        %v8187 = vsel %vm3535, %v8155, %v6500
        %v8188 = vsel %vm3535, %v8156, %v6502
        %v8189 = vsel %vm3535, %v8157, %v6504
        %v8190 = vsel %vm3535, %v8158, %v6506
        %v8191 = vsel %vm3535, %v8159, %v6508
        %v8192 = vsel %vm3535, %v8160, %v6510
        %v8193 = vsel %vm3535, %v8161, %v6512
        %v8194 = vsel %vm3535, %v8162, %v6514
        %v8195 = vsel %vm3535, %v8163, %v6516
        %v8196 = vsel %vm3535, %v8164, %v6518
        %v8197 = vsel %vm3535, %v8165, %v6520
        %v8198 = vsel %vm3535, %v8166, %v6522
        %v8199 = vsel %vm3535, %v8167, %v6524
        %v8200 = vsel %vm3535, %v8168, %v6526
        %v8201 = vsel %vm3535, %v8169, %v6528
        %v8202 = vsel %vm3535, %v8170, %v6530
        %v8203 = vsel %vm3535, %v8171, %v6532
        %v8204 = vsel %vm3535, %v8172, %v6534
        %v8205 = vsel %vm3535, %v8173, %v6536
        %v8206 = vsel %vm3535, %v8174, %v6538
        %v8207 = vsel %vm3535, %v8175, %v6540
        %v8208 = vsel %vm3535, %v8176, %v6542
        %v8209 = vsel %vm3535, %v8177, %v6544
        %v8210 = vsel %vm3535, %v8178, %v6546
        %vm8211 = vcmask 654336
        %v8212 = vsel %vm8211, %v8179, %v6612
        %v8213 = vsel %vm8211, %v8180, %v6614
        %v8214 = vsel %vm8211, %v8181, %v6616
        %v8215 = vsel %vm8211, %v8182, %v6618
        %v8216 = vsel %vm8211, %v8183, %v6620
        %v8217 = vsel %vm8211, %v8184, %v6622
        %v8218 = vsel %vm8211, %v8185, %v6624
        %v8219 = vsel %vm8211, %v8186, %v6626
        %v8220 = vsel %vm8211, %v8187, %v6628
        %v8221 = vsel %vm8211, %v8188, %v6630
        %v8222 = vsel %vm8211, %v8189, %v6632
        %v8223 = vsel %vm8211, %v8190, %v6634
        %v8224 = vsel %vm8211, %v8191, %v6636
        %v8225 = vsel %vm8211, %v8192, %v6638
        %v8226 = vsel %vm8211, %v8193, %v6640
        %v8227 = vsel %vm8211, %v8194, %v6642
        %v8228 = vsel %vm8211, %v8195, %v6644
        %v8229 = vsel %vm8211, %v8196, %v6646
        %v8230 = vsel %vm8211, %v8197, %v6648
        %v8231 = vsel %vm8211, %v8198, %v6650
        %v8232 = vsel %vm8211, %v8199, %v6652
        %v8233 = vsel %vm8211, %v8200, %v6654
        %v8234 = vsel %vm8211, %v8201, %v6656
        %v8235 = vsel %vm8211, %v8202, %v6658
        %v8236 = vsel %vm8211, %v8203, %v6660
        %v8237 = vsel %vm8211, %v8204, %v6662
        %v8238 = vsel %vm8211, %v8205, %v6664
        %v8239 = vsel %vm8211, %v8206, %v6666
        %v8240 = vsel %vm8211, %v8207, %v6668
        %v8241 = vsel %vm8211, %v8208, %v6670
        %v8242 = vsel %vm8211, %v8209, %v6672
        %v8243 = vsel %vm8211, %v8210, %v6674
        %v8244 = vsel %vm5052, %v8212, %v6740
        %v8245 = vsel %vm5052, %v8213, %v6742
        %v8246 = vsel %vm5052, %v8214, %v6744
        %v8247 = vsel %vm5052, %v8215, %v6746
        %v8248 = vsel %vm5052, %v8216, %v6748
        %v8249 = vsel %vm5052, %v8217, %v6750
        %v8250 = vsel %vm5052, %v8218, %v6752
        %v8251 = vsel %vm5052, %v8219, %v6754
        %v8252 = vsel %vm5052, %v8220, %v6756
        %v8253 = vsel %vm5052, %v8221, %v6758
        %v8254 = vsel %vm5052, %v8222, %v6760
        %v8255 = vsel %vm5052, %v8223, %v6762
        %v8256 = vsel %vm5052, %v8224, %v6764
        %v8257 = vsel %vm5052, %v8225, %v6766
        %v8258 = vsel %vm5052, %v8226, %v6768
        %v8259 = vsel %vm5052, %v8227, %v6770
        %v8260 = vsel %vm5052, %v8228, %v6772
        %v8261 = vsel %vm5052, %v8229, %v6774
        %v8262 = vsel %vm5052, %v8230, %v6776
        %v8263 = vsel %vm5052, %v8231, %v6778
        %v8264 = vsel %vm5052, %v8232, %v6780
        %v8265 = vsel %vm5052, %v8233, %v6782
        %v8266 = vsel %vm5052, %v8234, %v6784
        %v8267 = vsel %vm5052, %v8235, %v6786
        %v8268 = vsel %vm5052, %v8236, %v6788
        %v8269 = vsel %vm5052, %v8237, %v6790
        %v8270 = vsel %vm5052, %v8238, %v6792
        %v8271 = vsel %vm5052, %v8239, %v6794
        %v8272 = vsel %vm5052, %v8240, %v6796
        %v8273 = vsel %vm5052, %v8241, %v6798
        %v8274 = vsel %vm5052, %v8242, %v6800
        %v8275 = vsel %vm5052, %v8243, %v6802
        %vm8276 = vcmask 982016
        %v8277 = vsel %vm8276, %v8244, %v6868
        %v8278 = vsel %vm8276, %v8245, %v6870
        %v8279 = vsel %vm8276, %v8246, %v6872
        %v8280 = vsel %vm8276, %v8247, %v6874
        %v8281 = vsel %vm8276, %v8248, %v6876
        %v8282 = vsel %vm8276, %v8249, %v6878
        %v8283 = vsel %vm8276, %v8250, %v6880
        %v8284 = vsel %vm8276, %v8251, %v6882
        %v8285 = vsel %vm8276, %v8252, %v6884
        %v8286 = vsel %vm8276, %v8253, %v6886
        %v8287 = vsel %vm8276, %v8254, %v6888
        %v8288 = vsel %vm8276, %v8255, %v6890
        %v8289 = vsel %vm8276, %v8256, %v6892
        %v8290 = vsel %vm8276, %v8257, %v6894
        %v8291 = vsel %vm8276, %v8258, %v6896
        %v8292 = vsel %vm8276, %v8259, %v6898
        %v8293 = vsel %vm8276, %v8260, %v6900
        %v8294 = vsel %vm8276, %v8261, %v6902
        %v8295 = vsel %vm8276, %v8262, %v6904
        %v8296 = vsel %vm8276, %v8263, %v6906
        %v8297 = vsel %vm8276, %v8264, %v6908
        %v8298 = vsel %vm8276, %v8265, %v6910
        %v8299 = vsel %vm8276, %v8266, %v6912
        %v8300 = vsel %vm8276, %v8267, %v6914
        %v8301 = vsel %vm8276, %v8268, %v6916
        %v8302 = vsel %vm8276, %v8269, %v6918
        %v8303 = vsel %vm8276, %v8270, %v6920
        %v8304 = vsel %vm8276, %v8271, %v6922
        %v8305 = vsel %vm8276, %v8272, %v6924
        %v8306 = vsel %vm8276, %v8273, %v6926
        %v8307 = vsel %vm8276, %v8274, %v6928
        %v8308 = vsel %vm8276, %v8275, %v6930
        %v8309 = vsel %vm3139, %v6868, %v6996
        %v8310 = vsel %vm3139, %v6870, %v6998
        %v8311 = vsel %vm3139, %v6872, %v7000
        %v8312 = vsel %vm3139, %v6874, %v7002
        %v8313 = vsel %vm3139, %v6876, %v7004
        %v8314 = vsel %vm3139, %v6878, %v7006
        %v8315 = vsel %vm3139, %v6880, %v7008
        %v8316 = vsel %vm3139, %v6882, %v7010
        %v8317 = vsel %vm3139, %v6884, %v7012
        %v8318 = vsel %vm3139, %v6886, %v7014
        %v8319 = vsel %vm3139, %v6888, %v7016
        %v8320 = vsel %vm3139, %v6890, %v7018
        %v8321 = vsel %vm3139, %v6892, %v7020
        %v8322 = vsel %vm3139, %v6894, %v7022
        %v8323 = vsel %vm3139, %v6896, %v7024
        %v8324 = vsel %vm3139, %v6898, %v7026
        %v8325 = vsel %vm3139, %v6900, %v7028
        %v8326 = vsel %vm3139, %v6902, %v7030
        %v8327 = vsel %vm3139, %v6904, %v7032
        %v8328 = vsel %vm3139, %v6906, %v7034
        %v8329 = vsel %vm3139, %v6908, %v7036
        %v8330 = vsel %vm3139, %v6910, %v7038
        %v8331 = vsel %vm3139, %v6912, %v7040
        %v8332 = vsel %vm3139, %v6914, %v7042
        %v8333 = vsel %vm3139, %v6916, %v7044
        %v8334 = vsel %vm3139, %v6918, %v7046
        %v8335 = vsel %vm3139, %v6920, %v7048
        %v8336 = vsel %vm3139, %v6922, %v7050
        %v8337 = vsel %vm3139, %v6924, %v7052
        %v8338 = vsel %vm3139, %v6926, %v7054
        %v8339 = vsel %vm3139, %v6928, %v7056
        %v8340 = vsel %vm3139, %v6930, %v7058
        %v8341 = vsel %vm3304, %v8309, %v7124
        %v8342 = vsel %vm3304, %v8310, %v7126
        %v8343 = vsel %vm3304, %v8311, %v7128
        %v8344 = vsel %vm3304, %v8312, %v7130
        %v8345 = vsel %vm3304, %v8313, %v7132
        %v8346 = vsel %vm3304, %v8314, %v7134
        %v8347 = vsel %vm3304, %v8315, %v7136
        %v8348 = vsel %vm3304, %v8316, %v7138
        %v8349 = vsel %vm3304, %v8317, %v7140
        %v8350 = vsel %vm3304, %v8318, %v7142
        %v8351 = vsel %vm3304, %v8319, %v7144
        %v8352 = vsel %vm3304, %v8320, %v7146
        %v8353 = vsel %vm3304, %v8321, %v7148
        %v8354 = vsel %vm3304, %v8322, %v7150
        %v8355 = vsel %vm3304, %v8323, %v7152
        %v8356 = vsel %vm3304, %v8324, %v7154
        %v8357 = vsel %vm3304, %v8325, %v7156
        %v8358 = vsel %vm3304, %v8326, %v7158
        %v8359 = vsel %vm3304, %v8327, %v7160
        %v8360 = vsel %vm3304, %v8328, %v7162
        %v8361 = vsel %vm3304, %v8329, %v7164
        %v8362 = vsel %vm3304, %v8330, %v7166
        %v8363 = vsel %vm3304, %v8331, %v7168
        %v8364 = vsel %vm3304, %v8332, %v7170
        %v8365 = vsel %vm3304, %v8333, %v7172
        %v8366 = vsel %vm3304, %v8334, %v7174
        %v8367 = vsel %vm3304, %v8335, %v7176
        %v8368 = vsel %vm3304, %v8336, %v7178
        %v8369 = vsel %vm3304, %v8337, %v7180
        %v8370 = vsel %vm3304, %v8338, %v7182
        %v8371 = vsel %vm3304, %v8339, %v7184
        %v8372 = vsel %vm3304, %v8340, %v7186
        %v8373 = vsel %vm3469, %v8341, %v7252
        %v8374 = vsel %vm3469, %v8342, %v7254
        %v8375 = vsel %vm3469, %v8343, %v7256
        %v8376 = vsel %vm3469, %v8344, %v7258
        %v8377 = vsel %vm3469, %v8345, %v7260
        %v8378 = vsel %vm3469, %v8346, %v7262
        %v8379 = vsel %vm3469, %v8347, %v7264
        %v8380 = vsel %vm3469, %v8348, %v7266
        %v8381 = vsel %vm3469, %v8349, %v7268
        %v8382 = vsel %vm3469, %v8350, %v7270
        %v8383 = vsel %vm3469, %v8351, %v7272
        %v8384 = vsel %vm3469, %v8352, %v7274
        %v8385 = vsel %vm3469, %v8353, %v7276
        %v8386 = vsel %vm3469, %v8354, %v7278
        %v8387 = vsel %vm3469, %v8355, %v7280
        %v8388 = vsel %vm3469, %v8356, %v7282
        %v8389 = vsel %vm3469, %v8357, %v7284
        %v8390 = vsel %vm3469, %v8358, %v7286
        %v8391 = vsel %vm3469, %v8359, %v7288
        %v8392 = vsel %vm3469, %v8360, %v7290
        %v8393 = vsel %vm3469, %v8361, %v7292
        %v8394 = vsel %vm3469, %v8362, %v7294
        %v8395 = vsel %vm3469, %v8363, %v7296
        %v8396 = vsel %vm3469, %v8364, %v7298
        %v8397 = vsel %vm3469, %v8365, %v7300
        %v8398 = vsel %vm3469, %v8366, %v7302
        %v8399 = vsel %vm3469, %v8367, %v7304
        %v8400 = vsel %vm3469, %v8368, %v7306
        %v8401 = vsel %vm3469, %v8369, %v7308
        %v8402 = vsel %vm3469, %v8370, %v7310
        %v8403 = vsel %vm3469, %v8371, %v7312
        %v8404 = vsel %vm3469, %v8372, %v7314
        %vm8405 = vcmask 588800
        %v8406 = vsel %vm8405, %v8373, %v7380
        %v8407 = vsel %vm8405, %v8374, %v7382
        %v8408 = vsel %vm8405, %v8375, %v7384
        %v8409 = vsel %vm8405, %v8376, %v7386
        %v8410 = vsel %vm8405, %v8377, %v7388
        %v8411 = vsel %vm8405, %v8378, %v7390
        %v8412 = vsel %vm8405, %v8379, %v7392
        %v8413 = vsel %vm8405, %v8380, %v7394
        %v8414 = vsel %vm8405, %v8381, %v7396
        %v8415 = vsel %vm8405, %v8382, %v7398
        %v8416 = vsel %vm8405, %v8383, %v7400
        %v8417 = vsel %vm8405, %v8384, %v7402
        %v8418 = vsel %vm8405, %v8385, %v7404
        %v8419 = vsel %vm8405, %v8386, %v7406
        %v8420 = vsel %vm8405, %v8387, %v7408
        %v8421 = vsel %vm8405, %v8388, %v7410
        %v8422 = vsel %vm8405, %v8389, %v7412
        %v8423 = vsel %vm8405, %v8390, %v7414
        %v8424 = vsel %vm8405, %v8391, %v7416
        %v8425 = vsel %vm8405, %v8392, %v7418
        %v8426 = vsel %vm8405, %v8393, %v7420
        %v8427 = vsel %vm8405, %v8394, %v7422
        %v8428 = vsel %vm8405, %v8395, %v7424
        %v8429 = vsel %vm8405, %v8396, %v7426
        %v8430 = vsel %vm8405, %v8397, %v7428
        %v8431 = vsel %vm8405, %v8398, %v7430
        %v8432 = vsel %vm8405, %v8399, %v7432
        %v8433 = vsel %vm8405, %v8400, %v7434
        %v8434 = vsel %vm8405, %v8401, %v7436
        %v8435 = vsel %vm8405, %v8402, %v7438
        %v8436 = vsel %vm8405, %v8403, %v7440
        %v8437 = vsel %vm8405, %v8404, %v7442
        %vm8438 = vcmask 752640
        %v8439 = vsel %vm8438, %v8406, %v7508
        %v8440 = vsel %vm8438, %v8407, %v7510
        %v8441 = vsel %vm8438, %v8408, %v7512
        %v8442 = vsel %vm8438, %v8409, %v7514
        %v8443 = vsel %vm8438, %v8410, %v7516
        %v8444 = vsel %vm8438, %v8411, %v7518
        %v8445 = vsel %vm8438, %v8412, %v7520
        %v8446 = vsel %vm8438, %v8413, %v7522
        %v8447 = vsel %vm8438, %v8414, %v7524
        %v8448 = vsel %vm8438, %v8415, %v7526
        %v8449 = vsel %vm8438, %v8416, %v7528
        %v8450 = vsel %vm8438, %v8417, %v7530
        %v8451 = vsel %vm8438, %v8418, %v7532
        %v8452 = vsel %vm8438, %v8419, %v7534
        %v8453 = vsel %vm8438, %v8420, %v7536
        %v8454 = vsel %vm8438, %v8421, %v7538
        %v8455 = vsel %vm8438, %v8422, %v7540
        %v8456 = vsel %vm8438, %v8423, %v7542
        %v8457 = vsel %vm8438, %v8424, %v7544
        %v8458 = vsel %vm8438, %v8425, %v7546
        %v8459 = vsel %vm8438, %v8426, %v7548
        %v8460 = vsel %vm8438, %v8427, %v7550
        %v8461 = vsel %vm8438, %v8428, %v7552
        %v8462 = vsel %vm8438, %v8429, %v7554
        %v8463 = vsel %vm8438, %v8430, %v7556
        %v8464 = vsel %vm8438, %v8431, %v7558
        %v8465 = vsel %vm8438, %v8432, %v7560
        %v8466 = vsel %vm8438, %v8433, %v7562
        %v8467 = vsel %vm8438, %v8434, %v7564
        %v8468 = vsel %vm8438, %v8435, %v7566
        %v8469 = vsel %vm8438, %v8436, %v7568
        %v8470 = vsel %vm8438, %v8437, %v7570
        %vm8471 = vcmask 916480
        %v8472 = vsel %vm8471, %v8439, %v7636
        %v8473 = vsel %vm8471, %v8440, %v7638
        %v8474 = vsel %vm8471, %v8441, %v7640
        %v8475 = vsel %vm8471, %v8442, %v7642
        %v8476 = vsel %vm8471, %v8443, %v7644
        %v8477 = vsel %vm8471, %v8444, %v7646
        %v8478 = vsel %vm8471, %v8445, %v7648
        %v8479 = vsel %vm8471, %v8446, %v7650
        %v8480 = vsel %vm8471, %v8447, %v7652
        %v8481 = vsel %vm8471, %v8448, %v7654
        %v8482 = vsel %vm8471, %v8449, %v7656
        %v8483 = vsel %vm8471, %v8450, %v7658
        %v8484 = vsel %vm8471, %v8451, %v7660
        %v8485 = vsel %vm8471, %v8452, %v7662
        %v8486 = vsel %vm8471, %v8453, %v7664
        %v8487 = vsel %vm8471, %v8454, %v7666
        %v8488 = vsel %vm8471, %v8455, %v7668
        %v8489 = vsel %vm8471, %v8456, %v7670
        %v8490 = vsel %vm8471, %v8457, %v7672
        %v8491 = vsel %vm8471, %v8458, %v7674
        %v8492 = vsel %vm8471, %v8459, %v7676
        %v8493 = vsel %vm8471, %v8460, %v7678
        %v8494 = vsel %vm8471, %v8461, %v7680
        %v8495 = vsel %vm8471, %v8462, %v7682
        %v8496 = vsel %vm8471, %v8463, %v7684
        %v8497 = vsel %vm8471, %v8464, %v7686
        %v8498 = vsel %vm8471, %v8465, %v7688
        %v8499 = vsel %vm8471, %v8466, %v7690
        %v8500 = vsel %vm8471, %v8467, %v7692
        %v8501 = vsel %vm8471, %v8468, %v7694
        %v8502 = vsel %vm8471, %v8469, %v7696
        %v8503 = vsel %vm8471, %v8470, %v7698
        %v8504 = vsel %vm224, %v7636, %v7764
        %v8505 = vsel %vm224, %v7638, %v7766
        %v8506 = vsel %vm224, %v7640, %v7768
        %v8507 = vsel %vm224, %v7642, %v7770
        %v8508 = vsel %vm224, %v7644, %v7772
        %v8509 = vsel %vm224, %v7646, %v7774
        %v8510 = vsel %vm224, %v7648, %v7776
        %v8511 = vsel %vm224, %v7650, %v7778
        %v8512 = vsel %vm224, %v7652, %v7780
        %v8513 = vsel %vm224, %v7654, %v7782
        %v8514 = vsel %vm224, %v7656, %v7784
        %v8515 = vsel %vm224, %v7658, %v7786
        %v8516 = vsel %vm224, %v7660, %v7788
        %v8517 = vsel %vm224, %v7662, %v7790
        %v8518 = vsel %vm224, %v7664, %v7792
        %v8519 = vsel %vm224, %v7666, %v7794
        %v8520 = vsel %vm224, %v7668, %v7796
        %v8521 = vsel %vm224, %v7670, %v7798
        %v8522 = vsel %vm224, %v7672, %v7800
        %v8523 = vsel %vm224, %v7674, %v7802
        %v8524 = vsel %vm224, %v7676, %v7804
        %v8525 = vsel %vm224, %v7678, %v7806
        %v8526 = vsel %vm224, %v7680, %v7808
        %v8527 = vsel %vm224, %v7682, %v7810
        %v8528 = vsel %vm224, %v7684, %v7812
        %v8529 = vsel %vm224, %v7686, %v7814
        %v8530 = vsel %vm224, %v7688, %v7816
        %v8531 = vsel %vm224, %v7690, %v7818
        %v8532 = vsel %vm224, %v7692, %v7820
        %v8533 = vsel %vm224, %v7694, %v7822
        %v8534 = vsel %vm224, %v7696, %v7824
        %v8535 = vsel %vm224, %v7698, %v7826
        %v8536 = vsel %vm3238, %v8504, %v7892
        %v8537 = vsel %vm3238, %v8505, %v7894
        %v8538 = vsel %vm3238, %v8506, %v7896
        %v8539 = vsel %vm3238, %v8507, %v7898
        %v8540 = vsel %vm3238, %v8508, %v7900
        %v8541 = vsel %vm3238, %v8509, %v7902
        %v8542 = vsel %vm3238, %v8510, %v7904
        %v8543 = vsel %vm3238, %v8511, %v7906
        %v8544 = vsel %vm3238, %v8512, %v7908
        %v8545 = vsel %vm3238, %v8513, %v7910
        %v8546 = vsel %vm3238, %v8514, %v7912
        %v8547 = vsel %vm3238, %v8515, %v7914
        %v8548 = vsel %vm3238, %v8516, %v7916
        %v8549 = vsel %vm3238, %v8517, %v7918
        %v8550 = vsel %vm3238, %v8518, %v7920
        %v8551 = vsel %vm3238, %v8519, %v7922
        %v8552 = vsel %vm3238, %v8520, %v7924
        %v8553 = vsel %vm3238, %v8521, %v7926
        %v8554 = vsel %vm3238, %v8522, %v7928
        %v8555 = vsel %vm3238, %v8523, %v7930
        %v8556 = vsel %vm3238, %v8524, %v7932
        %v8557 = vsel %vm3238, %v8525, %v7934
        %v8558 = vsel %vm3238, %v8526, %v7936
        %v8559 = vsel %vm3238, %v8527, %v7938
        %v8560 = vsel %vm3238, %v8528, %v7940
        %v8561 = vsel %vm3238, %v8529, %v7942
        %v8562 = vsel %vm3238, %v8530, %v7944
        %v8563 = vsel %vm3238, %v8531, %v7946
        %v8564 = vsel %vm3238, %v8532, %v7948
        %v8565 = vsel %vm3238, %v8533, %v7950
        %v8566 = vsel %vm3238, %v8534, %v7952
        %v8567 = vsel %vm3238, %v8535, %v7954
        %v8568 = vsel %vm3403, %v8536, %v8020
        %v8569 = vsel %vm3403, %v8537, %v8022
        %v8570 = vsel %vm3403, %v8538, %v8024
        %v8571 = vsel %vm3403, %v8539, %v8026
        %v8572 = vsel %vm3403, %v8540, %v8028
        %v8573 = vsel %vm3403, %v8541, %v8030
        %v8574 = vsel %vm3403, %v8542, %v8032
        %v8575 = vsel %vm3403, %v8543, %v8034
        %v8576 = vsel %vm3403, %v8544, %v8036
        %v8577 = vsel %vm3403, %v8545, %v8038
        %v8578 = vsel %vm3403, %v8546, %v8040
        %v8579 = vsel %vm3403, %v8547, %v8042
        %v8580 = vsel %vm3403, %v8548, %v8044
        %v8581 = vsel %vm3403, %v8549, %v8046
        %v8582 = vsel %vm3403, %v8550, %v8048
        %v8583 = vsel %vm3403, %v8551, %v8050
        %v8584 = vsel %vm3403, %v8552, %v8052
        %v8585 = vsel %vm3403, %v8553, %v8054
        %v8586 = vsel %vm3403, %v8554, %v8056
        %v8587 = vsel %vm3403, %v8555, %v8058
        %v8588 = vsel %vm3403, %v8556, %v8060
        %v8589 = vsel %vm3403, %v8557, %v8062
        %v8590 = vsel %vm3403, %v8558, %v8064
        %v8591 = vsel %vm3403, %v8559, %v8066
        %v8592 = vsel %vm3403, %v8560, %v8068
        %v8593 = vsel %vm3403, %v8561, %v8070
        %v8594 = vsel %vm3403, %v8562, %v8072
        %v8595 = vsel %vm3403, %v8563, %v8074
        %v8596 = vsel %vm3403, %v8564, %v8076
        %v8597 = vsel %vm3403, %v8565, %v8078
        %v8598 = vsel %vm3403, %v8566, %v8080
        %v8599 = vsel %vm3403, %v8567, %v8082
        %8632 = vrot.lane.b32.xlu0 %v5938, 20
        %v8633 = vpop.permute.xlu0 %8632
        %8634 = vrot.lane.b32.xlu0 %v5939, 20
        %v8635 = vpop.permute.xlu0 %8634
        %8636 = vrot.lane.b32.xlu0 %v5940, 20
        %v8637 = vpop.permute.xlu0 %8636
        %8638 = vrot.lane.b32.xlu0 %v5941, 20
        %v8639 = vpop.permute.xlu0 %8638
        %8640 = vrot.lane.b32.xlu0 %v5942, 20
        %v8641 = vpop.permute.xlu0 %8640
        %8642 = vrot.lane.b32.xlu0 %v5943, 20
        %v8643 = vpop.permute.xlu0 %8642
        %8644 = vrot.lane.b32.xlu0 %v5944, 20
        %v8645 = vpop.permute.xlu0 %8644
        %8646 = vrot.lane.b32.xlu0 %v5945, 20
        %v8647 = vpop.permute.xlu0 %8646
        %8648 = vrot.lane.b32.xlu0 %v5946, 20
        %v8649 = vpop.permute.xlu0 %8648
        %8650 = vrot.lane.b32.xlu0 %v5947, 20
        %v8651 = vpop.permute.xlu0 %8650
        %8652 = vrot.lane.b32.xlu0 %v5948, 20
        %v8653 = vpop.permute.xlu0 %8652
        %8654 = vrot.lane.b32.xlu0 %v5949, 20
        %v8655 = vpop.permute.xlu0 %8654
        %8656 = vrot.lane.b32.xlu0 %v5950, 20
        %v8657 = vpop.permute.xlu0 %8656
        %8658 = vrot.lane.b32.xlu0 %v5951, 20
        %v8659 = vpop.permute.xlu0 %8658
        %8660 = vrot.lane.b32.xlu0 %v5952, 20
        %v8661 = vpop.permute.xlu0 %8660
        %8662 = vrot.lane.b32.xlu0 %v5953, 20
        %v8663 = vpop.permute.xlu0 %8662
        %8664 = vrot.lane.b32.xlu0 %v5954, 20
        %v8665 = vpop.permute.xlu0 %8664
        %8666 = vrot.lane.b32.xlu0 %v5955, 20
        %v8667 = vpop.permute.xlu0 %8666
        %8668 = vrot.lane.b32.xlu0 %v5956, 20
        %v8669 = vpop.permute.xlu0 %8668
        %8670 = vrot.lane.b32.xlu0 %v5957, 20
        %v8671 = vpop.permute.xlu0 %8670
        %8672 = vrot.lane.b32.xlu0 %v5958, 20
        %v8673 = vpop.permute.xlu0 %8672
        %8674 = vrot.lane.b32.xlu0 %v5959, 20
        %v8675 = vpop.permute.xlu0 %8674
        %8676 = vrot.lane.b32.xlu0 %v5960, 20
        %v8677 = vpop.permute.xlu0 %8676
        %8678 = vrot.lane.b32.xlu0 %v5961, 20
        %v8679 = vpop.permute.xlu0 %8678
        %8680 = vrot.lane.b32.xlu0 %v5962, 20
        %v8681 = vpop.permute.xlu0 %8680
        %8682 = vrot.lane.b32.xlu0 %v5963, 20
        %v8683 = vpop.permute.xlu0 %8682
        %8684 = vrot.lane.b32.xlu0 %v5964, 20
        %v8685 = vpop.permute.xlu0 %8684
        %8686 = vrot.lane.b32.xlu0 %v5965, 20
        %v8687 = vpop.permute.xlu0 %8686
        %8688 = vrot.lane.b32.xlu0 %v5966, 20
        %v8689 = vpop.permute.xlu0 %8688
        %8690 = vrot.lane.b32.xlu0 %v5967, 20
        %v8691 = vpop.permute.xlu0 %8690
        %8692 = vrot.lane.b32.xlu0 %v5968, 20
        %v8693 = vpop.permute.xlu0 %8692
        %8694 = vrot.lane.b32.xlu0 %v5969, 20
        %v8695 = vpop.permute.xlu0 %8694
        %8760 = vrot.lane.b32.xlu0 %v5970, 40
        %v8761 = vpop.permute.xlu0 %8760
        %8762 = vrot.lane.b32.xlu0 %v5971, 40
        %v8763 = vpop.permute.xlu0 %8762
        %8764 = vrot.lane.b32.xlu0 %v5972, 40
        %v8765 = vpop.permute.xlu0 %8764
        %8766 = vrot.lane.b32.xlu0 %v5973, 40
        %v8767 = vpop.permute.xlu0 %8766
        %8768 = vrot.lane.b32.xlu0 %v5974, 40
        %v8769 = vpop.permute.xlu0 %8768
        %8770 = vrot.lane.b32.xlu0 %v5975, 40
        %v8771 = vpop.permute.xlu0 %8770
        %8772 = vrot.lane.b32.xlu0 %v5976, 40
        %v8773 = vpop.permute.xlu0 %8772
        %8774 = vrot.lane.b32.xlu0 %v5977, 40
        %v8775 = vpop.permute.xlu0 %8774
        %8776 = vrot.lane.b32.xlu0 %v5978, 40
        %v8777 = vpop.permute.xlu0 %8776
        %8778 = vrot.lane.b32.xlu0 %v5979, 40
        %v8779 = vpop.permute.xlu0 %8778
        %8780 = vrot.lane.b32.xlu0 %v5980, 40
        %v8781 = vpop.permute.xlu0 %8780
        %8782 = vrot.lane.b32.xlu0 %v5981, 40
        %v8783 = vpop.permute.xlu0 %8782
        %8784 = vrot.lane.b32.xlu0 %v5982, 40
        %v8785 = vpop.permute.xlu0 %8784
        %8786 = vrot.lane.b32.xlu0 %v5983, 40
        %v8787 = vpop.permute.xlu0 %8786
        %8788 = vrot.lane.b32.xlu0 %v5984, 40
        %v8789 = vpop.permute.xlu0 %8788
        %8790 = vrot.lane.b32.xlu0 %v5985, 40
        %v8791 = vpop.permute.xlu0 %8790
        %8792 = vrot.lane.b32.xlu0 %v5986, 40
        %v8793 = vpop.permute.xlu0 %8792
        %8794 = vrot.lane.b32.xlu0 %v5987, 40
        %v8795 = vpop.permute.xlu0 %8794
        %8796 = vrot.lane.b32.xlu0 %v5988, 40
        %v8797 = vpop.permute.xlu0 %8796
        %8798 = vrot.lane.b32.xlu0 %v5989, 40
        %v8799 = vpop.permute.xlu0 %8798
        %8800 = vrot.lane.b32.xlu0 %v5990, 40
        %v8801 = vpop.permute.xlu0 %8800
        %8802 = vrot.lane.b32.xlu0 %v5991, 40
        %v8803 = vpop.permute.xlu0 %8802
        %8804 = vrot.lane.b32.xlu0 %v5992, 40
        %v8805 = vpop.permute.xlu0 %8804
        %8806 = vrot.lane.b32.xlu0 %v5993, 40
        %v8807 = vpop.permute.xlu0 %8806
        %8808 = vrot.lane.b32.xlu0 %v5994, 40
        %v8809 = vpop.permute.xlu0 %8808
        %8810 = vrot.lane.b32.xlu0 %v5995, 40
        %v8811 = vpop.permute.xlu0 %8810
        %8812 = vrot.lane.b32.xlu0 %v5996, 40
        %v8813 = vpop.permute.xlu0 %8812
        %8814 = vrot.lane.b32.xlu0 %v5997, 40
        %v8815 = vpop.permute.xlu0 %8814
        %8816 = vrot.lane.b32.xlu0 %v5998, 40
        %v8817 = vpop.permute.xlu0 %8816
        %8818 = vrot.lane.b32.xlu0 %v5999, 40
        %v8819 = vpop.permute.xlu0 %8818
        %8820 = vrot.lane.b32.xlu0 %v6000, 40
        %v8821 = vpop.permute.xlu0 %8820
        %8822 = vrot.lane.b32.xlu0 %v6001, 40
        %v8823 = vpop.permute.xlu0 %8822
        %8888 = vrot.lane.b32.xlu0 %v6002, 60
        %v8889 = vpop.permute.xlu0 %8888
        %8890 = vrot.lane.b32.xlu0 %v6003, 60
        %v8891 = vpop.permute.xlu0 %8890
        %8892 = vrot.lane.b32.xlu0 %v6004, 60
        %v8893 = vpop.permute.xlu0 %8892
        %8894 = vrot.lane.b32.xlu0 %v6005, 60
        %v8895 = vpop.permute.xlu0 %8894
        %8896 = vrot.lane.b32.xlu0 %v6006, 60
        %v8897 = vpop.permute.xlu0 %8896
        %8898 = vrot.lane.b32.xlu0 %v6007, 60
        %v8899 = vpop.permute.xlu0 %8898
        %8900 = vrot.lane.b32.xlu0 %v6008, 60
        %v8901 = vpop.permute.xlu0 %8900
        %8902 = vrot.lane.b32.xlu0 %v6009, 60
        %v8903 = vpop.permute.xlu0 %8902
        %8904 = vrot.lane.b32.xlu0 %v6010, 60
        %v8905 = vpop.permute.xlu0 %8904
        %8906 = vrot.lane.b32.xlu0 %v6011, 60
        %v8907 = vpop.permute.xlu0 %8906
        %8908 = vrot.lane.b32.xlu0 %v6012, 60
        %v8909 = vpop.permute.xlu0 %8908
        %8910 = vrot.lane.b32.xlu0 %v6013, 60
        %v8911 = vpop.permute.xlu0 %8910
        %8912 = vrot.lane.b32.xlu0 %v6014, 60
        %v8913 = vpop.permute.xlu0 %8912
        %8914 = vrot.lane.b32.xlu0 %v6015, 60
        %v8915 = vpop.permute.xlu0 %8914
        %8916 = vrot.lane.b32.xlu0 %v6016, 60
        %v8917 = vpop.permute.xlu0 %8916
        %8918 = vrot.lane.b32.xlu0 %v6017, 60
        %v8919 = vpop.permute.xlu0 %8918
        %8920 = vrot.lane.b32.xlu0 %v6018, 60
        %v8921 = vpop.permute.xlu0 %8920
        %8922 = vrot.lane.b32.xlu0 %v6019, 60
        %v8923 = vpop.permute.xlu0 %8922
        %8924 = vrot.lane.b32.xlu0 %v6020, 60
        %v8925 = vpop.permute.xlu0 %8924
        %8926 = vrot.lane.b32.xlu0 %v6021, 60
        %v8927 = vpop.permute.xlu0 %8926
        %8928 = vrot.lane.b32.xlu0 %v6022, 60
        %v8929 = vpop.permute.xlu0 %8928
        %8930 = vrot.lane.b32.xlu0 %v6023, 60
        %v8931 = vpop.permute.xlu0 %8930
        %8932 = vrot.lane.b32.xlu0 %v6024, 60
        %v8933 = vpop.permute.xlu0 %8932
        %8934 = vrot.lane.b32.xlu0 %v6025, 60
        %v8935 = vpop.permute.xlu0 %8934
        %8936 = vrot.lane.b32.xlu0 %v6026, 60
        %v8937 = vpop.permute.xlu0 %8936
        %8938 = vrot.lane.b32.xlu0 %v6027, 60
        %v8939 = vpop.permute.xlu0 %8938
        %8940 = vrot.lane.b32.xlu0 %v6028, 60
        %v8941 = vpop.permute.xlu0 %8940
        %8942 = vrot.lane.b32.xlu0 %v6029, 60
        %v8943 = vpop.permute.xlu0 %8942
        %8944 = vrot.lane.b32.xlu0 %v6030, 60
        %v8945 = vpop.permute.xlu0 %8944
        %8946 = vrot.lane.b32.xlu0 %v6031, 60
        %v8947 = vpop.permute.xlu0 %8946
        %8948 = vrot.lane.b32.xlu0 %v6032, 60
        %v8949 = vpop.permute.xlu0 %8948
        %8950 = vrot.lane.b32.xlu0 %v6033, 60
        %v8951 = vpop.permute.xlu0 %8950
        %9016 = vrot.lane.b32.xlu0 %v6035, 80
        %v9017 = vpop.permute.xlu0 %9016
        %9018 = vrot.lane.b32.xlu0 %v6036, 80
        %v9019 = vpop.permute.xlu0 %9018
        %9020 = vrot.lane.b32.xlu0 %v6037, 80
        %v9021 = vpop.permute.xlu0 %9020
        %9022 = vrot.lane.b32.xlu0 %v6038, 80
        %v9023 = vpop.permute.xlu0 %9022
        %9024 = vrot.lane.b32.xlu0 %v6039, 80
        %v9025 = vpop.permute.xlu0 %9024
        %9026 = vrot.lane.b32.xlu0 %v6040, 80
        %v9027 = vpop.permute.xlu0 %9026
        %9028 = vrot.lane.b32.xlu0 %v6041, 80
        %v9029 = vpop.permute.xlu0 %9028
        %9030 = vrot.lane.b32.xlu0 %v6042, 80
        %v9031 = vpop.permute.xlu0 %9030
        %9032 = vrot.lane.b32.xlu0 %v6043, 80
        %v9033 = vpop.permute.xlu0 %9032
        %9034 = vrot.lane.b32.xlu0 %v6044, 80
        %v9035 = vpop.permute.xlu0 %9034
        %9036 = vrot.lane.b32.xlu0 %v6045, 80
        %v9037 = vpop.permute.xlu0 %9036
        %9038 = vrot.lane.b32.xlu0 %v6046, 80
        %v9039 = vpop.permute.xlu0 %9038
        %9040 = vrot.lane.b32.xlu0 %v6047, 80
        %v9041 = vpop.permute.xlu0 %9040
        %9042 = vrot.lane.b32.xlu0 %v6048, 80
        %v9043 = vpop.permute.xlu0 %9042
        %9044 = vrot.lane.b32.xlu0 %v6049, 80
        %v9045 = vpop.permute.xlu0 %9044
        %9046 = vrot.lane.b32.xlu0 %v6050, 80
        %v9047 = vpop.permute.xlu0 %9046
        %9048 = vrot.lane.b32.xlu0 %v6051, 80
        %v9049 = vpop.permute.xlu0 %9048
        %9050 = vrot.lane.b32.xlu0 %v6052, 80
        %v9051 = vpop.permute.xlu0 %9050
        %9052 = vrot.lane.b32.xlu0 %v6053, 80
        %v9053 = vpop.permute.xlu0 %9052
        %9054 = vrot.lane.b32.xlu0 %v6054, 80
        %v9055 = vpop.permute.xlu0 %9054
        %9056 = vrot.lane.b32.xlu0 %v6055, 80
        %v9057 = vpop.permute.xlu0 %9056
        %9058 = vrot.lane.b32.xlu0 %v6056, 80
        %v9059 = vpop.permute.xlu0 %9058
        %9060 = vrot.lane.b32.xlu0 %v6057, 80
        %v9061 = vpop.permute.xlu0 %9060
        %9062 = vrot.lane.b32.xlu0 %v6058, 80
        %v9063 = vpop.permute.xlu0 %9062
        %9064 = vrot.lane.b32.xlu0 %v6059, 80
        %v9065 = vpop.permute.xlu0 %9064
        %9066 = vrot.lane.b32.xlu0 %v6060, 80
        %v9067 = vpop.permute.xlu0 %9066
        %9068 = vrot.lane.b32.xlu0 %v6061, 80
        %v9069 = vpop.permute.xlu0 %9068
        %9070 = vrot.lane.b32.xlu0 %v6062, 80
        %v9071 = vpop.permute.xlu0 %9070
        %9072 = vrot.lane.b32.xlu0 %v6063, 80
        %v9073 = vpop.permute.xlu0 %9072
        %9074 = vrot.lane.b32.xlu0 %v6064, 80
        %v9075 = vpop.permute.xlu0 %9074
        %9076 = vrot.lane.b32.xlu0 %v6065, 80
        %v9077 = vpop.permute.xlu0 %9076
        %9078 = vrot.lane.b32.xlu0 %v6066, 80
        %v9079 = vpop.permute.xlu0 %9078
        %9144 = vrot.lane.b32.xlu0 %v6067, 100
        %v9145 = vpop.permute.xlu0 %9144
        %9146 = vrot.lane.b32.xlu0 %v6068, 100
        %v9147 = vpop.permute.xlu0 %9146
        %9148 = vrot.lane.b32.xlu0 %v6069, 100
        %v9149 = vpop.permute.xlu0 %9148
        %9150 = vrot.lane.b32.xlu0 %v6070, 100
        %v9151 = vpop.permute.xlu0 %9150
        %9152 = vrot.lane.b32.xlu0 %v6071, 100
        %v9153 = vpop.permute.xlu0 %9152
        %9154 = vrot.lane.b32.xlu0 %v6072, 100
        %v9155 = vpop.permute.xlu0 %9154
        %9156 = vrot.lane.b32.xlu0 %v6073, 100
        %v9157 = vpop.permute.xlu0 %9156
        %9158 = vrot.lane.b32.xlu0 %v6074, 100
        %v9159 = vpop.permute.xlu0 %9158
        %9160 = vrot.lane.b32.xlu0 %v6075, 100
        %v9161 = vpop.permute.xlu0 %9160
        %9162 = vrot.lane.b32.xlu0 %v6076, 100
        %v9163 = vpop.permute.xlu0 %9162
        %9164 = vrot.lane.b32.xlu0 %v6077, 100
        %v9165 = vpop.permute.xlu0 %9164
        %9166 = vrot.lane.b32.xlu0 %v6078, 100
        %v9167 = vpop.permute.xlu0 %9166
        %9168 = vrot.lane.b32.xlu0 %v6079, 100
        %v9169 = vpop.permute.xlu0 %9168
        %9170 = vrot.lane.b32.xlu0 %v6080, 100
        %v9171 = vpop.permute.xlu0 %9170
        %9172 = vrot.lane.b32.xlu0 %v6081, 100
        %v9173 = vpop.permute.xlu0 %9172
        %9174 = vrot.lane.b32.xlu0 %v6082, 100
        %v9175 = vpop.permute.xlu0 %9174
        %9176 = vrot.lane.b32.xlu0 %v6083, 100
        %v9177 = vpop.permute.xlu0 %9176
        %9178 = vrot.lane.b32.xlu0 %v6084, 100
        %v9179 = vpop.permute.xlu0 %9178
        %9180 = vrot.lane.b32.xlu0 %v6085, 100
        %v9181 = vpop.permute.xlu0 %9180
        %9182 = vrot.lane.b32.xlu0 %v6086, 100
        %v9183 = vpop.permute.xlu0 %9182
        %9184 = vrot.lane.b32.xlu0 %v6087, 100
        %v9185 = vpop.permute.xlu0 %9184
        %9186 = vrot.lane.b32.xlu0 %v6088, 100
        %v9187 = vpop.permute.xlu0 %9186
        %9188 = vrot.lane.b32.xlu0 %v6089, 100
        %v9189 = vpop.permute.xlu0 %9188
        %9190 = vrot.lane.b32.xlu0 %v6090, 100
        %v9191 = vpop.permute.xlu0 %9190
        %9192 = vrot.lane.b32.xlu0 %v6091, 100
        %v9193 = vpop.permute.xlu0 %9192
        %9194 = vrot.lane.b32.xlu0 %v6092, 100
        %v9195 = vpop.permute.xlu0 %9194
        %9196 = vrot.lane.b32.xlu0 %v6093, 100
        %v9197 = vpop.permute.xlu0 %9196
        %9198 = vrot.lane.b32.xlu0 %v6094, 100
        %v9199 = vpop.permute.xlu0 %9198
        %9200 = vrot.lane.b32.xlu0 %v6095, 100
        %v9201 = vpop.permute.xlu0 %9200
        %9202 = vrot.lane.b32.xlu0 %v6096, 100
        %v9203 = vpop.permute.xlu0 %9202
        %9204 = vrot.lane.b32.xlu0 %v6097, 100
        %v9205 = vpop.permute.xlu0 %9204
        %9206 = vrot.lane.b32.xlu0 %v6098, 100
        %v9207 = vpop.permute.xlu0 %9206
        %9272 = vrot.lane.b32.xlu0 %v6099, 120
        %v9273 = vpop.permute.xlu0 %9272
        %9274 = vrot.lane.b32.xlu0 %v6100, 120
        %v9275 = vpop.permute.xlu0 %9274
        %9276 = vrot.lane.b32.xlu0 %v6101, 120
        %v9277 = vpop.permute.xlu0 %9276
        %9278 = vrot.lane.b32.xlu0 %v6102, 120
        %v9279 = vpop.permute.xlu0 %9278
        %9280 = vrot.lane.b32.xlu0 %v6103, 120
        %v9281 = vpop.permute.xlu0 %9280
        %9282 = vrot.lane.b32.xlu0 %v6104, 120
        %v9283 = vpop.permute.xlu0 %9282
        %9284 = vrot.lane.b32.xlu0 %v6105, 120
        %v9285 = vpop.permute.xlu0 %9284
        %9286 = vrot.lane.b32.xlu0 %v6106, 120
        %v9287 = vpop.permute.xlu0 %9286
        %9288 = vrot.lane.b32.xlu0 %v6107, 120
        %v9289 = vpop.permute.xlu0 %9288
        %9290 = vrot.lane.b32.xlu0 %v6108, 120
        %v9291 = vpop.permute.xlu0 %9290
        %9292 = vrot.lane.b32.xlu0 %v6109, 120
        %v9293 = vpop.permute.xlu0 %9292
        %9294 = vrot.lane.b32.xlu0 %v6110, 120
        %v9295 = vpop.permute.xlu0 %9294
        %9296 = vrot.lane.b32.xlu0 %v6111, 120
        %v9297 = vpop.permute.xlu0 %9296
        %9298 = vrot.lane.b32.xlu0 %v6112, 120
        %v9299 = vpop.permute.xlu0 %9298
        %9300 = vrot.lane.b32.xlu0 %v6113, 120
        %v9301 = vpop.permute.xlu0 %9300
        %9302 = vrot.lane.b32.xlu0 %v6114, 120
        %v9303 = vpop.permute.xlu0 %9302
        %9304 = vrot.lane.b32.xlu0 %v6115, 120
        %v9305 = vpop.permute.xlu0 %9304
        %9306 = vrot.lane.b32.xlu0 %v6116, 120
        %v9307 = vpop.permute.xlu0 %9306
        %9308 = vrot.lane.b32.xlu0 %v6117, 120
        %v9309 = vpop.permute.xlu0 %9308
        %9310 = vrot.lane.b32.xlu0 %v6118, 120
        %v9311 = vpop.permute.xlu0 %9310
        %9312 = vrot.lane.b32.xlu0 %v6119, 120
        %v9313 = vpop.permute.xlu0 %9312
        %9314 = vrot.lane.b32.xlu0 %v6120, 120
        %v9315 = vpop.permute.xlu0 %9314
        %9316 = vrot.lane.b32.xlu0 %v6121, 120
        %v9317 = vpop.permute.xlu0 %9316
        %9318 = vrot.lane.b32.xlu0 %v6122, 120
        %v9319 = vpop.permute.xlu0 %9318
        %9320 = vrot.lane.b32.xlu0 %v6123, 120
        %v9321 = vpop.permute.xlu0 %9320
        %9322 = vrot.lane.b32.xlu0 %v6124, 120
        %v9323 = vpop.permute.xlu0 %9322
        %9324 = vrot.lane.b32.xlu0 %v6125, 120
        %v9325 = vpop.permute.xlu0 %9324
        %9326 = vrot.lane.b32.xlu0 %v6126, 120
        %v9327 = vpop.permute.xlu0 %9326
        %9328 = vrot.lane.b32.xlu0 %v6127, 120
        %v9329 = vpop.permute.xlu0 %9328
        %9330 = vrot.lane.b32.xlu0 %v6128, 120
        %v9331 = vpop.permute.xlu0 %9330
        %9332 = vrot.lane.b32.xlu0 %v6129, 120
        %v9333 = vpop.permute.xlu0 %9332
        %9334 = vrot.lane.b32.xlu0 %v6130, 120
        %v9335 = vpop.permute.xlu0 %9334
        %9400 = vrot.lane.b32.xlu0 %v6131, 12
        %v9401 = vpop.permute.xlu0 %9400
        %9402 = vrot.lane.b32.xlu0 %v6132, 12
        %v9403 = vpop.permute.xlu0 %9402
        %9404 = vrot.lane.b32.xlu0 %v6133, 12
        %v9405 = vpop.permute.xlu0 %9404
        %9406 = vrot.lane.b32.xlu0 %v6134, 12
        %v9407 = vpop.permute.xlu0 %9406
        %9408 = vrot.lane.b32.xlu0 %v6135, 12
        %v9409 = vpop.permute.xlu0 %9408
        %9410 = vrot.lane.b32.xlu0 %v6136, 12
        %v9411 = vpop.permute.xlu0 %9410
        %9412 = vrot.lane.b32.xlu0 %v6137, 12
        %v9413 = vpop.permute.xlu0 %9412
        %9414 = vrot.lane.b32.xlu0 %v6138, 12
        %v9415 = vpop.permute.xlu0 %9414
        %9416 = vrot.lane.b32.xlu0 %v6139, 12
        %v9417 = vpop.permute.xlu0 %9416
        %9418 = vrot.lane.b32.xlu0 %v6140, 12
        %v9419 = vpop.permute.xlu0 %9418
        %9420 = vrot.lane.b32.xlu0 %v6141, 12
        %v9421 = vpop.permute.xlu0 %9420
        %9422 = vrot.lane.b32.xlu0 %v6142, 12
        %v9423 = vpop.permute.xlu0 %9422
        %9424 = vrot.lane.b32.xlu0 %v6143, 12
        %v9425 = vpop.permute.xlu0 %9424
        %9426 = vrot.lane.b32.xlu0 %v6144, 12
        %v9427 = vpop.permute.xlu0 %9426
        %9428 = vrot.lane.b32.xlu0 %v6145, 12
        %v9429 = vpop.permute.xlu0 %9428
        %9430 = vrot.lane.b32.xlu0 %v6146, 12
        %v9431 = vpop.permute.xlu0 %9430
        %9432 = vrot.lane.b32.xlu0 %v6147, 12
        %v9433 = vpop.permute.xlu0 %9432
        %9434 = vrot.lane.b32.xlu0 %v6148, 12
        %v9435 = vpop.permute.xlu0 %9434
        %9436 = vrot.lane.b32.xlu0 %v6149, 12
        %v9437 = vpop.permute.xlu0 %9436
        %9438 = vrot.lane.b32.xlu0 %v6150, 12
        %v9439 = vpop.permute.xlu0 %9438
        %9440 = vrot.lane.b32.xlu0 %v6151, 12
        %v9441 = vpop.permute.xlu0 %9440
        %9442 = vrot.lane.b32.xlu0 %v6152, 12
        %v9443 = vpop.permute.xlu0 %9442
        %9444 = vrot.lane.b32.xlu0 %v6153, 12
        %v9445 = vpop.permute.xlu0 %9444
        %9446 = vrot.lane.b32.xlu0 %v6154, 12
        %v9447 = vpop.permute.xlu0 %9446
        %9448 = vrot.lane.b32.xlu0 %v6155, 12
        %v9449 = vpop.permute.xlu0 %9448
        %9450 = vrot.lane.b32.xlu0 %v6156, 12
        %v9451 = vpop.permute.xlu0 %9450
        %9452 = vrot.lane.b32.xlu0 %v6157, 12
        %v9453 = vpop.permute.xlu0 %9452
        %9454 = vrot.lane.b32.xlu0 %v6158, 12
        %v9455 = vpop.permute.xlu0 %9454
        %9456 = vrot.lane.b32.xlu0 %v6159, 12
        %v9457 = vpop.permute.xlu0 %9456
        %9458 = vrot.lane.b32.xlu0 %v6160, 12
        %v9459 = vpop.permute.xlu0 %9458
        %9460 = vrot.lane.b32.xlu0 %v6161, 12
        %v9461 = vpop.permute.xlu0 %9460
        %9462 = vrot.lane.b32.xlu0 %v6162, 12
        %v9463 = vpop.permute.xlu0 %9462
        %9528 = vrot.lane.b32.xlu0 %v6163, 32
        %v9529 = vpop.permute.xlu0 %9528
        %9530 = vrot.lane.b32.xlu0 %v6164, 32
        %v9531 = vpop.permute.xlu0 %9530
        %9532 = vrot.lane.b32.xlu0 %v6165, 32
        %v9533 = vpop.permute.xlu0 %9532
        %9534 = vrot.lane.b32.xlu0 %v6166, 32
        %v9535 = vpop.permute.xlu0 %9534
        %9536 = vrot.lane.b32.xlu0 %v6167, 32
        %v9537 = vpop.permute.xlu0 %9536
        %9538 = vrot.lane.b32.xlu0 %v6168, 32
        %v9539 = vpop.permute.xlu0 %9538
        %9540 = vrot.lane.b32.xlu0 %v6169, 32
        %v9541 = vpop.permute.xlu0 %9540
        %9542 = vrot.lane.b32.xlu0 %v6170, 32
        %v9543 = vpop.permute.xlu0 %9542
        %9544 = vrot.lane.b32.xlu0 %v6171, 32
        %v9545 = vpop.permute.xlu0 %9544
        %9546 = vrot.lane.b32.xlu0 %v6172, 32
        %v9547 = vpop.permute.xlu0 %9546
        %9548 = vrot.lane.b32.xlu0 %v6173, 32
        %v9549 = vpop.permute.xlu0 %9548
        %9550 = vrot.lane.b32.xlu0 %v6174, 32
        %v9551 = vpop.permute.xlu0 %9550
        %9552 = vrot.lane.b32.xlu0 %v6175, 32
        %v9553 = vpop.permute.xlu0 %9552
        %9554 = vrot.lane.b32.xlu0 %v6176, 32
        %v9555 = vpop.permute.xlu0 %9554
        %9556 = vrot.lane.b32.xlu0 %v6177, 32
        %v9557 = vpop.permute.xlu0 %9556
        %9558 = vrot.lane.b32.xlu0 %v6178, 32
        %v9559 = vpop.permute.xlu0 %9558
        %9560 = vrot.lane.b32.xlu0 %v6179, 32
        %v9561 = vpop.permute.xlu0 %9560
        %9562 = vrot.lane.b32.xlu0 %v6180, 32
        %v9563 = vpop.permute.xlu0 %9562
        %9564 = vrot.lane.b32.xlu0 %v6181, 32
        %v9565 = vpop.permute.xlu0 %9564
        %9566 = vrot.lane.b32.xlu0 %v6182, 32
        %v9567 = vpop.permute.xlu0 %9566
        %9568 = vrot.lane.b32.xlu0 %v6183, 32
        %v9569 = vpop.permute.xlu0 %9568
        %9570 = vrot.lane.b32.xlu0 %v6184, 32
        %v9571 = vpop.permute.xlu0 %9570
        %9572 = vrot.lane.b32.xlu0 %v6185, 32
        %v9573 = vpop.permute.xlu0 %9572
        %9574 = vrot.lane.b32.xlu0 %v6186, 32
        %v9575 = vpop.permute.xlu0 %9574
        %9576 = vrot.lane.b32.xlu0 %v6187, 32
        %v9577 = vpop.permute.xlu0 %9576
        %9578 = vrot.lane.b32.xlu0 %v6188, 32
        %v9579 = vpop.permute.xlu0 %9578
        %9580 = vrot.lane.b32.xlu0 %v6189, 32
        %v9581 = vpop.permute.xlu0 %9580
        %9582 = vrot.lane.b32.xlu0 %v6190, 32
        %v9583 = vpop.permute.xlu0 %9582
        %9584 = vrot.lane.b32.xlu0 %v6191, 32
        %v9585 = vpop.permute.xlu0 %9584
        %9586 = vrot.lane.b32.xlu0 %v6192, 32
        %v9587 = vpop.permute.xlu0 %9586
        %9588 = vrot.lane.b32.xlu0 %v6193, 32
        %v9589 = vpop.permute.xlu0 %9588
        %9590 = vrot.lane.b32.xlu0 %v6194, 32
        %v9591 = vpop.permute.xlu0 %9590
        %v9624 = vsel %vm3205, %v5906, %v8633
        %v9625 = vsel %vm3205, %v5907, %v8635
        %v9626 = vsel %vm3205, %v5908, %v8637
        %v9627 = vsel %vm3205, %v5909, %v8639
        %v9628 = vsel %vm3205, %v5910, %v8641
        %v9629 = vsel %vm3205, %v5911, %v8643
        %v9630 = vsel %vm3205, %v5912, %v8645
        %v9631 = vsel %vm3205, %v5913, %v8647
        %v9632 = vsel %vm3205, %v5914, %v8649
        %v9633 = vsel %vm3205, %v5915, %v8651
        %v9634 = vsel %vm3205, %v5916, %v8653
        %v9635 = vsel %vm3205, %v5917, %v8655
        %v9636 = vsel %vm3205, %v5918, %v8657
        %v9637 = vsel %vm3205, %v5919, %v8659
        %v9638 = vsel %vm3205, %v5920, %v8661
        %v9639 = vsel %vm3205, %v5921, %v8663
        %v9640 = vsel %vm3205, %v5922, %v8665
        %v9641 = vsel %vm3205, %v5923, %v8667
        %v9642 = vsel %vm3205, %v5924, %v8669
        %v9643 = vsel %vm3205, %v5925, %v8671
        %v9644 = vsel %vm3205, %v5926, %v8673
        %v9645 = vsel %vm3205, %v5927, %v8675
        %v9646 = vsel %vm3205, %v5928, %v8677
        %v9647 = vsel %vm3205, %v5929, %v8679
        %v9648 = vsel %vm3205, %v5930, %v8681
        %v9649 = vsel %vm3205, %v5931, %v8683
        %v9650 = vsel %vm3205, %v5932, %v8685
        %v9651 = vsel %vm3205, %v5933, %v8687
        %v9652 = vsel %vm3205, %v5934, %v8689
        %v9653 = vsel %vm3205, %v5935, %v8691
        %v9654 = vsel %vm3205, %v5936, %v8693
        %v9655 = vsel %vm3205, %v5937, %v8695
        %v9656 = vsel %vm3370, %v9624, %v8761
        %v9657 = vsel %vm3370, %v9625, %v8763
        %v9658 = vsel %vm3370, %v9626, %v8765
        %v9659 = vsel %vm3370, %v9627, %v8767
        %v9660 = vsel %vm3370, %v9628, %v8769
        %v9661 = vsel %vm3370, %v9629, %v8771
        %v9662 = vsel %vm3370, %v9630, %v8773
        %v9663 = vsel %vm3370, %v9631, %v8775
        %v9664 = vsel %vm3370, %v9632, %v8777
        %v9665 = vsel %vm3370, %v9633, %v8779
        %v9666 = vsel %vm3370, %v9634, %v8781
        %v9667 = vsel %vm3370, %v9635, %v8783
        %v9668 = vsel %vm3370, %v9636, %v8785
        %v9669 = vsel %vm3370, %v9637, %v8787
        %v9670 = vsel %vm3370, %v9638, %v8789
        %v9671 = vsel %vm3370, %v9639, %v8791
        %v9672 = vsel %vm3370, %v9640, %v8793
        %v9673 = vsel %vm3370, %v9641, %v8795
        %v9674 = vsel %vm3370, %v9642, %v8797
        %v9675 = vsel %vm3370, %v9643, %v8799
        %v9676 = vsel %vm3370, %v9644, %v8801
        %v9677 = vsel %vm3370, %v9645, %v8803
        %v9678 = vsel %vm3370, %v9646, %v8805
        %v9679 = vsel %vm3370, %v9647, %v8807
        %v9680 = vsel %vm3370, %v9648, %v8809
        %v9681 = vsel %vm3370, %v9649, %v8811
        %v9682 = vsel %vm3370, %v9650, %v8813
        %v9683 = vsel %vm3370, %v9651, %v8815
        %v9684 = vsel %vm3370, %v9652, %v8817
        %v9685 = vsel %vm3370, %v9653, %v8819
        %v9686 = vsel %vm3370, %v9654, %v8821
        %v9687 = vsel %vm3370, %v9655, %v8823
        %v9688 = vsel %vm3535, %v9656, %v8889
        %v9689 = vsel %vm3535, %v9657, %v8891
        %v9690 = vsel %vm3535, %v9658, %v8893
        %v9691 = vsel %vm3535, %v9659, %v8895
        %v9692 = vsel %vm3535, %v9660, %v8897
        %v9693 = vsel %vm3535, %v9661, %v8899
        %v9694 = vsel %vm3535, %v9662, %v8901
        %v9695 = vsel %vm3535, %v9663, %v8903
        %v9696 = vsel %vm3535, %v9664, %v8905
        %v9697 = vsel %vm3535, %v9665, %v8907
        %v9698 = vsel %vm3535, %v9666, %v8909
        %v9699 = vsel %vm3535, %v9667, %v8911
        %v9700 = vsel %vm3535, %v9668, %v8913
        %v9701 = vsel %vm3535, %v9669, %v8915
        %v9702 = vsel %vm3535, %v9670, %v8917
        %v9703 = vsel %vm3535, %v9671, %v8919
        %v9704 = vsel %vm3535, %v9672, %v8921
        %v9705 = vsel %vm3535, %v9673, %v8923
        %v9706 = vsel %vm3535, %v9674, %v8925
        %v9707 = vsel %vm3535, %v9675, %v8927
        %v9708 = vsel %vm3535, %v9676, %v8929
        %v9709 = vsel %vm3535, %v9677, %v8931
        %v9710 = vsel %vm3535, %v9678, %v8933
        %v9711 = vsel %vm3535, %v9679, %v8935
        %v9712 = vsel %vm3535, %v9680, %v8937
        %v9713 = vsel %vm3535, %v9681, %v8939
        %v9714 = vsel %vm3535, %v9682, %v8941
        %v9715 = vsel %vm3535, %v9683, %v8943
        %v9716 = vsel %vm3535, %v9684, %v8945
        %v9717 = vsel %vm3535, %v9685, %v8947
        %v9718 = vsel %vm3535, %v9686, %v8949
        %v9719 = vsel %vm3535, %v9687, %v8951
        %v9720 = vsel %vm8211, %v9688, %v9017
        %v9721 = vsel %vm8211, %v9689, %v9019
        %v9722 = vsel %vm8211, %v9690, %v9021
        %v9723 = vsel %vm8211, %v9691, %v9023
        %v9724 = vsel %vm8211, %v9692, %v9025
        %v9725 = vsel %vm8211, %v9693, %v9027
        %v9726 = vsel %vm8211, %v9694, %v9029
        %v9727 = vsel %vm8211, %v9695, %v9031
        %v9728 = vsel %vm8211, %v9696, %v9033
        %v9729 = vsel %vm8211, %v9697, %v9035
        %v9730 = vsel %vm8211, %v9698, %v9037
        %v9731 = vsel %vm8211, %v9699, %v9039
        %v9732 = vsel %vm8211, %v9700, %v9041
        %v9733 = vsel %vm8211, %v9701, %v9043
        %v9734 = vsel %vm8211, %v9702, %v9045
        %v9735 = vsel %vm8211, %v9703, %v9047
        %v9736 = vsel %vm8211, %v9704, %v9049
        %v9737 = vsel %vm8211, %v9705, %v9051
        %v9738 = vsel %vm8211, %v9706, %v9053
        %v9739 = vsel %vm8211, %v9707, %v9055
        %v9740 = vsel %vm8211, %v9708, %v9057
        %v9741 = vsel %vm8211, %v9709, %v9059
        %v9742 = vsel %vm8211, %v9710, %v9061
        %v9743 = vsel %vm8211, %v9711, %v9063
        %v9744 = vsel %vm8211, %v9712, %v9065
        %v9745 = vsel %vm8211, %v9713, %v9067
        %v9746 = vsel %vm8211, %v9714, %v9069
        %v9747 = vsel %vm8211, %v9715, %v9071
        %v9748 = vsel %vm8211, %v9716, %v9073
        %v9749 = vsel %vm8211, %v9717, %v9075
        %v9750 = vsel %vm8211, %v9718, %v9077
        %v9751 = vsel %vm8211, %v9719, %v9079
        %v9752 = vsel %vm5052, %v9720, %v9145
        %v9753 = vsel %vm5052, %v9721, %v9147
        %v9754 = vsel %vm5052, %v9722, %v9149
        %v9755 = vsel %vm5052, %v9723, %v9151
        %v9756 = vsel %vm5052, %v9724, %v9153
        %v9757 = vsel %vm5052, %v9725, %v9155
        %v9758 = vsel %vm5052, %v9726, %v9157
        %v9759 = vsel %vm5052, %v9727, %v9159
        %v9760 = vsel %vm5052, %v9728, %v9161
        %v9761 = vsel %vm5052, %v9729, %v9163
        %v9762 = vsel %vm5052, %v9730, %v9165
        %v9763 = vsel %vm5052, %v9731, %v9167
        %v9764 = vsel %vm5052, %v9732, %v9169
        %v9765 = vsel %vm5052, %v9733, %v9171
        %v9766 = vsel %vm5052, %v9734, %v9173
        %v9767 = vsel %vm5052, %v9735, %v9175
        %v9768 = vsel %vm5052, %v9736, %v9177
        %v9769 = vsel %vm5052, %v9737, %v9179
        %v9770 = vsel %vm5052, %v9738, %v9181
        %v9771 = vsel %vm5052, %v9739, %v9183
        %v9772 = vsel %vm5052, %v9740, %v9185
        %v9773 = vsel %vm5052, %v9741, %v9187
        %v9774 = vsel %vm5052, %v9742, %v9189
        %v9775 = vsel %vm5052, %v9743, %v9191
        %v9776 = vsel %vm5052, %v9744, %v9193
        %v9777 = vsel %vm5052, %v9745, %v9195
        %v9778 = vsel %vm5052, %v9746, %v9197
        %v9779 = vsel %vm5052, %v9747, %v9199
        %v9780 = vsel %vm5052, %v9748, %v9201
        %v9781 = vsel %vm5052, %v9749, %v9203
        %v9782 = vsel %vm5052, %v9750, %v9205
        %v9783 = vsel %vm5052, %v9751, %v9207
        %v9784 = vsel %vm8276, %v9752, %v9273
        %v9785 = vsel %vm8276, %v9753, %v9275
        %v9786 = vsel %vm8276, %v9754, %v9277
        %v9787 = vsel %vm8276, %v9755, %v9279
        %v9788 = vsel %vm8276, %v9756, %v9281
        %v9789 = vsel %vm8276, %v9757, %v9283
        %v9790 = vsel %vm8276, %v9758, %v9285
        %v9791 = vsel %vm8276, %v9759, %v9287
        %v9792 = vsel %vm8276, %v9760, %v9289
        %v9793 = vsel %vm8276, %v9761, %v9291
        %v9794 = vsel %vm8276, %v9762, %v9293
        %v9795 = vsel %vm8276, %v9763, %v9295
        %v9796 = vsel %vm8276, %v9764, %v9297
        %v9797 = vsel %vm8276, %v9765, %v9299
        %v9798 = vsel %vm8276, %v9766, %v9301
        %v9799 = vsel %vm8276, %v9767, %v9303
        %v9800 = vsel %vm8276, %v9768, %v9305
        %v9801 = vsel %vm8276, %v9769, %v9307
        %v9802 = vsel %vm8276, %v9770, %v9309
        %v9803 = vsel %vm8276, %v9771, %v9311
        %v9804 = vsel %vm8276, %v9772, %v9313
        %v9805 = vsel %vm8276, %v9773, %v9315
        %v9806 = vsel %vm8276, %v9774, %v9317
        %v9807 = vsel %vm8276, %v9775, %v9319
        %v9808 = vsel %vm8276, %v9776, %v9321
        %v9809 = vsel %vm8276, %v9777, %v9323
        %v9810 = vsel %vm8276, %v9778, %v9325
        %v9811 = vsel %vm8276, %v9779, %v9327
        %v9812 = vsel %vm8276, %v9780, %v9329
        %v9813 = vsel %vm8276, %v9781, %v9331
        %v9814 = vsel %vm8276, %v9782, %v9333
        %v9815 = vsel %vm8276, %v9783, %v9335
        %v9816 = vsel %vm3139, %v9273, %v9401
        %v9817 = vsel %vm3139, %v9275, %v9403
        %v9818 = vsel %vm3139, %v9277, %v9405
        %v9819 = vsel %vm3139, %v9279, %v9407
        %v9820 = vsel %vm3139, %v9281, %v9409
        %v9821 = vsel %vm3139, %v9283, %v9411
        %v9822 = vsel %vm3139, %v9285, %v9413
        %v9823 = vsel %vm3139, %v9287, %v9415
        %v9824 = vsel %vm3139, %v9289, %v9417
        %v9825 = vsel %vm3139, %v9291, %v9419
        %v9826 = vsel %vm3139, %v9293, %v9421
        %v9827 = vsel %vm3139, %v9295, %v9423
        %v9828 = vsel %vm3139, %v9297, %v9425
        %v9829 = vsel %vm3139, %v9299, %v9427
        %v9830 = vsel %vm3139, %v9301, %v9429
        %v9831 = vsel %vm3139, %v9303, %v9431
        %v9832 = vsel %vm3139, %v9305, %v9433
        %v9833 = vsel %vm3139, %v9307, %v9435
        %v9834 = vsel %vm3139, %v9309, %v9437
        %v9835 = vsel %vm3139, %v9311, %v9439
        %v9836 = vsel %vm3139, %v9313, %v9441
        %v9837 = vsel %vm3139, %v9315, %v9443
        %v9838 = vsel %vm3139, %v9317, %v9445
        %v9839 = vsel %vm3139, %v9319, %v9447
        %v9840 = vsel %vm3139, %v9321, %v9449
        %v9841 = vsel %vm3139, %v9323, %v9451
        %v9842 = vsel %vm3139, %v9325, %v9453
        %v9843 = vsel %vm3139, %v9327, %v9455
        %v9844 = vsel %vm3139, %v9329, %v9457
        %v9845 = vsel %vm3139, %v9331, %v9459
        %v9846 = vsel %vm3139, %v9333, %v9461
        %v9847 = vsel %vm3139, %v9335, %v9463
        %v9848 = vsel %vm3304, %v9816, %v9529
        %v9849 = vsel %vm3304, %v9817, %v9531
        %v9850 = vsel %vm3304, %v9818, %v9533
        %v9851 = vsel %vm3304, %v9819, %v9535
        %v9852 = vsel %vm3304, %v9820, %v9537
        %v9853 = vsel %vm3304, %v9821, %v9539
        %v9854 = vsel %vm3304, %v9822, %v9541
        %v9855 = vsel %vm3304, %v9823, %v9543
        %v9856 = vsel %vm3304, %v9824, %v9545
        %v9857 = vsel %vm3304, %v9825, %v9547
        %v9858 = vsel %vm3304, %v9826, %v9549
        %v9859 = vsel %vm3304, %v9827, %v9551
        %v9860 = vsel %vm3304, %v9828, %v9553
        %v9861 = vsel %vm3304, %v9829, %v9555
        %v9862 = vsel %vm3304, %v9830, %v9557
        %v9863 = vsel %vm3304, %v9831, %v9559
        %v9864 = vsel %vm3304, %v9832, %v9561
        %v9865 = vsel %vm3304, %v9833, %v9563
        %v9866 = vsel %vm3304, %v9834, %v9565
        %v9867 = vsel %vm3304, %v9835, %v9567
        %v9868 = vsel %vm3304, %v9836, %v9569
        %v9869 = vsel %vm3304, %v9837, %v9571
        %v9870 = vsel %vm3304, %v9838, %v9573
        %v9871 = vsel %vm3304, %v9839, %v9575
        %v9872 = vsel %vm3304, %v9840, %v9577
        %v9873 = vsel %vm3304, %v9841, %v9579
        %v9874 = vsel %vm3304, %v9842, %v9581
        %v9875 = vsel %vm3304, %v9843, %v9583
        %v9876 = vsel %vm3304, %v9844, %v9585
        %v9877 = vsel %vm3304, %v9845, %v9587
        %v9878 = vsel %vm3304, %v9846, %v9589
        %v9879 = vsel %vm3304, %v9847, %v9591
        %9944 = vrot.lane.b32.xlu0 %v9784, 64
        %v9945 = vpop.permute.xlu0 %9944
        %9946 = vrot.lane.b32.xlu0 %v9848, 64
        %v9947 = vpop.permute.xlu0 %9946
        %9948 = vrot.lane.b32.xlu0 %v9785, 64
        %v9949 = vpop.permute.xlu0 %9948
        %9950 = vrot.lane.b32.xlu0 %v9849, 64
        %v9951 = vpop.permute.xlu0 %9950
        %9952 = vrot.lane.b32.xlu0 %v9786, 64
        %v9953 = vpop.permute.xlu0 %9952
        %9954 = vrot.lane.b32.xlu0 %v9850, 64
        %v9955 = vpop.permute.xlu0 %9954
        %9956 = vrot.lane.b32.xlu0 %v9787, 64
        %v9957 = vpop.permute.xlu0 %9956
        %9958 = vrot.lane.b32.xlu0 %v9851, 64
        %v9959 = vpop.permute.xlu0 %9958
        %9960 = vrot.lane.b32.xlu0 %v9788, 64
        %v9961 = vpop.permute.xlu0 %9960
        %9962 = vrot.lane.b32.xlu0 %v9852, 64
        %v9963 = vpop.permute.xlu0 %9962
        %9964 = vrot.lane.b32.xlu0 %v9789, 64
        %v9965 = vpop.permute.xlu0 %9964
        %9966 = vrot.lane.b32.xlu0 %v9853, 64
        %v9967 = vpop.permute.xlu0 %9966
        %9968 = vrot.lane.b32.xlu0 %v9790, 64
        %v9969 = vpop.permute.xlu0 %9968
        %9970 = vrot.lane.b32.xlu0 %v9854, 64
        %v9971 = vpop.permute.xlu0 %9970
        %9972 = vrot.lane.b32.xlu0 %v9791, 64
        %v9973 = vpop.permute.xlu0 %9972
        %9974 = vrot.lane.b32.xlu0 %v9855, 64
        %v9975 = vpop.permute.xlu0 %9974
        %9976 = vrot.lane.b32.xlu0 %v9792, 64
        %v9977 = vpop.permute.xlu0 %9976
        %9978 = vrot.lane.b32.xlu0 %v9856, 64
        %v9979 = vpop.permute.xlu0 %9978
        %9980 = vrot.lane.b32.xlu0 %v9793, 64
        %v9981 = vpop.permute.xlu0 %9980
        %9982 = vrot.lane.b32.xlu0 %v9857, 64
        %v9983 = vpop.permute.xlu0 %9982
        %9984 = vrot.lane.b32.xlu0 %v9794, 64
        %v9985 = vpop.permute.xlu0 %9984
        %9986 = vrot.lane.b32.xlu0 %v9858, 64
        %v9987 = vpop.permute.xlu0 %9986
        %9988 = vrot.lane.b32.xlu0 %v9795, 64
        %v9989 = vpop.permute.xlu0 %9988
        %9990 = vrot.lane.b32.xlu0 %v9859, 64
        %v9991 = vpop.permute.xlu0 %9990
        %9992 = vrot.lane.b32.xlu0 %v9796, 64
        %v9993 = vpop.permute.xlu0 %9992
        %9994 = vrot.lane.b32.xlu0 %v9860, 64
        %v9995 = vpop.permute.xlu0 %9994
        %9996 = vrot.lane.b32.xlu0 %v9797, 64
        %v9997 = vpop.permute.xlu0 %9996
        %9998 = vrot.lane.b32.xlu0 %v9861, 64
        %v9999 = vpop.permute.xlu0 %9998
        %10000 = vrot.lane.b32.xlu0 %v9798, 64
        %v10001 = vpop.permute.xlu0 %10000
        %10002 = vrot.lane.b32.xlu0 %v9862, 64
        %v10003 = vpop.permute.xlu0 %10002
        %10004 = vrot.lane.b32.xlu0 %v9799, 64
        %v10005 = vpop.permute.xlu0 %10004
        %10006 = vrot.lane.b32.xlu0 %v9863, 64
        %v10007 = vpop.permute.xlu0 %10006
        %10008 = vrot.lane.b32.xlu0 %v9800, 64
        %v10009 = vpop.permute.xlu0 %10008
        %10010 = vrot.lane.b32.xlu0 %v9864, 64
        %v10011 = vpop.permute.xlu0 %10010
        %10012 = vrot.lane.b32.xlu0 %v9801, 64
        %v10013 = vpop.permute.xlu0 %10012
        %10014 = vrot.lane.b32.xlu0 %v9865, 64
        %v10015 = vpop.permute.xlu0 %10014
        %10016 = vrot.lane.b32.xlu0 %v9802, 64
        %v10017 = vpop.permute.xlu0 %10016
        %10018 = vrot.lane.b32.xlu0 %v9866, 64
        %v10019 = vpop.permute.xlu0 %10018
        %10020 = vrot.lane.b32.xlu0 %v9803, 64
        %v10021 = vpop.permute.xlu0 %10020
        %10022 = vrot.lane.b32.xlu0 %v9867, 64
        %v10023 = vpop.permute.xlu0 %10022
        %10024 = vrot.lane.b32.xlu0 %v9804, 64
        %v10025 = vpop.permute.xlu0 %10024
        %10026 = vrot.lane.b32.xlu0 %v9868, 64
        %v10027 = vpop.permute.xlu0 %10026
        %10028 = vrot.lane.b32.xlu0 %v9805, 64
        %v10029 = vpop.permute.xlu0 %10028
        %10030 = vrot.lane.b32.xlu0 %v9869, 64
        %v10031 = vpop.permute.xlu0 %10030
        %10032 = vrot.lane.b32.xlu0 %v9806, 64
        %v10033 = vpop.permute.xlu0 %10032
        %10034 = vrot.lane.b32.xlu0 %v9870, 64
        %v10035 = vpop.permute.xlu0 %10034
        %10036 = vrot.lane.b32.xlu0 %v9807, 64
        %v10037 = vpop.permute.xlu0 %10036
        %10038 = vrot.lane.b32.xlu0 %v9871, 64
        %v10039 = vpop.permute.xlu0 %10038
        %10040 = vrot.lane.b32.xlu0 %v9808, 64
        %v10041 = vpop.permute.xlu0 %10040
        %10042 = vrot.lane.b32.xlu0 %v9872, 64
        %v10043 = vpop.permute.xlu0 %10042
        %10044 = vrot.lane.b32.xlu0 %v9809, 64
        %v10045 = vpop.permute.xlu0 %10044
        %10046 = vrot.lane.b32.xlu0 %v9873, 64
        %v10047 = vpop.permute.xlu0 %10046
        %10048 = vrot.lane.b32.xlu0 %v9810, 64
        %v10049 = vpop.permute.xlu0 %10048
        %10050 = vrot.lane.b32.xlu0 %v9874, 64
        %v10051 = vpop.permute.xlu0 %10050
        %10052 = vrot.lane.b32.xlu0 %v9811, 64
        %v10053 = vpop.permute.xlu0 %10052
        %10054 = vrot.lane.b32.xlu0 %v9875, 64
        %v10055 = vpop.permute.xlu0 %10054
        %10056 = vrot.lane.b32.xlu0 %v9812, 64
        %v10057 = vpop.permute.xlu0 %10056
        %10058 = vrot.lane.b32.xlu0 %v9876, 64
        %v10059 = vpop.permute.xlu0 %10058
        %10060 = vrot.lane.b32.xlu0 %v9813, 64
        %v10061 = vpop.permute.xlu0 %10060
        %10062 = vrot.lane.b32.xlu0 %v9877, 64
        %v10063 = vpop.permute.xlu0 %10062
        %10064 = vrot.lane.b32.xlu0 %v9814, 64
        %v10065 = vpop.permute.xlu0 %10064
        %10066 = vrot.lane.b32.xlu0 %v9878, 64
        %v10067 = vpop.permute.xlu0 %10066
        %10068 = vrot.lane.b32.xlu0 %v9815, 64
        %v10069 = vpop.permute.xlu0 %10068
        %10070 = vrot.lane.b32.xlu0 %v9879, 64
        %v10071 = vpop.permute.xlu0 %10070
        %v10072 = vsel %vm4976, %v9945, %v9947
        %v10073 = vsel %vm4976, %v9949, %v9951
        %v10074 = vsel %vm4976, %v9953, %v9955
        %v10075 = vsel %vm4976, %v9957, %v9959
        %v10076 = vsel %vm4976, %v9961, %v9963
        %v10077 = vsel %vm4976, %v9965, %v9967
        %v10078 = vsel %vm4976, %v9969, %v9971
        %v10079 = vsel %vm4976, %v9973, %v9975
        %v10080 = vsel %vm4976, %v9977, %v9979
        %v10081 = vsel %vm4976, %v9981, %v9983
        %v10082 = vsel %vm4976, %v9985, %v9987
        %v10083 = vsel %vm4976, %v9989, %v9991
        %v10084 = vsel %vm4976, %v9993, %v9995
        %v10085 = vsel %vm4976, %v9997, %v9999
        %v10086 = vsel %vm4976, %v10001, %v10003
        %v10087 = vsel %vm4976, %v10005, %v10007
        %v10088 = vsel %vm4976, %v10009, %v10011
        %v10089 = vsel %vm4976, %v10013, %v10015
        %v10090 = vsel %vm4976, %v10017, %v10019
        %v10091 = vsel %vm4976, %v10021, %v10023
        %v10092 = vsel %vm4976, %v10025, %v10027
        %v10093 = vsel %vm4976, %v10029, %v10031
        %v10094 = vsel %vm4976, %v10033, %v10035
        %v10095 = vsel %vm4976, %v10037, %v10039
        %v10096 = vsel %vm4976, %v10041, %v10043
        %v10097 = vsel %vm4976, %v10045, %v10047
        %v10098 = vsel %vm4976, %v10049, %v10051
        %v10099 = vsel %vm4976, %v10053, %v10055
        %v10100 = vsel %vm4976, %v10057, %v10059
        %v10101 = vsel %vm4976, %v10061, %v10063
        %v10102 = vsel %vm4976, %v10065, %v10067
        %v10103 = vsel %vm4976, %v10069, %v10071
        %v10168 = vsel %vm4976, %v8568, %v9945
        %v10169 = vsel %vm4976, %v8569, %v9949
        %v10170 = vsel %vm4976, %v8570, %v9953
        %v10171 = vsel %vm4976, %v8571, %v9957
        %v10172 = vsel %vm4976, %v8572, %v9961
        %v10173 = vsel %vm4976, %v8573, %v9965
        %v10174 = vsel %vm4976, %v8574, %v9969
        %v10175 = vsel %vm4976, %v8575, %v9973
        %v10176 = vsel %vm4976, %v8576, %v9977
        %v10177 = vsel %vm4976, %v8577, %v9981
        %v10178 = vsel %vm4976, %v8578, %v9985
        %v10179 = vsel %vm4976, %v8579, %v9989
        %v10180 = vsel %vm4976, %v8580, %v9993
        %v10181 = vsel %vm4976, %v8581, %v9997
        %v10182 = vsel %vm4976, %v8582, %v10001
        %v10183 = vsel %vm4976, %v8583, %v10005
        %v10184 = vsel %vm4976, %v8584, %v10009
        %v10185 = vsel %vm4976, %v8585, %v10013
        %v10186 = vsel %vm4976, %v8586, %v10017
        %v10187 = vsel %vm4976, %v8587, %v10021
        %v10188 = vsel %vm4976, %v8588, %v10025
        %v10189 = vsel %vm4976, %v8589, %v10029
        %v10190 = vsel %vm4976, %v8590, %v10033
        %v10191 = vsel %vm4976, %v8591, %v10037
        %v10192 = vsel %vm4976, %v8592, %v10041
        %v10193 = vsel %vm4976, %v8593, %v10045
        %v10194 = vsel %vm4976, %v8594, %v10049
        %v10195 = vsel %vm4976, %v8595, %v10053
        %v10196 = vsel %vm4976, %v8596, %v10057
        %v10197 = vsel %vm4976, %v8597, %v10061
        %v10198 = vsel %vm4976, %v8598, %v10065
        %v10199 = vsel %vm4976, %v8599, %v10069
        %v10200 = vpack.c.bf16 %v8278, %v8277
        %v10201 = vpack.c.bf16 %v8473, %v8472
        %v10202 = vpack.c.bf16 %v10169, %v10168
        %v10203 = vpack.c.bf16 %v10073, %v10072
        %v10204 = vpack.c.bf16 %v8280, %v8279
        %v10205 = vpack.c.bf16 %v8475, %v8474
        %v10206 = vpack.c.bf16 %v10171, %v10170
        %v10207 = vpack.c.bf16 %v10075, %v10074
        %v10208 = vpack.c.bf16 %v8282, %v8281
        %v10209 = vpack.c.bf16 %v8477, %v8476
        %v10210 = vpack.c.bf16 %v10173, %v10172
        %v10211 = vpack.c.bf16 %v10077, %v10076
        %v10212 = vpack.c.bf16 %v8284, %v8283
        %v10213 = vpack.c.bf16 %v8479, %v8478
        %v10214 = vpack.c.bf16 %v10175, %v10174
        %v10215 = vpack.c.bf16 %v10079, %v10078
        %v10216 = vpack.c.bf16 %v8286, %v8285
        %v10217 = vpack.c.bf16 %v8481, %v8480
        %v10218 = vpack.c.bf16 %v10177, %v10176
        %v10219 = vpack.c.bf16 %v10081, %v10080
        %v10220 = vpack.c.bf16 %v8288, %v8287
        %v10221 = vpack.c.bf16 %v8483, %v8482
        %v10222 = vpack.c.bf16 %v10179, %v10178
        %v10223 = vpack.c.bf16 %v10083, %v10082
        %v10224 = vpack.c.bf16 %v8290, %v8289
        %v10225 = vpack.c.bf16 %v8485, %v8484
        %v10226 = vpack.c.bf16 %v10181, %v10180
        %v10227 = vpack.c.bf16 %v10085, %v10084
        %v10228 = vpack.c.bf16 %v8292, %v8291
        %v10229 = vpack.c.bf16 %v8487, %v8486
        %v10230 = vpack.c.bf16 %v10183, %v10182
        %v10231 = vpack.c.bf16 %v10087, %v10086
        %v10232 = vpack.c.bf16 %v8294, %v8293
        %v10233 = vpack.c.bf16 %v8489, %v8488
        %v10234 = vpack.c.bf16 %v10185, %v10184
        %v10235 = vpack.c.bf16 %v10089, %v10088
        %v10236 = vpack.c.bf16 %v8296, %v8295
        %v10237 = vpack.c.bf16 %v8491, %v8490
        %v10238 = vpack.c.bf16 %v10187, %v10186
        %v10239 = vpack.c.bf16 %v10091, %v10090
        %v10240 = vpack.c.bf16 %v8298, %v8297
        %v10241 = vpack.c.bf16 %v8493, %v8492
        %v10242 = vpack.c.bf16 %v10189, %v10188
        %v10243 = vpack.c.bf16 %v10093, %v10092
        %v10244 = vpack.c.bf16 %v8300, %v8299
        %v10245 = vpack.c.bf16 %v8495, %v8494
        %v10246 = vpack.c.bf16 %v10191, %v10190
        %v10247 = vpack.c.bf16 %v10095, %v10094
        %v10248 = vpack.c.bf16 %v8302, %v8301
        %v10249 = vpack.c.bf16 %v8497, %v8496
        %v10250 = vpack.c.bf16 %v10193, %v10192
        %v10251 = vpack.c.bf16 %v10097, %v10096
        %v10252 = vpack.c.bf16 %v8304, %v8303
        %v10253 = vpack.c.bf16 %v8499, %v8498
        %v10254 = vpack.c.bf16 %v10195, %v10194
        %v10255 = vpack.c.bf16 %v10099, %v10098
        %v10256 = vpack.c.bf16 %v8306, %v8305
        %v10257 = vpack.c.bf16 %v8501, %v8500
        %v10258 = vpack.c.bf16 %v10197, %v10196
        %v10259 = vpack.c.bf16 %v10101, %v10100
        %v10260 = vpack.c.bf16 %v8308, %v8307
        %v10261 = vpack.c.bf16 %v8503, %v8502
        %v10262 = vpack.c.bf16 %v10199, %v10198
        %v10263 = vpack.c.bf16 %v10103, %v10102
        %v10264 = vld [vmem:[%s3] sm:$0xff]
        %v10265 = vld [vmem:[%s3 + $0x8] sm:$0xff]
        %v10266 = vld [vmem:[%s3 + $0x10] sm:$0xff]
        %v10267 = vld [vmem:[%s3 + $0x18] sm:$0xff]
        %v10268 = vld [vmem:[%s3 + $0x20] sm:$0xff]
        %v10269 = vld [vmem:[%s3 + $0x28] sm:$0xff]
        %v10270 = vld [vmem:[%s3 + $0x30] sm:$0xff]
        %v10271 = vld [vmem:[%s3 + $0x38] sm:$0xff]
        %v10272 = vld [vmem:[%s3 + $0x40] sm:$0xff]
        %v10273 = vld [vmem:[%s3 + $0x48] sm:$0xff]
        %v10274 = vld [vmem:[%s3 + $0x50] sm:$0xff]
        %v10275 = vld [vmem:[%s3 + $0x58] sm:$0xff]
        %v10276 = vld [vmem:[%s3 + $0x60] sm:$0xff]
        %v10277 = vld [vmem:[%s3 + $0x68] sm:$0xff]
        %v10278 = vld [vmem:[%s3 + $0x70] sm:$0xff]
        %v10279 = vld [vmem:[%s3 + $0x78] sm:$0xff]
        %v10280 = vld [vmem:[%s3 + $0x80] sm:$0xff]
        %v10281 = vld [vmem:[%s3 + $0x88] sm:$0xff]
        %v10282 = vld [vmem:[%s3 + $0x90] sm:$0xff]
        %v10283 = vld [vmem:[%s3 + $0x98] sm:$0xff]
        %v10284 = vld [vmem:[%s3 + $0xa0] sm:$0xff]
        %v10285 = vld [vmem:[%s3 + $0xa8] sm:$0xff]
        %v10286 = vld [vmem:[%s3 + $0xb0] sm:$0xff]
        %v10287 = vld [vmem:[%s3 + $0xb8] sm:$0xff]
        %v10288 = vld [vmem:[%s3 + $0xc0] sm:$0xff]
        %v10289 = vld [vmem:[%s3 + $0xc8] sm:$0xff]
        %v10290 = vld [vmem:[%s3 + $0xd0] sm:$0xff]
        %v10291 = vld [vmem:[%s3 + $0xd8] sm:$0xff]
        %v10292 = vld [vmem:[%s3 + $0xe0] sm:$0xff]
        %v10293 = vld [vmem:[%s3 + $0xe8] sm:$0xff]
        %v10294 = vld [vmem:[%s3 + $0xf0] sm:$0xff]
        %v10295 = vld [vmem:[%s3 + $0xf8] sm:$0xff]
        %v10296 = vld [vmem:[%s3 + $0x100] sm:$0xff]
        %v10297 = vld [vmem:[%s3 + $0x108] sm:$0xff]
        %v10298 = vld [vmem:[%s3 + $0x110] sm:$0xff]
        %v10299 = vld [vmem:[%s3 + $0x118] sm:$0xff]
        %v10300 = vld [vmem:[%s3 + $0x120] sm:$0xff]
        %v10301 = vld [vmem:[%s3 + $0x128] sm:$0xff]
        %v10302 = vld [vmem:[%s3 + $0x130] sm:$0xff]
        %v10303 = vld [vmem:[%s3 + $0x138] sm:$0xff]
        %v10304 = vld [vmem:[%s3 + $0x140] sm:$0xff]
        %v10305 = vld [vmem:[%s3 + $0x148] sm:$0xff]
        %v10306 = vld [vmem:[%s3 + $0x150] sm:$0xff]
        %v10307 = vld [vmem:[%s3 + $0x158] sm:$0xff]
        %v10308 = vld [vmem:[%s3 + $0x160] sm:$0xff]
        %v10309 = vld [vmem:[%s3 + $0x168] sm:$0xff]
        %v10310 = vld [vmem:[%s3 + $0x170] sm:$0xff]
        %v10311 = vld [vmem:[%s3 + $0x178] sm:$0xff]
        %v10312 = vld [vmem:[%s3 + $0x180] sm:$0xff]
        %v10313 = vld [vmem:[%s3 + $0x188] sm:$0xff]
        %v10314 = vld [vmem:[%s3 + $0x190] sm:$0xff]
        %v10315 = vld [vmem:[%s3 + $0x198] sm:$0xff]
        %v10316 = vld [vmem:[%s3 + $0x1a0] sm:$0xff]
        %v10317 = vld [vmem:[%s3 + $0x1a8] sm:$0xff]
        %v10318 = vld [vmem:[%s3 + $0x1b0] sm:$0xff]
        %v10319 = vld [vmem:[%s3 + $0x1b8] sm:$0xff]
        %v10320 = vld [vmem:[%s3 + $0x1c0] sm:$0xff]
        %v10321 = vld [vmem:[%s3 + $0x1c8] sm:$0xff]
        %v10322 = vld [vmem:[%s3 + $0x1d0] sm:$0xff]
        %v10323 = vld [vmem:[%s3 + $0x1d8] sm:$0xff]
        %v10324 = vld [vmem:[%s3 + $0x1e0] sm:$0xff]
        %v10325 = vld [vmem:[%s3 + $0x1e8] sm:$0xff]
        %v10326 = vld [vmem:[%s3 + $0x1f0] sm:$0xf]
        %v10327 = vpack.c.bf16 %v10265, %v10264
        %v10328 = vpack.c.bf16 %v10267, %v10266
        %v10329 = vpack.c.bf16 %v10269, %v10268
        %v10330 = vpack.c.bf16 %v10271, %v10270
        %v10331 = vpack.c.bf16 %v10273, %v10272
        %v10332 = vpack.c.bf16 %v10275, %v10274
        %v10333 = vpack.c.bf16 %v10277, %v10276
        %v10334 = vpack.c.bf16 %v10279, %v10278
        %v10335 = vpack.c.bf16 %v10281, %v10280
        %v10336 = vpack.c.bf16 %v10283, %v10282
        %v10337 = vpack.c.bf16 %v10285, %v10284
        %v10338 = vpack.c.bf16 %v10287, %v10286
        %v10339 = vpack.c.bf16 %v10289, %v10288
        %v10340 = vpack.c.bf16 %v10291, %v10290
        %v10341 = vpack.c.bf16 %v10293, %v10292
        %v10342 = vpack.c.bf16 %v10295, %v10294
        %v10343 = vpack.c.bf16 %v10297, %v10296
        %v10344 = vpack.c.bf16 %v10299, %v10298
        %v10345 = vpack.c.bf16 %v10301, %v10300
        %v10346 = vpack.c.bf16 %v10303, %v10302
        %v10347 = vpack.c.bf16 %v10305, %v10304
        %v10348 = vpack.c.bf16 %v10307, %v10306
        %v10349 = vpack.c.bf16 %v10309, %v10308
        %v10350 = vpack.c.bf16 %v10311, %v10310
        %v10351 = vpack.c.bf16 %v10313, %v10312
        %v10352 = vpack.c.bf16 %v10315, %v10314
        %v10353 = vpack.c.bf16 %v10317, %v10316
        %v10354 = vpack.c.bf16 %v10319, %v10318
        %v10355 = vpack.c.bf16 %v10321, %v10320
        %v10356 = vpack.c.bf16 %v10323, %v10322
        %v10357 = vpack.c.bf16 %v10325, %v10324
        %v10358 = vpack.c.bf16 %v10326, %v10326
        %v10359 = vld [vmem:[%s4] sm:$0x1]
        %v10361 = vlaneseq
        %v10362 = vshrl.u32 %v10361, 7
        %v10363 = vsub.s32 0, %v10362
        %v10364 = vrot.slane %v10359, %v10363
        %vm10366 = vcmask 949248
        %v10368 = vsel %vm10366, %v10203, 0
        %v10371 = vsel %vm10366, %v10207, 0
        %v10374 = vsel %vm10366, %v10211, 0
        %v10377 = vsel %vm10366, %v10215, 0
        %v10380 = vsel %vm10366, %v10219, 0
        %v10383 = vsel %vm10366, %v10223, 0
        %v10386 = vsel %vm10366, %v10227, 0
        %v10389 = vsel %vm10366, %v10231, 0
        %v10392 = vsel %vm10366, %v10235, 0
        %v10395 = vsel %vm10366, %v10239, 0
        %v10398 = vsel %vm10366, %v10243, 0
        %v10401 = vsel %vm10366, %v10247, 0
        %v10404 = vsel %vm10366, %v10251, 0
        %v10407 = vsel %vm10366, %v10255, 0
        %v10410 = vsel %vm10366, %v10259, 0
        %v10413 = vsel %vm10366, %v10263, 0
        %v10416 = vsel %vm5101, %v10358, 0
        %10418 = vmatprep.subr.bf16.mxu0 0
        %10419 = vmatpush1.bf16.msra.mxu0 %v10334
        %10420 = vmatprep.subr.bf16.mxu0 0
        %10421 = vmatpush1.bf16.msra.mxu0 %v10333
        %10422 = vmatprep.subr.bf16.mxu0 0
        %10423 = vmatpush1.bf16.msra.mxu0 %v10332
        %10424 = vmatprep.subr.bf16.mxu0 0
        %10425 = vmatpush1.bf16.msra.mxu0 %v10331
        %10426 = vmatprep.subr.bf16.mxu0 0
        %10427 = vmatpush1.bf16.msra.mxu0 %v10330
        %10428 = vmatprep.subr.bf16.mxu0 0
        %10429 = vmatpush1.bf16.msra.mxu0 %v10329
        %10430 = vmatprep.subr.bf16.mxu0 0
        %10431 = vmatpush1.bf16.msra.mxu0 %v10328
        %10432 = vmatprep.subr.bf16.mxu0 0
        %10433 = vmatpush1.bf16.msra.mxu0 %v10327
        %10434 = vmatprep.subr.bf16.mxu0 0
        %10435 = vmatpush2.bf16.msra.mxu0 %v10342
        %10436 = vmatprep.subr.bf16.mxu0 0
        %10437 = vmatpush2.bf16.msra.mxu0 %v10341
        %10438 = vmatprep.subr.bf16.mxu0 0
        %10439 = vmatpush2.bf16.msra.mxu0 %v10340
        %10440 = vmatprep.subr.bf16.mxu0 0
        %10441 = vmatpush2.bf16.msra.mxu0 %v10339
        %10442 = vmatprep.subr.bf16.mxu0 0
        %10443 = vmatpush2.bf16.msra.mxu0 %v10338
        %10444 = vmatprep.subr.bf16.mxu0 0
        %10445 = vmatpush2.bf16.msra.mxu0 %v10337
        %10446 = vmatprep.subr.bf16.mxu0 0
        %10447 = vmatpush2.bf16.msra.mxu0 %v10336
        %10448 = vmatprep.subr.bf16.mxu0 0
        %10449 = vmatpush2.bf16.msra.mxu0 %v10335
        %10450 = vmatprep.mubr.bf16.mxu0 %v10201
        %10451 = vmatmul.mubr.bf16.gmra.mxu0 %v10200
        %v10452 = vpop.f32.mrf.mxu0
        %v10453 = vadd.f32 %v10364, %v10452
        %v10454 = vpop.f32.mrf.mxu0
        %v10455 = vpop.f32.mrf.mxu0
        %v10456 = vadd.f32 %v10364, %v10455
        %v10457 = vpop.f32.mrf.mxu0
        %10458 = vmatprep.mubr.bf16.mxu0 %v10205
        %10459 = vmatmul.mubr.bf16.gmra.mxu0 %v10204
        %v10460 = vpop.f32.mrf.mxu0
        %v10461 = vadd.f32 %v10364, %v10460
        %v10462 = vpop.f32.mrf.mxu0
        %v10463 = vpop.f32.mrf.mxu0
        %v10464 = vadd.f32 %v10364, %v10463
        %v10465 = vpop.f32.mrf.mxu0
        %10466 = vmatprep.mubr.bf16.mxu0 %v10209
        %10467 = vmatmul.mubr.bf16.gmra.mxu0 %v10208
        %v10468 = vpop.f32.mrf.mxu0
        %v10469 = vadd.f32 %v10364, %v10468
        %v10470 = vpop.f32.mrf.mxu0
        %v10471 = vpop.f32.mrf.mxu0
        %v10472 = vadd.f32 %v10364, %v10471
        %v10473 = vpop.f32.mrf.mxu0
        %10474 = vmatprep.mubr.bf16.mxu0 %v10213
        %10475 = vmatmul.mubr.bf16.gmra.mxu0 %v10212
        %v10476 = vpop.f32.mrf.mxu0
        %v10477 = vadd.f32 %v10364, %v10476
        %v10478 = vpop.f32.mrf.mxu0
        %v10479 = vpop.f32.mrf.mxu0
        %v10480 = vadd.f32 %v10364, %v10479
        %v10481 = vpop.f32.mrf.mxu0
        %10482 = vmatprep.mubr.bf16.mxu0 %v10217
        %10483 = vmatmul.mubr.bf16.gmra.mxu0 %v10216
        %v10484 = vpop.f32.mrf.mxu0
        %v10485 = vadd.f32 %v10364, %v10484
        %v10486 = vpop.f32.mrf.mxu0
        %v10487 = vpop.f32.mrf.mxu0
        %v10488 = vadd.f32 %v10364, %v10487
        %v10489 = vpop.f32.mrf.mxu0
        %10490 = vmatprep.mubr.bf16.mxu0 %v10221
        %10491 = vmatmul.mubr.bf16.gmra.mxu0 %v10220
        %v10492 = vpop.f32.mrf.mxu0
        %v10493 = vadd.f32 %v10364, %v10492
        %v10494 = vpop.f32.mrf.mxu0
        %v10495 = vpop.f32.mrf.mxu0
        %v10496 = vadd.f32 %v10364, %v10495
        %v10497 = vpop.f32.mrf.mxu0
        %10498 = vmatprep.mubr.bf16.mxu0 %v10225
        %10499 = vmatmul.mubr.bf16.gmra.mxu0 %v10224
        %v10500 = vpop.f32.mrf.mxu0
        %v10501 = vadd.f32 %v10364, %v10500
        %v10502 = vpop.f32.mrf.mxu0
        %v10503 = vpop.f32.mrf.mxu0
        %v10504 = vadd.f32 %v10364, %v10503
        %v10505 = vpop.f32.mrf.mxu0
        %10506 = vmatprep.mubr.bf16.mxu0 %v10229
        %10507 = vmatmul.mubr.bf16.gmra.mxu0 %v10228
        %v10508 = vpop.f32.mrf.mxu0
        %v10509 = vadd.f32 %v10364, %v10508
        %v10510 = vpop.f32.mrf.mxu0
        %v10511 = vpop.f32.mrf.mxu0
        %v10512 = vadd.f32 %v10364, %v10511
        %v10513 = vpop.f32.mrf.mxu0
        %10514 = vmatprep.mubr.bf16.mxu0 %v10233
        %10515 = vmatmul.mubr.bf16.gmra.mxu0 %v10232
        %v10516 = vpop.f32.mrf.mxu0
        %v10517 = vadd.f32 %v10364, %v10516
        %v10518 = vpop.f32.mrf.mxu0
        %v10519 = vpop.f32.mrf.mxu0
        %v10520 = vadd.f32 %v10364, %v10519
        %v10521 = vpop.f32.mrf.mxu0
        %10522 = vmatprep.mubr.bf16.mxu0 %v10237
        %10523 = vmatmul.mubr.bf16.gmra.mxu0 %v10236
        %v10524 = vpop.f32.mrf.mxu0
        %v10525 = vadd.f32 %v10364, %v10524
        %v10526 = vpop.f32.mrf.mxu0
        %v10527 = vpop.f32.mrf.mxu0
        %v10528 = vadd.f32 %v10364, %v10527
        %v10529 = vpop.f32.mrf.mxu0
        %10530 = vmatprep.mubr.bf16.mxu0 %v10241
        %10531 = vmatmul.mubr.bf16.gmra.mxu0 %v10240
        %v10532 = vpop.f32.mrf.mxu0
        %v10533 = vadd.f32 %v10364, %v10532
        %v10534 = vpop.f32.mrf.mxu0
        %v10535 = vpop.f32.mrf.mxu0
        %v10536 = vadd.f32 %v10364, %v10535
        %v10537 = vpop.f32.mrf.mxu0
        %10538 = vmatprep.mubr.bf16.mxu0 %v10245
        %10539 = vmatmul.mubr.bf16.gmra.mxu0 %v10244
        %v10540 = vpop.f32.mrf.mxu0
        %v10541 = vadd.f32 %v10364, %v10540
        %v10542 = vpop.f32.mrf.mxu0
        %v10543 = vpop.f32.mrf.mxu0
        %v10544 = vadd.f32 %v10364, %v10543
        %v10545 = vpop.f32.mrf.mxu0
        %10546 = vmatprep.mubr.bf16.mxu0 %v10249
        %10547 = vmatmul.mubr.bf16.gmra.mxu0 %v10248
        %v10548 = vpop.f32.mrf.mxu0
        %v10549 = vadd.f32 %v10364, %v10548
        %v10550 = vpop.f32.mrf.mxu0
        %v10551 = vpop.f32.mrf.mxu0
        %v10552 = vadd.f32 %v10364, %v10551
        %v10553 = vpop.f32.mrf.mxu0
        %10554 = vmatprep.mubr.bf16.mxu0 %v10253
        %10555 = vmatmul.mubr.bf16.gmra.mxu0 %v10252
        %v10556 = vpop.f32.mrf.mxu0
        %v10557 = vadd.f32 %v10364, %v10556
        %v10558 = vpop.f32.mrf.mxu0
        %v10559 = vpop.f32.mrf.mxu0
        %v10560 = vadd.f32 %v10364, %v10559
        %v10561 = vpop.f32.mrf.mxu0
        %10562 = vmatprep.mubr.bf16.mxu0 %v10257
        %10563 = vmatmul.mubr.bf16.gmra.mxu0 %v10256
        %v10564 = vpop.f32.mrf.mxu0
        %v10565 = vadd.f32 %v10364, %v10564
        %v10566 = vpop.f32.mrf.mxu0
        %v10567 = vpop.f32.mrf.mxu0
        %v10568 = vadd.f32 %v10364, %v10567
        %v10569 = vpop.f32.mrf.mxu0
        %10570 = vmatprep.mubr.bf16.mxu0 %v10261
        %10571 = vmatmul.mubr.bf16.gmra.mxu0 %v10260
        %v10572 = vpop.f32.mrf.mxu0
        %v10573 = vadd.f32 %v10364, %v10572
        %v10574 = vpop.f32.mrf.mxu0
        %v10575 = vpop.f32.mrf.mxu0
        %v10576 = vadd.f32 %v10364, %v10575
        %v10577 = vpop.f32.mrf.mxu0
        %10578 = vdwg.mxu0
        %10579 = vmatprep.subr.bf16.mxu0 0
        %10580 = vmatpush1.bf16.msra.mxu0 %v10350
        %10581 = vmatprep.subr.bf16.mxu0 0
        %10582 = vmatpush1.bf16.msra.mxu0 %v10349
        %10583 = vmatprep.subr.bf16.mxu0 0
        %10584 = vmatpush1.bf16.msra.mxu0 %v10348
        %10585 = vmatprep.subr.bf16.mxu0 0
        %10586 = vmatpush1.bf16.msra.mxu0 %v10347
        %10587 = vmatprep.subr.bf16.mxu0 0
        %10588 = vmatpush1.bf16.msra.mxu0 %v10346
        %10589 = vmatprep.subr.bf16.mxu0 0
        %10590 = vmatpush1.bf16.msra.mxu0 %v10345
        %10591 = vmatprep.subr.bf16.mxu0 0
        %10592 = vmatpush1.bf16.msra.mxu0 %v10344
        %10593 = vmatprep.subr.bf16.mxu0 0
        %10594 = vmatpush1.bf16.msra.mxu0 %v10343
        %10595 = vmatprep.subr.bf16.mxu0 0
        %10596 = vmatpush2.bf16.msra.mxu0 %v10416
        %10597 = vmatprep.subr.bf16.mxu0 0
        %10598 = vmatpush2.bf16.msra.mxu0 %v10357
        %10599 = vmatprep.subr.bf16.mxu0 0
        %10600 = vmatpush2.bf16.msra.mxu0 %v10356
        %10601 = vmatprep.subr.bf16.mxu0 0
        %10602 = vmatpush2.bf16.msra.mxu0 %v10355
        %10603 = vmatprep.subr.bf16.mxu0 0
        %10604 = vmatpush2.bf16.msra.mxu0 %v10354
        %10605 = vmatprep.subr.bf16.mxu0 0
        %10606 = vmatpush2.bf16.msra.mxu0 %v10353
        %10607 = vmatprep.subr.bf16.mxu0 0
        %10608 = vmatpush2.bf16.msra.mxu0 %v10352
        %10609 = vmatprep.subr.bf16.mxu0 0
        %10610 = vmatpush2.bf16.msra.mxu0 %v10351
        %10611 = vmatprep.mubr.bf16.mxu0 %v10368
        %10612 = vmatmul.mubr.bf16.gmra.mxu0 %v10202
        %v10613 = vpop.f32.mrf.mxu0
        %v10614 = vadd.f32 %v10453, %v10613
        %v10615 = vpop.f32.mrf.mxu0
        %v10616 = vpop.f32.mrf.mxu0
        %v10617 = vadd.f32 %v10456, %v10616
        %v10618 = vpop.f32.mrf.mxu0
        %10619 = vmatprep.mubr.bf16.mxu0 %v10371
        %10620 = vmatmul.mubr.bf16.gmra.mxu0 %v10206
        %v10621 = vpop.f32.mrf.mxu0
        %v10622 = vadd.f32 %v10461, %v10621
        %v10623 = vpop.f32.mrf.mxu0
        %v10624 = vpop.f32.mrf.mxu0
        %v10625 = vadd.f32 %v10464, %v10624
        %v10626 = vpop.f32.mrf.mxu0
        %10627 = vmatprep.mubr.bf16.mxu0 %v10374
        %10628 = vmatmul.mubr.bf16.gmra.mxu0 %v10210
        %v10629 = vpop.f32.mrf.mxu0
        %v10630 = vadd.f32 %v10469, %v10629
        %v10631 = vpop.f32.mrf.mxu0
        %v10632 = vpop.f32.mrf.mxu0
        %v10633 = vadd.f32 %v10472, %v10632
        %v10634 = vpop.f32.mrf.mxu0
        %10635 = vmatprep.mubr.bf16.mxu0 %v10377
        %10636 = vmatmul.mubr.bf16.gmra.mxu0 %v10214
        %v10637 = vpop.f32.mrf.mxu0
        %v10638 = vadd.f32 %v10477, %v10637
        %v10639 = vpop.f32.mrf.mxu0
        %v10640 = vpop.f32.mrf.mxu0
        %v10641 = vadd.f32 %v10480, %v10640
        %v10642 = vpop.f32.mrf.mxu0
        %10643 = vmatprep.mubr.bf16.mxu0 %v10380
        %10644 = vmatmul.mubr.bf16.gmra.mxu0 %v10218
        %v10645 = vpop.f32.mrf.mxu0
        %v10646 = vadd.f32 %v10485, %v10645
        %v10647 = vpop.f32.mrf.mxu0
        %v10648 = vpop.f32.mrf.mxu0
        %v10649 = vadd.f32 %v10488, %v10648
        %v10650 = vpop.f32.mrf.mxu0
        %10651 = vmatprep.mubr.bf16.mxu0 %v10383
        %10652 = vmatmul.mubr.bf16.gmra.mxu0 %v10222
        %v10653 = vpop.f32.mrf.mxu0
        %v10654 = vadd.f32 %v10493, %v10653
        %v10655 = vpop.f32.mrf.mxu0
        %v10656 = vpop.f32.mrf.mxu0
        %v10657 = vadd.f32 %v10496, %v10656
        %v10658 = vpop.f32.mrf.mxu0
        %10659 = vmatprep.mubr.bf16.mxu0 %v10386
        %10660 = vmatmul.mubr.bf16.gmra.mxu0 %v10226
        %v10661 = vpop.f32.mrf.mxu0
        %v10662 = vadd.f32 %v10501, %v10661
        %v10663 = vpop.f32.mrf.mxu0
        %v10664 = vpop.f32.mrf.mxu0
        %v10665 = vadd.f32 %v10504, %v10664
        %v10666 = vpop.f32.mrf.mxu0
        %10667 = vmatprep.mubr.bf16.mxu0 %v10389
        %10668 = vmatmul.mubr.bf16.gmra.mxu0 %v10230
        %v10669 = vpop.f32.mrf.mxu0
        %v10670 = vadd.f32 %v10509, %v10669
        %v10671 = vpop.f32.mrf.mxu0
        %v10672 = vpop.f32.mrf.mxu0
        %v10673 = vadd.f32 %v10512, %v10672
        %v10674 = vpop.f32.mrf.mxu0
        %10675 = vmatprep.mubr.bf16.mxu0 %v10392
        %10676 = vmatmul.mubr.bf16.gmra.mxu0 %v10234
        %v10677 = vpop.f32.mrf.mxu0
        %v10678 = vadd.f32 %v10517, %v10677
        %v10679 = vpop.f32.mrf.mxu0
        %v10680 = vpop.f32.mrf.mxu0
        %v10681 = vadd.f32 %v10520, %v10680
        %v10682 = vpop.f32.mrf.mxu0
        %10683 = vmatprep.mubr.bf16.mxu0 %v10395
        %10684 = vmatmul.mubr.bf16.gmra.mxu0 %v10238
        %v10685 = vpop.f32.mrf.mxu0
        %v10686 = vadd.f32 %v10525, %v10685
        %v10687 = vpop.f32.mrf.mxu0
        %v10688 = vpop.f32.mrf.mxu0
        %v10689 = vadd.f32 %v10528, %v10688
        %v10690 = vpop.f32.mrf.mxu0
        %10691 = vmatprep.mubr.bf16.mxu0 %v10398
        %10692 = vmatmul.mubr.bf16.gmra.mxu0 %v10242
        %v10693 = vpop.f32.mrf.mxu0
        %v10694 = vadd.f32 %v10533, %v10693
        %v10695 = vpop.f32.mrf.mxu0
        %v10696 = vpop.f32.mrf.mxu0
        %v10697 = vadd.f32 %v10536, %v10696
        %v10698 = vpop.f32.mrf.mxu0
        %10699 = vmatprep.mubr.bf16.mxu0 %v10401
        %10700 = vmatmul.mubr.bf16.gmra.mxu0 %v10246
        %v10701 = vpop.f32.mrf.mxu0
        %v10702 = vadd.f32 %v10541, %v10701
        %v10703 = vpop.f32.mrf.mxu0
        %v10704 = vpop.f32.mrf.mxu0
        %v10705 = vadd.f32 %v10544, %v10704
        %v10706 = vpop.f32.mrf.mxu0
        %10707 = vmatprep.mubr.bf16.mxu0 %v10404
        %10708 = vmatmul.mubr.bf16.gmra.mxu0 %v10250
        %v10709 = vpop.f32.mrf.mxu0
        %v10710 = vadd.f32 %v10549, %v10709
        %v10711 = vpop.f32.mrf.mxu0
        %v10712 = vpop.f32.mrf.mxu0
        %v10713 = vadd.f32 %v10552, %v10712
        %v10714 = vpop.f32.mrf.mxu0
        %10715 = vmatprep.mubr.bf16.mxu0 %v10407
        %10716 = vmatmul.mubr.bf16.gmra.mxu0 %v10254
        %v10717 = vpop.f32.mrf.mxu0
        %v10718 = vadd.f32 %v10557, %v10717
        %v10719 = vpop.f32.mrf.mxu0
        %v10720 = vpop.f32.mrf.mxu0
        %v10721 = vadd.f32 %v10560, %v10720
        %v10722 = vpop.f32.mrf.mxu0
        %10723 = vmatprep.mubr.bf16.mxu0 %v10410
        %10724 = vmatmul.mubr.bf16.gmra.mxu0 %v10258
        %v10725 = vpop.f32.mrf.mxu0
        %v10726 = vadd.f32 %v10565, %v10725
        %v10727 = vpop.f32.mrf.mxu0
        %v10728 = vpop.f32.mrf.mxu0
        %v10729 = vadd.f32 %v10568, %v10728
        %v10730 = vpop.f32.mrf.mxu0
        %10731 = vmatprep.mubr.bf16.mxu0 %v10413
        %10732 = vmatmul.mubr.bf16.gmra.mxu0 %v10262
        %v10733 = vpop.f32.mrf.mxu0
        %v10734 = vadd.f32 %v10573, %v10733
        %v10735 = vpop.f32.mrf.mxu0
        %v10736 = vpop.f32.mrf.mxu0
        %v10737 = vadd.f32 %v10576, %v10736
        %v10738 = vpop.f32.mrf.mxu0
        %10739 = vdwg.mxu0
        %v10740 = vmax.f32 %v10614, 0.0
        %v10741 = vmax.f32 %v10617, 0.0
        %v10742 = vmax.f32 %v10622, 0.0
        %v10743 = vmax.f32 %v10625, 0.0
        %v10744 = vmax.f32 %v10630, 0.0
        %v10745 = vmax.f32 %v10633, 0.0
        %v10746 = vmax.f32 %v10638, 0.0
        %v10747 = vmax.f32 %v10641, 0.0
        %v10748 = vmax.f32 %v10646, 0.0
        %v10749 = vmax.f32 %v10649, 0.0
        %v10750 = vmax.f32 %v10654, 0.0
        %v10751 = vmax.f32 %v10657, 0.0
        %v10752 = vmax.f32 %v10662, 0.0
        %v10753 = vmax.f32 %v10665, 0.0
        %v10754 = vmax.f32 %v10670, 0.0
        %v10755 = vmax.f32 %v10673, 0.0
        %v10756 = vmax.f32 %v10678, 0.0
        %v10757 = vmax.f32 %v10681, 0.0
        %v10758 = vmax.f32 %v10686, 0.0
        %v10759 = vmax.f32 %v10689, 0.0
        %v10760 = vmax.f32 %v10694, 0.0
        %v10761 = vmax.f32 %v10697, 0.0
        %v10762 = vmax.f32 %v10702, 0.0
        %v10763 = vmax.f32 %v10705, 0.0
        %v10764 = vmax.f32 %v10710, 0.0
        %v10765 = vmax.f32 %v10713, 0.0
        %v10766 = vmax.f32 %v10718, 0.0
        %v10767 = vmax.f32 %v10721, 0.0
        %v10768 = vmax.f32 %v10726, 0.0
        %v10769 = vmax.f32 %v10729, 0.0
        %v10770 = vmax.f32 %v10734, 0.0
        %v10771 = vmax.f32 %v10737, 0.0
        %10772 = vst [vmem:[%s217] sm:$0xff] %v10740
        %10773 = vst [vmem:[%s217 + $0x8] sm:$0xff] %v10741
        %10774 = vst [vmem:[%s217 + $0x10] sm:$0xff] %v10742
        %10775 = vst [vmem:[%s217 + $0x18] sm:$0xff] %v10743
        %10776 = vst [vmem:[%s217 + $0x20] sm:$0xff] %v10744
        %10777 = vst [vmem:[%s217 + $0x28] sm:$0xff] %v10745
        %10778 = vst [vmem:[%s217 + $0x30] sm:$0xff] %v10746
        %10779 = vst [vmem:[%s217 + $0x38] sm:$0xff] %v10747
        %10780 = vst [vmem:[%s217 + $0x40] sm:$0xff] %v10748
        %10781 = vst [vmem:[%s217 + $0x48] sm:$0xff] %v10749
        %10782 = vst [vmem:[%s217 + $0x50] sm:$0xff] %v10750
        %10783 = vst [vmem:[%s217 + $0x58] sm:$0xff] %v10751
        %10784 = vst [vmem:[%s217 + $0x60] sm:$0xff] %v10752
        %10785 = vst [vmem:[%s217 + $0x68] sm:$0xff] %v10753
        %10786 = vst [vmem:[%s217 + $0x70] sm:$0xff] %v10754
        %10787 = vst [vmem:[%s217 + $0x78] sm:$0xff] %v10755
        %10788 = vst [vmem:[%s217 + $0x80] sm:$0xff] %v10756
        %10789 = vst [vmem:[%s217 + $0x88] sm:$0xff] %v10757
        %10790 = vst [vmem:[%s217 + $0x90] sm:$0xff] %v10758
        %10791 = vst [vmem:[%s217 + $0x98] sm:$0xff] %v10759
        %10792 = vst [vmem:[%s217 + $0xa0] sm:$0xff] %v10760
        %10793 = vst [vmem:[%s217 + $0xa8] sm:$0xff] %v10761
        %10794 = vst [vmem:[%s217 + $0xb0] sm:$0xff] %v10762
        %10795 = vst [vmem:[%s217 + $0xb8] sm:$0xff] %v10763
        %10796 = vst [vmem:[%s217 + $0xc0] sm:$0xff] %v10764
        %10797 = vst [vmem:[%s217 + $0xc8] sm:$0xff] %v10765
        %10798 = vst [vmem:[%s217 + $0xd0] sm:$0xff] %v10766
        %10799 = vst [vmem:[%s217 + $0xd8] sm:$0xff] %v10767
        %10800 = vst [vmem:[%s217 + $0xe0] sm:$0xff] %v10768
        %10801 = vst [vmem:[%s217 + $0xe8] sm:$0xff] %v10769
        %10802 = vst [vmem:[%s217 + $0xf0] sm:$0xff] %v10770
        %10803 = vst [vmem:[%s217 + $0xf8] sm:$0xff] %v10771
        %s10804 = sand.u32 %s137, 1
        %s10805 = scalar_lea.sflag [#allocation5], %s10804
        %s10806 = sand.u32 %s137, 1
        %s10807 = smul.addr %s10806, 256
        %s10808 = scalar_lea.vmem [#allocation4], %s10807
        // Predicated region
        $region41: #{base_encoder_pallas.1} parent=39 // pred_check
          %p10809 = pneg %p147
        $region42: #{base_encoder_pallas.1} parent=39 // pred_check_branch
          %10811 = sbr.rel (%p10809) target = $region44
        $region43: #{base_encoder_pallas.1} parent=39 // pred_region
          %s10813 = ssub.s32 4096, 4096
          %10814 = vsyncadd %s10805, %s10813
          %s10815 = smul.addr %s19, 32
          %s10816 = smul.addr %s10815, 128
          %s10817 = scalar_lea.hbm %s5, %s10816
          %s10818 = sshll.u32 %s10808, 4
          %s10819 = int_to_ptr.vmem [resolvable:$true] %s10818
          %10824 = dma.vmem_to_hbm [thread:$0]  %s10819, 4096, %s10817, %s10805, 128, 128, 8
        $region44: #{base_encoder_pallas.1} parent=39 // pred_fallthru
          _
      $region40: #{base_encoder_pallas.1} parent=5 // pred_fallthru
        _
      %p10825 = scmp.le.s32.totalorder 2, %s14
      // Predicated region
      $region45: #{base_encoder_pallas.1} parent=5 // pred_check
        %p10826 = pneg %p10825
      $region46: #{base_encoder_pallas.1} parent=5 // pred_check_branch
        %10828 = sbr.rel (%p10826) target = $region48
      $region47: #{base_encoder_pallas.1} parent=5 // pred_region
        %s10829 = ssub.s32 %s14, 2
        // Predicated region
        $region49: #{base_encoder_pallas.1} parent=47 // pred_check
          %p10830 = pneg %p153
        $region50: #{base_encoder_pallas.1} parent=47 // pred_check_branch
          %10832 = sbr.rel (%p10830) target = $region52
        $region51: #{base_encoder_pallas.1} parent=47 // pred_region
          %s10833 = sand.u32 %s138, 1
          %s10834 = scalar_lea.sflag [#allocation5], %s10833
          %s10835 = sand.u32 %s138, 1
          %s10836 = smul.addr %s10835, 256
          %s10837 = scalar_lea.vmem [#allocation4], %s10836
          %10838 = dma.done %s10834, 4096
        $region52: #{base_encoder_pallas.1} parent=47 // pred_fallthru
          _
      $region48: #{base_encoder_pallas.1} parent=5 // pred_fallthru
        _
    $region6: #{base_encoder_pallas.1} parent=1 // loop_footer
      %s18 = sadd.s32 1, %s14
    $region7: #{base_encoder_pallas.1} parent=1 // loop_footer_branch
      %13 = sbr.rel target = $region3
    $region8: #{base_encoder_pallas.1} parent=1 // loop_exit
      _
    %10839 = vsyncpa [#allocation5], 1
    %s10840 = scalar_lea.sflag [#allocation5], 1
    %10841 = vsyncpa %s10840, 1

</llo_original>
